<compile_context>
chip_gen: v5e
topology: v5e:2x2
jax: 0.10.0
libtpu: 0.0.40
codegen_flags: <defaults>
</compile_context>

<pallas_src>
import jax
import jax.numpy as jnp
from jax.experimental import pallas as pl
from jax.experimental.pallas import tpu as pltpu


# ----------------------------- Pallas kernel --------------------------------
def gated_gcn_net_kernel(
    h0_ref,       # [N, Gb*A]          lane-packed one-hot atom types (f32)
    e0_ref,       # [N, N, Gb*B]       lane-packed one-hot bond types (f32)
    adj_ref,      # [N, N, Gb*H]       edge mask, pre-expanded over H (f32)
    snn_ref,      # [1, Gb*H]          per-graph snorm_n, repeated over H (f32)
    sne_ref,      # [1, Gb*H]          per-graph snorm_e, repeated over H (f32)
    wemb_h_ref,   # [Gb*A, Gb*H]       block-diag, f32
    wemb_e_ref,   # [Gb*B, Gb*H]       block-diag, f32
    wnode_ref,    # [L, Gb*H, 5*Gb*H]  block-diag bf16, fused [Wa|Wb|Wd|We|Wg_hin]
    bnode_ref,    # [L, 1, 5*Gb*H]     f32, fused biases (gate block = 0)
    wc_ref,       # [L, Gb*H, Gb*H]    block-diag bf16
    bc_ref,       # [L, 1, Gb*H]       f32
    bnh_ref,      # [L, 2, 1, Gb*H]    f32, folded BN (scale, shift) for h
    bne_ref,      # [L, 2, 1, Gb*H]    f32, folded BN (scale, shift) for e
    wg1_ref,      # [L, Gb*H, Gb*H]    block-diag bf16, gate weight for h_new half
    wro_ref,      # [Gb*H, Gb*O]       block-diag bf16
    wpred_ref,    # [Gb*O, Gb]         block-structured f32
    bpred_ref,    # [1, Gb]            f32
    out_ref,      # [1, Gb]            graph-level scores (lane-dense)
):
    f32 = jnp.float32
    bf16 = jnp.bfloat16
    N = h0_ref.shape[0]
    GbB = e0_ref.shape[-1]
    GbH = wc_ref.shape[-1]
    L = wnode_ref.shape[0]

    # ---- input embeddings (one-hot inputs, tiny K; keep f32 for fidelity) --
    h = jnp.dot(h0_ref[...], wemb_h_ref[...], preferred_element_type=f32)          # [N, GbH]
    e = jnp.dot(e0_ref[...].reshape(N * N, GbB), wemb_e_ref[...],
                preferred_element_type=f32).reshape(N, N, GbH)                     # [N, N, GbH]

    adj3 = adj_ref[...]       # [N, N, GbH]  pre-expanded mask (hoisted; DMA'd once per step)
    snn = snn_ref[...]        # [1, GbH]
    sne = sne_ref[...]        # [1, GbH]

    # ---- GatedGCN layers (statically unrolled; L is small) -----------------
    for l in range(L):
        h_in = h
        h_b = h.astype(bf16)

        # fused node projections [A|B|D|E|Wg_hin]: one [N,GbH] x [GbH,5*GbH] bf16 matmul
        proj = (jnp.dot(h_b, wnode_ref[l, :, :], preferred_element_type=f32)
                + bnode_ref[l, :, :])                                              # [N, 5*GbH]
        Ah = proj[:, 0 * GbH:1 * GbH]
        Bh = proj[:, 1 * GbH:2 * GbH]
        Dh = proj[:, 2 * GbH:3 * GbH]
        Eh = proj[:, 3 * GbH:4 * GbH]
        g_in = proj[:, 4 * GbH:5 * GbH]       # h_in half of the gate pre-activation (no bias)

        # edge projection (bf16 MXU input, f32 accumulate), full K = GbH = 128
        Ce = (jnp.dot(e.reshape(N * N, GbH).astype(bf16), wc_ref[l, :, :],
                      preferred_element_type=f32)
              + bc_ref[l, :, :]).reshape(N, N, GbH)

        # e_ij for edge (src j -> dst i)
        e_new = Dh[None, :, :] + Eh[:, None, :] + Ce                               # [N, N, GbH]
        sigma_m = jax.nn.sigmoid(e_new) * adj3                                     # mask non-edges
        num = jnp.sum(sigma_m * Bh[None, :, :], axis=1)                            # [N, GbH]
        den = jnp.sum(sigma_m, axis=1) + 1e-6
        h_new = Ah + num / den                                                     # mean aggregation

        # graph norm + BatchNorm(eval) folded into one scale/shift per stream
        h_scale = snn * bnh_ref[l, 0, :, :]                                        # [1, GbH]
        e_scale = (sne * bne_ref[l, 0, :, :]).reshape(1, 1, GbH)
        e_shift = bne_ref[l, 1, :, :].reshape(1, 1, GbH)
        h_new = h_new * h_scale + bnh_ref[l, 1, :, :]
        e_new = e_new * e_scale + e_shift

        # ReLU (dropout is identity in eval mode); carry edge stream in f32 for fidelity
        h_new = jnp.maximum(h_new, 0.0)
        e = jnp.maximum(e_new, 0.0)

        # gated residual: z = sigmoid([h_new, h_in] @ W_g); h_in half was fused above
        z = jax.nn.sigmoid(
            jnp.dot(h_new.astype(bf16), wg1_ref[l, :, :], preferred_element_type=f32)
            + g_in)
        h = z * h_new + (1.0 - z) * h_in

    # ---- readout + prediction (graphs stay packed in the lane dimension) ---
    h_ro = jnp.dot(h.astype(bf16), wro_ref[...], preferred_element_type=f32)       # [N, GbO]
    hg = jnp.mean(h_ro, axis=0, keepdims=True)                                     # [1, GbO]
    out_ref[...] = (jnp.dot(hg, wpred_ref[...], preferred_element_type=f32)
                    + bpred_ref[...])                                              # [1, Gb]


# ------------------------------- wrapper -------------------------------------
def gated_gcn_net(h0, e0, adj, snorm_n, snorm_e, params, graphs_per_step=4):
    """h0:[G,N,A] e0:[G,N,N,B] adj:[G,N,N] snorm_n/snorm_e:[G] per-graph scalars."""
    G, N, A = h0.shape
    B = e0.shape[-1]
    gb = graphs_per_step
    assert G % gb == 0, "G must be a multiple of graphs_per_step"
    S = G // gb
    H = params["W_c"].shape[-1] // gb
    gbH = gb * H

    # ---- host-side layout plumbing: pack the graph block into the lane dim ----
    h0_p = h0.reshape(S, gb, N, A).transpose(0, 2, 1, 3).reshape(S, N, gb * A)
    e0_p = e0.reshape(S, gb, N, N, B).transpose(0, 2, 3, 1, 4).reshape(S, N, N, gb * B)
    adj_p = jnp.repeat(adj.reshape(S, gb, N, N).transpose(0, 2, 3, 1), H, axis=-1)  # [S,N,N,gbH]
    snn_p = jnp.repeat(snorm_n.reshape(S, gb), H, axis=-1).reshape(S, 1, gbH)
    sne_p = jnp.repeat(snorm_e.reshape(S, gb), H, axis=-1).reshape(S, 1, gbH)

    args = (
        h0_p, e0_p, adj_p, snn_p, sne_p,
        params["W_emb_h"], params["W_emb_e"],
        params["W_node"], params["b_node"],
        params["W_c"], params["b_c"],
        params["bn_h"], params["bn_e"],
        params["W_g1"],
        params["W_ro"], params["W_pred"], params["b_pred"],
    )

    def per_step(x):
        nd = x.ndim
        return pl.BlockSpec((None,) + tuple(x.shape[1:]),
                            lambda s, nd=nd: (s,) + (0,) * (nd - 1))

    def shared(x):
        # Weights never change across grid steps (constant index map -> single DMA).
        nd = x.ndim
        return pl.BlockSpec(tuple(x.shape), lambda s, nd=nd: (0,) * nd)

    in_specs = [per_step(a) for a in args[:5]] + [shared(a) for a in args[5:]]

    out = pl.pallas_call(
        gated_gcn_net_kernel,
        out_shape=jax.ShapeDtypeStruct((S, 1, gb), jnp.float32),
        grid_spec=pltpu.PrefetchScalarGridSpec(
            num_scalar_prefetch=0,
            grid=(S,),
            in_specs=in_specs,
            out_specs=pl.BlockSpec((None, 1, gb), lambda s: (s, 0, 0)),
        ),
        compiler_params=pltpu.CompilerParams(
            dimension_semantics=("parallel",),   # independent steps -> megacore on v7x
            vmem_limit_bytes=32 * 1024 * 1024,   # ample for ~2 MiB working set, safe on all gens
        ),
    )(*args)
    return out.reshape(G, 1)


# ------------------------------- params --------------------------------------
def init_raw_params(key, num_atom_type, num_bond_type, hidden_dim, out_dim, n_layers):
    """Per-projection parameters mirroring the PyTorch module (posterior means)."""
    A, B, H, O, L = num_atom_type, num_bond_type, hidden_dim, out_dim, n_layers
    ks = jax.random.split(key, 16)
    s = 0.1

    def n(k, shape):
        return jax.random.normal(k, shape, jnp.float32) * s

    raw = {
        "W_emb_h": n(ks[0], (A, H)),
        "W_emb_e": n(ks[1], (B, H)),
        "W_A": n(ks[2], (L, H, H)), "W_B": n(ks[3], (L, H, H)),
        "W_C": n(ks[4], (L, H, H)), "W_D": n(ks[5], (L, H, H)),
        "W_E": n(ks[6], (L, H, H)),
        "b_A": n(ks[7], (L, H)), "b_B": n(ks[8], (L, H)),
        "b_C": n(ks[9], (L, H)), "b_D": n(ks[10], (L, H)),
        "b_E": n(ks[11], (L, H)),
        # BN (eval): gamma=1, beta=0, running_mean=0, running_var=1
        "bn_h_gamma": jnp.ones((L, H), jnp.float32), "bn_h_beta": jnp.zeros((L, H), jnp.float32),
        "bn_h_mean": jnp.zeros((L, H), jnp.float32), "bn_h_var": jnp.ones((L, H), jnp.float32),
        "bn_e_gamma": jnp.ones((L, H), jnp.float32), "bn_e_beta": jnp.zeros((L, H), jnp.float32),
        "bn_e_mean": jnp.zeros((L, H), jnp.float32), "bn_e_var": jnp.ones((L, H), jnp.float32),
        "W_g": n(ks[12], (L, 2 * H, H)),      # [0:H] -> h_new half, [H:2H] -> h_in half
        "W_ro": n(ks[13], (H, O)),
        "W_pred": n(ks[14], (1, O)),          # stored transposed
        "b_pred": n(ks[15], (1, 1)),
    }
    return raw


def _block_diag(w, gb):
    """[K,M] or [L,K,M] -> gb identical diagonal blocks: [gb*K, gb*M] / [L, gb*K, gb*M]."""
    eye = jnp.eye(gb, dtype=w.dtype)
    if w.ndim == 2:
        K, M = w.shape
        return jnp.einsum('ab,km->akbm', eye, w).reshape(gb * K, gb * M)
    L, K, M = w.shape
    return jnp.einsum('ab,lkm->lakbm', eye, w).reshape(L, gb * K, gb * M)


def _tile_rows(b, gb):
    """[L, H] -> [L, gb*H]: each graph block shares the same per-feature vector."""
    return jnp.tile(b, (1, gb))


def pack_params(raw, graphs_per_step, bn_eps=1e-5):
    """Block-diag expand over the graph block, fuse A/B/D/E/Wg_hin projections,
    fold BN (eval) into scale/shift, cast MXU weights to bf16."""
    gb = graphs_per_step
    bf16 = jnp.bfloat16
    f32 = jnp.float32
    L, H, _ = raw["W_A"].shape

    wg_hnew = raw["W_g"][:, :H, :]       # gate weight for h_new (post-layer) half
    wg_hin = raw["W_g"][:, H:, :]        # gate weight for h_in half -> fused into node matmul

    node_blocks = [raw["W_A"], raw["W_B"], raw["W_D"], raw["W_E"], wg_hin]
    W_node = jnp.concatenate([_block_diag(w, gb) for w in node_blocks], axis=-1)   # [L,gbH,5gbH]
    b_node = jnp.concatenate(
        [_tile_rows(raw["b_A"], gb), _tile_rows(raw["b_B"], gb),
         _tile_rows(raw["b_D"], gb), _tile_rows(raw["b_E"], gb),
         jnp.zeros((L, gb * H), f32)], axis=-1)[:, None, :]                        # [L,1,5gbH]

    def fold_bn(gamma, beta, mean, var):
        scale = gamma / jnp.sqrt(var + bn_eps)
        shift = beta - mean * scale
        return jnp.stack([_tile_rows(scale, gb), _tile_rows(shift, gb)],
                         axis=1)[:, :, None, :].astype(f32)                        # [L,2,1,gbH]

    return {
        "W_emb_h": _block_diag(raw["W_emb_h"], gb).astype(f32),
        "W_emb_e": _block_diag(raw["W_emb_e"], gb).astype(f32),
        "W_node": W_node.astype(bf16),
        "b_node": b_node.astype(f32),
        "W_c": _block_diag(raw["W_C"], gb).astype(bf16),
        "b_c": _tile_rows(raw["b_C"], gb)[:, None, :].astype(f32),
        "bn_h": fold_bn(raw["bn_h_gamma"], raw["bn_h_beta"], raw["bn_h_mean"], raw["bn_h_var"]),
        "bn_e": fold_bn(raw["bn_e_gamma"], raw["bn_e_beta"], raw["bn_e_mean"], raw["bn_e_var"]),
        "W_g1": _block_diag(wg_hnew, gb).astype(bf16),
        "W_ro": _block_diag(raw["W_ro"], gb).astype(bf16),
        "W_pred": _block_diag(raw["W_pred"].T, gb).astype(f32),     # [gb*O, gb]
        "b_pred": jnp.tile(raw["b_pred"], (1, gb)).astype(f32),     # [1, gb]
    }


# ------------------------------- setup ---------------------------------------
if __name__ == "__main__":
    # small synthetic molecule-like graphs; Gb graphs are lane-packed per grid step
    G = 8                  # total graphs
    Gb = 4                 # graphs per grid step (Gb*H = 128 lanes -> full vreg fill)
    N = 16                 # nodes per graph
    num_atom_type = 8
    num_bond_type = 4
    hidden_dim = 32
    out_dim = 32
    n_layers = 3

    key = jax.random.PRNGKey(0)
    k_atom, k_bond, k_adj, k_par = jax.random.split(key, 4)

    atom_ids = jax.random.randint(k_atom, (G, N), 0, num_atom_type)
    h0 = jax.nn.one_hot(atom_ids, num_atom_type, dtype=jnp.float32)               # [G, N, A]

    adj = (jax.random.uniform(k_adj, (G, N, N)) < 0.35).astype(jnp.float32)
    adj = jnp.maximum(adj, jnp.eye(N, dtype=jnp.float32)[None])                    # >=1 in-edge/node

    bond_ids = jax.random.randint(k_bond, (G, N, N), 0, num_bond_type)
    e0 = jax.nn.one_hot(bond_ids, num_bond_type, dtype=jnp.float32) * adj[..., None]   # [G,N,N,B]

    n_edges = jnp.sum(adj, axis=(1, 2))                                            # [G]
    snorm_n = jnp.full((G,), 1.0 / float(N) ** 0.5, jnp.float32)                   # per-graph scalar
    snorm_e = (1.0 / jnp.sqrt(n_edges)).astype(jnp.float32)                        # per-graph scalar

    raw = init_raw_params(k_par, num_atom_type, num_bond_type,
                          hidden_dim, out_dim, n_layers)
    params = pack_params(raw, graphs_per_step=Gb)

    scores = gated_gcn_net(h0, e0, adj, snorm_n, snorm_e, params,
                           graphs_per_step=Gb)                                     # [G, 1]
    jax.block_until_ready(scores)
    assert scores.shape == (G, 1)
    assert bool(jnp.all(jnp.isfinite(scores)))
    print("KERNEL_OK")
</pallas_src>

<mosaic_0001>
module attributes {stable_mosaic.version = 11 : i64} {
  func.func @gated_gcn_net_kernel(%arg0: i32, %arg1: memref<1x16x32xf32, #tpu.memory_space<vmem>>, %arg2: memref<1x16x16x16xf32, #tpu.memory_space<vmem>>, %arg3: memref<1x16x16x128xf32, #tpu.memory_space<vmem>>, %arg4: memref<1x1x128xf32, #tpu.memory_space<vmem>>, %arg5: memref<1x1x128xf32, #tpu.memory_space<vmem>>, %arg6: memref<32x128xf32, #tpu.memory_space<vmem>>, %arg7: memref<16x128xf32, #tpu.memory_space<vmem>>, %arg8: memref<3x128x640xbf16, #tpu.memory_space<vmem>>, %arg9: memref<3x1x640xf32, #tpu.memory_space<vmem>>, %arg10: memref<3x128x128xbf16, #tpu.memory_space<vmem>>, %arg11: memref<3x1x128xf32, #tpu.memory_space<vmem>>, %arg12: memref<3x2x1x128xf32, #tpu.memory_space<vmem>>, %arg13: memref<3x2x1x128xf32, #tpu.memory_space<vmem>>, %arg14: memref<3x128x128xbf16, #tpu.memory_space<vmem>>, %arg15: memref<128x128xbf16, #tpu.memory_space<vmem>>, %arg16: memref<128x4xf32, #tpu.memory_space<vmem>>, %arg17: memref<1x4xf32, #tpu.memory_space<vmem>>, %arg18: memref<1x1x4xf32, #tpu.memory_space<vmem>>) attributes {dimension_semantics = [#tpu.dimension_semantics<parallel>], iteration_bounds = array<i64: 2>, scalar_prefetch = 0 : i64, scratch_operands = 0 : i64, tpu.core_type = #tpu.core_type<tc>, window_params = [{transform_indices = @transform_0, window_bounds = array<i64: 1, 16, 32>}, {transform_indices = @transform_1, window_bounds = array<i64: 1, 16, 16, 16>}, {transform_indices = @transform_2, window_bounds = array<i64: 1, 16, 16, 128>}, {transform_indices = @transform_3, window_bounds = array<i64: 1, 1, 128>}, {transform_indices = @transform_4, window_bounds = array<i64: 1, 1, 128>}, {pipeline_mode = #tpu.pipeline_mode<synchronous>, transform_indices = @transform_5, window_bounds = array<i64: 32, 128>}, {pipeline_mode = #tpu.pipeline_mode<synchronous>, transform_indices = @transform_6, window_bounds = array<i64: 16, 128>}, {pipeline_mode = #tpu.pipeline_mode<synchronous>, transform_indices = @transform_7, window_bounds = array<i64: 3, 128, 640>}, {pipeline_mode = #tpu.pipeline_mode<synchronous>, transform_indices = @transform_8, window_bounds = array<i64: 3, 1, 640>}, {pipeline_mode = #tpu.pipeline_mode<synchronous>, transform_indices = @transform_9, window_bounds = array<i64: 3, 128, 128>}, {pipeline_mode = #tpu.pipeline_mode<synchronous>, transform_indices = @transform_10, window_bounds = array<i64: 3, 1, 128>}, {pipeline_mode = #tpu.pipeline_mode<synchronous>, transform_indices = @transform_11, window_bounds = array<i64: 3, 2, 1, 128>}, {pipeline_mode = #tpu.pipeline_mode<synchronous>, transform_indices = @transform_12, window_bounds = array<i64: 3, 2, 1, 128>}, {pipeline_mode = #tpu.pipeline_mode<synchronous>, transform_indices = @transform_13, window_bounds = array<i64: 3, 128, 128>}, {pipeline_mode = #tpu.pipeline_mode<synchronous>, transform_indices = @transform_14, window_bounds = array<i64: 128, 128>}, {pipeline_mode = #tpu.pipeline_mode<synchronous>, transform_indices = @transform_15, window_bounds = array<i64: 128, 4>}, {pipeline_mode = #tpu.pipeline_mode<synchronous>, transform_indices = @transform_16, window_bounds = array<i64: 1, 4>}, {transform_indices = @transform_17, window_bounds = array<i64: 1, 1, 4>}]} {
    %c0 = arith.constant 0 : index
    %c0_0 = arith.constant 0 : index
    %c0_1 = arith.constant 0 : index
    %0 = vector.load %arg1[%c0, %c0_0, %c0_1] : memref<1x16x32xf32, #tpu.memory_space<vmem>>, vector<1x16x32xf32>
    %1 = vector.shape_cast %0 : vector<1x16x32xf32> to vector<16x32xf32>
    %c0_2 = arith.constant 0 : index
    %c0_3 = arith.constant 0 : index
    %2 = vector.load %arg6[%c0_2, %c0_3] : memref<32x128xf32, #tpu.memory_space<vmem>>, vector<32x128xf32>
    %cst = arith.constant dense<0.000000e+00> : vector<16x128xf32>
    %3 = tpu.matmul %1, %2, %cst {dimension_numbers = #tpu.dot_dimension_numbers<[1], [0], [0], [1], [0, 0, 1, 1], [], []>} : vector<16x32xf32>, vector<32x128xf32>, vector<16x128xf32> -> vector<16x128xf32>
    %c0_4 = arith.constant 0 : index
    %c0_5 = arith.constant 0 : index
    %c0_6 = arith.constant 0 : index
    %c0_7 = arith.constant 0 : index
    %4 = vector.load %arg2[%c0_4, %c0_5, %c0_6, %c0_7] : memref<1x16x16x16xf32, #tpu.memory_space<vmem>>, vector<1x16x16x16xf32>
    %5 = vector.shape_cast %4 : vector<1x16x16x16xf32> to vector<16x16x16xf32>
    %6 = vector.shape_cast %5 : vector<16x16x16xf32> to vector<256x16xf32>
    %c0_8 = arith.constant 0 : index
    %c0_9 = arith.constant 0 : index
    %7 = vector.load %arg7[%c0_8, %c0_9] : memref<16x128xf32, #tpu.memory_space<vmem>>, vector<16x128xf32>
    %cst_10 = arith.constant dense<0.000000e+00> : vector<256x128xf32>
    %8 = tpu.matmul %6, %7, %cst_10 {dimension_numbers = #tpu.dot_dimension_numbers<[1], [0], [0], [1], [0, 0, 1, 1], [], []>} : vector<256x16xf32>, vector<16x128xf32>, vector<256x128xf32> -> vector<256x128xf32>
    %9 = vector.shape_cast %8 : vector<256x128xf32> to vector<16x16x128xf32>
    %c0_11 = arith.constant 0 : index
    %c0_12 = arith.constant 0 : index
    %c0_13 = arith.constant 0 : index
    %c0_14 = arith.constant 0 : index
    %10 = vector.load %arg3[%c0_11, %c0_12, %c0_13, %c0_14] : memref<1x16x16x128xf32, #tpu.memory_space<vmem>>, vector<1x16x16x128xf32>
    %11 = vector.shape_cast %10 : vector<1x16x16x128xf32> to vector<16x16x128xf32>
    %c0_15 = arith.constant 0 : index
    %c0_16 = arith.constant 0 : index
    %c0_17 = arith.constant 0 : index
    %12 = vector.load %arg4[%c0_15, %c0_16, %c0_17] : memref<1x1x128xf32, #tpu.memory_space<vmem>>, vector<1x1x128xf32>
    %13 = vector.shape_cast %12 : vector<1x1x128xf32> to vector<1x128xf32>
    %c0_18 = arith.constant 0 : index
    %c0_19 = arith.constant 0 : index
    %c0_20 = arith.constant 0 : index
    %14 = vector.load %arg5[%c0_18, %c0_19, %c0_20] : memref<1x1x128xf32, #tpu.memory_space<vmem>>, vector<1x1x128xf32>
    %15 = vector.shape_cast %14 : vector<1x1x128xf32> to vector<1x128xf32>
    %16 = arith.truncf %3 : vector<16x128xf32> to vector<16x128xbf16>
    %c0_21 = arith.constant 0 : index
    %c0_22 = arith.constant 0 : index
    %c0_23 = arith.constant 0 : index
    %17 = vector.load %arg8[%c0_21, %c0_22, %c0_23] : memref<3x128x640xbf16, #tpu.memory_space<vmem>>, vector<1x128x640xbf16>
    %18 = vector.shape_cast %17 : vector<1x128x640xbf16> to vector<128x640xbf16>
    %cst_24 = arith.constant dense<0.000000e+00> : vector<16x640xf32>
    %19 = tpu.matmul %16, %18, %cst_24 {dimension_numbers = #tpu.dot_dimension_numbers<[1], [0], [0], [1], [0, 0, 1, 1], [], []>} : vector<16x128xbf16>, vector<128x640xbf16>, vector<16x640xf32> -> vector<16x640xf32>
    %c0_25 = arith.constant 0 : index
    %c0_26 = arith.constant 0 : index
    %c0_27 = arith.constant 0 : index
    %20 = vector.load %arg9[%c0_25, %c0_26, %c0_27] : memref<3x1x640xf32, #tpu.memory_space<vmem>>, vector<1x1x640xf32>
    %21 = vector.shape_cast %20 : vector<1x1x640xf32> to vector<1x640xf32>
    %22 = vector.broadcast %21 : vector<1x640xf32> to vector<16x640xf32>
    %23 = arith.addf %19, %22 : vector<16x640xf32>
    %24 = vector.extract_strided_slice %23 {offsets = [0, 0], sizes = [16, 128], strides = [1, 1]} : vector<16x640xf32> to vector<16x128xf32>
    %25 = vector.extract_strided_slice %23 {offsets = [0, 128], sizes = [16, 128], strides = [1, 1]} : vector<16x640xf32> to vector<16x128xf32>
    %26 = vector.extract_strided_slice %23 {offsets = [0, 256], sizes = [16, 128], strides = [1, 1]} : vector<16x640xf32> to vector<16x128xf32>
    %27 = vector.extract_strided_slice %23 {offsets = [0, 384], sizes = [16, 128], strides = [1, 1]} : vector<16x640xf32> to vector<16x128xf32>
    %28 = vector.extract_strided_slice %23 {offsets = [0, 512], sizes = [16, 128], strides = [1, 1]} : vector<16x640xf32> to vector<16x128xf32>
    %29 = vector.shape_cast %9 : vector<16x16x128xf32> to vector<256x128xf32>
    %30 = arith.truncf %29 : vector<256x128xf32> to vector<256x128xbf16>
    %c0_28 = arith.constant 0 : index
    %c0_29 = arith.constant 0 : index
    %c0_30 = arith.constant 0 : index
    %31 = vector.load %arg10[%c0_28, %c0_29, %c0_30] : memref<3x128x128xbf16, #tpu.memory_space<vmem>>, vector<1x128x128xbf16>
    %32 = vector.shape_cast %31 : vector<1x128x128xbf16> to vector<128x128xbf16>
    %cst_31 = arith.constant dense<0.000000e+00> : vector<256x128xf32>
    %33 = tpu.matmul %30, %32, %cst_31 {dimension_numbers = #tpu.dot_dimension_numbers<[1], [0], [0], [1], [0, 0, 1, 1], [], []>} : vector<256x128xbf16>, vector<128x128xbf16>, vector<256x128xf32> -> vector<256x128xf32>
    %c0_32 = arith.constant 0 : index
    %c0_33 = arith.constant 0 : index
    %c0_34 = arith.constant 0 : index
    %34 = vector.load %arg11[%c0_32, %c0_33, %c0_34] : memref<3x1x128xf32, #tpu.memory_space<vmem>>, vector<1x1x128xf32>
    %35 = vector.shape_cast %34 : vector<1x1x128xf32> to vector<1x128xf32>
    %36 = vector.broadcast %35 : vector<1x128xf32> to vector<256x128xf32>
    %37 = arith.addf %33, %36 : vector<256x128xf32>
    %38 = vector.shape_cast %37 : vector<256x128xf32> to vector<16x16x128xf32>
    %39 = vector.shape_cast %26 : vector<16x128xf32> to vector<1x16x128xf32>
    %40 = vector.shape_cast %27 : vector<16x128xf32> to vector<16x1x128xf32>
    %41 = vector.broadcast %39 : vector<1x16x128xf32> to vector<16x16x128xf32>
    %42 = vector.broadcast %40 : vector<16x1x128xf32> to vector<16x16x128xf32>
    %43 = arith.addf %41, %42 : vector<16x16x128xf32>
    %44 = arith.addf %43, %38 : vector<16x16x128xf32>
    %45 = arith.negf %44 : vector<16x16x128xf32>
    %46 = math.exp %45 : vector<16x16x128xf32>
    %cst_35 = arith.constant 1.000000e+00 : f32
    %47 = vector.broadcast %cst_35 : f32 to vector<16x16x128xf32>
    %48 = arith.addf %47, %46 : vector<16x16x128xf32>
    %49 = arith.divf %47, %48 : vector<16x16x128xf32>
    %50 = arith.mulf %49, %11 : vector<16x16x128xf32>
    %51 = vector.shape_cast %25 : vector<16x128xf32> to vector<1x16x128xf32>
    %52 = vector.broadcast %51 : vector<1x16x128xf32> to vector<16x16x128xf32>
    %53 = arith.mulf %50, %52 : vector<16x16x128xf32>
    %cst_36 = arith.constant dense<0.000000e+00> : vector<16x128xf32>
    %54 = vector.multi_reduction <add>, %53, %cst_36 [1] : vector<16x16x128xf32> to vector<16x128xf32>
    %cst_37 = arith.constant dense<0.000000e+00> : vector<16x128xf32>
    %55 = vector.multi_reduction <add>, %50, %cst_37 [1] : vector<16x16x128xf32> to vector<16x128xf32>
    %cst_38 = arith.constant 9.99999997E-7 : f32
    %56 = vector.broadcast %cst_38 : f32 to vector<16x128xf32>
    %57 = arith.addf %55, %56 : vector<16x128xf32>
    %58 = arith.divf %54, %57 : vector<16x128xf32>
    %59 = arith.addf %24, %58 : vector<16x128xf32>
    %c0_39 = arith.constant 0 : index
    %c0_40 = arith.constant 0 : index
    %c0_41 = arith.constant 0 : index
    %c0_42 = arith.constant 0 : index
    %60 = vector.load %arg12[%c0_39, %c0_40, %c0_41, %c0_42] : memref<3x2x1x128xf32, #tpu.memory_space<vmem>>, vector<1x1x1x128xf32>
    %61 = vector.shape_cast %60 : vector<1x1x1x128xf32> to vector<1x128xf32>
    %62 = arith.mulf %13, %61 : vector<1x128xf32>
    %c0_43 = arith.constant 0 : index
    %c0_44 = arith.constant 0 : index
    %c0_45 = arith.constant 0 : index
    %c0_46 = arith.constant 0 : index
    %63 = vector.load %arg13[%c0_43, %c0_44, %c0_45, %c0_46] : memref<3x2x1x128xf32, #tpu.memory_space<vmem>>, vector<1x1x1x128xf32>
    %64 = vector.shape_cast %63 : vector<1x1x1x128xf32> to vector<1x128xf32>
    %65 = arith.mulf %15, %64 : vector<1x128xf32>
    %66 = vector.shape_cast %65 : vector<1x128xf32> to vector<1x1x128xf32>
    %c0_47 = arith.constant 0 : index
    %c1 = arith.constant 1 : index
    %c0_48 = arith.constant 0 : index
    %c0_49 = arith.constant 0 : index
    %67 = vector.load %arg13[%c0_47, %c1, %c0_48, %c0_49] : memref<3x2x1x128xf32, #tpu.memory_space<vmem>>, vector<1x1x1x128xf32>
    %68 = vector.shape_cast %67 : vector<1x1x1x128xf32> to vector<1x128xf32>
    %69 = vector.shape_cast %68 : vector<1x128xf32> to vector<1x1x128xf32>
    %70 = vector.broadcast %62 : vector<1x128xf32> to vector<16x128xf32>
    %71 = arith.mulf %59, %70 : vector<16x128xf32>
    %c0_50 = arith.constant 0 : index
    %c1_51 = arith.constant 1 : index
    %c0_52 = arith.constant 0 : index
    %c0_53 = arith.constant 0 : index
    %72 = vector.load %arg12[%c0_50, %c1_51, %c0_52, %c0_53] : memref<3x2x1x128xf32, #tpu.memory_space<vmem>>, vector<1x1x1x128xf32>
    %73 = vector.shape_cast %72 : vector<1x1x1x128xf32> to vector<1x128xf32>
    %74 = vector.broadcast %73 : vector<1x128xf32> to vector<16x128xf32>
    %75 = arith.addf %71, %74 : vector<16x128xf32>
    %76 = vector.broadcast %66 : vector<1x1x128xf32> to vector<16x16x128xf32>
    %77 = arith.mulf %44, %76 : vector<16x16x128xf32>
    %78 = vector.broadcast %69 : vector<1x1x128xf32> to vector<16x16x128xf32>
    %79 = arith.addf %77, %78 : vector<16x16x128xf32>
    %cst_54 = arith.constant 0.000000e+00 : f32
    %80 = vector.broadcast %cst_54 : f32 to vector<16x128xf32>
    %81 = arith.maximumf %75, %80 : vector<16x128xf32>
    %cst_55 = arith.constant 0.000000e+00 : f32
    %82 = vector.broadcast %cst_55 : f32 to vector<16x16x128xf32>
    %83 = arith.maximumf %79, %82 : vector<16x16x128xf32>
    %84 = arith.truncf %81 : vector<16x128xf32> to vector<16x128xbf16>
    %c0_56 = arith.constant 0 : index
    %c0_57 = arith.constant 0 : index
    %c0_58 = arith.constant 0 : index
    %85 = vector.load %arg14[%c0_56, %c0_57, %c0_58] : memref<3x128x128xbf16, #tpu.memory_space<vmem>>, vector<1x128x128xbf16>
    %86 = vector.shape_cast %85 : vector<1x128x128xbf16> to vector<128x128xbf16>
    %cst_59 = arith.constant dense<0.000000e+00> : vector<16x128xf32>
    %87 = tpu.matmul %84, %86, %cst_59 {dimension_numbers = #tpu.dot_dimension_numbers<[1], [0], [0], [1], [0, 0, 1, 1], [], []>} : vector<16x128xbf16>, vector<128x128xbf16>, vector<16x128xf32> -> vector<16x128xf32>
    %88 = arith.addf %87, %28 : vector<16x128xf32>
    %89 = arith.negf %88 : vector<16x128xf32>
    %90 = math.exp %89 : vector<16x128xf32>
    %cst_60 = arith.constant 1.000000e+00 : f32
    %91 = vector.broadcast %cst_60 : f32 to vector<16x128xf32>
    %92 = arith.addf %91, %90 : vector<16x128xf32>
    %93 = arith.divf %91, %92 : vector<16x128xf32>
    %94 = arith.mulf %93, %81 : vector<16x128xf32>
    %cst_61 = arith.constant 1.000000e+00 : f32
    %95 = vector.broadcast %cst_61 : f32 to vector<16x128xf32>
    %96 = arith.subf %95, %93 : vector<16x128xf32>
    %97 = arith.mulf %96, %3 : vector<16x128xf32>
    %98 = arith.addf %94, %97 : vector<16x128xf32>
    %99 = arith.truncf %98 : vector<16x128xf32> to vector<16x128xbf16>
    %c1_62 = arith.constant 1 : index
    %c0_63 = arith.constant 0 : index
    %c0_64 = arith.constant 0 : index
    %100 = vector.load %arg8[%c1_62, %c0_63, %c0_64] : memref<3x128x640xbf16, #tpu.memory_space<vmem>>, vector<1x128x640xbf16>
    %101 = vector.shape_cast %100 : vector<1x128x640xbf16> to vector<128x640xbf16>
    %cst_65 = arith.constant dense<0.000000e+00> : vector<16x640xf32>
    %102 = tpu.matmul %99, %101, %cst_65 {dimension_numbers = #tpu.dot_dimension_numbers<[1], [0], [0], [1], [0, 0, 1, 1], [], []>} : vector<16x128xbf16>, vector<128x640xbf16>, vector<16x640xf32> -> vector<16x640xf32>
    %c1_66 = arith.constant 1 : index
    %c0_67 = arith.constant 0 : index
    %c0_68 = arith.constant 0 : index
    %103 = vector.load %arg9[%c1_66, %c0_67, %c0_68] : memref<3x1x640xf32, #tpu.memory_space<vmem>>, vector<1x1x640xf32>
    %104 = vector.shape_cast %103 : vector<1x1x640xf32> to vector<1x640xf32>
    %105 = vector.broadcast %104 : vector<1x640xf32> to vector<16x640xf32>
    %106 = arith.addf %102, %105 : vector<16x640xf32>
    %107 = vector.extract_strided_slice %106 {offsets = [0, 0], sizes = [16, 128], strides = [1, 1]} : vector<16x640xf32> to vector<16x128xf32>
    %108 = vector.extract_strided_slice %106 {offsets = [0, 128], sizes = [16, 128], strides = [1, 1]} : vector<16x640xf32> to vector<16x128xf32>
    %109 = vector.extract_strided_slice %106 {offsets = [0, 256], sizes = [16, 128], strides = [1, 1]} : vector<16x640xf32> to vector<16x128xf32>
    %110 = vector.extract_strided_slice %106 {offsets = [0, 384], sizes = [16, 128], strides = [1, 1]} : vector<16x640xf32> to vector<16x128xf32>
    %111 = vector.extract_strided_slice %106 {offsets = [0, 512], sizes = [16, 128], strides = [1, 1]} : vector<16x640xf32> to vector<16x128xf32>
    %112 = vector.shape_cast %83 : vector<16x16x128xf32> to vector<256x128xf32>
    %113 = arith.truncf %112 : vector<256x128xf32> to vector<256x128xbf16>
    %c1_69 = arith.constant 1 : index
    %c0_70 = arith.constant 0 : index
    %c0_71 = arith.constant 0 : index
    %114 = vector.load %arg10[%c1_69, %c0_70, %c0_71] : memref<3x128x128xbf16, #tpu.memory_space<vmem>>, vector<1x128x128xbf16>
    %115 = vector.shape_cast %114 : vector<1x128x128xbf16> to vector<128x128xbf16>
    %cst_72 = arith.constant dense<0.000000e+00> : vector<256x128xf32>
    %116 = tpu.matmul %113, %115, %cst_72 {dimension_numbers = #tpu.dot_dimension_numbers<[1], [0], [0], [1], [0, 0, 1, 1], [], []>} : vector<256x128xbf16>, vector<128x128xbf16>, vector<256x128xf32> -> vector<256x128xf32>
    %c1_73 = arith.constant 1 : index
    %c0_74 = arith.constant 0 : index
    %c0_75 = arith.constant 0 : index
    %117 = vector.load %arg11[%c1_73, %c0_74, %c0_75] : memref<3x1x128xf32, #tpu.memory_space<vmem>>, vector<1x1x128xf32>
    %118 = vector.shape_cast %117 : vector<1x1x128xf32> to vector<1x128xf32>
    %119 = vector.broadcast %118 : vector<1x128xf32> to vector<256x128xf32>
    %120 = arith.addf %116, %119 : vector<256x128xf32>
    %121 = vector.shape_cast %120 : vector<256x128xf32> to vector<16x16x128xf32>
    %122 = vector.shape_cast %109 : vector<16x128xf32> to vector<1x16x128xf32>
    %123 = vector.shape_cast %110 : vector<16x128xf32> to vector<16x1x128xf32>
    %124 = vector.broadcast %122 : vector<1x16x128xf32> to vector<16x16x128xf32>
    %125 = vector.broadcast %123 : vector<16x1x128xf32> to vector<16x16x128xf32>
    %126 = arith.addf %124, %125 : vector<16x16x128xf32>
    %127 = arith.addf %126, %121 : vector<16x16x128xf32>
    %128 = arith.negf %127 : vector<16x16x128xf32>
    %129 = math.exp %128 : vector<16x16x128xf32>
    %cst_76 = arith.constant 1.000000e+00 : f32
    %130 = vector.broadcast %cst_76 : f32 to vector<16x16x128xf32>
    %131 = arith.addf %130, %129 : vector<16x16x128xf32>
    %132 = arith.divf %130, %131 : vector<16x16x128xf32>
    %133 = arith.mulf %132, %11 : vector<16x16x128xf32>
    %134 = vector.shape_cast %108 : vector<16x128xf32> to vector<1x16x128xf32>
    %135 = vector.broadcast %134 : vector<1x16x128xf32> to vector<16x16x128xf32>
    %136 = arith.mulf %133, %135 : vector<16x16x128xf32>
    %cst_77 = arith.constant dense<0.000000e+00> : vector<16x128xf32>
    %137 = vector.multi_reduction <add>, %136, %cst_77 [1] : vector<16x16x128xf32> to vector<16x128xf32>
    %cst_78 = arith.constant dense<0.000000e+00> : vector<16x128xf32>
    %138 = vector.multi_reduction <add>, %133, %cst_78 [1] : vector<16x16x128xf32> to vector<16x128xf32>
    %cst_79 = arith.constant 9.99999997E-7 : f32
    %139 = vector.broadcast %cst_79 : f32 to vector<16x128xf32>
    %140 = arith.addf %138, %139 : vector<16x128xf32>
    %141 = arith.divf %137, %140 : vector<16x128xf32>
    %142 = arith.addf %107, %141 : vector<16x128xf32>
    %c1_80 = arith.constant 1 : index
    %c0_81 = arith.constant 0 : index
    %c0_82 = arith.constant 0 : index
    %c0_83 = arith.constant 0 : index
    %143 = vector.load %arg12[%c1_80, %c0_81, %c0_82, %c0_83] : memref<3x2x1x128xf32, #tpu.memory_space<vmem>>, vector<1x1x1x128xf32>
    %144 = vector.shape_cast %143 : vector<1x1x1x128xf32> to vector<1x128xf32>
    %145 = arith.mulf %13, %144 : vector<1x128xf32>
    %c1_84 = arith.constant 1 : index
    %c0_85 = arith.constant 0 : index
    %c0_86 = arith.constant 0 : index
    %c0_87 = arith.constant 0 : index
    %146 = vector.load %arg13[%c1_84, %c0_85, %c0_86, %c0_87] : memref<3x2x1x128xf32, #tpu.memory_space<vmem>>, vector<1x1x1x128xf32>
    %147 = vector.shape_cast %146 : vector<1x1x1x128xf32> to vector<1x128xf32>
    %148 = arith.mulf %15, %147 : vector<1x128xf32>
    %149 = vector.shape_cast %148 : vector<1x128xf32> to vector<1x1x128xf32>
    %c1_88 = arith.constant 1 : index
    %c1_89 = arith.constant 1 : index
    %c0_90 = arith.constant 0 : index
    %c0_91 = arith.constant 0 : index
    %150 = vector.load %arg13[%c1_88, %c1_89, %c0_90, %c0_91] : memref<3x2x1x128xf32, #tpu.memory_space<vmem>>, vector<1x1x1x128xf32>
    %151 = vector.shape_cast %150 : vector<1x1x1x128xf32> to vector<1x128xf32>
    %152 = vector.shape_cast %151 : vector<1x128xf32> to vector<1x1x128xf32>
    %153 = vector.broadcast %145 : vector<1x128xf32> to vector<16x128xf32>
    %154 = arith.mulf %142, %153 : vector<16x128xf32>
    %c1_92 = arith.constant 1 : index
    %c1_93 = arith.constant 1 : index
    %c0_94 = arith.constant 0 : index
    %c0_95 = arith.constant 0 : index
    %155 = vector.load %arg12[%c1_92, %c1_93, %c0_94, %c0_95] : memref<3x2x1x128xf32, #tpu.memory_space<vmem>>, vector<1x1x1x128xf32>
    %156 = vector.shape_cast %155 : vector<1x1x1x128xf32> to vector<1x128xf32>
    %157 = vector.broadcast %156 : vector<1x128xf32> to vector<16x128xf32>
    %158 = arith.addf %154, %157 : vector<16x128xf32>
    %159 = vector.broadcast %149 : vector<1x1x128xf32> to vector<16x16x128xf32>
    %160 = arith.mulf %127, %159 : vector<16x16x128xf32>
    %161 = vector.broadcast %152 : vector<1x1x128xf32> to vector<16x16x128xf32>
    %162 = arith.addf %160, %161 : vector<16x16x128xf32>
    %cst_96 = arith.constant 0.000000e+00 : f32
    %163 = vector.broadcast %cst_96 : f32 to vector<16x128xf32>
    %164 = arith.maximumf %158, %163 : vector<16x128xf32>
    %cst_97 = arith.constant 0.000000e+00 : f32
    %165 = vector.broadcast %cst_97 : f32 to vector<16x16x128xf32>
    %166 = arith.maximumf %162, %165 : vector<16x16x128xf32>
    %167 = arith.truncf %164 : vector<16x128xf32> to vector<16x128xbf16>
    %c1_98 = arith.constant 1 : index
    %c0_99 = arith.constant 0 : index
    %c0_100 = arith.constant 0 : index
    %168 = vector.load %arg14[%c1_98, %c0_99, %c0_100] : memref<3x128x128xbf16, #tpu.memory_space<vmem>>, vector<1x128x128xbf16>
    %169 = vector.shape_cast %168 : vector<1x128x128xbf16> to vector<128x128xbf16>
    %cst_101 = arith.constant dense<0.000000e+00> : vector<16x128xf32>
    %170 = tpu.matmul %167, %169, %cst_101 {dimension_numbers = #tpu.dot_dimension_numbers<[1], [0], [0], [1], [0, 0, 1, 1], [], []>} : vector<16x128xbf16>, vector<128x128xbf16>, vector<16x128xf32> -> vector<16x128xf32>
    %171 = arith.addf %170, %111 : vector<16x128xf32>
    %172 = arith.negf %171 : vector<16x128xf32>
    %173 = math.exp %172 : vector<16x128xf32>
    %cst_102 = arith.constant 1.000000e+00 : f32
    %174 = vector.broadcast %cst_102 : f32 to vector<16x128xf32>
    %175 = arith.addf %174, %173 : vector<16x128xf32>
    %176 = arith.divf %174, %175 : vector<16x128xf32>
    %177 = arith.mulf %176, %164 : vector<16x128xf32>
    %cst_103 = arith.constant 1.000000e+00 : f32
    %178 = vector.broadcast %cst_103 : f32 to vector<16x128xf32>
    %179 = arith.subf %178, %176 : vector<16x128xf32>
    %180 = arith.mulf %179, %98 : vector<16x128xf32>
    %181 = arith.addf %177, %180 : vector<16x128xf32>
    %182 = arith.truncf %181 : vector<16x128xf32> to vector<16x128xbf16>
    %c2 = arith.constant 2 : index
    %c0_104 = arith.constant 0 : index
    %c0_105 = arith.constant 0 : index
    %183 = vector.load %arg8[%c2, %c0_104, %c0_105] : memref<3x128x640xbf16, #tpu.memory_space<vmem>>, vector<1x128x640xbf16>
    %184 = vector.shape_cast %183 : vector<1x128x640xbf16> to vector<128x640xbf16>
    %cst_106 = arith.constant dense<0.000000e+00> : vector<16x640xf32>
    %185 = tpu.matmul %182, %184, %cst_106 {dimension_numbers = #tpu.dot_dimension_numbers<[1], [0], [0], [1], [0, 0, 1, 1], [], []>} : vector<16x128xbf16>, vector<128x640xbf16>, vector<16x640xf32> -> vector<16x640xf32>
    %c2_107 = arith.constant 2 : index
    %c0_108 = arith.constant 0 : index
    %c0_109 = arith.constant 0 : index
    %186 = vector.load %arg9[%c2_107, %c0_108, %c0_109] : memref<3x1x640xf32, #tpu.memory_space<vmem>>, vector<1x1x640xf32>
    %187 = vector.shape_cast %186 : vector<1x1x640xf32> to vector<1x640xf32>
    %188 = vector.broadcast %187 : vector<1x640xf32> to vector<16x640xf32>
    %189 = arith.addf %185, %188 : vector<16x640xf32>
    %190 = vector.extract_strided_slice %189 {offsets = [0, 0], sizes = [16, 128], strides = [1, 1]} : vector<16x640xf32> to vector<16x128xf32>
    %191 = vector.extract_strided_slice %189 {offsets = [0, 128], sizes = [16, 128], strides = [1, 1]} : vector<16x640xf32> to vector<16x128xf32>
    %192 = vector.extract_strided_slice %189 {offsets = [0, 256], sizes = [16, 128], strides = [1, 1]} : vector<16x640xf32> to vector<16x128xf32>
    %193 = vector.extract_strided_slice %189 {offsets = [0, 384], sizes = [16, 128], strides = [1, 1]} : vector<16x640xf32> to vector<16x128xf32>
    %194 = vector.extract_strided_slice %189 {offsets = [0, 512], sizes = [16, 128], strides = [1, 1]} : vector<16x640xf32> to vector<16x128xf32>
    %195 = vector.shape_cast %166 : vector<16x16x128xf32> to vector<256x128xf32>
    %196 = arith.truncf %195 : vector<256x128xf32> to vector<256x128xbf16>
    %c2_110 = arith.constant 2 : index
    %c0_111 = arith.constant 0 : index
    %c0_112 = arith.constant 0 : index
    %197 = vector.load %arg10[%c2_110, %c0_111, %c0_112] : memref<3x128x128xbf16, #tpu.memory_space<vmem>>, vector<1x128x128xbf16>
    %198 = vector.shape_cast %197 : vector<1x128x128xbf16> to vector<128x128xbf16>
    %cst_113 = arith.constant dense<0.000000e+00> : vector<256x128xf32>
    %199 = tpu.matmul %196, %198, %cst_113 {dimension_numbers = #tpu.dot_dimension_numbers<[1], [0], [0], [1], [0, 0, 1, 1], [], []>} : vector<256x128xbf16>, vector<128x128xbf16>, vector<256x128xf32> -> vector<256x128xf32>
    %c2_114 = arith.constant 2 : index
    %c0_115 = arith.constant 0 : index
    %c0_116 = arith.constant 0 : index
    %200 = vector.load %arg11[%c2_114, %c0_115, %c0_116] : memref<3x1x128xf32, #tpu.memory_space<vmem>>, vector<1x1x128xf32>
    %201 = vector.shape_cast %200 : vector<1x1x128xf32> to vector<1x128xf32>
    %202 = vector.broadcast %201 : vector<1x128xf32> to vector<256x128xf32>
    %203 = arith.addf %199, %202 : vector<256x128xf32>
    %204 = vector.shape_cast %203 : vector<256x128xf32> to vector<16x16x128xf32>
    %205 = vector.shape_cast %192 : vector<16x128xf32> to vector<1x16x128xf32>
    %206 = vector.shape_cast %193 : vector<16x128xf32> to vector<16x1x128xf32>
    %207 = vector.broadcast %205 : vector<1x16x128xf32> to vector<16x16x128xf32>
    %208 = vector.broadcast %206 : vector<16x1x128xf32> to vector<16x16x128xf32>
    %209 = arith.addf %207, %208 : vector<16x16x128xf32>
    %210 = arith.addf %209, %204 : vector<16x16x128xf32>
    %211 = arith.negf %210 : vector<16x16x128xf32>
    %212 = math.exp %211 : vector<16x16x128xf32>
    %cst_117 = arith.constant 1.000000e+00 : f32
    %213 = vector.broadcast %cst_117 : f32 to vector<16x16x128xf32>
    %214 = arith.addf %213, %212 : vector<16x16x128xf32>
    %215 = arith.divf %213, %214 : vector<16x16x128xf32>
    %216 = arith.mulf %215, %11 : vector<16x16x128xf32>
    %217 = vector.shape_cast %191 : vector<16x128xf32> to vector<1x16x128xf32>
    %218 = vector.broadcast %217 : vector<1x16x128xf32> to vector<16x16x128xf32>
    %219 = arith.mulf %216, %218 : vector<16x16x128xf32>
    %cst_118 = arith.constant dense<0.000000e+00> : vector<16x128xf32>
    %220 = vector.multi_reduction <add>, %219, %cst_118 [1] : vector<16x16x128xf32> to vector<16x128xf32>
    %cst_119 = arith.constant dense<0.000000e+00> : vector<16x128xf32>
    %221 = vector.multi_reduction <add>, %216, %cst_119 [1] : vector<16x16x128xf32> to vector<16x128xf32>
    %cst_120 = arith.constant 9.99999997E-7 : f32
    %222 = vector.broadcast %cst_120 : f32 to vector<16x128xf32>
    %223 = arith.addf %221, %222 : vector<16x128xf32>
    %224 = arith.divf %220, %223 : vector<16x128xf32>
    %225 = arith.addf %190, %224 : vector<16x128xf32>
    %c2_121 = arith.constant 2 : index
    %c0_122 = arith.constant 0 : index
    %c0_123 = arith.constant 0 : index
    %c0_124 = arith.constant 0 : index
    %226 = vector.load %arg12[%c2_121, %c0_122, %c0_123, %c0_124] : memref<3x2x1x128xf32, #tpu.memory_space<vmem>>, vector<1x1x1x128xf32>
    %227 = vector.shape_cast %226 : vector<1x1x1x128xf32> to vector<1x128xf32>
    %228 = arith.mulf %13, %227 : vector<1x128xf32>
    %229 = vector.broadcast %228 : vector<1x128xf32> to vector<16x128xf32>
    %230 = arith.mulf %225, %229 : vector<16x128xf32>
    %c2_125 = arith.constant 2 : index
    %c1_126 = arith.constant 1 : index
    %c0_127 = arith.constant 0 : index
    %c0_128 = arith.constant 0 : index
    %231 = vector.load %arg12[%c2_125, %c1_126, %c0_127, %c0_128] : memref<3x2x1x128xf32, #tpu.memory_space<vmem>>, vector<1x1x1x128xf32>
    %232 = vector.shape_cast %231 : vector<1x1x1x128xf32> to vector<1x128xf32>
    %233 = vector.broadcast %232 : vector<1x128xf32> to vector<16x128xf32>
    %234 = arith.addf %230, %233 : vector<16x128xf32>
    %cst_129 = arith.constant 0.000000e+00 : f32
    %235 = vector.broadcast %cst_129 : f32 to vector<16x128xf32>
    %236 = arith.maximumf %234, %235 : vector<16x128xf32>
    %237 = arith.truncf %236 : vector<16x128xf32> to vector<16x128xbf16>
    %c2_130 = arith.constant 2 : index
    %c0_131 = arith.constant 0 : index
    %c0_132 = arith.constant 0 : index
    %238 = vector.load %arg14[%c2_130, %c0_131, %c0_132] : memref<3x128x128xbf16, #tpu.memory_space<vmem>>, vector<1x128x128xbf16>
    %239 = vector.shape_cast %238 : vector<1x128x128xbf16> to vector<128x128xbf16>
    %cst_133 = arith.constant dense<0.000000e+00> : vector<16x128xf32>
    %240 = tpu.matmul %237, %239, %cst_133 {dimension_numbers = #tpu.dot_dimension_numbers<[1], [0], [0], [1], [0, 0, 1, 1], [], []>} : vector<16x128xbf16>, vector<128x128xbf16>, vector<16x128xf32> -> vector<16x128xf32>
    %241 = arith.addf %240, %194 : vector<16x128xf32>
    %242 = arith.negf %241 : vector<16x128xf32>
    %243 = math.exp %242 : vector<16x128xf32>
    %cst_134 = arith.constant 1.000000e+00 : f32
    %244 = vector.broadcast %cst_134 : f32 to vector<16x128xf32>
    %245 = arith.addf %244, %243 : vector<16x128xf32>
    %246 = arith.divf %244, %245 : vector<16x128xf32>
    %247 = arith.mulf %246, %236 : vector<16x128xf32>
    %cst_135 = arith.constant 1.000000e+00 : f32
    %248 = vector.broadcast %cst_135 : f32 to vector<16x128xf32>
    %249 = arith.subf %248, %246 : vector<16x128xf32>
    %250 = arith.mulf %249, %181 : vector<16x128xf32>
    %251 = arith.addf %247, %250 : vector<16x128xf32>
    %252 = arith.truncf %251 : vector<16x128xf32> to vector<16x128xbf16>
    %c0_136 = arith.constant 0 : index
    %c0_137 = arith.constant 0 : index
    %253 = vector.load %arg15[%c0_136, %c0_137] : memref<128x128xbf16, #tpu.memory_space<vmem>>, vector<128x128xbf16>
    %cst_138 = arith.constant dense<0.000000e+00> : vector<16x128xf32>
    %254 = tpu.matmul %252, %253, %cst_138 {dimension_numbers = #tpu.dot_dimension_numbers<[1], [0], [0], [1], [0, 0, 1, 1], [], []>} : vector<16x128xbf16>, vector<128x128xbf16>, vector<16x128xf32> -> vector<16x128xf32>
    %cst_139 = arith.constant dense<0.000000e+00> : vector<128xf32>
    %255 = vector.multi_reduction <add>, %254, %cst_139 [0] : vector<16x128xf32> to vector<128xf32>
    %256 = vector.shape_cast %255 : vector<128xf32> to vector<1x128xf32>
    %cst_140 = arith.constant 1.600000e+01 : f32
    %257 = vector.broadcast %cst_140 : f32 to vector<1x128xf32>
    %258 = arith.divf %256, %257 : vector<1x128xf32>
    %c0_141 = arith.constant 0 : index
    %c0_142 = arith.constant 0 : index
    %259 = vector.load %arg16[%c0_141, %c0_142] : memref<128x4xf32, #tpu.memory_space<vmem>>, vector<128x4xf32>
    %cst_143 = arith.constant dense<0.000000e+00> : vector<1x4xf32>
    %260 = tpu.matmul %258, %259, %cst_143 {dimension_numbers = #tpu.dot_dimension_numbers<[1], [0], [0], [1], [0, 0, 1, 1], [], []>} : vector<1x128xf32>, vector<128x4xf32>, vector<1x4xf32> -> vector<1x4xf32>
    %c0_144 = arith.constant 0 : index
    %c0_145 = arith.constant 0 : index
    %261 = vector.load %arg17[%c0_144, %c0_145] : memref<1x4xf32, #tpu.memory_space<vmem>>, vector<1x4xf32>
    %262 = arith.addf %260, %261 : vector<1x4xf32>
    %c0_146 = arith.constant 0 : index
    %c0_147 = arith.constant 0 : index
    %c0_148 = arith.constant 0 : index
    %263 = vector.load %arg18[%c0_146, %c0_147, %c0_148] : memref<1x1x4xf32, #tpu.memory_space<vmem>>, vector<1x1x4xf32>
    %264 = vector.shape_cast %263 : vector<1x1x4xf32> to vector<1x4xf32>
    %265 = vector.shape_cast %262 : vector<1x4xf32> to vector<1x1x4xf32>
    tpu.vector_store %arg18[%c0_146, %c0_147, %c0_148], %265 {strides = array<i32>} : memref<1x1x4xf32, #tpu.memory_space<vmem>>, vector<1x1x4xf32>,
    return
  }
  func.func @transform_0(%arg0: i32) -> (i32, i32, i32) {
    %c0_i32 = arith.constant 0 : i32
    %c0_i32_0 = arith.constant 0 : i32
    %c0_i32_1 = arith.constant 0 : i32
    return %arg0, %c0_i32, %c0_i32_0 : i32, i32, i32
  }
  func.func @transform_1(%arg0: i32) -> (i32, i32, i32, i32) {
    %c0_i32 = arith.constant 0 : i32
    %c0_i32_0 = arith.constant 0 : i32
    %c0_i32_1 = arith.constant 0 : i32
    %c0_i32_2 = arith.constant 0 : i32
    return %arg0, %c0_i32, %c0_i32_0, %c0_i32_1 : i32, i32, i32, i32
  }
  func.func @transform_2(%arg0: i32) -> (i32, i32, i32, i32) {
    %c0_i32 = arith.constant 0 : i32
    %c0_i32_0 = arith.constant 0 : i32
    %c0_i32_1 = arith.constant 0 : i32
    %c0_i32_2 = arith.constant 0 : i32
    return %arg0, %c0_i32, %c0_i32_0, %c0_i32_1 : i32, i32, i32, i32
  }
  func.func @transform_3(%arg0: i32) -> (i32, i32, i32) {
    %c0_i32 = arith.constant 0 : i32
    %c0_i32_0 = arith.constant 0 : i32
    %c0_i32_1 = arith.constant 0 : i32
    return %arg0, %c0_i32, %c0_i32_0 : i32, i32, i32
  }
  func.func @transform_4(%arg0: i32) -> (i32, i32, i32) {
    %c0_i32 = arith.constant 0 : i32
    %c0_i32_0 = arith.constant 0 : i32
    %c0_i32_1 = arith.constant 0 : i32
    return %arg0, %c0_i32, %c0_i32_0 : i32, i32, i32
  }
  func.func @transform_5(%arg0: i32) -> (i32, i32) {
    %c0_i32 = arith.constant 0 : i32
    %c0_i32_0 = arith.constant 0 : i32
    %c0_i32_1 = arith.constant 0 : i32
    return %c0_i32, %c0_i32_0 : i32, i32
  }
  func.func @transform_6(%arg0: i32) -> (i32, i32) {
    %c0_i32 = arith.constant 0 : i32
    %c0_i32_0 = arith.constant 0 : i32
    %c0_i32_1 = arith.constant 0 : i32
    return %c0_i32, %c0_i32_0 : i32, i32
  }
  func.func @transform_7(%arg0: i32) -> (i32, i32, i32) {
    %c0_i32 = arith.constant 0 : i32
    %c0_i32_0 = arith.constant 0 : i32
    %c0_i32_1 = arith.constant 0 : i32
    %c0_i32_2 = arith.constant 0 : i32
    return %c0_i32, %c0_i32_0, %c0_i32_1 : i32, i32, i32
  }
  func.func @transform_8(%arg0: i32) -> (i32, i32, i32) {
    %c0_i32 = arith.constant 0 : i32
    %c0_i32_0 = arith.constant 0 : i32
    %c0_i32_1 = arith.constant 0 : i32
    %c0_i32_2 = arith.constant 0 : i32
    return %c0_i32, %c0_i32_0, %c0_i32_1 : i32, i32, i32
  }
  func.func @transform_9(%arg0: i32) -> (i32, i32, i32) {
    %c0_i32 = arith.constant 0 : i32
    %c0_i32_0 = arith.constant 0 : i32
    %c0_i32_1 = arith.constant 0 : i32
    %c0_i32_2 = arith.constant 0 : i32
    return %c0_i32, %c0_i32_0, %c0_i32_1 : i32, i32, i32
  }
  func.func @transform_10(%arg0: i32) -> (i32, i32, i32) {
    %c0_i32 = arith.constant 0 : i32
    %c0_i32_0 = arith.constant 0 : i32
    %c0_i32_1 = arith.constant 0 : i32
    %c0_i32_2 = arith.constant 0 : i32
    return %c0_i32, %c0_i32_0, %c0_i32_1 : i32, i32, i32
  }
  func.func @transform_11(%arg0: i32) -> (i32, i32, i32, i32) {
    %c0_i32 = arith.constant 0 : i32
    %c0_i32_0 = arith.constant 0 : i32
    %c0_i32_1 = arith.constant 0 : i32
    %c0_i32_2 = arith.constant 0 : i32
    %c0_i32_3 = arith.constant 0 : i32
    return %c0_i32, %c0_i32_0, %c0_i32_1, %c0_i32_2 : i32, i32, i32, i32
  }
  func.func @transform_12(%arg0: i32) -> (i32, i32, i32, i32) {
    %c0_i32 = arith.constant 0 : i32
    %c0_i32_0 = arith.constant 0 : i32
    %c0_i32_1 = arith.constant 0 : i32
    %c0_i32_2 = arith.constant 0 : i32
    %c0_i32_3 = arith.constant 0 : i32
    return %c0_i32, %c0_i32_0, %c0_i32_1, %c0_i32_2 : i32, i32, i32, i32
  }
  func.func @transform_13(%arg0: i32) -> (i32, i32, i32) {
    %c0_i32 = arith.constant 0 : i32
    %c0_i32_0 = arith.constant 0 : i32
    %c0_i32_1 = arith.constant 0 : i32
    %c0_i32_2 = arith.constant 0 : i32
    return %c0_i32, %c0_i32_0, %c0_i32_1 : i32, i32, i32
  }
  func.func @transform_14(%arg0: i32) -> (i32, i32) {
    %c0_i32 = arith.constant 0 : i32
    %c0_i32_0 = arith.constant 0 : i32
    %c0_i32_1 = arith.constant 0 : i32
    return %c0_i32, %c0_i32_0 : i32, i32
  }
  func.func @transform_15(%arg0: i32) -> (i32, i32) {
    %c0_i32 = arith.constant 0 : i32
    %c0_i32_0 = arith.constant 0 : i32
    %c0_i32_1 = arith.constant 0 : i32
    return %c0_i32, %c0_i32_0 : i32, i32
  }
  func.func @transform_16(%arg0: i32) -> (i32, i32) {
    %c0_i32 = arith.constant 0 : i32
    %c0_i32_0 = arith.constant 0 : i32
    %c0_i32_1 = arith.constant 0 : i32
    return %c0_i32, %c0_i32_0 : i32, i32
  }
  func.func @transform_17(%arg0: i32) -> (i32, i32, i32) {
    %c0_i32 = arith.constant 0 : i32
    %c0_i32_0 = arith.constant 0 : i32
    %c0_i32_1 = arith.constant 0 : i32
    return %arg0, %c0_i32, %c0_i32_0 : i32, i32, i32
  }
}

</mosaic_0001>

<llo_original>
// kernel: tpu_custom_call.1
$region0: #{tpu_custom_call.1}
  #allocation0 [shape = 'u32[]', space=smem, size = 0x4, offset = 0x4, fixed_abs, tag = 'smem constant byte address 0x4 - core index']
  #allocation1 [shape = 'u32[72,128]{1,0:T(1,128)}', space=vmem, size = 0x9000, scoped, tag = 'internal scratch']
  %s0 = inlined_call_operand.vmem [shape: f32[2,16,32], index: 0, kind: input, shape index: {}]
  %s1 = inlined_call_operand.hbm [shape: f32[2,16,16,16], index: 1, kind: input, shape index: {}]
  %s2 = inlined_call_operand.hbm [shape: f32[2,16,16,128], index: 2, kind: input, shape index: {}]
  %s3 = inlined_call_operand.hbm [shape: f32[2,1,128], index: 3, kind: input, shape index: {}]
  %s4 = inlined_call_operand.hbm [shape: f32[2,1,128], index: 4, kind: input, shape index: {}]
  %s5 = inlined_call_operand.vmem [shape: f32[32,128], index: 5, kind: input, shape index: {}]
  %s6 = inlined_call_operand.hbm [shape: f32[16,128], index: 6, kind: input, shape index: {}]
  %s7 = inlined_call_operand.hbm [shape: bf16[3,128,640], index: 7, kind: input, shape index: {}]
  %s8 = inlined_call_operand.hbm [shape: f32[3,1,640], index: 8, kind: input, shape index: {}]
  %s9 = inlined_call_operand.hbm [shape: bf16[3,128,128], index: 9, kind: input, shape index: {}]
  %s10 = inlined_call_operand.vmem [shape: f32[3,1,128], index: 10, kind: input, shape index: {}]
  %s11 = inlined_call_operand.vmem [shape: f32[3,2,1,128], index: 11, kind: input, shape index: {}]
  %s12 = inlined_call_operand.hbm [shape: f32[3,2,1,128], index: 12, kind: input, shape index: {}]
  %s13 = inlined_call_operand.hbm [shape: bf16[3,128,128], index: 13, kind: input, shape index: {}]
  %s14 = inlined_call_operand.vmem [shape: bf16[128,128], index: 14, kind: input, shape index: {}]
  %s15 = inlined_call_operand.vmem [shape: f32[128,4], index: 15, kind: input, shape index: {}]
  %s16 = inlined_call_operand.vmem [shape: f32[1,4], index: 16, kind: input, shape index: {}]
  %s17 = inlined_call_operand.hbm [shape: f32[2,1,4], index: 17, kind: output, shape index: {}]
  %s18 = sld [smem:[#allocation0]]
  $region141: #{tpu_custom_call.1} parent=0
    _
  %s20 = ssub.s32 1, %s18
  %s21 = scalar_select 0, %s20, %s18
  $region1: #{tpu_custom_call.1} parent=0
    #allocation2 [shape = 'u8[262144]{0}', space=vmem, size = 0x40000, scoped, tag = 'input window, operand 1']
    #allocation3 [shape = 's32[2]{0}', space=sflag, size = 0x8, scoped, tag = 'scoped memory for tpu_custom_call.1']
    #allocation4 [shape = 's32[2]{0}', space=sflag, size = 0x8, scoped, tag = 'scoped memory for tpu_custom_call.1']
    #allocation5 [shape = 'u8[262144]{0}', space=vmem, size = 0x40000, scoped, tag = 'input window, operand 2']
    #allocation6 [shape = 's32[2]{0}', space=sflag, size = 0x8, scoped, tag = 'scoped memory for tpu_custom_call.1']
    #allocation7 [shape = 'u8[1024]{0}', space=vmem, size = 0x400, scoped, tag = 'input window, operand 3']
    #allocation8 [shape = 'u8[1024]{0}', space=vmem, size = 0x400, scoped, tag = 'input window, operand 4']
    #allocation9 [shape = 's32[2]{0}', space=sflag, size = 0x8, scoped, tag = 'scoped memory for tpu_custom_call.1']
    #allocation10 [shape = 'u8[8192]{0}', space=vmem, size = 0x2000, scoped, tag = 'input window, operand 6, single buffered']
    #allocation11 [shape = 'u8[491520]{0}', space=vmem, size = 0x78000, scoped, tag = 'input window, operand 7, single buffered']
    #allocation12 [shape = 's32[1]{0}', space=sflag, size = 0x4, scoped, tag = 'scoped memory for tpu_custom_call.1']
    #allocation13 [shape = 'u8[7680]{0}', space=vmem, size = 0x2000, scoped, tag = 'input window, operand 8, single buffered']
    #allocation14 [shape = 'u8[98304]{0}', space=vmem, size = 0x18000, scoped, tag = 'input window, operand 9, single buffered']
    #allocation15 [shape = 's32[1]{0}', space=sflag, size = 0x4, scoped, tag = 'scoped memory for tpu_custom_call.1']
    #allocation16 [shape = 'u8[3072]{0}', space=vmem, size = 0xc00, scoped, tag = 'input window, operand 12, single buffered']
    #allocation17 [shape = 'u8[98304]{0}', space=vmem, size = 0x18000, scoped, tag = 'input window, operand 13, single buffered']
    #allocation18 [shape = 's32[1]{0}', space=sflag, size = 0x4, scoped, tag = 'scoped memory for tpu_custom_call.1']
    #allocation19 [shape = 'u8[1024]{0}', space=vmem, size = 0x400, scoped, tag = 'output window, operand 0']
    %22 = vsyncpa [#allocation3], 0
    %s23 = scalar_lea.sflag [#allocation3], 1
    %24 = vsyncpa %s23, 0
    %25 = vsyncpa [#allocation6], 0
    %s26 = scalar_lea.sflag [#allocation6], 1
    %27 = vsyncpa %s26, 0
    %28 = vsyncpa [#allocation9], 0
    %s29 = scalar_lea.sflag [#allocation9], 1
    %30 = vsyncpa %s29, 0
    %31 = vsyncpa [#allocation12], 0
    %32 = vsyncpa [#allocation15], 0
    %33 = vsyncpa [#allocation18], 0
    %34 = vsyncpa [#allocation4], 0
    %s35 = scalar_lea.sflag [#allocation4], 1
    %36 = vsyncpa %s35, 0
    loop: start=0, step=1, limit=4
    $region2: #{tpu_custom_call.1} parent=1 // loop_pre_header
      _
    $region3: #{tpu_custom_call.1} parent=1 // loop_header
      %s38 = sphi 0, %s42
      %p39 = scmp.ge.s32.totalorder %s38, 4
      %s48 = sphi 0, %s50
      %s51 = sphi 0, %s48
      %s52 = sphi 0, %s51
      %s68 = sphi 0, %s52
      %s74 = sphi 0, %s76
      %s77 = sphi 0, %s74
      %s78 = sphi 0, %s77
      %s94 = sphi 0, %s78
      %s100 = sphi 0, %s102
      %s103 = sphi 0, %s100
      %s104 = sphi 0, %s103
      %s120 = sphi 0, %s104
      %s126 = sphi 0, %s128
      %s129 = sphi 0, %s126
      %s130 = sphi 0, %s129
      %s146 = sphi 0, %s130
      %s152 = sphi 0, %s154
      %s155 = sphi 0, %s152
      %s156 = sphi 0, %s155
      %s172 = sphi 0, %s156
      %s176 = sphi 0, %s176
      %s178 = sphi 0, %s176
      %s179 = sphi 0, %s178
      %s193 = sphi 0, %s179
      %s197 = sphi 0, %s197
      %s199 = sphi 0, %s197
      %s200 = sphi 0, %s199
      %s214 = sphi 0, %s200
      %s218 = sphi 0, %s218
      %s220 = sphi 0, %s218
      %s221 = sphi 0, %s220
      %s235 = sphi 0, %s221
      %s239 = sphi 0, %s239
      %s241 = sphi 0, %s239
      %s242 = sphi 0, %s241
      %s256 = sphi 0, %s242
      %s260 = sphi 0, %s260
      %s262 = sphi 0, %s260
      %s263 = sphi 0, %s262
      %s277 = sphi 0, %s263
      %s281 = sphi 0, %s281
      %s283 = sphi 0, %s281
      %s284 = sphi 0, %s283
      %s298 = sphi 0, %s284
      %s302 = sphi 0, %s302
      %s304 = sphi 0, %s302
      %s305 = sphi 0, %s304
      %s319 = sphi 0, %s305
      %s323 = sphi 0, %s323
      %s325 = sphi 0, %s323
      %s326 = sphi 0, %s325
      %s340 = sphi 0, %s326
      %s344 = sphi 0, %s344
      %s346 = sphi 0, %s344
      %s347 = sphi 0, %s346
      %s361 = sphi 0, %s347
      %s365 = sphi 0, %s365
      %s367 = sphi 0, %s365
      %s368 = sphi 0, %s367
      %s382 = sphi 0, %s368
      %s386 = sphi 0, %s386
      %s388 = sphi 0, %s386
      %s389 = sphi 0, %s388
      %s403 = sphi 0, %s389
      %s407 = sphi 0, %s407
      %s409 = sphi 0, %s407
      %s410 = sphi 0, %s409
      %s424 = sphi 0, %s410
      %s430 = sphi 0, %s432
      %s433 = sphi 0, %s430
      %s434 = sphi 0, %s433
      %s450 = sphi 0, %s434
    $region4: #{tpu_custom_call.1} parent=1 // loop_header_branch
      %41 = sbr.rel (%p39) target = $region8
    $region5: #{tpu_custom_call.1} parent=1 // loop_body
      %s43 = ssub.s32 %s38, 1
      %s44 = ssub.s32 %s38, 2
      %s45 = sadd.s32 %s38, 1
      %s46 = ssub.s32 %s38, %s45
      %p47 = scmp.eq.s32.totalorder %s46, 0
      %s49 = sadd.s32 %s48, 1
      %s50 = scalar_select %p47, %s48, %s49
      %p53 = pneg %p47
      %p54 = scmp.eq.s32.totalorder %s38, 1
      %p55 = por %p53, %p54
      %p56 = scmp.ne.s32.totalorder %s48, %s51
      %p57 = scmp.eq.s32.totalorder %s38, 0
      %p58 = por %p56, %p57
      %p59 = scmp.ne.s32.totalorder %s48, %s51
      %p60 = scmp.eq.s32.totalorder %s43, 1
      %p61 = por %p59, %p60
      %p62 = scmp.ne.s32.totalorder %s51, %s52
      %p63 = scmp.eq.s32.totalorder %s43, 0
      %p64 = por %p62, %p63
      %p65 = scmp.ne.s32.totalorder %s51, %s52
      %p66 = scmp.eq.s32.totalorder %s44, 1
      %p67 = por %p65, %p66
      %p69 = scmp.ne.s32.totalorder %s52, %s68
      %p70 = scmp.eq.s32.totalorder %s44, 0
      %p71 = por %p69, %p70
      %s72 = ssub.s32 %s38, %s45
      %p73 = scmp.eq.s32.totalorder %s72, 0
      %s75 = sadd.s32 %s74, 1
      %s76 = scalar_select %p73, %s74, %s75
      %p79 = pneg %p73
      %p80 = scmp.eq.s32.totalorder %s38, 1
      %p81 = por %p79, %p80
      %p82 = scmp.ne.s32.totalorder %s74, %s77
      %p83 = scmp.eq.s32.totalorder %s38, 0
      %p84 = por %p82, %p83
      %p85 = scmp.ne.s32.totalorder %s74, %s77
      %p86 = scmp.eq.s32.totalorder %s43, 1
      %p87 = por %p85, %p86
      %p88 = scmp.ne.s32.totalorder %s77, %s78
      %p89 = scmp.eq.s32.totalorder %s43, 0
      %p90 = por %p88, %p89
      %p91 = scmp.ne.s32.totalorder %s77, %s78
      %p92 = scmp.eq.s32.totalorder %s44, 1
      %p93 = por %p91, %p92
      %p95 = scmp.ne.s32.totalorder %s78, %s94
      %p96 = scmp.eq.s32.totalorder %s44, 0
      %p97 = por %p95, %p96
      %s98 = ssub.s32 %s38, %s45
      %p99 = scmp.eq.s32.totalorder %s98, 0
      %s101 = sadd.s32 %s100, 1
      %s102 = scalar_select %p99, %s100, %s101
      %p105 = pneg %p99
      %p106 = scmp.eq.s32.totalorder %s38, 1
      %p107 = por %p105, %p106
      %p108 = scmp.ne.s32.totalorder %s100, %s103
      %p109 = scmp.eq.s32.totalorder %s38, 0
      %p110 = por %p108, %p109
      %p111 = scmp.ne.s32.totalorder %s100, %s103
      %p112 = scmp.eq.s32.totalorder %s43, 1
      %p113 = por %p111, %p112
      %p114 = scmp.ne.s32.totalorder %s103, %s104
      %p115 = scmp.eq.s32.totalorder %s43, 0
      %p116 = por %p114, %p115
      %p117 = scmp.ne.s32.totalorder %s103, %s104
      %p118 = scmp.eq.s32.totalorder %s44, 1
      %p119 = por %p117, %p118
      %p121 = scmp.ne.s32.totalorder %s104, %s120
      %p122 = scmp.eq.s32.totalorder %s44, 0
      %p123 = por %p121, %p122
      %s124 = ssub.s32 %s38, %s45
      %p125 = scmp.eq.s32.totalorder %s124, 0
      %s127 = sadd.s32 %s126, 1
      %s128 = scalar_select %p125, %s126, %s127
      %p131 = pneg %p125
      %p132 = scmp.eq.s32.totalorder %s38, 1
      %p133 = por %p131, %p132
      %p134 = scmp.ne.s32.totalorder %s126, %s129
      %p135 = scmp.eq.s32.totalorder %s38, 0
      %p136 = por %p134, %p135
      %p137 = scmp.ne.s32.totalorder %s126, %s129
      %p138 = scmp.eq.s32.totalorder %s43, 1
      %p139 = por %p137, %p138
      %p140 = scmp.ne.s32.totalorder %s129, %s130
      %p141 = scmp.eq.s32.totalorder %s43, 0
      %p142 = por %p140, %p141
      %p143 = scmp.ne.s32.totalorder %s129, %s130
      %p144 = scmp.eq.s32.totalorder %s44, 1
      %p145 = por %p143, %p144
      %p147 = scmp.ne.s32.totalorder %s130, %s146
      %p148 = scmp.eq.s32.totalorder %s44, 0
      %p149 = por %p147, %p148
      %s150 = ssub.s32 %s38, %s45
      %p151 = scmp.eq.s32.totalorder %s150, 0
      %s153 = sadd.s32 %s152, 1
      %s154 = scalar_select %p151, %s152, %s153
      %p157 = pneg %p151
      %p158 = scmp.eq.s32.totalorder %s38, 1
      %p159 = por %p157, %p158
      %p160 = scmp.ne.s32.totalorder %s152, %s155
      %p161 = scmp.eq.s32.totalorder %s38, 0
      %p162 = por %p160, %p161
      %p163 = scmp.ne.s32.totalorder %s152, %s155
      %p164 = scmp.eq.s32.totalorder %s43, 1
      %p165 = por %p163, %p164
      %p166 = scmp.ne.s32.totalorder %s155, %s156
      %p167 = scmp.eq.s32.totalorder %s43, 0
      %p168 = por %p166, %p167
      %p169 = scmp.ne.s32.totalorder %s155, %s156
      %p170 = scmp.eq.s32.totalorder %s44, 1
      %p171 = por %p169, %p170
      %p173 = scmp.ne.s32.totalorder %s156, %s172
      %p174 = scmp.eq.s32.totalorder %s44, 0
      %p175 = por %p173, %p174
      %s177 = sadd.s32 %s176, 1
      %p180 = scmp.eq.s32.totalorder %s38, 1
      %p181 = scmp.ne.s32.totalorder %s176, %s178
      %p182 = scmp.eq.s32.totalorder %s38, 0
      %p183 = por %p181, %p182
      %p184 = scmp.ne.s32.totalorder %s176, %s178
      %p185 = scmp.eq.s32.totalorder %s43, 1
      %p186 = por %p184, %p185
      %p187 = scmp.ne.s32.totalorder %s178, %s179
      %p188 = scmp.eq.s32.totalorder %s43, 0
      %p189 = por %p187, %p188
      %p190 = scmp.ne.s32.totalorder %s178, %s179
      %p191 = scmp.eq.s32.totalorder %s44, 1
      %p192 = por %p190, %p191
      %p194 = scmp.ne.s32.totalorder %s179, %s193
      %p195 = scmp.eq.s32.totalorder %s44, 0
      %p196 = por %p194, %p195
      %s198 = sadd.s32 %s197, 1
      %p201 = scmp.eq.s32.totalorder %s38, 1
      %p202 = scmp.ne.s32.totalorder %s197, %s199
      %p203 = scmp.eq.s32.totalorder %s38, 0
      %p204 = por %p202, %p203
      %p205 = scmp.ne.s32.totalorder %s197, %s199
      %p206 = scmp.eq.s32.totalorder %s43, 1
      %p207 = por %p205, %p206
      %p208 = scmp.ne.s32.totalorder %s199, %s200
      %p209 = scmp.eq.s32.totalorder %s43, 0
      %p210 = por %p208, %p209
      %p211 = scmp.ne.s32.totalorder %s199, %s200
      %p212 = scmp.eq.s32.totalorder %s44, 1
      %p213 = por %p211, %p212
      %p215 = scmp.ne.s32.totalorder %s200, %s214
      %p216 = scmp.eq.s32.totalorder %s44, 0
      %p217 = por %p215, %p216
      %s219 = sadd.s32 %s218, 1
      %p222 = scmp.eq.s32.totalorder %s38, 1
      %p223 = scmp.ne.s32.totalorder %s218, %s220
      %p224 = scmp.eq.s32.totalorder %s38, 0
      %p225 = por %p223, %p224
      %p226 = scmp.ne.s32.totalorder %s218, %s220
      %p227 = scmp.eq.s32.totalorder %s43, 1
      %p228 = por %p226, %p227
      %p229 = scmp.ne.s32.totalorder %s220, %s221
      %p230 = scmp.eq.s32.totalorder %s43, 0
      %p231 = por %p229, %p230
      %p232 = scmp.ne.s32.totalorder %s220, %s221
      %p233 = scmp.eq.s32.totalorder %s44, 1
      %p234 = por %p232, %p233
      %p236 = scmp.ne.s32.totalorder %s221, %s235
      %p237 = scmp.eq.s32.totalorder %s44, 0
      %p238 = por %p236, %p237
      %s240 = sadd.s32 %s239, 1
      %p243 = scmp.eq.s32.totalorder %s38, 1
      %p244 = scmp.ne.s32.totalorder %s239, %s241
      %p245 = scmp.eq.s32.totalorder %s38, 0
      %p246 = por %p244, %p245
      %p247 = scmp.ne.s32.totalorder %s239, %s241
      %p248 = scmp.eq.s32.totalorder %s43, 1
      %p249 = por %p247, %p248
      %p250 = scmp.ne.s32.totalorder %s241, %s242
      %p251 = scmp.eq.s32.totalorder %s43, 0
      %p252 = por %p250, %p251
      %p253 = scmp.ne.s32.totalorder %s241, %s242
      %p254 = scmp.eq.s32.totalorder %s44, 1
      %p255 = por %p253, %p254
      %p257 = scmp.ne.s32.totalorder %s242, %s256
      %p258 = scmp.eq.s32.totalorder %s44, 0
      %p259 = por %p257, %p258
      %s261 = sadd.s32 %s260, 1
      %p264 = scmp.eq.s32.totalorder %s38, 1
      %p265 = scmp.ne.s32.totalorder %s260, %s262
      %p266 = scmp.eq.s32.totalorder %s38, 0
      %p267 = por %p265, %p266
      %p268 = scmp.ne.s32.totalorder %s260, %s262
      %p269 = scmp.eq.s32.totalorder %s43, 1
      %p270 = por %p268, %p269
      %p271 = scmp.ne.s32.totalorder %s262, %s263
      %p272 = scmp.eq.s32.totalorder %s43, 0
      %p273 = por %p271, %p272
      %p274 = scmp.ne.s32.totalorder %s262, %s263
      %p275 = scmp.eq.s32.totalorder %s44, 1
      %p276 = por %p274, %p275
      %p278 = scmp.ne.s32.totalorder %s263, %s277
      %p279 = scmp.eq.s32.totalorder %s44, 0
      %p280 = por %p278, %p279
      %s282 = sadd.s32 %s281, 1
      %p285 = scmp.eq.s32.totalorder %s38, 1
      %p286 = scmp.ne.s32.totalorder %s281, %s283
      %p287 = scmp.eq.s32.totalorder %s38, 0
      %p288 = por %p286, %p287
      %p289 = scmp.ne.s32.totalorder %s281, %s283
      %p290 = scmp.eq.s32.totalorder %s43, 1
      %p291 = por %p289, %p290
      %p292 = scmp.ne.s32.totalorder %s283, %s284
      %p293 = scmp.eq.s32.totalorder %s43, 0
      %p294 = por %p292, %p293
      %p295 = scmp.ne.s32.totalorder %s283, %s284
      %p296 = scmp.eq.s32.totalorder %s44, 1
      %p297 = por %p295, %p296
      %p299 = scmp.ne.s32.totalorder %s284, %s298
      %p300 = scmp.eq.s32.totalorder %s44, 0
      %p301 = por %p299, %p300
      %s303 = sadd.s32 %s302, 1
      %p306 = scmp.eq.s32.totalorder %s38, 1
      %p307 = scmp.ne.s32.totalorder %s302, %s304
      %p308 = scmp.eq.s32.totalorder %s38, 0
      %p309 = por %p307, %p308
      %p310 = scmp.ne.s32.totalorder %s302, %s304
      %p311 = scmp.eq.s32.totalorder %s43, 1
      %p312 = por %p310, %p311
      %p313 = scmp.ne.s32.totalorder %s304, %s305
      %p314 = scmp.eq.s32.totalorder %s43, 0
      %p315 = por %p313, %p314
      %p316 = scmp.ne.s32.totalorder %s304, %s305
      %p317 = scmp.eq.s32.totalorder %s44, 1
      %p318 = por %p316, %p317
      %p320 = scmp.ne.s32.totalorder %s305, %s319
      %p321 = scmp.eq.s32.totalorder %s44, 0
      %p322 = por %p320, %p321
      %s324 = sadd.s32 %s323, 1
      %p327 = scmp.eq.s32.totalorder %s38, 1
      %p328 = scmp.ne.s32.totalorder %s323, %s325
      %p329 = scmp.eq.s32.totalorder %s38, 0
      %p330 = por %p328, %p329
      %p331 = scmp.ne.s32.totalorder %s323, %s325
      %p332 = scmp.eq.s32.totalorder %s43, 1
      %p333 = por %p331, %p332
      %p334 = scmp.ne.s32.totalorder %s325, %s326
      %p335 = scmp.eq.s32.totalorder %s43, 0
      %p336 = por %p334, %p335
      %p337 = scmp.ne.s32.totalorder %s325, %s326
      %p338 = scmp.eq.s32.totalorder %s44, 1
      %p339 = por %p337, %p338
      %p341 = scmp.ne.s32.totalorder %s326, %s340
      %p342 = scmp.eq.s32.totalorder %s44, 0
      %p343 = por %p341, %p342
      %s345 = sadd.s32 %s344, 1
      %p348 = scmp.eq.s32.totalorder %s38, 1
      %p349 = scmp.ne.s32.totalorder %s344, %s346
      %p350 = scmp.eq.s32.totalorder %s38, 0
      %p351 = por %p349, %p350
      %p352 = scmp.ne.s32.totalorder %s344, %s346
      %p353 = scmp.eq.s32.totalorder %s43, 1
      %p354 = por %p352, %p353
      %p355 = scmp.ne.s32.totalorder %s346, %s347
      %p356 = scmp.eq.s32.totalorder %s43, 0
      %p357 = por %p355, %p356
      %p358 = scmp.ne.s32.totalorder %s346, %s347
      %p359 = scmp.eq.s32.totalorder %s44, 1
      %p360 = por %p358, %p359
      %p362 = scmp.ne.s32.totalorder %s347, %s361
      %p363 = scmp.eq.s32.totalorder %s44, 0
      %p364 = por %p362, %p363
      %s366 = sadd.s32 %s365, 1
      %p369 = scmp.eq.s32.totalorder %s38, 1
      %p370 = scmp.ne.s32.totalorder %s365, %s367
      %p371 = scmp.eq.s32.totalorder %s38, 0
      %p372 = por %p370, %p371
      %p373 = scmp.ne.s32.totalorder %s365, %s367
      %p374 = scmp.eq.s32.totalorder %s43, 1
      %p375 = por %p373, %p374
      %p376 = scmp.ne.s32.totalorder %s367, %s368
      %p377 = scmp.eq.s32.totalorder %s43, 0
      %p378 = por %p376, %p377
      %p379 = scmp.ne.s32.totalorder %s367, %s368
      %p380 = scmp.eq.s32.totalorder %s44, 1
      %p381 = por %p379, %p380
      %p383 = scmp.ne.s32.totalorder %s368, %s382
      %p384 = scmp.eq.s32.totalorder %s44, 0
      %p385 = por %p383, %p384
      %s387 = sadd.s32 %s386, 1
      %p390 = scmp.eq.s32.totalorder %s38, 1
      %p391 = scmp.ne.s32.totalorder %s386, %s388
      %p392 = scmp.eq.s32.totalorder %s38, 0
      %p393 = por %p391, %p392
      %p394 = scmp.ne.s32.totalorder %s386, %s388
      %p395 = scmp.eq.s32.totalorder %s43, 1
      %p396 = por %p394, %p395
      %p397 = scmp.ne.s32.totalorder %s388, %s389
      %p398 = scmp.eq.s32.totalorder %s43, 0
      %p399 = por %p397, %p398
      %p400 = scmp.ne.s32.totalorder %s388, %s389
      %p401 = scmp.eq.s32.totalorder %s44, 1
      %p402 = por %p400, %p401
      %p404 = scmp.ne.s32.totalorder %s389, %s403
      %p405 = scmp.eq.s32.totalorder %s44, 0
      %p406 = por %p404, %p405
      %s408 = sadd.s32 %s407, 1
      %p411 = scmp.eq.s32.totalorder %s38, 1
      %p412 = scmp.ne.s32.totalorder %s407, %s409
      %p413 = scmp.eq.s32.totalorder %s38, 0
      %p414 = por %p412, %p413
      %p415 = scmp.ne.s32.totalorder %s407, %s409
      %p416 = scmp.eq.s32.totalorder %s43, 1
      %p417 = por %p415, %p416
      %p418 = scmp.ne.s32.totalorder %s409, %s410
      %p419 = scmp.eq.s32.totalorder %s43, 0
      %p420 = por %p418, %p419
      %p421 = scmp.ne.s32.totalorder %s409, %s410
      %p422 = scmp.eq.s32.totalorder %s44, 1
      %p423 = por %p421, %p422
      %p425 = scmp.ne.s32.totalorder %s410, %s424
      %p426 = scmp.eq.s32.totalorder %s44, 0
      %p427 = por %p425, %p426
      %s428 = ssub.s32 %s38, %s45
      %p429 = scmp.eq.s32.totalorder %s428, 0
      %s431 = sadd.s32 %s430, 1
      %s432 = scalar_select %p429, %s430, %s431
      %p435 = pneg %p429
      %p436 = scmp.eq.s32.totalorder %s38, 1
      %p437 = por %p435, %p436
      %p438 = scmp.ne.s32.totalorder %s430, %s433
      %p439 = scmp.eq.s32.totalorder %s38, 0
      %p440 = por %p438, %p439
      %p441 = scmp.ne.s32.totalorder %s430, %s433
      %p442 = scmp.eq.s32.totalorder %s43, 1
      %p443 = por %p441, %p442
      %p444 = scmp.ne.s32.totalorder %s433, %s434
      %p445 = scmp.eq.s32.totalorder %s43, 0
      %p446 = por %p444, %p445
      %p447 = scmp.ne.s32.totalorder %s433, %s434
      %p448 = scmp.eq.s32.totalorder %s44, 1
      %p449 = por %p447, %p448
      %p451 = scmp.ne.s32.totalorder %s434, %s450
      %p452 = scmp.eq.s32.totalorder %s44, 0
      %p453 = por %p451, %p452
      %p454 = scmp.le.s32.totalorder 1, %s38
      %p455 = scmp.lt.s32.totalorder %s38, 3
      %p456 = pnand %p454, %p455
      %p457 = pneg %p456
      // Predicated region
      $region9: #{tpu_custom_call.1} parent=5 // pred_check
        _
      $region10: #{tpu_custom_call.1} parent=5 // pred_check_branch
        %459 = sbr.rel (%p456) target = $region12
      $region11: #{tpu_custom_call.1} parent=5 // pred_region
        %s460 = ssub.s32 %s38, 1
        // Predicated region
        $region13: #{tpu_custom_call.1} parent=11 // pred_check
          %p461 = pneg %p189
        $region14: #{tpu_custom_call.1} parent=11 // pred_check_branch
          %463 = sbr.rel (%p461) target = $region16
        $region15: #{tpu_custom_call.1} parent=11 // pred_region
          _
        $region16: #{tpu_custom_call.1} parent=11 // pred_fallthru
          _
        // Predicated region
        $region17: #{tpu_custom_call.1} parent=11 // pred_check
          %p464 = pneg %p210
        $region18: #{tpu_custom_call.1} parent=11 // pred_check_branch
          %466 = sbr.rel (%p464) target = $region20
        $region19: #{tpu_custom_call.1} parent=11 // pred_region
          %468 = vsyncadd [#allocation9], 0
          %s469 = sshll.u32 %s6, 4
          %s470 = int_to_ptr.hbm [resolvable:$true] %s469
          %s471 = sshll.u32 [#allocation10], 4
          %s472 = int_to_ptr.vmem [resolvable:$true] %s471
          %477 = dma.hbm_to_vmem [thread:$0]  %s470, 256, %s472, [#allocation9], 128, 128, 8
        $region20: #{tpu_custom_call.1} parent=11 // pred_fallthru
          _
        // Predicated region
        $region21: #{tpu_custom_call.1} parent=11 // pred_check
          %p478 = pneg %p231
        $region22: #{tpu_custom_call.1} parent=11 // pred_check_branch
          %480 = sbr.rel (%p478) target = $region24
        $region23: #{tpu_custom_call.1} parent=11 // pred_region
          %482 = vsyncadd [#allocation12], 0
          %s483 = sshll.u32 %s7, 4
          %s484 = int_to_ptr.hbm [resolvable:$true] %s483
          %s485 = sshll.u32 [#allocation11], 4
          %s486 = int_to_ptr.vmem [resolvable:$true] %s485
          %491 = dma.hbm_to_vmem [thread:$0]  %s484, 15360, %s486, [#allocation12], 320, 320, 20
        $region24: #{tpu_custom_call.1} parent=11 // pred_fallthru
          _
        // Predicated region
        $region25: #{tpu_custom_call.1} parent=11 // pred_check
          %p492 = pneg %p252
        $region26: #{tpu_custom_call.1} parent=11 // pred_check_branch
          %494 = sbr.rel (%p492) target = $region28
        $region27: #{tpu_custom_call.1} parent=11 // pred_region
          %496 = vsyncadd [#allocation12], 0
          %s497 = sshll.u32 %s8, 4
          %s498 = int_to_ptr.hbm [resolvable:$true] %s497
          %s499 = sshll.u32 [#allocation13], 4
          %s500 = int_to_ptr.vmem [resolvable:$true] %s499
          %505 = dma.hbm_to_vmem [thread:$0]  %s498, 240, %s500, [#allocation12], 80, 80, 5
        $region28: #{tpu_custom_call.1} parent=11 // pred_fallthru
          _
        // Predicated region
        $region29: #{tpu_custom_call.1} parent=11 // pred_check
          %p506 = pneg %p273
        $region30: #{tpu_custom_call.1} parent=11 // pred_check_branch
          %508 = sbr.rel (%p506) target = $region32
        $region31: #{tpu_custom_call.1} parent=11 // pred_region
          %510 = vsyncadd [#allocation15], 0
          %s511 = sshll.u32 %s9, 4
          %s512 = int_to_ptr.hbm [resolvable:$true] %s511
          %s513 = sshll.u32 [#allocation14], 4
          %s514 = int_to_ptr.vmem [resolvable:$true] %s513
          %519 = dma.hbm_to_vmem [thread:$0]  %s512, 3072, %s514, [#allocation15], 64, 64, 4
        $region32: #{tpu_custom_call.1} parent=11 // pred_fallthru
          _
        // Predicated region
        $region33: #{tpu_custom_call.1} parent=11 // pred_check
          %p520 = pneg %p294
        $region34: #{tpu_custom_call.1} parent=11 // pred_check_branch
          %522 = sbr.rel (%p520) target = $region36
        $region35: #{tpu_custom_call.1} parent=11 // pred_region
          _
        $region36: #{tpu_custom_call.1} parent=11 // pred_fallthru
          _
        // Predicated region
        $region37: #{tpu_custom_call.1} parent=11 // pred_check
          %p523 = pneg %p315
        $region38: #{tpu_custom_call.1} parent=11 // pred_check_branch
          %525 = sbr.rel (%p523) target = $region40
        $region39: #{tpu_custom_call.1} parent=11 // pred_region
          _
        $region40: #{tpu_custom_call.1} parent=11 // pred_fallthru
          _
        // Predicated region
        $region41: #{tpu_custom_call.1} parent=11 // pred_check
          %p526 = pneg %p336
        $region42: #{tpu_custom_call.1} parent=11 // pred_check_branch
          %528 = sbr.rel (%p526) target = $region44
        $region43: #{tpu_custom_call.1} parent=11 // pred_region
          %530 = vsyncadd [#allocation15], 0
          %s531 = sshll.u32 %s12, 4
          %s532 = int_to_ptr.hbm [resolvable:$true] %s531
          %s533 = sshll.u32 [#allocation16], 4
          %s534 = int_to_ptr.vmem [resolvable:$true] %s533
          %539 = dma.hbm_to_vmem [thread:$0]  %s532, 96, %s534, [#allocation15], 16, 16, 1
        $region44: #{tpu_custom_call.1} parent=11 // pred_fallthru
          _
        // Predicated region
        $region45: #{tpu_custom_call.1} parent=11 // pred_check
          %p540 = pneg %p357
        $region46: #{tpu_custom_call.1} parent=11 // pred_check_branch
          %542 = sbr.rel (%p540) target = $region48
        $region47: #{tpu_custom_call.1} parent=11 // pred_region
          %544 = vsyncadd [#allocation18], 0
          %s545 = sshll.u32 %s13, 4
          %s546 = int_to_ptr.hbm [resolvable:$true] %s545
          %s547 = sshll.u32 [#allocation17], 4
          %s548 = int_to_ptr.vmem [resolvable:$true] %s547
          %553 = dma.hbm_to_vmem [thread:$0]  %s546, 3072, %s548, [#allocation18], 64, 64, 4
        $region48: #{tpu_custom_call.1} parent=11 // pred_fallthru
          _
        // Predicated region
        $region49: #{tpu_custom_call.1} parent=11 // pred_check
          %p554 = pneg %p378
        $region50: #{tpu_custom_call.1} parent=11 // pred_check_branch
          %556 = sbr.rel (%p554) target = $region52
        $region51: #{tpu_custom_call.1} parent=11 // pred_region
          _
        $region52: #{tpu_custom_call.1} parent=11 // pred_fallthru
          _
        // Predicated region
        $region53: #{tpu_custom_call.1} parent=11 // pred_check
          %p557 = pneg %p399
        $region54: #{tpu_custom_call.1} parent=11 // pred_check_branch
          %559 = sbr.rel (%p557) target = $region56
        $region55: #{tpu_custom_call.1} parent=11 // pred_region
          _
        $region56: #{tpu_custom_call.1} parent=11 // pred_fallthru
          _
        // Predicated region
        $region57: #{tpu_custom_call.1} parent=11 // pred_check
          %p560 = pneg %p420
        $region58: #{tpu_custom_call.1} parent=11 // pred_check_branch
          %562 = sbr.rel (%p560) target = $region60
        $region59: #{tpu_custom_call.1} parent=11 // pred_region
          _
        $region60: #{tpu_custom_call.1} parent=11 // pred_fallthru
          _
      $region12: #{tpu_custom_call.1} parent=5 // pred_fallthru
        _
      %p563 = scmp.lt.s32.totalorder %s38, 2
      // Predicated region
      $region61: #{tpu_custom_call.1} parent=5 // pred_check
        %p564 = pneg %p563
      $region62: #{tpu_custom_call.1} parent=5 // pred_check_branch
        %566 = sbr.rel (%p564) target = $region64
      $region63: #{tpu_custom_call.1} parent=5 // pred_region
        // Predicated region
        $region65: #{tpu_custom_call.1} parent=63 // pred_check
          %p567 = pneg %p58
        $region66: #{tpu_custom_call.1} parent=63 // pred_check_branch
          %569 = sbr.rel (%p567) target = $region68
        $region67: #{tpu_custom_call.1} parent=63 // pred_region
          %p570 = scmp.lt.s32.totalorder %s38, 1
          %s571 = scalar_select %p570, %s38, 1
          %s572 = smul.addr %s571, 2
          %s573 = smul.addr %s572, 8
          %s574 = scalar_lea.vmem %s0, %s573
        $region68: #{tpu_custom_call.1} parent=63 // pred_fallthru
          _
        // Predicated region
        $region69: #{tpu_custom_call.1} parent=63 // pred_check
          %p575 = pneg %p84
        $region70: #{tpu_custom_call.1} parent=63 // pred_check_branch
          %577 = sbr.rel (%p575) target = $region72
        $region71: #{tpu_custom_call.1} parent=63 // pred_region
          %s578 = sand.u32 %s74, 1
          %s579 = scalar_lea.sflag [#allocation3], %s578
          %s580 = sand.u32 %s74, 1
          %s581 = smul.addr %s580, 256
          %s582 = scalar_lea.vmem [#allocation2], %s581
          %584 = vsyncadd %s579, 0
          %s585 = smul.addr %s38, 32
          %s586 = smul.addr %s585, 8
          %s587 = scalar_lea.hbm %s1, %s586
          %s588 = sshll.u32 %s587, 4
          %s589 = int_to_ptr.hbm [resolvable:$true] %s588
          %s590 = sshll.u32 %s582, 4
          %s591 = int_to_ptr.vmem [resolvable:$true] %s590
          %596 = dma.hbm_to_vmem [thread:$0]  %s589, 4096, %s591, %s579, 128, 128, 8
        $region72: #{tpu_custom_call.1} parent=63 // pred_fallthru
          _
        // Predicated region
        $region73: #{tpu_custom_call.1} parent=63 // pred_check
          %p597 = pneg %p110
        $region74: #{tpu_custom_call.1} parent=63 // pred_check_branch
          %599 = sbr.rel (%p597) target = $region76
        $region75: #{tpu_custom_call.1} parent=63 // pred_region
          %s600 = sand.u32 %s38, 1
          %s601 = scalar_lea.sflag [#allocation6], %s600
          %s602 = sand.u32 %s100, 1
          %s603 = smul.addr %s602, 256
          %s604 = scalar_lea.vmem [#allocation5], %s603
          %606 = vsyncadd %s601, 0
          %s607 = smul.addr %s38, 32
          %s608 = smul.addr %s607, 8
          %s609 = scalar_lea.hbm %s2, %s608
          %s610 = sshll.u32 %s609, 4
          %s611 = int_to_ptr.hbm [resolvable:$true] %s610
          %s612 = sshll.u32 %s604, 4
          %s613 = int_to_ptr.vmem [resolvable:$true] %s612
          %618 = dma.hbm_to_vmem [thread:$0]  %s611, 4096, %s613, %s601, 128, 128, 8
        $region76: #{tpu_custom_call.1} parent=63 // pred_fallthru
          _
        // Predicated region
        $region77: #{tpu_custom_call.1} parent=63 // pred_check
          %p619 = pneg %p136
        $region78: #{tpu_custom_call.1} parent=63 // pred_check_branch
          %621 = sbr.rel (%p619) target = $region80
        $region79: #{tpu_custom_call.1} parent=63 // pred_region
          %s622 = sand.u32 %s38, 1
          %s623 = scalar_lea.sflag [#allocation6], %s622
          %s624 = sand.u32 %s126, 1
          %s625 = scalar_lea.vmem [#allocation7], %s624
          %627 = vsyncadd %s623, 0
          %s628 = scalar_lea.hbm %s3, %s38
          %s630 = sshll.u32 %s628, 4
          %s631 = int_to_ptr.hbm [resolvable:$true] %s630
          %s632 = sshll.u32 %s625, 4
          %s633 = int_to_ptr.vmem [resolvable:$true] %s632
          %635 = dma.hbm_to_vmem [thread:$0]  %s631, 16, %s633, %s623
        $region80: #{tpu_custom_call.1} parent=63 // pred_fallthru
          _
        // Predicated region
        $region81: #{tpu_custom_call.1} parent=63 // pred_check
          %p636 = pneg %p162
        $region82: #{tpu_custom_call.1} parent=63 // pred_check_branch
          %638 = sbr.rel (%p636) target = $region84
        $region83: #{tpu_custom_call.1} parent=63 // pred_region
          %s639 = sand.u32 %s38, 1
          %s640 = scalar_lea.sflag [#allocation9], %s639
          %s641 = sand.u32 %s152, 1
          %s642 = scalar_lea.vmem [#allocation8], %s641
          %644 = vsyncadd %s640, 0
          %s645 = scalar_lea.hbm %s4, %s38
          %s647 = sshll.u32 %s645, 4
          %s648 = int_to_ptr.hbm [resolvable:$true] %s647
          %s649 = sshll.u32 %s642, 4
          %s650 = int_to_ptr.vmem [resolvable:$true] %s649
          %652 = dma.hbm_to_vmem [thread:$0]  %s648, 16, %s650, %s640
        $region84: #{tpu_custom_call.1} parent=63 // pred_fallthru
          _
      $region64: #{tpu_custom_call.1} parent=5 // pred_fallthru
        _
      %p653 = scmp.le.s32.totalorder 1, %s38
      %p654 = scmp.lt.s32.totalorder %s38, 3
      %p655 = pnand %p653, %p654
      %p656 = pneg %p655
      // Predicated region
      $region85: #{tpu_custom_call.1} parent=5 // pred_check
        _
      $region86: #{tpu_custom_call.1} parent=5 // pred_check_branch
        %658 = sbr.rel (%p655) target = $region88
      $region87: #{tpu_custom_call.1} parent=5 // pred_region
        %s659 = ssub.s32 %s38, 1
        %s660 = sand.u32 %s77, 1
        %s661 = scalar_lea.sflag [#allocation3], %s660
        %s662 = sand.u32 %s77, 1
        %s663 = smul.addr %s662, 256
        %s664 = scalar_lea.vmem [#allocation2], %s663
        // Predicated region
        $region89: #{tpu_custom_call.1} parent=87 // pred_check
          %p665 = pneg %p90
        $region90: #{tpu_custom_call.1} parent=87 // pred_check_branch
          %667 = sbr.rel (%p665) target = $region92
        $region91: #{tpu_custom_call.1} parent=87 // pred_region
          %669 = dma.done %s661, 4096
        $region92: #{tpu_custom_call.1} parent=87 // pred_fallthru
          _
        %s670 = sand.u32 %s43, 1
        %s671 = scalar_lea.sflag [#allocation6], %s670
        %s672 = sand.u32 %s103, 1
        %s673 = smul.addr %s672, 256
        %s674 = scalar_lea.vmem [#allocation5], %s673
        // Predicated region
        $region93: #{tpu_custom_call.1} parent=87 // pred_check
          %p675 = pneg %p116
        $region94: #{tpu_custom_call.1} parent=87 // pred_check_branch
          %677 = sbr.rel (%p675) target = $region96
        $region95: #{tpu_custom_call.1} parent=87 // pred_region
          %679 = dma.done %s671, 4096
        $region96: #{tpu_custom_call.1} parent=87 // pred_fallthru
          _
        %s680 = sand.u32 %s43, 1
        %s681 = scalar_lea.sflag [#allocation6], %s680
        %s682 = sand.u32 %s129, 1
        %s683 = scalar_lea.vmem [#allocation7], %s682
        // Predicated region
        $region97: #{tpu_custom_call.1} parent=87 // pred_check
          %p684 = pneg %p142
        $region98: #{tpu_custom_call.1} parent=87 // pred_check_branch
          %686 = sbr.rel (%p684) target = $region100
        $region99: #{tpu_custom_call.1} parent=87 // pred_region
          %688 = dma.done %s681, 16
        $region100: #{tpu_custom_call.1} parent=87 // pred_fallthru
          _
        %s689 = sand.u32 %s43, 1
        %s690 = scalar_lea.sflag [#allocation9], %s689
        %s691 = sand.u32 %s155, 1
        %s692 = scalar_lea.vmem [#allocation8], %s691
        // Predicated region
        $region101: #{tpu_custom_call.1} parent=87 // pred_check
          %p693 = pneg %p168
        $region102: #{tpu_custom_call.1} parent=87 // pred_check_branch
          %695 = sbr.rel (%p693) target = $region104
        $region103: #{tpu_custom_call.1} parent=87 // pred_region
          %697 = dma.done %s690, 16
        $region104: #{tpu_custom_call.1} parent=87 // pred_fallthru
          _
        // Predicated region
        $region105: #{tpu_custom_call.1} parent=87 // pred_check
          %p698 = pneg %p210
        $region106: #{tpu_custom_call.1} parent=87 // pred_check_branch
          %700 = sbr.rel (%p698) target = $region108
        $region107: #{tpu_custom_call.1} parent=87 // pred_region
          %702 = dma.done [#allocation9], 256
        $region108: #{tpu_custom_call.1} parent=87 // pred_fallthru
          _
        // Predicated region
        $region109: #{tpu_custom_call.1} parent=87 // pred_check
          %p703 = pneg %p231
        $region110: #{tpu_custom_call.1} parent=87 // pred_check_branch
          %705 = sbr.rel (%p703) target = $region112
        $region111: #{tpu_custom_call.1} parent=87 // pred_region
          %707 = dma.done [#allocation12], 15360
        $region112: #{tpu_custom_call.1} parent=87 // pred_fallthru
          _
        // Predicated region
        $region113: #{tpu_custom_call.1} parent=87 // pred_check
          %p708 = pneg %p252
        $region114: #{tpu_custom_call.1} parent=87 // pred_check_branch
          %710 = sbr.rel (%p708) target = $region116
        $region115: #{tpu_custom_call.1} parent=87 // pred_region
          %712 = dma.done [#allocation12], 240
        $region116: #{tpu_custom_call.1} parent=87 // pred_fallthru
          _
        // Predicated region
        $region117: #{tpu_custom_call.1} parent=87 // pred_check
          %p713 = pneg %p273
        $region118: #{tpu_custom_call.1} parent=87 // pred_check_branch
          %715 = sbr.rel (%p713) target = $region120
        $region119: #{tpu_custom_call.1} parent=87 // pred_region
          %717 = dma.done [#allocation15], 3072
        $region120: #{tpu_custom_call.1} parent=87 // pred_fallthru
          _
        // Predicated region
        $region121: #{tpu_custom_call.1} parent=87 // pred_check
          %p718 = pneg %p336
        $region122: #{tpu_custom_call.1} parent=87 // pred_check_branch
          %720 = sbr.rel (%p718) target = $region124
        $region123: #{tpu_custom_call.1} parent=87 // pred_region
          %722 = dma.done [#allocation15], 96
        $region124: #{tpu_custom_call.1} parent=87 // pred_fallthru
          _
        // Predicated region
        $region125: #{tpu_custom_call.1} parent=87 // pred_check
          %p723 = pneg %p357
        $region126: #{tpu_custom_call.1} parent=87 // pred_check_branch
          %725 = sbr.rel (%p723) target = $region128
        $region127: #{tpu_custom_call.1} parent=87 // pred_region
          %727 = dma.done [#allocation18], 3072
        $region128: #{tpu_custom_call.1} parent=87 // pred_fallthru
          _
        %p728 = scmp.lt.s32.totalorder %s43, 1
        %s729 = scalar_select %p728, %s43, 1
        %s730 = smul.addr %s729, 2
        %s731 = smul.addr %s730, 8
        %s732 = scalar_lea.vmem %s0, %s731
        %p733 = pneg %p64
        %p734 = pneg %p61
        %s735 = sand.u32 %s77, 1
        %s736 = scalar_lea.sflag [#allocation3], %s735
        %s737 = sand.u32 %s77, 1
        %s738 = smul.addr %s737, 256
        %s739 = scalar_lea.vmem [#allocation2], %s738
        %p740 = pneg %p90
        %p741 = pneg %p87
        %s742 = sand.u32 %s43, 1
        %s743 = scalar_lea.sflag [#allocation6], %s742
        %s744 = sand.u32 %s103, 1
        %s745 = smul.addr %s744, 256
        %s746 = scalar_lea.vmem [#allocation5], %s745
        %p747 = pneg %p116
        %p748 = pneg %p113
        %s749 = sand.u32 %s43, 1
        %s750 = scalar_lea.sflag [#allocation6], %s749
        %s751 = sand.u32 %s129, 1
        %s752 = scalar_lea.vmem [#allocation7], %s751
        %p753 = pneg %p142
        %p754 = pneg %p139
        %s755 = sand.u32 %s43, 1
        %s756 = scalar_lea.sflag [#allocation9], %s755
        %s757 = sand.u32 %s155, 1
        %s758 = scalar_lea.vmem [#allocation8], %s757
        %p759 = pneg %p168
        %p760 = pneg %p165
        %p761 = pneg %p189
        %p762 = pneg %p186
        %p763 = pneg %p210
        %p764 = pneg %p207
        %p765 = pneg %p231
        %p766 = pneg %p228
        %p767 = pneg %p252
        %p768 = pneg %p249
        %p769 = pneg %p273
        %p770 = pneg %p270
        %p771 = pneg %p294
        %p772 = pneg %p291
        %p773 = pneg %p315
        %p774 = pneg %p312
        %p775 = pneg %p336
        %p776 = pneg %p333
        %p777 = pneg %p357
        %p778 = pneg %p354
        %p779 = pneg %p378
        %p780 = pneg %p375
        %p781 = pneg %p399
        %p782 = pneg %p396
        %p783 = pneg %p420
        %p784 = pneg %p417
        %p785 = pneg %p446
        %p786 = pneg %p443
        %s787 = sand.u32 %s433, 1
        %s788 = scalar_lea.sflag [#allocation4], %s787
        %s789 = sand.u32 %s433, 1
        %s790 = scalar_lea.vmem [#allocation19], %s789
        %p791 = scmp.lt.s32.totalorder %s43, 1
        %s792 = scalar_select %p791, %s43, 1
        %s793 = smul.addr %s792, 2
        %s794 = smul.addr %s793, 8
        %s795 = scalar_lea.vmem %s0, %s794
        %v796 = vld [vmem:[%s795] sm:$0xff]
        %v797 = vld [vmem:[%s795 + $0x8] sm:$0xff]
        %v798 = vld [vmem:[%s5] sm:$0xff]
        %v799 = vld [vmem:[%s5 + $0x8] sm:$0xff]
        %v800 = vld [vmem:[%s5 + $0x10] sm:$0xff]
        %v801 = vld [vmem:[%s5 + $0x18] sm:$0xff]
        %vm802 = vcmask 261120
        %v804 = vsel %vm802, %v796, 0
        %v807 = vsel %vm802, %v797, 0
        %809 = vmatpush.msra.mxu0 0.0
        %810 = vmatpush.msra.mxu0 0.0
        %811 = vmatpush.msra.mxu0 0.0
        %812 = vmatpush.msra.mxu0 0.0
        %813 = vmatpush.msra.mxu0 0.0
        %814 = vmatpush.msra.mxu0 0.0
        %815 = vmatpush.msra.mxu0 0.0
        %816 = vmatpush.msra.mxu0 0.0
        %817 = vmatpush.msra.mxu0 0.0
        %818 = vmatpush.msra.mxu0 0.0
        %819 = vmatpush.msra.mxu0 0.0
        %820 = vmatpush.msra.mxu0 0.0
        %821 = vmatpush.msra.mxu0 %v801
        %822 = vmatpush.msra.mxu0 %v800
        %823 = vmatpush.msra.mxu0 %v799
        %824 = vmatpush.msra.mxu0 %v798
        %825 = vmatmul.f32.gmra.mxu0 %v804
        %v826 = vpop.f32.mrf.mxu0
        %v827 = vadd.f32 0.0, %v826
        %828 = vmatmul.f32.gmra.mxu0 %v807
        %v829 = vpop.f32.mrf.mxu0
        %v830 = vadd.f32 0.0, %v829
        %831 = vdwg.mxu0
        %v832 = vld [vmem:[%s664] sm:$0xff]
        %v833 = vld [vmem:[%s664 + $0x8] sm:$0xff]
        %v834 = vld [vmem:[%s664 + $0x10] sm:$0xff]
        %v835 = vld [vmem:[%s664 + $0x18] sm:$0xff]
        %v836 = vld [vmem:[%s664 + $0x20] sm:$0xff]
        %v837 = vld [vmem:[%s664 + $0x28] sm:$0xff]
        %v838 = vld [vmem:[%s664 + $0x30] sm:$0xff]
        %v839 = vld [vmem:[%s664 + $0x38] sm:$0xff]
        %v840 = vld [vmem:[%s664 + $0x40] sm:$0xff]
        %v841 = vld [vmem:[%s664 + $0x48] sm:$0xff]
        %v842 = vld [vmem:[%s664 + $0x50] sm:$0xff]
        %v843 = vld [vmem:[%s664 + $0x58] sm:$0xff]
        %v844 = vld [vmem:[%s664 + $0x60] sm:$0xff]
        %v845 = vld [vmem:[%s664 + $0x68] sm:$0xff]
        %v846 = vld [vmem:[%s664 + $0x70] sm:$0xff]
        %v847 = vld [vmem:[%s664 + $0x78] sm:$0xff]
        %v848 = vld [vmem:[%s664 + $0x80] sm:$0xff]
        %v849 = vld [vmem:[%s664 + $0x88] sm:$0xff]
        %v850 = vld [vmem:[%s664 + $0x90] sm:$0xff]
        %v851 = vld [vmem:[%s664 + $0x98] sm:$0xff]
        %v852 = vld [vmem:[%s664 + $0xa0] sm:$0xff]
        %v853 = vld [vmem:[%s664 + $0xa8] sm:$0xff]
        %v854 = vld [vmem:[%s664 + $0xb0] sm:$0xff]
        %v855 = vld [vmem:[%s664 + $0xb8] sm:$0xff]
        %v856 = vld [vmem:[%s664 + $0xc0] sm:$0xff]
        %v857 = vld [vmem:[%s664 + $0xc8] sm:$0xff]
        %v858 = vld [vmem:[%s664 + $0xd0] sm:$0xff]
        %v859 = vld [vmem:[%s664 + $0xd8] sm:$0xff]
        %v860 = vld [vmem:[%s664 + $0xe0] sm:$0xff]
        %v861 = vld [vmem:[%s664 + $0xe8] sm:$0xff]
        %v862 = vld [vmem:[%s664 + $0xf0] sm:$0xff]
        %v863 = vld [vmem:[%s664 + $0xf8] sm:$0xff]
        %v864 = vld [vmem:[#allocation10] sm:$0xff]
        %v865 = vld [vmem:[#allocation10 + $0x8] sm:$0xff]
        %vm866 = vcmask 130048
        %v868 = vsel %vm866, %v832, 0
        %v871 = vsel %vm866, %v833, 0
        %v874 = vsel %vm866, %v834, 0
        %v877 = vsel %vm866, %v835, 0
        %v880 = vsel %vm866, %v836, 0
        %v883 = vsel %vm866, %v837, 0
        %v886 = vsel %vm866, %v838, 0
        %v889 = vsel %vm866, %v839, 0
        %v892 = vsel %vm866, %v840, 0
        %v895 = vsel %vm866, %v841, 0
        %v898 = vsel %vm866, %v842, 0
        %v901 = vsel %vm866, %v843, 0
        %v904 = vsel %vm866, %v844, 0
        %v907 = vsel %vm866, %v845, 0
        %v910 = vsel %vm866, %v846, 0
        %v913 = vsel %vm866, %v847, 0
        %v916 = vsel %vm866, %v848, 0
        %v919 = vsel %vm866, %v849, 0
        %v922 = vsel %vm866, %v850, 0
        %v925 = vsel %vm866, %v851, 0
        %v928 = vsel %vm866, %v852, 0
        %v931 = vsel %vm866, %v853, 0
        %v934 = vsel %vm866, %v854, 0
        %v937 = vsel %vm866, %v855, 0
        %v940 = vsel %vm866, %v856, 0
        %v943 = vsel %vm866, %v857, 0
        %v946 = vsel %vm866, %v858, 0
        %v949 = vsel %vm866, %v859, 0
        %v952 = vsel %vm866, %v860, 0
        %v955 = vsel %vm866, %v861, 0
        %v958 = vsel %vm866, %v862, 0
        %v961 = vsel %vm866, %v863, 0
        %963 = vmatpush.msra.mxu0 0.0
        %964 = vmatpush.msra.mxu0 0.0
        %965 = vmatpush.msra.mxu0 0.0
        %966 = vmatpush.msra.mxu0 0.0
        %967 = vmatpush.msra.mxu0 0.0
        %968 = vmatpush.msra.mxu0 0.0
        %969 = vmatpush.msra.mxu0 0.0
        %970 = vmatpush.msra.mxu0 0.0
        %971 = vmatpush.msra.mxu0 0.0
        %972 = vmatpush.msra.mxu0 0.0
        %973 = vmatpush.msra.mxu0 0.0
        %974 = vmatpush.msra.mxu0 0.0
        %975 = vmatpush.msra.mxu0 0.0
        %976 = vmatpush.msra.mxu0 0.0
        %977 = vmatpush.msra.mxu0 %v865
        %978 = vmatpush.msra.mxu0 %v864
        %979 = vmatmul.f32.gmra.mxu0 %v868
        %v980 = vpop.f32.mrf.mxu0
        %v981 = vadd.f32 0.0, %v980
        %982 = vmatmul.f32.gmra.mxu0 %v871
        %v983 = vpop.f32.mrf.mxu0
        %v984 = vadd.f32 0.0, %v983
        %985 = vmatmul.f32.gmra.mxu0 %v874
        %v986 = vpop.f32.mrf.mxu0
        %v987 = vadd.f32 0.0, %v986
        %988 = vmatmul.f32.gmra.mxu0 %v877
        %v989 = vpop.f32.mrf.mxu0
        %v990 = vadd.f32 0.0, %v989
        %991 = vmatmul.f32.gmra.mxu0 %v880
        %v992 = vpop.f32.mrf.mxu0
        %v993 = vadd.f32 0.0, %v992
        %994 = vmatmul.f32.gmra.mxu0 %v883
        %v995 = vpop.f32.mrf.mxu0
        %v996 = vadd.f32 0.0, %v995
        %997 = vmatmul.f32.gmra.mxu0 %v886
        %v998 = vpop.f32.mrf.mxu0
        %v999 = vadd.f32 0.0, %v998
        %1000 = vmatmul.f32.gmra.mxu0 %v889
        %v1001 = vpop.f32.mrf.mxu0
        %v1002 = vadd.f32 0.0, %v1001
        %1003 = vmatmul.f32.gmra.mxu0 %v892
        %v1004 = vpop.f32.mrf.mxu0
        %v1005 = vadd.f32 0.0, %v1004
        %1006 = vmatmul.f32.gmra.mxu0 %v895
        %v1007 = vpop.f32.mrf.mxu0
        %v1008 = vadd.f32 0.0, %v1007
        %1009 = vmatmul.f32.gmra.mxu0 %v898
        %v1010 = vpop.f32.mrf.mxu0
        %v1011 = vadd.f32 0.0, %v1010
        %1012 = vmatmul.f32.gmra.mxu0 %v901
        %v1013 = vpop.f32.mrf.mxu0
        %v1014 = vadd.f32 0.0, %v1013
        %1015 = vmatmul.f32.gmra.mxu0 %v904
        %v1016 = vpop.f32.mrf.mxu0
        %v1017 = vadd.f32 0.0, %v1016
        %1018 = vmatmul.f32.gmra.mxu0 %v907
        %v1019 = vpop.f32.mrf.mxu0
        %v1020 = vadd.f32 0.0, %v1019
        %1021 = vmatmul.f32.gmra.mxu0 %v910
        %v1022 = vpop.f32.mrf.mxu0
        %v1023 = vadd.f32 0.0, %v1022
        %1024 = vmatmul.f32.gmra.mxu0 %v913
        %v1025 = vpop.f32.mrf.mxu0
        %v1026 = vadd.f32 0.0, %v1025
        %1027 = vmatmul.f32.gmra.mxu0 %v916
        %v1028 = vpop.f32.mrf.mxu0
        %v1029 = vadd.f32 0.0, %v1028
        %1030 = vmatmul.f32.gmra.mxu0 %v919
        %v1031 = vpop.f32.mrf.mxu0
        %v1032 = vadd.f32 0.0, %v1031
        %1033 = vmatmul.f32.gmra.mxu0 %v922
        %v1034 = vpop.f32.mrf.mxu0
        %v1035 = vadd.f32 0.0, %v1034
        %1036 = vmatmul.f32.gmra.mxu0 %v925
        %v1037 = vpop.f32.mrf.mxu0
        %v1038 = vadd.f32 0.0, %v1037
        %1039 = vmatmul.f32.gmra.mxu0 %v928
        %v1040 = vpop.f32.mrf.mxu0
        %v1041 = vadd.f32 0.0, %v1040
        %1042 = vmatmul.f32.gmra.mxu0 %v931
        %v1043 = vpop.f32.mrf.mxu0
        %v1044 = vadd.f32 0.0, %v1043
        %1045 = vmatmul.f32.gmra.mxu0 %v934
        %v1046 = vpop.f32.mrf.mxu0
        %v1047 = vadd.f32 0.0, %v1046
        %1048 = vmatmul.f32.gmra.mxu0 %v937
        %v1049 = vpop.f32.mrf.mxu0
        %v1050 = vadd.f32 0.0, %v1049
        %1051 = vmatmul.f32.gmra.mxu0 %v940
        %v1052 = vpop.f32.mrf.mxu0
        %v1053 = vadd.f32 0.0, %v1052
        %1054 = vmatmul.f32.gmra.mxu0 %v943
        %v1055 = vpop.f32.mrf.mxu0
        %v1056 = vadd.f32 0.0, %v1055
        %1057 = vmatmul.f32.gmra.mxu0 %v946
        %v1058 = vpop.f32.mrf.mxu0
        %v1059 = vadd.f32 0.0, %v1058
        %1060 = vmatmul.f32.gmra.mxu0 %v949
        %v1061 = vpop.f32.mrf.mxu0
        %v1062 = vadd.f32 0.0, %v1061
        %1063 = vmatmul.f32.gmra.mxu0 %v952
        %v1064 = vpop.f32.mrf.mxu0
        %v1065 = vadd.f32 0.0, %v1064
        %1066 = vmatmul.f32.gmra.mxu0 %v955
        %v1067 = vpop.f32.mrf.mxu0
        %v1068 = vadd.f32 0.0, %v1067
        %1069 = vmatmul.f32.gmra.mxu0 %v958
        %v1070 = vpop.f32.mrf.mxu0
        %v1071 = vadd.f32 0.0, %v1070
        %1072 = vmatmul.f32.gmra.mxu0 %v961
        %v1073 = vpop.f32.mrf.mxu0
        %v1074 = vadd.f32 0.0, %v1073
        %1075 = vdwg.mxu0
        %v1076 = vld [vmem:[%s674] sm:$0xff]
        %v1077 = vld [vmem:[%s674 + $0x8] sm:$0xff]
        %v1078 = vld [vmem:[%s674 + $0x10] sm:$0xff]
        %v1079 = vld [vmem:[%s674 + $0x18] sm:$0xff]
        %v1080 = vld [vmem:[%s674 + $0x20] sm:$0xff]
        %v1081 = vld [vmem:[%s674 + $0x28] sm:$0xff]
        %v1082 = vld [vmem:[%s674 + $0x30] sm:$0xff]
        %v1083 = vld [vmem:[%s674 + $0x38] sm:$0xff]
        %v1084 = vld [vmem:[%s674 + $0x40] sm:$0xff]
        %v1085 = vld [vmem:[%s674 + $0x48] sm:$0xff]
        %v1086 = vld [vmem:[%s674 + $0x50] sm:$0xff]
        %v1087 = vld [vmem:[%s674 + $0x58] sm:$0xff]
        %v1088 = vld [vmem:[%s674 + $0x60] sm:$0xff]
        %v1089 = vld [vmem:[%s674 + $0x68] sm:$0xff]
        %v1090 = vld [vmem:[%s674 + $0x70] sm:$0xff]
        %v1091 = vld [vmem:[%s674 + $0x78] sm:$0xff]
        %v1092 = vld [vmem:[%s674 + $0x80] sm:$0xff]
        %v1093 = vld [vmem:[%s674 + $0x88] sm:$0xff]
        %v1094 = vld [vmem:[%s674 + $0x90] sm:$0xff]
        %v1095 = vld [vmem:[%s674 + $0x98] sm:$0xff]
        %v1096 = vld [vmem:[%s674 + $0xa0] sm:$0xff]
        %v1097 = vld [vmem:[%s674 + $0xa8] sm:$0xff]
        %v1098 = vld [vmem:[%s674 + $0xb0] sm:$0xff]
        %v1099 = vld [vmem:[%s674 + $0xb8] sm:$0xff]
        %v1100 = vld [vmem:[%s674 + $0xc0] sm:$0xff]
        %v1101 = vld [vmem:[%s674 + $0xc8] sm:$0xff]
        %v1102 = vld [vmem:[%s674 + $0xd0] sm:$0xff]
        %v1103 = vld [vmem:[%s674 + $0xd8] sm:$0xff]
        %v1104 = vld [vmem:[%s674 + $0xe0] sm:$0xff]
        %v1105 = vld [vmem:[%s674 + $0xe8] sm:$0xff]
        %v1106 = vld [vmem:[%s674 + $0xf0] sm:$0xff]
        %v1107 = vld [vmem:[%s674 + $0xf8] sm:$0xff]
        %v1108 = vld [vmem:[%s683] sm:$0x1]
        %v1109 = vld [vmem:[%s692] sm:$0x1]
        %v1110 = vpack.c.bf16 %v830, %v827
        %v1111 = vld [vmem:[#allocation11] sm:$0xff]
        %v1112 = vld [vmem:[#allocation11 + $0x8] sm:$0xff]
        %v1113 = vld [vmem:[#allocation11 + $0x10] sm:$0xf]
        %v1114 = vld [vmem:[#allocation11 + $0x14] sm:$0xff]
        %v1115 = vld [vmem:[#allocation11 + $0x1c] sm:$0xff]
        %v1116 = vld [vmem:[#allocation11 + $0x24] sm:$0xf]
        %v1117 = vld [vmem:[#allocation11 + $0x28] sm:$0xff]
        %v1118 = vld [vmem:[#allocation11 + $0x30] sm:$0xff]
        %v1119 = vld [vmem:[#allocation11 + $0x38] sm:$0xf]
        %v1120 = vld [vmem:[#allocation11 + $0x3c] sm:$0xff]
        %v1121 = vld [vmem:[#allocation11 + $0x44] sm:$0xff]
        %v1122 = vld [vmem:[#allocation11 + $0x4c] sm:$0xf]
        %v1123 = vld [vmem:[#allocation11 + $0x50] sm:$0xff]
        %v1124 = vld [vmem:[#allocation11 + $0x58] sm:$0xff]
        %v1125 = vld [vmem:[#allocation11 + $0x60] sm:$0xf]
        %v1126 = vld [vmem:[#allocation11 + $0x64] sm:$0xff]
        %v1127 = vld [vmem:[#allocation11 + $0x6c] sm:$0xff]
        %v1128 = vld [vmem:[#allocation11 + $0x74] sm:$0xf]
        %v1129 = vld [vmem:[#allocation11 + $0x78] sm:$0xff]
        %v1130 = vld [vmem:[#allocation11 + $0x80] sm:$0xff]
        %v1131 = vld [vmem:[#allocation11 + $0x88] sm:$0xf]
        %v1132 = vld [vmem:[#allocation11 + $0x8c] sm:$0xff]
        %v1133 = vld [vmem:[#allocation11 + $0x94] sm:$0xff]
        %v1134 = vld [vmem:[#allocation11 + $0x9c] sm:$0xf]
        %v1135 = vld [vmem:[#allocation11 + $0xa0] sm:$0xff]
        %v1136 = vld [vmem:[#allocation11 + $0xa8] sm:$0xff]
        %v1137 = vld [vmem:[#allocation11 + $0xb0] sm:$0xf]
        %v1138 = vld [vmem:[#allocation11 + $0xb4] sm:$0xff]
        %v1139 = vld [vmem:[#allocation11 + $0xbc] sm:$0xff]
        %v1140 = vld [vmem:[#allocation11 + $0xc4] sm:$0xf]
        %v1141 = vld [vmem:[#allocation11 + $0xc8] sm:$0xff]
        %v1142 = vld [vmem:[#allocation11 + $0xd0] sm:$0xff]
        %v1143 = vld [vmem:[#allocation11 + $0xd8] sm:$0xf]
        %v1144 = vld [vmem:[#allocation11 + $0xdc] sm:$0xff]
        %v1145 = vld [vmem:[#allocation11 + $0xe4] sm:$0xff]
        %v1146 = vld [vmem:[#allocation11 + $0xec] sm:$0xf]
        %v1147 = vld [vmem:[#allocation11 + $0xf0] sm:$0xff]
        %v1148 = vld [vmem:[#allocation11 + $0xf8] sm:$0xff]
        %v1149 = vld [vmem:[#allocation11 + $0x100] sm:$0xf]
        %v1150 = vld [vmem:[#allocation11 + $0x104] sm:$0xff]
        %v1151 = vld [vmem:[#allocation11 + $0x10c] sm:$0xff]
        %v1152 = vld [vmem:[#allocation11 + $0x114] sm:$0xf]
        %v1153 = vld [vmem:[#allocation11 + $0x118] sm:$0xff]
        %v1154 = vld [vmem:[#allocation11 + $0x120] sm:$0xff]
        %v1155 = vld [vmem:[#allocation11 + $0x128] sm:$0xf]
        %v1156 = vld [vmem:[#allocation11 + $0x12c] sm:$0xff]
        %v1157 = vld [vmem:[#allocation11 + $0x134] sm:$0xff]
        %v1158 = vld [vmem:[#allocation11 + $0x13c] sm:$0xf]
        %v1159 = vld [vmem:[#allocation13] sm:$0x1f]
        %v1161 = vperm.slane %v1159, 0
        %v1162 = vperm.slane %v1159, 1
        %v1163 = vperm.slane %v1159, 2
        %v1164 = vperm.slane %v1159, 3
        %v1165 = vperm.slane %v1159, 4
        %v1219 = vunpack.c.l.b16 %v1111
        %v1220 = vunpack.c.h.b16 %v1111
        %v1221 = vunpack.c.l.b16 %v1112
        %v1222 = vunpack.c.h.b16 %v1112
        %v1223 = vunpack.c.l.b16 %v1113
        %v1224 = vunpack.c.l.b16 %v1114
        %v1225 = vunpack.c.h.b16 %v1114
        %v1226 = vunpack.c.l.b16 %v1115
        %v1227 = vunpack.c.h.b16 %v1115
        %v1228 = vunpack.c.l.b16 %v1116
        %v1229 = vunpack.c.l.b16 %v1117
        %v1230 = vunpack.c.h.b16 %v1117
        %v1231 = vunpack.c.l.b16 %v1118
        %v1232 = vunpack.c.h.b16 %v1118
        %v1233 = vunpack.c.l.b16 %v1119
        %v1234 = vunpack.c.l.b16 %v1120
        %v1235 = vunpack.c.h.b16 %v1120
        %v1236 = vunpack.c.l.b16 %v1121
        %v1237 = vunpack.c.h.b16 %v1121
        %v1238 = vunpack.c.l.b16 %v1122
        %v1239 = vunpack.c.l.b16 %v1123
        %v1240 = vunpack.c.h.b16 %v1123
        %v1241 = vunpack.c.l.b16 %v1124
        %v1242 = vunpack.c.h.b16 %v1124
        %v1243 = vunpack.c.l.b16 %v1125
        %v1244 = vunpack.c.l.b16 %v1126
        %v1245 = vunpack.c.h.b16 %v1126
        %v1246 = vunpack.c.l.b16 %v1127
        %v1247 = vunpack.c.h.b16 %v1127
        %v1248 = vunpack.c.l.b16 %v1128
        %v1249 = vunpack.c.l.b16 %v1129
        %v1250 = vunpack.c.h.b16 %v1129
        %v1251 = vunpack.c.l.b16 %v1130
        %v1252 = vunpack.c.h.b16 %v1130
        %v1253 = vunpack.c.l.b16 %v1131
        %v1254 = vunpack.c.l.b16 %v1132
        %v1255 = vunpack.c.h.b16 %v1132
        %v1256 = vunpack.c.l.b16 %v1133
        %v1257 = vunpack.c.h.b16 %v1133
        %v1258 = vunpack.c.l.b16 %v1134
        %v1259 = vunpack.c.l.b16 %v1135
        %v1260 = vunpack.c.h.b16 %v1135
        %v1261 = vunpack.c.l.b16 %v1136
        %v1262 = vunpack.c.h.b16 %v1136
        %v1263 = vunpack.c.l.b16 %v1137
        %v1264 = vunpack.c.l.b16 %v1138
        %v1265 = vunpack.c.h.b16 %v1138
        %v1266 = vunpack.c.l.b16 %v1139
        %v1267 = vunpack.c.h.b16 %v1139
        %v1268 = vunpack.c.l.b16 %v1140
        %v1269 = vunpack.c.l.b16 %v1141
        %v1270 = vunpack.c.h.b16 %v1141
        %v1271 = vunpack.c.l.b16 %v1142
        %v1272 = vunpack.c.h.b16 %v1142
        %v1273 = vunpack.c.l.b16 %v1143
        %v1274 = vunpack.c.l.b16 %v1144
        %v1275 = vunpack.c.h.b16 %v1144
        %v1276 = vunpack.c.l.b16 %v1145
        %v1277 = vunpack.c.h.b16 %v1145
        %v1278 = vunpack.c.l.b16 %v1146
        %v1279 = vunpack.c.l.b16 %v1147
        %v1280 = vunpack.c.h.b16 %v1147
        %v1281 = vunpack.c.l.b16 %v1148
        %v1282 = vunpack.c.h.b16 %v1148
        %v1283 = vunpack.c.l.b16 %v1149
        %v1284 = vunpack.c.l.b16 %v1150
        %v1285 = vunpack.c.h.b16 %v1150
        %v1286 = vunpack.c.l.b16 %v1151
        %v1287 = vunpack.c.h.b16 %v1151
        %v1288 = vunpack.c.l.b16 %v1152
        %v1289 = vunpack.c.l.b16 %v1153
        %v1290 = vunpack.c.h.b16 %v1153
        %v1291 = vunpack.c.l.b16 %v1154
        %v1292 = vunpack.c.h.b16 %v1154
        %v1293 = vunpack.c.l.b16 %v1155
        %v1294 = vunpack.c.l.b16 %v1156
        %v1295 = vunpack.c.h.b16 %v1156
        %v1296 = vunpack.c.l.b16 %v1157
        %v1297 = vunpack.c.h.b16 %v1157
        %v1298 = vunpack.c.l.b16 %v1158
        %v1299 = vpack.c.b16 %v1224, %v1219
        %v1300 = vpack.c.b16 %v1225, %v1220
        %v1301 = vpack.c.b16 %v1226, %v1221
        %v1302 = vpack.c.b16 %v1227, %v1222
        %v1303 = vpack.c.b16 %v1228, %v1223
        %v1304 = vpack.c.b16 %v1234, %v1229
        %v1305 = vpack.c.b16 %v1235, %v1230
        %v1306 = vpack.c.b16 %v1236, %v1231
        %v1307 = vpack.c.b16 %v1237, %v1232
        %v1308 = vpack.c.b16 %v1238, %v1233
        %v1309 = vpack.c.b16 %v1244, %v1239
        %v1310 = vpack.c.b16 %v1245, %v1240
        %v1311 = vpack.c.b16 %v1246, %v1241
        %v1312 = vpack.c.b16 %v1247, %v1242
        %v1313 = vpack.c.b16 %v1248, %v1243
        %v1314 = vpack.c.b16 %v1254, %v1249
        %v1315 = vpack.c.b16 %v1255, %v1250
        %v1316 = vpack.c.b16 %v1256, %v1251
        %v1317 = vpack.c.b16 %v1257, %v1252
        %v1318 = vpack.c.b16 %v1258, %v1253
        %v1319 = vpack.c.b16 %v1264, %v1259
        %v1320 = vpack.c.b16 %v1265, %v1260
        %v1321 = vpack.c.b16 %v1266, %v1261
        %v1322 = vpack.c.b16 %v1267, %v1262
        %v1323 = vpack.c.b16 %v1268, %v1263
        %v1324 = vpack.c.b16 %v1274, %v1269
        %v1325 = vpack.c.b16 %v1275, %v1270
        %v1326 = vpack.c.b16 %v1276, %v1271
        %v1327 = vpack.c.b16 %v1277, %v1272
        %v1328 = vpack.c.b16 %v1278, %v1273
        %v1329 = vpack.c.b16 %v1284, %v1279
        %v1330 = vpack.c.b16 %v1285, %v1280
        %v1331 = vpack.c.b16 %v1286, %v1281
        %v1332 = vpack.c.b16 %v1287, %v1282
        %v1333 = vpack.c.b16 %v1288, %v1283
        %v1334 = vpack.c.b16 %v1294, %v1289
        %v1335 = vpack.c.b16 %v1295, %v1290
        %v1336 = vpack.c.b16 %v1296, %v1291
        %v1337 = vpack.c.b16 %v1297, %v1292
        %v1338 = vpack.c.b16 %v1298, %v1293
        %1379 = vmatpush.bf16.msra.mxu0 %v1334
        %1380 = vmatpush.bf16.msra.mxu0 %v1329
        %1381 = vmatpush.bf16.msra.mxu0 %v1324
        %1382 = vmatpush.bf16.msra.mxu0 %v1319
        %1383 = vmatpush.bf16.msra.mxu0 %v1314
        %1384 = vmatpush.bf16.msra.mxu0 %v1309
        %1385 = vmatpush.bf16.msra.mxu0 %v1304
        %1386 = vmatpush.bf16.msra.mxu0 %v1299
        %1387 = vmatmul.bf16.gmra.mxu0 %v1110
        %v1388 = vpop.f32.mrf.mxu0
        %v1389 = vadd.f32 %v1161, %v1388
        %v1390 = vpop.f32.mrf.mxu0
        %v1391 = vadd.f32 %v1161, %v1390
        %1392 = vdwg.mxu0
        %1393 = vmatpush.bf16.msra.mxu0 %v1335
        %1394 = vmatpush.bf16.msra.mxu0 %v1330
        %1395 = vmatpush.bf16.msra.mxu0 %v1325
        %1396 = vmatpush.bf16.msra.mxu0 %v1320
        %1397 = vmatpush.bf16.msra.mxu0 %v1315
        %1398 = vmatpush.bf16.msra.mxu0 %v1310
        %1399 = vmatpush.bf16.msra.mxu0 %v1305
        %1400 = vmatpush.bf16.msra.mxu0 %v1300
        %1401 = vmatmul.bf16.gmra.mxu0 %v1110
        %v1402 = vpop.f32.mrf.mxu0
        %v1403 = vadd.f32 %v1162, %v1402
        %v1404 = vpop.f32.mrf.mxu0
        %v1405 = vadd.f32 %v1162, %v1404
        %1406 = vdwg.mxu0
        %1407 = vmatpush.bf16.msra.mxu0 %v1336
        %1408 = vmatpush.bf16.msra.mxu0 %v1331
        %1409 = vmatpush.bf16.msra.mxu0 %v1326
        %1410 = vmatpush.bf16.msra.mxu0 %v1321
        %1411 = vmatpush.bf16.msra.mxu0 %v1316
        %1412 = vmatpush.bf16.msra.mxu0 %v1311
        %1413 = vmatpush.bf16.msra.mxu0 %v1306
        %1414 = vmatpush.bf16.msra.mxu0 %v1301
        %1415 = vmatmul.bf16.gmra.mxu0 %v1110
        %v1416 = vpop.f32.mrf.mxu0
        %v1417 = vadd.f32 %v1163, %v1416
        %v1418 = vpop.f32.mrf.mxu0
        %v1419 = vadd.f32 %v1163, %v1418
        %1420 = vdwg.mxu0
        %1421 = vmatpush.bf16.msra.mxu0 %v1337
        %1422 = vmatpush.bf16.msra.mxu0 %v1332
        %1423 = vmatpush.bf16.msra.mxu0 %v1327
        %1424 = vmatpush.bf16.msra.mxu0 %v1322
        %1425 = vmatpush.bf16.msra.mxu0 %v1317
        %1426 = vmatpush.bf16.msra.mxu0 %v1312
        %1427 = vmatpush.bf16.msra.mxu0 %v1307
        %1428 = vmatpush.bf16.msra.mxu0 %v1302
        %1429 = vmatmul.bf16.gmra.mxu0 %v1110
        %v1430 = vpop.f32.mrf.mxu0
        %v1431 = vadd.f32 %v1164, %v1430
        %v1432 = vpop.f32.mrf.mxu0
        %v1433 = vadd.f32 %v1164, %v1432
        %1434 = vdwg.mxu0
        %1435 = vmatpush.bf16.msra.mxu0 %v1338
        %1436 = vmatpush.bf16.msra.mxu0 %v1333
        %1437 = vmatpush.bf16.msra.mxu0 %v1328
        %1438 = vmatpush.bf16.msra.mxu0 %v1323
        %1439 = vmatpush.bf16.msra.mxu0 %v1318
        %1440 = vmatpush.bf16.msra.mxu0 %v1313
        %1441 = vmatpush.bf16.msra.mxu0 %v1308
        %1442 = vmatpush.bf16.msra.mxu0 %v1303
        %1443 = vmatmul.bf16.gmra.mxu0 %v1110
        %v1444 = vpop.f32.mrf.mxu0
        %v1445 = vadd.f32 %v1165, %v1444
        %v1446 = vpop.f32.mrf.mxu0
        %v1447 = vadd.f32 %v1165, %v1446
        %1448 = vdwg.mxu0
        %v1449 = vpack.c.bf16 %v984, %v981
        %v1450 = vpack.c.bf16 %v990, %v987
        %v1451 = vpack.c.bf16 %v996, %v993
        %v1452 = vpack.c.bf16 %v1002, %v999
        %v1453 = vpack.c.bf16 %v1008, %v1005
        %v1454 = vpack.c.bf16 %v1014, %v1011
        %v1455 = vpack.c.bf16 %v1020, %v1017
        %v1456 = vpack.c.bf16 %v1026, %v1023
        %v1457 = vpack.c.bf16 %v1032, %v1029
        %v1458 = vpack.c.bf16 %v1038, %v1035
        %v1459 = vpack.c.bf16 %v1044, %v1041
        %v1460 = vpack.c.bf16 %v1050, %v1047
        %v1461 = vpack.c.bf16 %v1056, %v1053
        %v1462 = vpack.c.bf16 %v1062, %v1059
        %v1463 = vpack.c.bf16 %v1068, %v1065
        %v1464 = vpack.c.bf16 %v1074, %v1071
        %v1465 = vld [vmem:[#allocation14] sm:$0xf]
        %v1466 = vld [vmem:[#allocation14 + $0x4] sm:$0xf]
        %v1467 = vld [vmem:[#allocation14 + $0x8] sm:$0xf]
        %v1468 = vld [vmem:[#allocation14 + $0xc] sm:$0xf]
        %v1469 = vld [vmem:[#allocation14 + $0x10] sm:$0xf]
        %v1470 = vld [vmem:[#allocation14 + $0x14] sm:$0xf]
        %v1471 = vld [vmem:[#allocation14 + $0x18] sm:$0xf]
        %v1472 = vld [vmem:[#allocation14 + $0x1c] sm:$0xf]
        %v1473 = vld [vmem:[#allocation14 + $0x20] sm:$0xf]
        %v1474 = vld [vmem:[#allocation14 + $0x24] sm:$0xf]
        %v1475 = vld [vmem:[#allocation14 + $0x28] sm:$0xf]
        %v1476 = vld [vmem:[#allocation14 + $0x2c] sm:$0xf]
        %v1477 = vld [vmem:[#allocation14 + $0x30] sm:$0xf]
        %v1478 = vld [vmem:[#allocation14 + $0x34] sm:$0xf]
        %v1479 = vld [vmem:[#allocation14 + $0x38] sm:$0xf]
        %v1480 = vld [vmem:[#allocation14 + $0x3c] sm:$0xf]
        %v1481 = vld [vmem:[%s10] sm:$0x1]
        %v1483 = vperm.slane %v1481, 0
        %v1501 = vunpack.c.l.b16 %v1465
        %v1502 = vunpack.c.l.b16 %v1466
        %v1503 = vunpack.c.l.b16 %v1467
        %v1504 = vunpack.c.l.b16 %v1468
        %v1505 = vunpack.c.l.b16 %v1469
        %v1506 = vunpack.c.l.b16 %v1470
        %v1507 = vunpack.c.l.b16 %v1471
        %v1508 = vunpack.c.l.b16 %v1472
        %v1509 = vunpack.c.l.b16 %v1473
        %v1510 = vunpack.c.l.b16 %v1474
        %v1511 = vunpack.c.l.b16 %v1475
        %v1512 = vunpack.c.l.b16 %v1476
        %v1513 = vunpack.c.l.b16 %v1477
        %v1514 = vunpack.c.l.b16 %v1478
        %v1515 = vunpack.c.l.b16 %v1479
        %v1516 = vunpack.c.l.b16 %v1480
        %v1517 = vpack.c.b16 %v1502, %v1501
        %v1518 = vpack.c.b16 %v1504, %v1503
        %v1519 = vpack.c.b16 %v1506, %v1505
        %v1520 = vpack.c.b16 %v1508, %v1507
        %v1521 = vpack.c.b16 %v1510, %v1509
        %v1522 = vpack.c.b16 %v1512, %v1511
        %v1523 = vpack.c.b16 %v1514, %v1513
        %v1524 = vpack.c.b16 %v1516, %v1515
        %1533 = vmatpush.bf16.msra.mxu0 %v1524
        %1534 = vmatpush.bf16.msra.mxu0 %v1523
        %1535 = vmatpush.bf16.msra.mxu0 %v1522
        %1536 = vmatpush.bf16.msra.mxu0 %v1521
        %1537 = vmatpush.bf16.msra.mxu0 %v1520
        %1538 = vmatpush.bf16.msra.mxu0 %v1519
        %1539 = vmatpush.bf16.msra.mxu0 %v1518
        %1540 = vmatpush.bf16.msra.mxu0 %v1517
        %1541 = vmatmul.bf16.gmra.mxu0 %v1449
        %v1542 = vpop.f32.mrf.mxu0
        %v1543 = vadd.f32 %v1483, %v1542
        %v1544 = vpop.f32.mrf.mxu0
        %v1545 = vadd.f32 %v1483, %v1544
        %1546 = vmatmul.bf16.gmra.mxu0 %v1450
        %v1547 = vpop.f32.mrf.mxu0
        %v1548 = vadd.f32 %v1483, %v1547
        %v1549 = vpop.f32.mrf.mxu0
        %v1550 = vadd.f32 %v1483, %v1549
        %1551 = vmatmul.bf16.gmra.mxu0 %v1451
        %v1552 = vpop.f32.mrf.mxu0
        %v1553 = vadd.f32 %v1483, %v1552
        %v1554 = vpop.f32.mrf.mxu0
        %v1555 = vadd.f32 %v1483, %v1554
        %1556 = vmatmul.bf16.gmra.mxu0 %v1452
        %v1557 = vpop.f32.mrf.mxu0
        %v1558 = vadd.f32 %v1483, %v1557
        %v1559 = vpop.f32.mrf.mxu0
        %v1560 = vadd.f32 %v1483, %v1559
        %1561 = vmatmul.bf16.gmra.mxu0 %v1453
        %v1562 = vpop.f32.mrf.mxu0
        %v1563 = vadd.f32 %v1483, %v1562
        %v1564 = vpop.f32.mrf.mxu0
        %v1565 = vadd.f32 %v1483, %v1564
        %1566 = vmatmul.bf16.gmra.mxu0 %v1454
        %v1567 = vpop.f32.mrf.mxu0
        %v1568 = vadd.f32 %v1483, %v1567
        %v1569 = vpop.f32.mrf.mxu0
        %v1570 = vadd.f32 %v1483, %v1569
        %1571 = vmatmul.bf16.gmra.mxu0 %v1455
        %v1572 = vpop.f32.mrf.mxu0
        %v1573 = vadd.f32 %v1483, %v1572
        %v1574 = vpop.f32.mrf.mxu0
        %v1575 = vadd.f32 %v1483, %v1574
        %1576 = vmatmul.bf16.gmra.mxu0 %v1456
        %v1577 = vpop.f32.mrf.mxu0
        %v1578 = vadd.f32 %v1483, %v1577
        %v1579 = vpop.f32.mrf.mxu0
        %v1580 = vadd.f32 %v1483, %v1579
        %1581 = vmatmul.bf16.gmra.mxu0 %v1457
        %v1582 = vpop.f32.mrf.mxu0
        %v1583 = vadd.f32 %v1483, %v1582
        %v1584 = vpop.f32.mrf.mxu0
        %v1585 = vadd.f32 %v1483, %v1584
        %1586 = vmatmul.bf16.gmra.mxu0 %v1458
        %v1587 = vpop.f32.mrf.mxu0
        %v1588 = vadd.f32 %v1483, %v1587
        %v1589 = vpop.f32.mrf.mxu0
        %v1590 = vadd.f32 %v1483, %v1589
        %1591 = vmatmul.bf16.gmra.mxu0 %v1459
        %v1592 = vpop.f32.mrf.mxu0
        %v1593 = vadd.f32 %v1483, %v1592
        %v1594 = vpop.f32.mrf.mxu0
        %v1595 = vadd.f32 %v1483, %v1594
        %1596 = vmatmul.bf16.gmra.mxu0 %v1460
        %v1597 = vpop.f32.mrf.mxu0
        %v1598 = vadd.f32 %v1483, %v1597
        %v1599 = vpop.f32.mrf.mxu0
        %v1600 = vadd.f32 %v1483, %v1599
        %1601 = vmatmul.bf16.gmra.mxu0 %v1461
        %v1602 = vpop.f32.mrf.mxu0
        %v1603 = vadd.f32 %v1483, %v1602
        %v1604 = vpop.f32.mrf.mxu0
        %v1605 = vadd.f32 %v1483, %v1604
        %1606 = vmatmul.bf16.gmra.mxu0 %v1462
        %v1607 = vpop.f32.mrf.mxu0
        %v1608 = vadd.f32 %v1483, %v1607
        %v1609 = vpop.f32.mrf.mxu0
        %v1610 = vadd.f32 %v1483, %v1609
        %1611 = vmatmul.bf16.gmra.mxu0 %v1463
        %v1612 = vpop.f32.mrf.mxu0
        %v1613 = vadd.f32 %v1483, %v1612
        %v1614 = vpop.f32.mrf.mxu0
        %v1615 = vadd.f32 %v1483, %v1614
        %1616 = vmatmul.bf16.gmra.mxu0 %v1464
        %v1617 = vpop.f32.mrf.mxu0
        %v1618 = vadd.f32 %v1483, %v1617
        %v1619 = vpop.f32.mrf.mxu0
        %v1620 = vadd.f32 %v1483, %v1619
        %1621 = vdwg.mxu0
        %v1624 = vrot.slane %v1431, 1
        %v1625 = vrot.slane %v1431, 2
        %v1626 = vrot.slane %v1431, 3
        %v1627 = vrot.slane %v1431, 4
        %v1628 = vrot.slane %v1431, 5
        %v1629 = vrot.slane %v1431, 6
        %v1630 = vrot.slane %v1431, 7
        %v1631 = vrot.slane %v1433, 1
        %v1632 = vrot.slane %v1433, 2
        %v1633 = vrot.slane %v1433, 3
        %v1634 = vrot.slane %v1433, 4
        %v1635 = vrot.slane %v1433, 5
        %v1636 = vrot.slane %v1433, 6
        %v1637 = vrot.slane %v1433, 7
        %v1638 = vperm.slane %v1431, 0
        %v1639 = vperm.slane %v1624, 0
        %v1640 = vperm.slane %v1625, 0
        %v1641 = vperm.slane %v1626, 0
        %v1642 = vperm.slane %v1627, 0
        %v1643 = vperm.slane %v1628, 0
        %v1644 = vperm.slane %v1629, 0
        %v1645 = vperm.slane %v1630, 0
        %v1646 = vperm.slane %v1433, 0
        %v1647 = vperm.slane %v1631, 0
        %v1648 = vperm.slane %v1632, 0
        %v1649 = vperm.slane %v1633, 0
        %v1650 = vperm.slane %v1634, 0
        %v1651 = vperm.slane %v1635, 0
        %v1652 = vperm.slane %v1636, 0
        %v1653 = vperm.slane %v1637, 0
        %v1670 = vadd.f32 %v1417, %v1638
        %v1671 = vadd.f32 %v1419, %v1638
        %v1672 = vadd.f32 %v1417, %v1639
        %v1673 = vadd.f32 %v1419, %v1639
        %v1674 = vadd.f32 %v1417, %v1640
        %v1675 = vadd.f32 %v1419, %v1640
        %v1676 = vadd.f32 %v1417, %v1641
        %v1677 = vadd.f32 %v1419, %v1641
        %v1678 = vadd.f32 %v1417, %v1642
        %v1679 = vadd.f32 %v1419, %v1642
        %v1680 = vadd.f32 %v1417, %v1643
        %v1681 = vadd.f32 %v1419, %v1643
        %v1682 = vadd.f32 %v1417, %v1644
        %v1683 = vadd.f32 %v1419, %v1644
        %v1684 = vadd.f32 %v1417, %v1645
        %v1685 = vadd.f32 %v1419, %v1645
        %v1686 = vadd.f32 %v1417, %v1646
        %v1687 = vadd.f32 %v1419, %v1646
        %v1688 = vadd.f32 %v1417, %v1647
        %v1689 = vadd.f32 %v1419, %v1647
        %v1690 = vadd.f32 %v1417, %v1648
        %v1691 = vadd.f32 %v1419, %v1648
        %v1692 = vadd.f32 %v1417, %v1649
        %v1693 = vadd.f32 %v1419, %v1649
        %v1694 = vadd.f32 %v1417, %v1650
        %v1695 = vadd.f32 %v1419, %v1650
        %v1696 = vadd.f32 %v1417, %v1651
        %v1697 = vadd.f32 %v1419, %v1651
        %v1698 = vadd.f32 %v1417, %v1652
        %v1699 = vadd.f32 %v1419, %v1652
        %v1700 = vadd.f32 %v1417, %v1653
        %v1701 = vadd.f32 %v1419, %v1653
        %v1702 = vadd.f32 %v1670, %v1543
        %v1703 = vadd.f32 %v1671, %v1545
        %v1704 = vadd.f32 %v1672, %v1548
        %v1705 = vadd.f32 %v1673, %v1550
        %v1706 = vadd.f32 %v1674, %v1553
        %v1707 = vadd.f32 %v1675, %v1555
        %v1708 = vadd.f32 %v1676, %v1558
        %v1709 = vadd.f32 %v1677, %v1560
        %v1710 = vadd.f32 %v1678, %v1563
        %v1711 = vadd.f32 %v1679, %v1565
        %v1712 = vadd.f32 %v1680, %v1568
        %v1713 = vadd.f32 %v1681, %v1570
        %v1714 = vadd.f32 %v1682, %v1573
        %v1715 = vadd.f32 %v1683, %v1575
        %v1716 = vadd.f32 %v1684, %v1578
        %v1717 = vadd.f32 %v1685, %v1580
        %v1718 = vadd.f32 %v1686, %v1583
        %v1719 = vadd.f32 %v1687, %v1585
        %v1720 = vadd.f32 %v1688, %v1588
        %v1721 = vadd.f32 %v1689, %v1590
        %v1722 = vadd.f32 %v1690, %v1593
        %v1723 = vadd.f32 %v1691, %v1595
        %v1724 = vadd.f32 %v1692, %v1598
        %v1725 = vadd.f32 %v1693, %v1600
        %v1726 = vadd.f32 %v1694, %v1603
        %v1727 = vadd.f32 %v1695, %v1605
        %v1728 = vadd.f32 %v1696, %v1608
        %v1729 = vadd.f32 %v1697, %v1610
        %v1730 = vadd.f32 %v1698, %v1613
        %v1731 = vadd.f32 %v1699, %v1615
        %v1732 = vadd.f32 %v1700, %v1618
        %v1733 = vadd.f32 %v1701, %v1620
        %v1734 = vxor.u32 %v1702, 2147483648
        %v1735 = vxor.u32 %v1703, 2147483648
        %v1736 = vxor.u32 %v1704, 2147483648
        %v1737 = vxor.u32 %v1705, 2147483648
        %v1738 = vxor.u32 %v1706, 2147483648
        %v1739 = vxor.u32 %v1707, 2147483648
        %v1740 = vxor.u32 %v1708, 2147483648
        %v1741 = vxor.u32 %v1709, 2147483648
        %v1742 = vxor.u32 %v1710, 2147483648
        %v1743 = vxor.u32 %v1711, 2147483648
        %v1744 = vxor.u32 %v1712, 2147483648
        %v1745 = vxor.u32 %v1713, 2147483648
        %v1746 = vxor.u32 %v1714, 2147483648
        %v1747 = vxor.u32 %v1715, 2147483648
        %v1748 = vxor.u32 %v1716, 2147483648
        %v1749 = vxor.u32 %v1717, 2147483648
        %v1750 = vxor.u32 %v1718, 2147483648
        %v1751 = vxor.u32 %v1719, 2147483648
        %v1752 = vxor.u32 %v1720, 2147483648
        %v1753 = vxor.u32 %v1721, 2147483648
        %v1754 = vxor.u32 %v1722, 2147483648
        %v1755 = vxor.u32 %v1723, 2147483648
        %v1756 = vxor.u32 %v1724, 2147483648
        %v1757 = vxor.u32 %v1725, 2147483648
        %v1758 = vxor.u32 %v1726, 2147483648
        %v1759 = vxor.u32 %v1727, 2147483648
        %v1760 = vxor.u32 %v1728, 2147483648
        %v1761 = vxor.u32 %v1729, 2147483648
        %v1762 = vxor.u32 %v1730, 2147483648
        %v1763 = vxor.u32 %v1731, 2147483648
        %v1764 = vxor.u32 %v1732, 2147483648
        %v1765 = vxor.u32 %v1733, 2147483648
        %v1766 = vmul.f32 %v1734, 1.442695
        %v1767 = vpow.pop %v1766
        %v1768 = vmul.f32 %v1735, 1.442695
        %v1769 = vpow.pop %v1768
        %v1770 = vmul.f32 %v1736, 1.442695
        %v1771 = vpow.pop %v1770
        %v1772 = vmul.f32 %v1737, 1.442695
        %v1773 = vpow.pop %v1772
        %v1774 = vmul.f32 %v1738, 1.442695
        %v1775 = vpow.pop %v1774
        %v1776 = vmul.f32 %v1739, 1.442695
        %v1777 = vpow.pop %v1776
        %v1778 = vmul.f32 %v1740, 1.442695
        %v1779 = vpow.pop %v1778
        %v1780 = vmul.f32 %v1741, 1.442695
        %v1781 = vpow.pop %v1780
        %v1782 = vmul.f32 %v1742, 1.442695
        %v1783 = vpow.pop %v1782
        %v1784 = vmul.f32 %v1743, 1.442695
        %v1785 = vpow.pop %v1784
        %v1786 = vmul.f32 %v1744, 1.442695
        %v1787 = vpow.pop %v1786
        %v1788 = vmul.f32 %v1745, 1.442695
        %v1789 = vpow.pop %v1788
        %v1790 = vmul.f32 %v1746, 1.442695
        %v1791 = vpow.pop %v1790
        %v1792 = vmul.f32 %v1747, 1.442695
        %v1793 = vpow.pop %v1792
        %v1794 = vmul.f32 %v1748, 1.442695
        %v1795 = vpow.pop %v1794
        %v1796 = vmul.f32 %v1749, 1.442695
        %v1797 = vpow.pop %v1796
        %v1798 = vmul.f32 %v1750, 1.442695
        %v1799 = vpow.pop %v1798
        %v1800 = vmul.f32 %v1751, 1.442695
        %v1801 = vpow.pop %v1800
        %v1802 = vmul.f32 %v1752, 1.442695
        %v1803 = vpow.pop %v1802
        %v1804 = vmul.f32 %v1753, 1.442695
        %v1805 = vpow.pop %v1804
        %v1806 = vmul.f32 %v1754, 1.442695
        %v1807 = vpow.pop %v1806
        %v1808 = vmul.f32 %v1755, 1.442695
        %v1809 = vpow.pop %v1808
        %v1810 = vmul.f32 %v1756, 1.442695
        %v1811 = vpow.pop %v1810
        %v1812 = vmul.f32 %v1757, 1.442695
        %v1813 = vpow.pop %v1812
        %v1814 = vmul.f32 %v1758, 1.442695
        %v1815 = vpow.pop %v1814
        %v1816 = vmul.f32 %v1759, 1.442695
        %v1817 = vpow.pop %v1816
        %v1818 = vmul.f32 %v1760, 1.442695
        %v1819 = vpow.pop %v1818
        %v1820 = vmul.f32 %v1761, 1.442695
        %v1821 = vpow.pop %v1820
        %v1822 = vmul.f32 %v1762, 1.442695
        %v1823 = vpow.pop %v1822
        %v1824 = vmul.f32 %v1763, 1.442695
        %v1825 = vpow.pop %v1824
        %v1826 = vmul.f32 %v1764, 1.442695
        %v1827 = vpow.pop %v1826
        %v1828 = vmul.f32 %v1765, 1.442695
        %v1829 = vpow.pop %v1828
        %v1830 = vadd.f32 %v1767, 1.0
        %v1831 = vadd.f32 %v1769, 1.0
        %v1832 = vadd.f32 %v1771, 1.0
        %v1833 = vadd.f32 %v1773, 1.0
        %v1834 = vadd.f32 %v1775, 1.0
        %v1835 = vadd.f32 %v1777, 1.0
        %v1836 = vadd.f32 %v1779, 1.0
        %v1837 = vadd.f32 %v1781, 1.0
        %v1838 = vadd.f32 %v1783, 1.0
        %v1839 = vadd.f32 %v1785, 1.0
        %v1840 = vadd.f32 %v1787, 1.0
        %v1841 = vadd.f32 %v1789, 1.0
        %v1842 = vadd.f32 %v1791, 1.0
        %v1843 = vadd.f32 %v1793, 1.0
        %v1844 = vadd.f32 %v1795, 1.0
        %v1845 = vadd.f32 %v1797, 1.0
        %v1846 = vadd.f32 %v1799, 1.0
        %v1847 = vadd.f32 %v1801, 1.0
        %v1848 = vadd.f32 %v1803, 1.0
        %v1849 = vadd.f32 %v1805, 1.0
        %v1850 = vadd.f32 %v1807, 1.0
        %v1851 = vadd.f32 %v1809, 1.0
        %v1852 = vadd.f32 %v1811, 1.0
        %v1853 = vadd.f32 %v1813, 1.0
        %v1854 = vadd.f32 %v1815, 1.0
        %v1855 = vadd.f32 %v1817, 1.0
        %v1856 = vadd.f32 %v1819, 1.0
        %v1857 = vadd.f32 %v1821, 1.0
        %v1858 = vadd.f32 %v1823, 1.0
        %v1859 = vadd.f32 %v1825, 1.0
        %v1860 = vadd.f32 %v1827, 1.0
        %v1861 = vadd.f32 %v1829, 1.0
        %v1862 = vrcp.pop %v1830
        %v1863 = vmul.f32 %v1830, %v1862
        %v1864 = vsub.f32 1.0, %v1863
        %v1865 = vmul.f32 %v1862, %v1864
        %v1866 = vadd.f32 %v1862, %v1865
        %vm1867 = vweird.f32 %v1830
        %vm1868 = vweird.f32 %v1862
        %vm1869 = vmor %vm1867, %vm1868
        %v1870 = vsel %vm1869, %v1862, %v1866
        %v1871 = vand.u32 2147483647, %v1830
        %vm1872 = vcmp.eq.f32.partialorder %v1871, 8.507059e+37
        %v1873 = vand.u32 %v1830, 2147483648
        %v1874 = vor.u32 1.1754944e-38, %v1873
        %v1875 = vsel %vm1872, %v1874, %v1870
        %v1876 = vmul.f32 1.0, %v1875
        %v1877 = vrcp.pop %v1831
        %v1878 = vmul.f32 %v1831, %v1877
        %v1879 = vsub.f32 1.0, %v1878
        %v1880 = vmul.f32 %v1877, %v1879
        %v1881 = vadd.f32 %v1877, %v1880
        %vm1882 = vweird.f32 %v1831
        %vm1883 = vweird.f32 %v1877
        %vm1884 = vmor %vm1882, %vm1883
        %v1885 = vsel %vm1884, %v1877, %v1881
        %v1886 = vand.u32 2147483647, %v1831
        %vm1887 = vcmp.eq.f32.partialorder %v1886, 8.507059e+37
        %v1888 = vand.u32 %v1831, 2147483648
        %v1889 = vor.u32 1.1754944e-38, %v1888
        %v1890 = vsel %vm1887, %v1889, %v1885
        %v1891 = vmul.f32 1.0, %v1890
        %v1892 = vrcp.pop %v1832
        %v1893 = vmul.f32 %v1832, %v1892
        %v1894 = vsub.f32 1.0, %v1893
        %v1895 = vmul.f32 %v1892, %v1894
        %v1896 = vadd.f32 %v1892, %v1895
        %vm1897 = vweird.f32 %v1832
        %vm1898 = vweird.f32 %v1892
        %vm1899 = vmor %vm1897, %vm1898
        %v1900 = vsel %vm1899, %v1892, %v1896
        %v1901 = vand.u32 2147483647, %v1832
        %vm1902 = vcmp.eq.f32.partialorder %v1901, 8.507059e+37
        %v1903 = vand.u32 %v1832, 2147483648
        %v1904 = vor.u32 1.1754944e-38, %v1903
        %v1905 = vsel %vm1902, %v1904, %v1900
        %v1906 = vmul.f32 1.0, %v1905
        %v1907 = vrcp.pop %v1833
        %v1908 = vmul.f32 %v1833, %v1907
        %v1909 = vsub.f32 1.0, %v1908
        %v1910 = vmul.f32 %v1907, %v1909
        %v1911 = vadd.f32 %v1907, %v1910
        %vm1912 = vweird.f32 %v1833
        %vm1913 = vweird.f32 %v1907
        %vm1914 = vmor %vm1912, %vm1913
        %v1915 = vsel %vm1914, %v1907, %v1911
        %v1916 = vand.u32 2147483647, %v1833
        %vm1917 = vcmp.eq.f32.partialorder %v1916, 8.507059e+37
        %v1918 = vand.u32 %v1833, 2147483648
        %v1919 = vor.u32 1.1754944e-38, %v1918
        %v1920 = vsel %vm1917, %v1919, %v1915
        %v1921 = vmul.f32 1.0, %v1920
        %v1922 = vrcp.pop %v1834
        %v1923 = vmul.f32 %v1834, %v1922
        %v1924 = vsub.f32 1.0, %v1923
        %v1925 = vmul.f32 %v1922, %v1924
        %v1926 = vadd.f32 %v1922, %v1925
        %vm1927 = vweird.f32 %v1834
        %vm1928 = vweird.f32 %v1922
        %vm1929 = vmor %vm1927, %vm1928
        %v1930 = vsel %vm1929, %v1922, %v1926
        %v1931 = vand.u32 2147483647, %v1834
        %vm1932 = vcmp.eq.f32.partialorder %v1931, 8.507059e+37
        %v1933 = vand.u32 %v1834, 2147483648
        %v1934 = vor.u32 1.1754944e-38, %v1933
        %v1935 = vsel %vm1932, %v1934, %v1930
        %v1936 = vmul.f32 1.0, %v1935
        %v1937 = vrcp.pop %v1835
        %v1938 = vmul.f32 %v1835, %v1937
        %v1939 = vsub.f32 1.0, %v1938
        %v1940 = vmul.f32 %v1937, %v1939
        %v1941 = vadd.f32 %v1937, %v1940
        %vm1942 = vweird.f32 %v1835
        %vm1943 = vweird.f32 %v1937
        %vm1944 = vmor %vm1942, %vm1943
        %v1945 = vsel %vm1944, %v1937, %v1941
        %v1946 = vand.u32 2147483647, %v1835
        %vm1947 = vcmp.eq.f32.partialorder %v1946, 8.507059e+37
        %v1948 = vand.u32 %v1835, 2147483648
        %v1949 = vor.u32 1.1754944e-38, %v1948
        %v1950 = vsel %vm1947, %v1949, %v1945
        %v1951 = vmul.f32 1.0, %v1950
        %v1952 = vrcp.pop %v1836
        %v1953 = vmul.f32 %v1836, %v1952
        %v1954 = vsub.f32 1.0, %v1953
        %v1955 = vmul.f32 %v1952, %v1954
        %v1956 = vadd.f32 %v1952, %v1955
        %vm1957 = vweird.f32 %v1836
        %vm1958 = vweird.f32 %v1952
        %vm1959 = vmor %vm1957, %vm1958
        %v1960 = vsel %vm1959, %v1952, %v1956
        %v1961 = vand.u32 2147483647, %v1836
        %vm1962 = vcmp.eq.f32.partialorder %v1961, 8.507059e+37
        %v1963 = vand.u32 %v1836, 2147483648
        %v1964 = vor.u32 1.1754944e-38, %v1963
        %v1965 = vsel %vm1962, %v1964, %v1960
        %v1966 = vmul.f32 1.0, %v1965
        %v1967 = vrcp.pop %v1837
        %v1968 = vmul.f32 %v1837, %v1967
        %v1969 = vsub.f32 1.0, %v1968
        %v1970 = vmul.f32 %v1967, %v1969
        %v1971 = vadd.f32 %v1967, %v1970
        %vm1972 = vweird.f32 %v1837
        %vm1973 = vweird.f32 %v1967
        %vm1974 = vmor %vm1972, %vm1973
        %v1975 = vsel %vm1974, %v1967, %v1971
        %v1976 = vand.u32 2147483647, %v1837
        %vm1977 = vcmp.eq.f32.partialorder %v1976, 8.507059e+37
        %v1978 = vand.u32 %v1837, 2147483648
        %v1979 = vor.u32 1.1754944e-38, %v1978
        %v1980 = vsel %vm1977, %v1979, %v1975
        %v1981 = vmul.f32 1.0, %v1980
        %v1982 = vrcp.pop %v1838
        %v1983 = vmul.f32 %v1838, %v1982
        %v1984 = vsub.f32 1.0, %v1983
        %v1985 = vmul.f32 %v1982, %v1984
        %v1986 = vadd.f32 %v1982, %v1985
        %vm1987 = vweird.f32 %v1838
        %vm1988 = vweird.f32 %v1982
        %vm1989 = vmor %vm1987, %vm1988
        %v1990 = vsel %vm1989, %v1982, %v1986
        %v1991 = vand.u32 2147483647, %v1838
        %vm1992 = vcmp.eq.f32.partialorder %v1991, 8.507059e+37
        %v1993 = vand.u32 %v1838, 2147483648
        %v1994 = vor.u32 1.1754944e-38, %v1993
        %v1995 = vsel %vm1992, %v1994, %v1990
        %v1996 = vmul.f32 1.0, %v1995
        %v1997 = vrcp.pop %v1839
        %v1998 = vmul.f32 %v1839, %v1997
        %v1999 = vsub.f32 1.0, %v1998
        %v2000 = vmul.f32 %v1997, %v1999
        %v2001 = vadd.f32 %v1997, %v2000
        %vm2002 = vweird.f32 %v1839
        %vm2003 = vweird.f32 %v1997
        %vm2004 = vmor %vm2002, %vm2003
        %v2005 = vsel %vm2004, %v1997, %v2001
        %v2006 = vand.u32 2147483647, %v1839
        %vm2007 = vcmp.eq.f32.partialorder %v2006, 8.507059e+37
        %v2008 = vand.u32 %v1839, 2147483648
        %v2009 = vor.u32 1.1754944e-38, %v2008
        %v2010 = vsel %vm2007, %v2009, %v2005
        %v2011 = vmul.f32 1.0, %v2010
        %v2012 = vrcp.pop %v1840
        %v2013 = vmul.f32 %v1840, %v2012
        %v2014 = vsub.f32 1.0, %v2013
        %v2015 = vmul.f32 %v2012, %v2014
        %v2016 = vadd.f32 %v2012, %v2015
        %vm2017 = vweird.f32 %v1840
        %vm2018 = vweird.f32 %v2012
        %vm2019 = vmor %vm2017, %vm2018
        %v2020 = vsel %vm2019, %v2012, %v2016
        %v2021 = vand.u32 2147483647, %v1840
        %vm2022 = vcmp.eq.f32.partialorder %v2021, 8.507059e+37
        %v2023 = vand.u32 %v1840, 2147483648
        %v2024 = vor.u32 1.1754944e-38, %v2023
        %v2025 = vsel %vm2022, %v2024, %v2020
        %v2026 = vmul.f32 1.0, %v2025
        %v2027 = vrcp.pop %v1841
        %v2028 = vmul.f32 %v1841, %v2027
        %v2029 = vsub.f32 1.0, %v2028
        %v2030 = vmul.f32 %v2027, %v2029
        %v2031 = vadd.f32 %v2027, %v2030
        %vm2032 = vweird.f32 %v1841
        %vm2033 = vweird.f32 %v2027
        %vm2034 = vmor %vm2032, %vm2033
        %v2035 = vsel %vm2034, %v2027, %v2031
        %v2036 = vand.u32 2147483647, %v1841
        %vm2037 = vcmp.eq.f32.partialorder %v2036, 8.507059e+37
        %v2038 = vand.u32 %v1841, 2147483648
        %v2039 = vor.u32 1.1754944e-38, %v2038
        %v2040 = vsel %vm2037, %v2039, %v2035
        %v2041 = vmul.f32 1.0, %v2040
        %v2042 = vrcp.pop %v1842
        %v2043 = vmul.f32 %v1842, %v2042
        %v2044 = vsub.f32 1.0, %v2043
        %v2045 = vmul.f32 %v2042, %v2044
        %v2046 = vadd.f32 %v2042, %v2045
        %vm2047 = vweird.f32 %v1842
        %vm2048 = vweird.f32 %v2042
        %vm2049 = vmor %vm2047, %vm2048
        %v2050 = vsel %vm2049, %v2042, %v2046
        %v2051 = vand.u32 2147483647, %v1842
        %vm2052 = vcmp.eq.f32.partialorder %v2051, 8.507059e+37
        %v2053 = vand.u32 %v1842, 2147483648
        %v2054 = vor.u32 1.1754944e-38, %v2053
        %v2055 = vsel %vm2052, %v2054, %v2050
        %v2056 = vmul.f32 1.0, %v2055
        %v2057 = vrcp.pop %v1843
        %v2058 = vmul.f32 %v1843, %v2057
        %v2059 = vsub.f32 1.0, %v2058
        %v2060 = vmul.f32 %v2057, %v2059
        %v2061 = vadd.f32 %v2057, %v2060
        %vm2062 = vweird.f32 %v1843
        %vm2063 = vweird.f32 %v2057
        %vm2064 = vmor %vm2062, %vm2063
        %v2065 = vsel %vm2064, %v2057, %v2061
        %v2066 = vand.u32 2147483647, %v1843
        %vm2067 = vcmp.eq.f32.partialorder %v2066, 8.507059e+37
        %v2068 = vand.u32 %v1843, 2147483648
        %v2069 = vor.u32 1.1754944e-38, %v2068
        %v2070 = vsel %vm2067, %v2069, %v2065
        %v2071 = vmul.f32 1.0, %v2070
        %v2072 = vrcp.pop %v1844
        %v2073 = vmul.f32 %v1844, %v2072
        %v2074 = vsub.f32 1.0, %v2073
        %v2075 = vmul.f32 %v2072, %v2074
        %v2076 = vadd.f32 %v2072, %v2075
        %vm2077 = vweird.f32 %v1844
        %vm2078 = vweird.f32 %v2072
        %vm2079 = vmor %vm2077, %vm2078
        %v2080 = vsel %vm2079, %v2072, %v2076
        %v2081 = vand.u32 2147483647, %v1844
        %vm2082 = vcmp.eq.f32.partialorder %v2081, 8.507059e+37
        %v2083 = vand.u32 %v1844, 2147483648
        %v2084 = vor.u32 1.1754944e-38, %v2083
        %v2085 = vsel %vm2082, %v2084, %v2080
        %v2086 = vmul.f32 1.0, %v2085
        %v2087 = vrcp.pop %v1845
        %v2088 = vmul.f32 %v1845, %v2087
        %v2089 = vsub.f32 1.0, %v2088
        %v2090 = vmul.f32 %v2087, %v2089
        %v2091 = vadd.f32 %v2087, %v2090
        %vm2092 = vweird.f32 %v1845
        %vm2093 = vweird.f32 %v2087
        %vm2094 = vmor %vm2092, %vm2093
        %v2095 = vsel %vm2094, %v2087, %v2091
        %v2096 = vand.u32 2147483647, %v1845
        %vm2097 = vcmp.eq.f32.partialorder %v2096, 8.507059e+37
        %v2098 = vand.u32 %v1845, 2147483648
        %v2099 = vor.u32 1.1754944e-38, %v2098
        %v2100 = vsel %vm2097, %v2099, %v2095
        %v2101 = vmul.f32 1.0, %v2100
        %v2102 = vrcp.pop %v1846
        %v2103 = vmul.f32 %v1846, %v2102
        %v2104 = vsub.f32 1.0, %v2103
        %v2105 = vmul.f32 %v2102, %v2104
        %v2106 = vadd.f32 %v2102, %v2105
        %vm2107 = vweird.f32 %v1846
        %vm2108 = vweird.f32 %v2102
        %vm2109 = vmor %vm2107, %vm2108
        %v2110 = vsel %vm2109, %v2102, %v2106
        %v2111 = vand.u32 2147483647, %v1846
        %vm2112 = vcmp.eq.f32.partialorder %v2111, 8.507059e+37
        %v2113 = vand.u32 %v1846, 2147483648
        %v2114 = vor.u32 1.1754944e-38, %v2113
        %v2115 = vsel %vm2112, %v2114, %v2110
        %v2116 = vmul.f32 1.0, %v2115
        %v2117 = vrcp.pop %v1847
        %v2118 = vmul.f32 %v1847, %v2117
        %v2119 = vsub.f32 1.0, %v2118
        %v2120 = vmul.f32 %v2117, %v2119
        %v2121 = vadd.f32 %v2117, %v2120
        %vm2122 = vweird.f32 %v1847
        %vm2123 = vweird.f32 %v2117
        %vm2124 = vmor %vm2122, %vm2123
        %v2125 = vsel %vm2124, %v2117, %v2121
        %v2126 = vand.u32 2147483647, %v1847
        %vm2127 = vcmp.eq.f32.partialorder %v2126, 8.507059e+37
        %v2128 = vand.u32 %v1847, 2147483648
        %v2129 = vor.u32 1.1754944e-38, %v2128
        %v2130 = vsel %vm2127, %v2129, %v2125
        %v2131 = vmul.f32 1.0, %v2130
        %v2132 = vrcp.pop %v1848
        %v2133 = vmul.f32 %v1848, %v2132
        %v2134 = vsub.f32 1.0, %v2133
        %v2135 = vmul.f32 %v2132, %v2134
        %v2136 = vadd.f32 %v2132, %v2135
        %vm2137 = vweird.f32 %v1848
        %vm2138 = vweird.f32 %v2132
        %vm2139 = vmor %vm2137, %vm2138
        %v2140 = vsel %vm2139, %v2132, %v2136
        %v2141 = vand.u32 2147483647, %v1848
        %vm2142 = vcmp.eq.f32.partialorder %v2141, 8.507059e+37
        %v2143 = vand.u32 %v1848, 2147483648
        %v2144 = vor.u32 1.1754944e-38, %v2143
        %v2145 = vsel %vm2142, %v2144, %v2140
        %v2146 = vmul.f32 1.0, %v2145
        %v2147 = vrcp.pop %v1849
        %v2148 = vmul.f32 %v1849, %v2147
        %v2149 = vsub.f32 1.0, %v2148
        %v2150 = vmul.f32 %v2147, %v2149
        %v2151 = vadd.f32 %v2147, %v2150
        %vm2152 = vweird.f32 %v1849
        %vm2153 = vweird.f32 %v2147
        %vm2154 = vmor %vm2152, %vm2153
        %v2155 = vsel %vm2154, %v2147, %v2151
        %v2156 = vand.u32 2147483647, %v1849
        %vm2157 = vcmp.eq.f32.partialorder %v2156, 8.507059e+37
        %v2158 = vand.u32 %v1849, 2147483648
        %v2159 = vor.u32 1.1754944e-38, %v2158
        %v2160 = vsel %vm2157, %v2159, %v2155
        %v2161 = vmul.f32 1.0, %v2160
        %v2162 = vrcp.pop %v1850
        %v2163 = vmul.f32 %v1850, %v2162
        %v2164 = vsub.f32 1.0, %v2163
        %v2165 = vmul.f32 %v2162, %v2164
        %v2166 = vadd.f32 %v2162, %v2165
        %vm2167 = vweird.f32 %v1850
        %vm2168 = vweird.f32 %v2162
        %vm2169 = vmor %vm2167, %vm2168
        %v2170 = vsel %vm2169, %v2162, %v2166
        %v2171 = vand.u32 2147483647, %v1850
        %vm2172 = vcmp.eq.f32.partialorder %v2171, 8.507059e+37
        %v2173 = vand.u32 %v1850, 2147483648
        %v2174 = vor.u32 1.1754944e-38, %v2173
        %v2175 = vsel %vm2172, %v2174, %v2170
        %v2176 = vmul.f32 1.0, %v2175
        %v2177 = vrcp.pop %v1851
        %v2178 = vmul.f32 %v1851, %v2177
        %v2179 = vsub.f32 1.0, %v2178
        %v2180 = vmul.f32 %v2177, %v2179
        %v2181 = vadd.f32 %v2177, %v2180
        %vm2182 = vweird.f32 %v1851
        %vm2183 = vweird.f32 %v2177
        %vm2184 = vmor %vm2182, %vm2183
        %v2185 = vsel %vm2184, %v2177, %v2181
        %v2186 = vand.u32 2147483647, %v1851
        %vm2187 = vcmp.eq.f32.partialorder %v2186, 8.507059e+37
        %v2188 = vand.u32 %v1851, 2147483648
        %v2189 = vor.u32 1.1754944e-38, %v2188
        %v2190 = vsel %vm2187, %v2189, %v2185
        %v2191 = vmul.f32 1.0, %v2190
        %v2192 = vrcp.pop %v1852
        %v2193 = vmul.f32 %v1852, %v2192
        %v2194 = vsub.f32 1.0, %v2193
        %v2195 = vmul.f32 %v2192, %v2194
        %v2196 = vadd.f32 %v2192, %v2195
        %vm2197 = vweird.f32 %v1852
        %vm2198 = vweird.f32 %v2192
        %vm2199 = vmor %vm2197, %vm2198
        %v2200 = vsel %vm2199, %v2192, %v2196
        %v2201 = vand.u32 2147483647, %v1852
        %vm2202 = vcmp.eq.f32.partialorder %v2201, 8.507059e+37
        %v2203 = vand.u32 %v1852, 2147483648
        %v2204 = vor.u32 1.1754944e-38, %v2203
        %v2205 = vsel %vm2202, %v2204, %v2200
        %v2206 = vmul.f32 1.0, %v2205
        %v2207 = vrcp.pop %v1853
        %v2208 = vmul.f32 %v1853, %v2207
        %v2209 = vsub.f32 1.0, %v2208
        %v2210 = vmul.f32 %v2207, %v2209
        %v2211 = vadd.f32 %v2207, %v2210
        %vm2212 = vweird.f32 %v1853
        %vm2213 = vweird.f32 %v2207
        %vm2214 = vmor %vm2212, %vm2213
        %v2215 = vsel %vm2214, %v2207, %v2211
        %v2216 = vand.u32 2147483647, %v1853
        %vm2217 = vcmp.eq.f32.partialorder %v2216, 8.507059e+37
        %v2218 = vand.u32 %v1853, 2147483648
        %v2219 = vor.u32 1.1754944e-38, %v2218
        %v2220 = vsel %vm2217, %v2219, %v2215
        %v2221 = vmul.f32 1.0, %v2220
        %v2222 = vrcp.pop %v1854
        %v2223 = vmul.f32 %v1854, %v2222
        %v2224 = vsub.f32 1.0, %v2223
        %v2225 = vmul.f32 %v2222, %v2224
        %v2226 = vadd.f32 %v2222, %v2225
        %vm2227 = vweird.f32 %v1854
        %vm2228 = vweird.f32 %v2222
        %vm2229 = vmor %vm2227, %vm2228
        %v2230 = vsel %vm2229, %v2222, %v2226
        %v2231 = vand.u32 2147483647, %v1854
        %vm2232 = vcmp.eq.f32.partialorder %v2231, 8.507059e+37
        %v2233 = vand.u32 %v1854, 2147483648
        %v2234 = vor.u32 1.1754944e-38, %v2233
        %v2235 = vsel %vm2232, %v2234, %v2230
        %v2236 = vmul.f32 1.0, %v2235
        %v2237 = vrcp.pop %v1855
        %v2238 = vmul.f32 %v1855, %v2237
        %v2239 = vsub.f32 1.0, %v2238
        %v2240 = vmul.f32 %v2237, %v2239
        %v2241 = vadd.f32 %v2237, %v2240
        %vm2242 = vweird.f32 %v1855
        %vm2243 = vweird.f32 %v2237
        %vm2244 = vmor %vm2242, %vm2243
        %v2245 = vsel %vm2244, %v2237, %v2241
        %v2246 = vand.u32 2147483647, %v1855
        %vm2247 = vcmp.eq.f32.partialorder %v2246, 8.507059e+37
        %v2248 = vand.u32 %v1855, 2147483648
        %v2249 = vor.u32 1.1754944e-38, %v2248
        %v2250 = vsel %vm2247, %v2249, %v2245
        %v2251 = vmul.f32 1.0, %v2250
        %v2252 = vrcp.pop %v1856
        %v2253 = vmul.f32 %v1856, %v2252
        %v2254 = vsub.f32 1.0, %v2253
        %v2255 = vmul.f32 %v2252, %v2254
        %v2256 = vadd.f32 %v2252, %v2255
        %vm2257 = vweird.f32 %v1856
        %vm2258 = vweird.f32 %v2252
        %vm2259 = vmor %vm2257, %vm2258
        %v2260 = vsel %vm2259, %v2252, %v2256
        %v2261 = vand.u32 2147483647, %v1856
        %vm2262 = vcmp.eq.f32.partialorder %v2261, 8.507059e+37
        %v2263 = vand.u32 %v1856, 2147483648
        %v2264 = vor.u32 1.1754944e-38, %v2263
        %v2265 = vsel %vm2262, %v2264, %v2260
        %v2266 = vmul.f32 1.0, %v2265
        %v2267 = vrcp.pop %v1857
        %v2268 = vmul.f32 %v1857, %v2267
        %v2269 = vsub.f32 1.0, %v2268
        %v2270 = vmul.f32 %v2267, %v2269
        %v2271 = vadd.f32 %v2267, %v2270
        %vm2272 = vweird.f32 %v1857
        %vm2273 = vweird.f32 %v2267
        %vm2274 = vmor %vm2272, %vm2273
        %v2275 = vsel %vm2274, %v2267, %v2271
        %v2276 = vand.u32 2147483647, %v1857
        %vm2277 = vcmp.eq.f32.partialorder %v2276, 8.507059e+37
        %v2278 = vand.u32 %v1857, 2147483648
        %v2279 = vor.u32 1.1754944e-38, %v2278
        %v2280 = vsel %vm2277, %v2279, %v2275
        %v2281 = vmul.f32 1.0, %v2280
        %v2282 = vrcp.pop %v1858
        %v2283 = vmul.f32 %v1858, %v2282
        %v2284 = vsub.f32 1.0, %v2283
        %v2285 = vmul.f32 %v2282, %v2284
        %v2286 = vadd.f32 %v2282, %v2285
        %vm2287 = vweird.f32 %v1858
        %vm2288 = vweird.f32 %v2282
        %vm2289 = vmor %vm2287, %vm2288
        %v2290 = vsel %vm2289, %v2282, %v2286
        %v2291 = vand.u32 2147483647, %v1858
        %vm2292 = vcmp.eq.f32.partialorder %v2291, 8.507059e+37
        %v2293 = vand.u32 %v1858, 2147483648
        %v2294 = vor.u32 1.1754944e-38, %v2293
        %v2295 = vsel %vm2292, %v2294, %v2290
        %v2296 = vmul.f32 1.0, %v2295
        %v2297 = vrcp.pop %v1859
        %v2298 = vmul.f32 %v1859, %v2297
        %v2299 = vsub.f32 1.0, %v2298
        %v2300 = vmul.f32 %v2297, %v2299
        %v2301 = vadd.f32 %v2297, %v2300
        %vm2302 = vweird.f32 %v1859
        %vm2303 = vweird.f32 %v2297
        %vm2304 = vmor %vm2302, %vm2303
        %v2305 = vsel %vm2304, %v2297, %v2301
        %v2306 = vand.u32 2147483647, %v1859
        %vm2307 = vcmp.eq.f32.partialorder %v2306, 8.507059e+37
        %v2308 = vand.u32 %v1859, 2147483648
        %v2309 = vor.u32 1.1754944e-38, %v2308
        %v2310 = vsel %vm2307, %v2309, %v2305
        %v2311 = vmul.f32 1.0, %v2310
        %v2312 = vrcp.pop %v1860
        %v2313 = vmul.f32 %v1860, %v2312
        %v2314 = vsub.f32 1.0, %v2313
        %v2315 = vmul.f32 %v2312, %v2314
        %v2316 = vadd.f32 %v2312, %v2315
        %vm2317 = vweird.f32 %v1860
        %vm2318 = vweird.f32 %v2312
        %vm2319 = vmor %vm2317, %vm2318
        %v2320 = vsel %vm2319, %v2312, %v2316
        %v2321 = vand.u32 2147483647, %v1860
        %vm2322 = vcmp.eq.f32.partialorder %v2321, 8.507059e+37
        %v2323 = vand.u32 %v1860, 2147483648
        %v2324 = vor.u32 1.1754944e-38, %v2323
        %v2325 = vsel %vm2322, %v2324, %v2320
        %v2326 = vmul.f32 1.0, %v2325
        %v2327 = vrcp.pop %v1861
        %v2328 = vmul.f32 %v1861, %v2327
        %v2329 = vsub.f32 1.0, %v2328
        %v2330 = vmul.f32 %v2327, %v2329
        %v2331 = vadd.f32 %v2327, %v2330
        %vm2332 = vweird.f32 %v1861
        %vm2333 = vweird.f32 %v2327
        %vm2334 = vmor %vm2332, %vm2333
        %v2335 = vsel %vm2334, %v2327, %v2331
        %v2336 = vand.u32 2147483647, %v1861
        %vm2337 = vcmp.eq.f32.partialorder %v2336, 8.507059e+37
        %v2338 = vand.u32 %v1861, 2147483648
        %v2339 = vor.u32 1.1754944e-38, %v2338
        %v2340 = vsel %vm2337, %v2339, %v2335
        %v2341 = vmul.f32 1.0, %v2340
        %v2342 = vmul.f32 %v1876, %v1076
        %v2343 = vmul.f32 %v1891, %v1077
        %v2344 = vmul.f32 %v1906, %v1078
        %v2345 = vmul.f32 %v1921, %v1079
        %v2346 = vmul.f32 %v1936, %v1080
        %v2347 = vmul.f32 %v1951, %v1081
        %v2348 = vmul.f32 %v1966, %v1082
        %v2349 = vmul.f32 %v1981, %v1083
        %v2350 = vmul.f32 %v1996, %v1084
        %v2351 = vmul.f32 %v2011, %v1085
        %v2352 = vmul.f32 %v2026, %v1086
        %v2353 = vmul.f32 %v2041, %v1087
        %v2354 = vmul.f32 %v2056, %v1088
        %v2355 = vmul.f32 %v2071, %v1089
        %v2356 = vmul.f32 %v2086, %v1090
        %v2357 = vmul.f32 %v2101, %v1091
        %v2358 = vmul.f32 %v2116, %v1092
        %v2359 = vmul.f32 %v2131, %v1093
        %v2360 = vmul.f32 %v2146, %v1094
        %v2361 = vmul.f32 %v2161, %v1095
        %v2362 = vmul.f32 %v2176, %v1096
        %v2363 = vmul.f32 %v2191, %v1097
        %v2364 = vmul.f32 %v2206, %v1098
        %v2365 = vmul.f32 %v2221, %v1099
        %v2366 = vmul.f32 %v2236, %v1100
        %v2367 = vmul.f32 %v2251, %v1101
        %v2368 = vmul.f32 %v2266, %v1102
        %v2369 = vmul.f32 %v2281, %v1103
        %v2370 = vmul.f32 %v2296, %v1104
        %v2371 = vmul.f32 %v2311, %v1105
        %v2372 = vmul.f32 %v2326, %v1106
        %v2373 = vmul.f32 %v2341, %v1107
        %v2374 = vmul.f32 %v2342, %v1403
        %v2375 = vmul.f32 %v2343, %v1405
        %v2376 = vmul.f32 %v2344, %v1403
        %v2377 = vmul.f32 %v2345, %v1405
        %v2378 = vmul.f32 %v2346, %v1403
        %v2379 = vmul.f32 %v2347, %v1405
        %v2380 = vmul.f32 %v2348, %v1403
        %v2381 = vmul.f32 %v2349, %v1405
        %v2382 = vmul.f32 %v2350, %v1403
        %v2383 = vmul.f32 %v2351, %v1405
        %v2384 = vmul.f32 %v2352, %v1403
        %v2385 = vmul.f32 %v2353, %v1405
        %v2386 = vmul.f32 %v2354, %v1403
        %v2387 = vmul.f32 %v2355, %v1405
        %v2388 = vmul.f32 %v2356, %v1403
        %v2389 = vmul.f32 %v2357, %v1405
        %v2390 = vmul.f32 %v2358, %v1403
        %v2391 = vmul.f32 %v2359, %v1405
        %v2392 = vmul.f32 %v2360, %v1403
        %v2393 = vmul.f32 %v2361, %v1405
        %v2394 = vmul.f32 %v2362, %v1403
        %v2395 = vmul.f32 %v2363, %v1405
        %v2396 = vmul.f32 %v2364, %v1403
        %v2397 = vmul.f32 %v2365, %v1405
        %v2398 = vmul.f32 %v2366, %v1403
        %v2399 = vmul.f32 %v2367, %v1405
        %v2400 = vmul.f32 %v2368, %v1403
        %v2401 = vmul.f32 %v2369, %v1405
        %v2402 = vmul.f32 %v2370, %v1403
        %v2403 = vmul.f32 %v2371, %v1405
        %v2404 = vmul.f32 %v2372, %v1403
        %v2405 = vmul.f32 %v2373, %v1405
        %v2406 = vadd.f32 %v2374, %v2375
        %v2407 = vrot.slane %v2406, 4
        %v2408 = vadd.f32 %v2406, %v2407
        %v2409 = vrot.slane %v2408, 2
        %v2410 = vadd.f32 %v2408, %v2409
        %v2411 = vrot.slane %v2410, 1
        %v2412 = vadd.f32 %v2410, %v2411
        %v2413 = vadd.f32 %v2376, %v2377
        %v2414 = vrot.slane %v2413, 4
        %v2415 = vadd.f32 %v2413, %v2414
        %v2416 = vrot.slane %v2415, 2
        %v2417 = vadd.f32 %v2415, %v2416
        %v2418 = vrot.slane %v2417, 1
        %v2419 = vadd.f32 %v2417, %v2418
        %v2420 = vadd.f32 %v2378, %v2379
        %v2421 = vrot.slane %v2420, 4
        %v2422 = vadd.f32 %v2420, %v2421
        %v2423 = vrot.slane %v2422, 2
        %v2424 = vadd.f32 %v2422, %v2423
        %v2425 = vrot.slane %v2424, 1
        %v2426 = vadd.f32 %v2424, %v2425
        %v2427 = vadd.f32 %v2380, %v2381
        %v2428 = vrot.slane %v2427, 4
        %v2429 = vadd.f32 %v2427, %v2428
        %v2430 = vrot.slane %v2429, 2
        %v2431 = vadd.f32 %v2429, %v2430
        %v2432 = vrot.slane %v2431, 1
        %v2433 = vadd.f32 %v2431, %v2432
        %v2434 = vadd.f32 %v2382, %v2383
        %v2435 = vrot.slane %v2434, 4
        %v2436 = vadd.f32 %v2434, %v2435
        %v2437 = vrot.slane %v2436, 2
        %v2438 = vadd.f32 %v2436, %v2437
        %v2439 = vrot.slane %v2438, 1
        %v2440 = vadd.f32 %v2438, %v2439
        %v2441 = vadd.f32 %v2384, %v2385
        %v2442 = vrot.slane %v2441, 4
        %v2443 = vadd.f32 %v2441, %v2442
        %v2444 = vrot.slane %v2443, 2
        %v2445 = vadd.f32 %v2443, %v2444
        %v2446 = vrot.slane %v2445, 1
        %v2447 = vadd.f32 %v2445, %v2446
        %v2448 = vadd.f32 %v2386, %v2387
        %v2449 = vrot.slane %v2448, 4
        %v2450 = vadd.f32 %v2448, %v2449
        %v2451 = vrot.slane %v2450, 2
        %v2452 = vadd.f32 %v2450, %v2451
        %v2453 = vrot.slane %v2452, 1
        %v2454 = vadd.f32 %v2452, %v2453
        %v2455 = vadd.f32 %v2388, %v2389
        %v2456 = vrot.slane %v2455, 4
        %v2457 = vadd.f32 %v2455, %v2456
        %v2458 = vrot.slane %v2457, 2
        %v2459 = vadd.f32 %v2457, %v2458
        %v2460 = vrot.slane %v2459, 1
        %v2461 = vadd.f32 %v2459, %v2460
        %v2462 = vadd.f32 %v2390, %v2391
        %v2463 = vrot.slane %v2462, 4
        %v2464 = vadd.f32 %v2462, %v2463
        %v2465 = vrot.slane %v2464, 2
        %v2466 = vadd.f32 %v2464, %v2465
        %v2467 = vrot.slane %v2466, 1
        %v2468 = vadd.f32 %v2466, %v2467
        %v2469 = vadd.f32 %v2392, %v2393
        %v2470 = vrot.slane %v2469, 4
        %v2471 = vadd.f32 %v2469, %v2470
        %v2472 = vrot.slane %v2471, 2
        %v2473 = vadd.f32 %v2471, %v2472
        %v2474 = vrot.slane %v2473, 1
        %v2475 = vadd.f32 %v2473, %v2474
        %v2476 = vadd.f32 %v2394, %v2395
        %v2477 = vrot.slane %v2476, 4
        %v2478 = vadd.f32 %v2476, %v2477
        %v2479 = vrot.slane %v2478, 2
        %v2480 = vadd.f32 %v2478, %v2479
        %v2481 = vrot.slane %v2480, 1
        %v2482 = vadd.f32 %v2480, %v2481
        %v2483 = vadd.f32 %v2396, %v2397
        %v2484 = vrot.slane %v2483, 4
        %v2485 = vadd.f32 %v2483, %v2484
        %v2486 = vrot.slane %v2485, 2
        %v2487 = vadd.f32 %v2485, %v2486
        %v2488 = vrot.slane %v2487, 1
        %v2489 = vadd.f32 %v2487, %v2488
        %v2490 = vadd.f32 %v2398, %v2399
        %v2491 = vrot.slane %v2490, 4
        %v2492 = vadd.f32 %v2490, %v2491
        %v2493 = vrot.slane %v2492, 2
        %v2494 = vadd.f32 %v2492, %v2493
        %v2495 = vrot.slane %v2494, 1
        %v2496 = vadd.f32 %v2494, %v2495
        %v2497 = vadd.f32 %v2400, %v2401
        %v2498 = vrot.slane %v2497, 4
        %v2499 = vadd.f32 %v2497, %v2498
        %v2500 = vrot.slane %v2499, 2
        %v2501 = vadd.f32 %v2499, %v2500
        %v2502 = vrot.slane %v2501, 1
        %v2503 = vadd.f32 %v2501, %v2502
        %v2504 = vadd.f32 %v2402, %v2403
        %v2505 = vrot.slane %v2504, 4
        %v2506 = vadd.f32 %v2504, %v2505
        %v2507 = vrot.slane %v2506, 2
        %v2508 = vadd.f32 %v2506, %v2507
        %v2509 = vrot.slane %v2508, 1
        %v2510 = vadd.f32 %v2508, %v2509
        %v2511 = vadd.f32 %v2404, %v2405
        %v2512 = vrot.slane %v2511, 4
        %v2513 = vadd.f32 %v2511, %v2512
        %v2514 = vrot.slane %v2513, 2
        %v2515 = vadd.f32 %v2513, %v2514
        %v2516 = vrot.slane %v2515, 1
        %v2517 = vadd.f32 %v2515, %v2516
        %v2518 = vadd.f32 %v2342, %v2343
        %v2519 = vrot.slane %v2518, 4
        %v2520 = vadd.f32 %v2518, %v2519
        %v2521 = vrot.slane %v2520, 2
        %v2522 = vadd.f32 %v2520, %v2521
        %v2523 = vrot.slane %v2522, 1
        %v2524 = vadd.f32 %v2522, %v2523
        %v2525 = vadd.f32 %v2344, %v2345
        %v2526 = vrot.slane %v2525, 4
        %v2527 = vadd.f32 %v2525, %v2526
        %v2528 = vrot.slane %v2527, 2
        %v2529 = vadd.f32 %v2527, %v2528
        %v2530 = vrot.slane %v2529, 1
        %v2531 = vadd.f32 %v2529, %v2530
        %v2532 = vadd.f32 %v2346, %v2347
        %v2533 = vrot.slane %v2532, 4
        %v2534 = vadd.f32 %v2532, %v2533
        %v2535 = vrot.slane %v2534, 2
        %v2536 = vadd.f32 %v2534, %v2535
        %v2537 = vrot.slane %v2536, 1
        %v2538 = vadd.f32 %v2536, %v2537
        %v2539 = vadd.f32 %v2348, %v2349
        %v2540 = vrot.slane %v2539, 4
        %v2541 = vadd.f32 %v2539, %v2540
        %v2542 = vrot.slane %v2541, 2
        %v2543 = vadd.f32 %v2541, %v2542
        %v2544 = vrot.slane %v2543, 1
        %v2545 = vadd.f32 %v2543, %v2544
        %v2546 = vadd.f32 %v2350, %v2351
        %v2547 = vrot.slane %v2546, 4
        %v2548 = vadd.f32 %v2546, %v2547
        %v2549 = vrot.slane %v2548, 2
        %v2550 = vadd.f32 %v2548, %v2549
        %v2551 = vrot.slane %v2550, 1
        %v2552 = vadd.f32 %v2550, %v2551
        %v2553 = vadd.f32 %v2352, %v2353
        %v2554 = vrot.slane %v2553, 4
        %v2555 = vadd.f32 %v2553, %v2554
        %v2556 = vrot.slane %v2555, 2
        %v2557 = vadd.f32 %v2555, %v2556
        %v2558 = vrot.slane %v2557, 1
        %v2559 = vadd.f32 %v2557, %v2558
        %v2560 = vadd.f32 %v2354, %v2355
        %v2561 = vrot.slane %v2560, 4
        %v2562 = vadd.f32 %v2560, %v2561
        %v2563 = vrot.slane %v2562, 2
        %v2564 = vadd.f32 %v2562, %v2563
        %v2565 = vrot.slane %v2564, 1
        %v2566 = vadd.f32 %v2564, %v2565
        %v2567 = vadd.f32 %v2356, %v2357
        %v2568 = vrot.slane %v2567, 4
        %v2569 = vadd.f32 %v2567, %v2568
        %v2570 = vrot.slane %v2569, 2
        %v2571 = vadd.f32 %v2569, %v2570
        %v2572 = vrot.slane %v2571, 1
        %v2573 = vadd.f32 %v2571, %v2572
        %v2574 = vadd.f32 %v2358, %v2359
        %v2575 = vrot.slane %v2574, 4
        %v2576 = vadd.f32 %v2574, %v2575
        %v2577 = vrot.slane %v2576, 2
        %v2578 = vadd.f32 %v2576, %v2577
        %v2579 = vrot.slane %v2578, 1
        %v2580 = vadd.f32 %v2578, %v2579
        %v2581 = vadd.f32 %v2360, %v2361
        %v2582 = vrot.slane %v2581, 4
        %v2583 = vadd.f32 %v2581, %v2582
        %v2584 = vrot.slane %v2583, 2
        %v2585 = vadd.f32 %v2583, %v2584
        %v2586 = vrot.slane %v2585, 1
        %v2587 = vadd.f32 %v2585, %v2586
        %v2588 = vadd.f32 %v2362, %v2363
        %v2589 = vrot.slane %v2588, 4
        %v2590 = vadd.f32 %v2588, %v2589
        %v2591 = vrot.slane %v2590, 2
        %v2592 = vadd.f32 %v2590, %v2591
        %v2593 = vrot.slane %v2592, 1
        %v2594 = vadd.f32 %v2592, %v2593
        %v2595 = vadd.f32 %v2364, %v2365
        %v2596 = vrot.slane %v2595, 4
        %v2597 = vadd.f32 %v2595, %v2596
        %v2598 = vrot.slane %v2597, 2
        %v2599 = vadd.f32 %v2597, %v2598
        %v2600 = vrot.slane %v2599, 1
        %v2601 = vadd.f32 %v2599, %v2600
        %v2602 = vadd.f32 %v2366, %v2367
        %v2603 = vrot.slane %v2602, 4
        %v2604 = vadd.f32 %v2602, %v2603
        %v2605 = vrot.slane %v2604, 2
        %v2606 = vadd.f32 %v2604, %v2605
        %v2607 = vrot.slane %v2606, 1
        %v2608 = vadd.f32 %v2606, %v2607
        %v2609 = vadd.f32 %v2368, %v2369
        %v2610 = vrot.slane %v2609, 4
        %v2611 = vadd.f32 %v2609, %v2610
        %v2612 = vrot.slane %v2611, 2
        %v2613 = vadd.f32 %v2611, %v2612
        %v2614 = vrot.slane %v2613, 1
        %v2615 = vadd.f32 %v2613, %v2614
        %v2616 = vadd.f32 %v2370, %v2371
        %v2617 = vrot.slane %v2616, 4
        %v2618 = vadd.f32 %v2616, %v2617
        %v2619 = vrot.slane %v2618, 2
        %v2620 = vadd.f32 %v2618, %v2619
        %v2621 = vrot.slane %v2620, 1
        %v2622 = vadd.f32 %v2620, %v2621
        %v2623 = vadd.f32 %v2372, %v2373
        %v2624 = vrot.slane %v2623, 4
        %v2625 = vadd.f32 %v2623, %v2624
        %v2626 = vrot.slane %v2625, 2
        %v2627 = vadd.f32 %v2625, %v2626
        %v2628 = vrot.slane %v2627, 1
        %v2629 = vadd.f32 %v2627, %v2628
        %v2630 = vadd.f32 %v2524, 1e-06
        %v2631 = vadd.f32 %v2531, 1e-06
        %v2632 = vadd.f32 %v2538, 1e-06
        %v2633 = vadd.f32 %v2545, 1e-06
        %v2634 = vadd.f32 %v2552, 1e-06
        %v2635 = vadd.f32 %v2559, 1e-06
        %v2636 = vadd.f32 %v2566, 1e-06
        %v2637 = vadd.f32 %v2573, 1e-06
        %v2638 = vadd.f32 %v2580, 1e-06
        %v2639 = vadd.f32 %v2587, 1e-06
        %v2640 = vadd.f32 %v2594, 1e-06
        %v2641 = vadd.f32 %v2601, 1e-06
        %v2642 = vadd.f32 %v2608, 1e-06
        %v2643 = vadd.f32 %v2615, 1e-06
        %v2644 = vadd.f32 %v2622, 1e-06
        %v2645 = vadd.f32 %v2629, 1e-06
        %v2646 = vrcp.pop %v2630
        %v2647 = vmul.f32 %v2630, %v2646
        %v2648 = vsub.f32 1.0, %v2647
        %v2649 = vmul.f32 %v2646, %v2648
        %v2650 = vadd.f32 %v2646, %v2649
        %vm2651 = vweird.f32 %v2630
        %vm2652 = vweird.f32 %v2646
        %vm2653 = vmor %vm2651, %vm2652
        %v2654 = vsel %vm2653, %v2646, %v2650
        %v2655 = vand.u32 2147483647, %v2630
        %vm2656 = vcmp.eq.f32.partialorder %v2655, 8.507059e+37
        %v2657 = vand.u32 %v2630, 2147483648
        %v2658 = vor.u32 1.1754944e-38, %v2657
        %v2659 = vsel %vm2656, %v2658, %v2654
        %v2660 = vmul.f32 %v2412, %v2659
        %v2661 = vrcp.pop %v2631
        %v2662 = vmul.f32 %v2631, %v2661
        %v2663 = vsub.f32 1.0, %v2662
        %v2664 = vmul.f32 %v2661, %v2663
        %v2665 = vadd.f32 %v2661, %v2664
        %vm2666 = vweird.f32 %v2631
        %vm2667 = vweird.f32 %v2661
        %vm2668 = vmor %vm2666, %vm2667
        %v2669 = vsel %vm2668, %v2661, %v2665
        %v2670 = vand.u32 2147483647, %v2631
        %vm2671 = vcmp.eq.f32.partialorder %v2670, 8.507059e+37
        %v2672 = vand.u32 %v2631, 2147483648
        %v2673 = vor.u32 1.1754944e-38, %v2672
        %v2674 = vsel %vm2671, %v2673, %v2669
        %v2675 = vmul.f32 %v2419, %v2674
        %v2676 = vrcp.pop %v2632
        %v2677 = vmul.f32 %v2632, %v2676
        %v2678 = vsub.f32 1.0, %v2677
        %v2679 = vmul.f32 %v2676, %v2678
        %v2680 = vadd.f32 %v2676, %v2679
        %vm2681 = vweird.f32 %v2632
        %vm2682 = vweird.f32 %v2676
        %vm2683 = vmor %vm2681, %vm2682
        %v2684 = vsel %vm2683, %v2676, %v2680
        %v2685 = vand.u32 2147483647, %v2632
        %vm2686 = vcmp.eq.f32.partialorder %v2685, 8.507059e+37
        %v2687 = vand.u32 %v2632, 2147483648
        %v2688 = vor.u32 1.1754944e-38, %v2687
        %v2689 = vsel %vm2686, %v2688, %v2684
        %v2690 = vmul.f32 %v2426, %v2689
        %v2691 = vrcp.pop %v2633
        %v2692 = vmul.f32 %v2633, %v2691
        %v2693 = vsub.f32 1.0, %v2692
        %v2694 = vmul.f32 %v2691, %v2693
        %v2695 = vadd.f32 %v2691, %v2694
        %vm2696 = vweird.f32 %v2633
        %vm2697 = vweird.f32 %v2691
        %vm2698 = vmor %vm2696, %vm2697
        %v2699 = vsel %vm2698, %v2691, %v2695
        %v2700 = vand.u32 2147483647, %v2633
        %vm2701 = vcmp.eq.f32.partialorder %v2700, 8.507059e+37
        %v2702 = vand.u32 %v2633, 2147483648
        %v2703 = vor.u32 1.1754944e-38, %v2702
        %v2704 = vsel %vm2701, %v2703, %v2699
        %v2705 = vmul.f32 %v2433, %v2704
        %v2706 = vrcp.pop %v2634
        %v2707 = vmul.f32 %v2634, %v2706
        %v2708 = vsub.f32 1.0, %v2707
        %v2709 = vmul.f32 %v2706, %v2708
        %v2710 = vadd.f32 %v2706, %v2709
        %vm2711 = vweird.f32 %v2634
        %vm2712 = vweird.f32 %v2706
        %vm2713 = vmor %vm2711, %vm2712
        %v2714 = vsel %vm2713, %v2706, %v2710
        %v2715 = vand.u32 2147483647, %v2634
        %vm2716 = vcmp.eq.f32.partialorder %v2715, 8.507059e+37
        %v2717 = vand.u32 %v2634, 2147483648
        %v2718 = vor.u32 1.1754944e-38, %v2717
        %v2719 = vsel %vm2716, %v2718, %v2714
        %v2720 = vmul.f32 %v2440, %v2719
        %v2721 = vrcp.pop %v2635
        %v2722 = vmul.f32 %v2635, %v2721
        %v2723 = vsub.f32 1.0, %v2722
        %v2724 = vmul.f32 %v2721, %v2723
        %v2725 = vadd.f32 %v2721, %v2724
        %vm2726 = vweird.f32 %v2635
        %vm2727 = vweird.f32 %v2721
        %vm2728 = vmor %vm2726, %vm2727
        %v2729 = vsel %vm2728, %v2721, %v2725
        %v2730 = vand.u32 2147483647, %v2635
        %vm2731 = vcmp.eq.f32.partialorder %v2730, 8.507059e+37
        %v2732 = vand.u32 %v2635, 2147483648
        %v2733 = vor.u32 1.1754944e-38, %v2732
        %v2734 = vsel %vm2731, %v2733, %v2729
        %v2735 = vmul.f32 %v2447, %v2734
        %v2736 = vrcp.pop %v2636
        %v2737 = vmul.f32 %v2636, %v2736
        %v2738 = vsub.f32 1.0, %v2737
        %v2739 = vmul.f32 %v2736, %v2738
        %v2740 = vadd.f32 %v2736, %v2739
        %vm2741 = vweird.f32 %v2636
        %vm2742 = vweird.f32 %v2736
        %vm2743 = vmor %vm2741, %vm2742
        %v2744 = vsel %vm2743, %v2736, %v2740
        %v2745 = vand.u32 2147483647, %v2636
        %vm2746 = vcmp.eq.f32.partialorder %v2745, 8.507059e+37
        %v2747 = vand.u32 %v2636, 2147483648
        %v2748 = vor.u32 1.1754944e-38, %v2747
        %v2749 = vsel %vm2746, %v2748, %v2744
        %v2750 = vmul.f32 %v2454, %v2749
        %v2751 = vrcp.pop %v2637
        %v2752 = vmul.f32 %v2637, %v2751
        %v2753 = vsub.f32 1.0, %v2752
        %v2754 = vmul.f32 %v2751, %v2753
        %v2755 = vadd.f32 %v2751, %v2754
        %vm2756 = vweird.f32 %v2637
        %vm2757 = vweird.f32 %v2751
        %vm2758 = vmor %vm2756, %vm2757
        %v2759 = vsel %vm2758, %v2751, %v2755
        %v2760 = vand.u32 2147483647, %v2637
        %vm2761 = vcmp.eq.f32.partialorder %v2760, 8.507059e+37
        %v2762 = vand.u32 %v2637, 2147483648
        %v2763 = vor.u32 1.1754944e-38, %v2762
        %v2764 = vsel %vm2761, %v2763, %v2759
        %v2765 = vmul.f32 %v2461, %v2764
        %v2766 = vrcp.pop %v2638
        %v2767 = vmul.f32 %v2638, %v2766
        %v2768 = vsub.f32 1.0, %v2767
        %v2769 = vmul.f32 %v2766, %v2768
        %v2770 = vadd.f32 %v2766, %v2769
        %vm2771 = vweird.f32 %v2638
        %vm2772 = vweird.f32 %v2766
        %vm2773 = vmor %vm2771, %vm2772
        %v2774 = vsel %vm2773, %v2766, %v2770
        %v2775 = vand.u32 2147483647, %v2638
        %vm2776 = vcmp.eq.f32.partialorder %v2775, 8.507059e+37
        %v2777 = vand.u32 %v2638, 2147483648
        %v2778 = vor.u32 1.1754944e-38, %v2777
        %v2779 = vsel %vm2776, %v2778, %v2774
        %v2780 = vmul.f32 %v2468, %v2779
        %v2781 = vrcp.pop %v2639
        %v2782 = vmul.f32 %v2639, %v2781
        %v2783 = vsub.f32 1.0, %v2782
        %v2784 = vmul.f32 %v2781, %v2783
        %v2785 = vadd.f32 %v2781, %v2784
        %vm2786 = vweird.f32 %v2639
        %vm2787 = vweird.f32 %v2781
        %vm2788 = vmor %vm2786, %vm2787
        %v2789 = vsel %vm2788, %v2781, %v2785
        %v2790 = vand.u32 2147483647, %v2639
        %vm2791 = vcmp.eq.f32.partialorder %v2790, 8.507059e+37
        %v2792 = vand.u32 %v2639, 2147483648
        %v2793 = vor.u32 1.1754944e-38, %v2792
        %v2794 = vsel %vm2791, %v2793, %v2789
        %v2795 = vmul.f32 %v2475, %v2794
        %v2796 = vrcp.pop %v2640
        %v2797 = vmul.f32 %v2640, %v2796
        %v2798 = vsub.f32 1.0, %v2797
        %v2799 = vmul.f32 %v2796, %v2798
        %v2800 = vadd.f32 %v2796, %v2799
        %vm2801 = vweird.f32 %v2640
        %vm2802 = vweird.f32 %v2796
        %vm2803 = vmor %vm2801, %vm2802
        %v2804 = vsel %vm2803, %v2796, %v2800
        %v2805 = vand.u32 2147483647, %v2640
        %vm2806 = vcmp.eq.f32.partialorder %v2805, 8.507059e+37
        %v2807 = vand.u32 %v2640, 2147483648
        %v2808 = vor.u32 1.1754944e-38, %v2807
        %v2809 = vsel %vm2806, %v2808, %v2804
        %v2810 = vmul.f32 %v2482, %v2809
        %v2811 = vrcp.pop %v2641
        %v2812 = vmul.f32 %v2641, %v2811
        %v2813 = vsub.f32 1.0, %v2812
        %v2814 = vmul.f32 %v2811, %v2813
        %v2815 = vadd.f32 %v2811, %v2814
        %vm2816 = vweird.f32 %v2641
        %vm2817 = vweird.f32 %v2811
        %vm2818 = vmor %vm2816, %vm2817
        %v2819 = vsel %vm2818, %v2811, %v2815
        %v2820 = vand.u32 2147483647, %v2641
        %vm2821 = vcmp.eq.f32.partialorder %v2820, 8.507059e+37
        %v2822 = vand.u32 %v2641, 2147483648
        %v2823 = vor.u32 1.1754944e-38, %v2822
        %v2824 = vsel %vm2821, %v2823, %v2819
        %v2825 = vmul.f32 %v2489, %v2824
        %v2826 = vrcp.pop %v2642
        %v2827 = vmul.f32 %v2642, %v2826
        %v2828 = vsub.f32 1.0, %v2827
        %v2829 = vmul.f32 %v2826, %v2828
        %v2830 = vadd.f32 %v2826, %v2829
        %vm2831 = vweird.f32 %v2642
        %vm2832 = vweird.f32 %v2826
        %vm2833 = vmor %vm2831, %vm2832
        %v2834 = vsel %vm2833, %v2826, %v2830
        %v2835 = vand.u32 2147483647, %v2642
        %vm2836 = vcmp.eq.f32.partialorder %v2835, 8.507059e+37
        %v2837 = vand.u32 %v2642, 2147483648
        %v2838 = vor.u32 1.1754944e-38, %v2837
        %v2839 = vsel %vm2836, %v2838, %v2834
        %v2840 = vmul.f32 %v2496, %v2839
        %v2841 = vrcp.pop %v2643
        %v2842 = vmul.f32 %v2643, %v2841
        %v2843 = vsub.f32 1.0, %v2842
        %v2844 = vmul.f32 %v2841, %v2843
        %v2845 = vadd.f32 %v2841, %v2844
        %vm2846 = vweird.f32 %v2643
        %vm2847 = vweird.f32 %v2841
        %vm2848 = vmor %vm2846, %vm2847
        %v2849 = vsel %vm2848, %v2841, %v2845
        %v2850 = vand.u32 2147483647, %v2643
        %vm2851 = vcmp.eq.f32.partialorder %v2850, 8.507059e+37
        %v2852 = vand.u32 %v2643, 2147483648
        %v2853 = vor.u32 1.1754944e-38, %v2852
        %v2854 = vsel %vm2851, %v2853, %v2849
        %v2855 = vmul.f32 %v2503, %v2854
        %v2856 = vrcp.pop %v2644
        %v2857 = vmul.f32 %v2644, %v2856
        %v2858 = vsub.f32 1.0, %v2857
        %v2859 = vmul.f32 %v2856, %v2858
        %v2860 = vadd.f32 %v2856, %v2859
        %vm2861 = vweird.f32 %v2644
        %vm2862 = vweird.f32 %v2856
        %vm2863 = vmor %vm2861, %vm2862
        %v2864 = vsel %vm2863, %v2856, %v2860
        %v2865 = vand.u32 2147483647, %v2644
        %vm2866 = vcmp.eq.f32.partialorder %v2865, 8.507059e+37
        %v2867 = vand.u32 %v2644, 2147483648
        %v2868 = vor.u32 1.1754944e-38, %v2867
        %v2869 = vsel %vm2866, %v2868, %v2864
        %v2870 = vmul.f32 %v2510, %v2869
        %v2871 = vrcp.pop %v2645
        %v2872 = vmul.f32 %v2645, %v2871
        %v2873 = vsub.f32 1.0, %v2872
        %v2874 = vmul.f32 %v2871, %v2873
        %v2875 = vadd.f32 %v2871, %v2874
        %vm2876 = vweird.f32 %v2645
        %vm2877 = vweird.f32 %v2871
        %vm2878 = vmor %vm2876, %vm2877
        %v2879 = vsel %vm2878, %v2871, %v2875
        %v2880 = vand.u32 2147483647, %v2645
        %vm2881 = vcmp.eq.f32.partialorder %v2880, 8.507059e+37
        %v2882 = vand.u32 %v2645, 2147483648
        %v2883 = vor.u32 1.1754944e-38, %v2882
        %v2884 = vsel %vm2881, %v2883, %v2879
        %v2885 = vmul.f32 %v2517, %v2884
        %vm2902 = vcmask 1041409
        %v2903 = vsel %vm2902, %v2675, %v2660
        %vm2904 = vcmask 1042434
        %v2905 = vsel %vm2904, %v2690, %v2903
        %vm2906 = vcmask 1043459
        %v2907 = vsel %vm2906, %v2705, %v2905
        %vm2908 = vcmask 1044484
        %v2909 = vsel %vm2908, %v2720, %v2907
        %vm2910 = vcmask 1045509
        %v2911 = vsel %vm2910, %v2735, %v2909
        %vm2912 = vcmask 1046534
        %v2913 = vsel %vm2912, %v2750, %v2911
        %vm2914 = vcmask 1047559
        %v2915 = vsel %vm2914, %v2765, %v2913
        %v2916 = vsel %vm2902, %v2795, %v2780
        %v2917 = vsel %vm2904, %v2810, %v2916
        %v2918 = vsel %vm2906, %v2825, %v2917
        %v2919 = vsel %vm2908, %v2840, %v2918
        %v2920 = vsel %vm2910, %v2855, %v2919
        %v2921 = vsel %vm2912, %v2870, %v2920
        %v2922 = vsel %vm2914, %v2885, %v2921
        %v2925 = vadd.f32 %v1389, %v2915
        %v2926 = vadd.f32 %v1391, %v2922
        %v2927 = vld [vmem:[%s11] sm:$0x1]
        %v2928 = vmul.f32 %v1108, %v2927
        %v2929 = vld [vmem:[#allocation16] sm:$0x1]
        %v2930 = vmul.f32 %v1109, %v2929
        %s2931 = scalar_lea.vmem [#allocation16], 1
        %v2932 = vld [vmem:[%s2931] sm:$0x1]
        %v2934 = vperm.slane %v2928, 0
        %v2936 = vmul.f32 %v2925, %v2934
        %v2937 = vmul.f32 %v2926, %v2934
        %s2938 = scalar_lea.vmem %s11, 1
        %v2939 = vld [vmem:[%s2938] sm:$0x1]
        %v2941 = vperm.slane %v2939, 0
        %v2943 = vadd.f32 %v2936, %v2941
        %v2944 = vadd.f32 %v2937, %v2941
        %v2946 = vperm.slane %v2930, 0
        %v2948 = vmul.f32 %v1702, %v2946
        %v2949 = vmul.f32 %v1703, %v2946
        %v2950 = vmul.f32 %v1704, %v2946
        %v2951 = vmul.f32 %v1705, %v2946
        %v2952 = vmul.f32 %v1706, %v2946
        %v2953 = vmul.f32 %v1707, %v2946
        %v2954 = vmul.f32 %v1708, %v2946
        %v2955 = vmul.f32 %v1709, %v2946
        %v2956 = vmul.f32 %v1710, %v2946
        %v2957 = vmul.f32 %v1711, %v2946
        %v2958 = vmul.f32 %v1712, %v2946
        %v2959 = vmul.f32 %v1713, %v2946
        %v2960 = vmul.f32 %v1714, %v2946
        %v2961 = vmul.f32 %v1715, %v2946
        %v2962 = vmul.f32 %v1716, %v2946
        %v2963 = vmul.f32 %v1717, %v2946
        %v2964 = vmul.f32 %v1718, %v2946
        %v2965 = vmul.f32 %v1719, %v2946
        %v2966 = vmul.f32 %v1720, %v2946
        %v2967 = vmul.f32 %v1721, %v2946
        %v2968 = vmul.f32 %v1722, %v2946
        %v2969 = vmul.f32 %v1723, %v2946
        %v2970 = vmul.f32 %v1724, %v2946
        %v2971 = vmul.f32 %v1725, %v2946
        %v2972 = vmul.f32 %v1726, %v2946
        %v2973 = vmul.f32 %v1727, %v2946
        %v2974 = vmul.f32 %v1728, %v2946
        %v2975 = vmul.f32 %v1729, %v2946
        %v2976 = vmul.f32 %v1730, %v2946
        %v2977 = vmul.f32 %v1731, %v2946
        %v2978 = vmul.f32 %v1732, %v2946
        %v2979 = vmul.f32 %v1733, %v2946
        %v2981 = vperm.slane %v2932, 0
        %v2983 = vadd.f32 %v2948, %v2981
        %v2984 = vadd.f32 %v2949, %v2981
        %v2985 = vadd.f32 %v2950, %v2981
        %v2986 = vadd.f32 %v2951, %v2981
        %v2987 = vadd.f32 %v2952, %v2981
        %v2988 = vadd.f32 %v2953, %v2981
        %v2989 = vadd.f32 %v2954, %v2981
        %v2990 = vadd.f32 %v2955, %v2981
        %v2991 = vadd.f32 %v2956, %v2981
        %v2992 = vadd.f32 %v2957, %v2981
        %v2993 = vadd.f32 %v2958, %v2981
        %v2994 = vadd.f32 %v2959, %v2981
        %v2995 = vadd.f32 %v2960, %v2981
        %v2996 = vadd.f32 %v2961, %v2981
        %v2997 = vadd.f32 %v2962, %v2981
        %v2998 = vadd.f32 %v2963, %v2981
        %v2999 = vadd.f32 %v2964, %v2981
        %v3000 = vadd.f32 %v2965, %v2981
        %v3001 = vadd.f32 %v2966, %v2981
        %v3002 = vadd.f32 %v2967, %v2981
        %v3003 = vadd.f32 %v2968, %v2981
        %v3004 = vadd.f32 %v2969, %v2981
        %v3005 = vadd.f32 %v2970, %v2981
        %v3006 = vadd.f32 %v2971, %v2981
        %v3007 = vadd.f32 %v2972, %v2981
        %v3008 = vadd.f32 %v2973, %v2981
        %v3009 = vadd.f32 %v2974, %v2981
        %v3010 = vadd.f32 %v2975, %v2981
        %v3011 = vadd.f32 %v2976, %v2981
        %v3012 = vadd.f32 %v2977, %v2981
        %v3013 = vadd.f32 %v2978, %v2981
        %v3014 = vadd.f32 %v2979, %v2981
        %v3015 = vmax.f32 %v2943, 0.0
        %v3016 = vmax.f32 %v2944, 0.0
        %v3017 = vmax.f32 %v2983, 0.0
        %v3018 = vmax.f32 %v2984, 0.0
        %v3019 = vmax.f32 %v2985, 0.0
        %v3020 = vmax.f32 %v2986, 0.0
        %v3021 = vmax.f32 %v2987, 0.0
        %v3022 = vmax.f32 %v2988, 0.0
        %v3023 = vmax.f32 %v2989, 0.0
        %v3024 = vmax.f32 %v2990, 0.0
        %v3025 = vmax.f32 %v2991, 0.0
        %v3026 = vmax.f32 %v2992, 0.0
        %v3027 = vmax.f32 %v2993, 0.0
        %v3028 = vmax.f32 %v2994, 0.0
        %v3029 = vmax.f32 %v2995, 0.0
        %v3030 = vmax.f32 %v2996, 0.0
        %v3031 = vmax.f32 %v2997, 0.0
        %v3032 = vmax.f32 %v2998, 0.0
        %v3033 = vmax.f32 %v2999, 0.0
        %v3034 = vmax.f32 %v3000, 0.0
        %v3035 = vmax.f32 %v3001, 0.0
        %v3036 = vmax.f32 %v3002, 0.0
        %v3037 = vmax.f32 %v3003, 0.0
        %v3038 = vmax.f32 %v3004, 0.0
        %v3039 = vmax.f32 %v3005, 0.0
        %v3040 = vmax.f32 %v3006, 0.0
        %v3041 = vmax.f32 %v3007, 0.0
        %v3042 = vmax.f32 %v3008, 0.0
        %v3043 = vmax.f32 %v3009, 0.0
        %v3044 = vmax.f32 %v3010, 0.0
        %v3045 = vmax.f32 %v3011, 0.0
        %v3046 = vmax.f32 %v3012, 0.0
        %v3047 = vmax.f32 %v3013, 0.0
        %v3048 = vmax.f32 %v3014, 0.0
        %v3049 = vpack.c.bf16 %v3016, %v3015
        %v3050 = vld [vmem:[#allocation17] sm:$0xf]
        %v3051 = vld [vmem:[#allocation17 + $0x4] sm:$0xf]
        %v3052 = vld [vmem:[#allocation17 + $0x8] sm:$0xf]
        %v3053 = vld [vmem:[#allocation17 + $0xc] sm:$0xf]
        %v3054 = vld [vmem:[#allocation17 + $0x10] sm:$0xf]
        %v3055 = vld [vmem:[#allocation17 + $0x14] sm:$0xf]
        %v3056 = vld [vmem:[#allocation17 + $0x18] sm:$0xf]
        %v3057 = vld [vmem:[#allocation17 + $0x1c] sm:$0xf]
        %v3058 = vld [vmem:[#allocation17 + $0x20] sm:$0xf]
        %v3059 = vld [vmem:[#allocation17 + $0x24] sm:$0xf]
        %v3060 = vld [vmem:[#allocation17 + $0x28] sm:$0xf]
        %v3061 = vld [vmem:[#allocation17 + $0x2c] sm:$0xf]
        %v3062 = vld [vmem:[#allocation17 + $0x30] sm:$0xf]
        %v3063 = vld [vmem:[#allocation17 + $0x34] sm:$0xf]
        %v3064 = vld [vmem:[#allocation17 + $0x38] sm:$0xf]
        %v3065 = vld [vmem:[#allocation17 + $0x3c] sm:$0xf]
        %v3082 = vunpack.c.l.b16 %v3050
        %v3083 = vunpack.c.l.b16 %v3051
        %v3084 = vunpack.c.l.b16 %v3052
        %v3085 = vunpack.c.l.b16 %v3053
        %v3086 = vunpack.c.l.b16 %v3054
        %v3087 = vunpack.c.l.b16 %v3055
        %v3088 = vunpack.c.l.b16 %v3056
        %v3089 = vunpack.c.l.b16 %v3057
        %v3090 = vunpack.c.l.b16 %v3058
        %v3091 = vunpack.c.l.b16 %v3059
        %v3092 = vunpack.c.l.b16 %v3060
        %v3093 = vunpack.c.l.b16 %v3061
        %v3094 = vunpack.c.l.b16 %v3062
        %v3095 = vunpack.c.l.b16 %v3063
        %v3096 = vunpack.c.l.b16 %v3064
        %v3097 = vunpack.c.l.b16 %v3065
        %v3098 = vpack.c.b16 %v3083, %v3082
        %v3099 = vpack.c.b16 %v3085, %v3084
        %v3100 = vpack.c.b16 %v3087, %v3086
        %v3101 = vpack.c.b16 %v3089, %v3088
        %v3102 = vpack.c.b16 %v3091, %v3090
        %v3103 = vpack.c.b16 %v3093, %v3092
        %v3104 = vpack.c.b16 %v3095, %v3094
        %v3105 = vpack.c.b16 %v3097, %v3096
        %3114 = vmatpush.bf16.msra.mxu0 %v3105
        %3115 = vmatpush.bf16.msra.mxu0 %v3104
        %3116 = vmatpush.bf16.msra.mxu0 %v3103
        %3117 = vmatpush.bf16.msra.mxu0 %v3102
        %3118 = vmatpush.bf16.msra.mxu0 %v3101
        %3119 = vmatpush.bf16.msra.mxu0 %v3100
        %3120 = vmatpush.bf16.msra.mxu0 %v3099
        %3121 = vmatpush.bf16.msra.mxu0 %v3098
        %3122 = vmatmul.bf16.gmra.mxu0 %v3049
        %v3123 = vpop.f32.mrf.mxu0
        %v3124 = vadd.f32 %v1445, %v3123
        %v3125 = vpop.f32.mrf.mxu0
        %v3126 = vadd.f32 %v1447, %v3125
        %3127 = vdwg.mxu0
        %v3128 = vxor.u32 %v3124, 2147483648
        %v3129 = vxor.u32 %v3126, 2147483648
        %v3130 = vmul.f32 %v3128, 1.442695
        %v3131 = vpow.pop %v3130
        %v3132 = vmul.f32 %v3129, 1.442695
        %v3133 = vpow.pop %v3132
        %v3134 = vadd.f32 %v3131, 1.0
        %v3135 = vadd.f32 %v3133, 1.0
        %v3136 = vrcp.pop %v3134
        %v3137 = vmul.f32 %v3134, %v3136
        %v3138 = vsub.f32 1.0, %v3137
        %v3139 = vmul.f32 %v3136, %v3138
        %v3140 = vadd.f32 %v3136, %v3139
        %vm3141 = vweird.f32 %v3134
        %vm3142 = vweird.f32 %v3136
        %vm3143 = vmor %vm3141, %vm3142
        %v3144 = vsel %vm3143, %v3136, %v3140
        %v3145 = vand.u32 2147483647, %v3134
        %vm3146 = vcmp.eq.f32.partialorder %v3145, 8.507059e+37
        %v3147 = vand.u32 %v3134, 2147483648
        %v3148 = vor.u32 1.1754944e-38, %v3147
        %v3149 = vsel %vm3146, %v3148, %v3144
        %v3150 = vmul.f32 1.0, %v3149
        %v3151 = vrcp.pop %v3135
        %v3152 = vmul.f32 %v3135, %v3151
        %v3153 = vsub.f32 1.0, %v3152
        %v3154 = vmul.f32 %v3151, %v3153
        %v3155 = vadd.f32 %v3151, %v3154
        %vm3156 = vweird.f32 %v3135
        %vm3157 = vweird.f32 %v3151
        %vm3158 = vmor %vm3156, %vm3157
        %v3159 = vsel %vm3158, %v3151, %v3155
        %v3160 = vand.u32 2147483647, %v3135
        %vm3161 = vcmp.eq.f32.partialorder %v3160, 8.507059e+37
        %v3162 = vand.u32 %v3135, 2147483648
        %v3163 = vor.u32 1.1754944e-38, %v3162
        %v3164 = vsel %vm3161, %v3163, %v3159
        %v3165 = vmul.f32 1.0, %v3164
        %v3166 = vmul.f32 %v3150, %v3015
        %v3167 = vmul.f32 %v3165, %v3016
        %v3168 = vsub.f32 1.0, %v3150
        %v3169 = vsub.f32 1.0, %v3165
        %v3170 = vmul.f32 %v3168, %v827
        %v3171 = vmul.f32 %v3169, %v830
        %v3172 = vadd.f32 %v3166, %v3170
        %v3173 = vadd.f32 %v3167, %v3171
        %v3174 = vpack.c.bf16 %v3173, %v3172
        %s3175 = scalar_lea.vmem [#allocation11], 320
        %v3176 = vld [vmem:[%s3175] sm:$0xff]
        %v3177 = vld [vmem:[%s3175 + $0x8] sm:$0xff]
        %v3178 = vld [vmem:[%s3175 + $0x10] sm:$0xf]
        %v3179 = vld [vmem:[%s3175 + $0x14] sm:$0xff]
        %v3180 = vld [vmem:[%s3175 + $0x1c] sm:$0xff]
        %v3181 = vld [vmem:[%s3175 + $0x24] sm:$0xf]
        %v3182 = vld [vmem:[%s3175 + $0x28] sm:$0xff]
        %v3183 = vld [vmem:[%s3175 + $0x30] sm:$0xff]
        %v3184 = vld [vmem:[%s3175 + $0x38] sm:$0xf]
        %v3185 = vld [vmem:[%s3175 + $0x3c] sm:$0xff]
        %v3186 = vld [vmem:[%s3175 + $0x44] sm:$0xff]
        %v3187 = vld [vmem:[%s3175 + $0x4c] sm:$0xf]
        %v3188 = vld [vmem:[%s3175 + $0x50] sm:$0xff]
        %v3189 = vld [vmem:[%s3175 + $0x58] sm:$0xff]
        %v3190 = vld [vmem:[%s3175 + $0x60] sm:$0xf]
        %v3191 = vld [vmem:[%s3175 + $0x64] sm:$0xff]
        %v3192 = vld [vmem:[%s3175 + $0x6c] sm:$0xff]
        %v3193 = vld [vmem:[%s3175 + $0x74] sm:$0xf]
        %v3194 = vld [vmem:[%s3175 + $0x78] sm:$0xff]
        %v3195 = vld [vmem:[%s3175 + $0x80] sm:$0xff]
        %v3196 = vld [vmem:[%s3175 + $0x88] sm:$0xf]
        %v3197 = vld [vmem:[%s3175 + $0x8c] sm:$0xff]
        %v3198 = vld [vmem:[%s3175 + $0x94] sm:$0xff]
        %v3199 = vld [vmem:[%s3175 + $0x9c] sm:$0xf]
        %v3200 = vld [vmem:[%s3175 + $0xa0] sm:$0xff]
        %v3201 = vld [vmem:[%s3175 + $0xa8] sm:$0xff]
        %v3202 = vld [vmem:[%s3175 + $0xb0] sm:$0xf]
        %v3203 = vld [vmem:[%s3175 + $0xb4] sm:$0xff]
        %v3204 = vld [vmem:[%s3175 + $0xbc] sm:$0xff]
        %v3205 = vld [vmem:[%s3175 + $0xc4] sm:$0xf]
        %v3206 = vld [vmem:[%s3175 + $0xc8] sm:$0xff]
        %v3207 = vld [vmem:[%s3175 + $0xd0] sm:$0xff]
        %v3208 = vld [vmem:[%s3175 + $0xd8] sm:$0xf]
        %v3209 = vld [vmem:[%s3175 + $0xdc] sm:$0xff]
        %v3210 = vld [vmem:[%s3175 + $0xe4] sm:$0xff]
        %v3211 = vld [vmem:[%s3175 + $0xec] sm:$0xf]
        %v3212 = vld [vmem:[%s3175 + $0xf0] sm:$0xff]
        %v3213 = vld [vmem:[%s3175 + $0xf8] sm:$0xff]
        %v3214 = vld [vmem:[%s3175 + $0x100] sm:$0xf]
        %v3215 = vld [vmem:[%s3175 + $0x104] sm:$0xff]
        %v3216 = vld [vmem:[%s3175 + $0x10c] sm:$0xff]
        %v3217 = vld [vmem:[%s3175 + $0x114] sm:$0xf]
        %v3218 = vld [vmem:[%s3175 + $0x118] sm:$0xff]
        %v3219 = vld [vmem:[%s3175 + $0x120] sm:$0xff]
        %v3220 = vld [vmem:[%s3175 + $0x128] sm:$0xf]
        %v3221 = vld [vmem:[%s3175 + $0x12c] sm:$0xff]
        %v3222 = vld [vmem:[%s3175 + $0x134] sm:$0xff]
        %v3223 = vld [vmem:[%s3175 + $0x13c] sm:$0xf]
        %s3224 = scalar_lea.vmem [#allocation13], 5
        %v3225 = vld [vmem:[%s3224] sm:$0x1f]
        %v3227 = vperm.slane %v3225, 0
        %v3228 = vperm.slane %v3225, 1
        %v3229 = vperm.slane %v3225, 2
        %v3230 = vperm.slane %v3225, 3
        %v3231 = vperm.slane %v3225, 4
        %v3285 = vunpack.c.l.b16 %v3176
        %v3286 = vunpack.c.h.b16 %v3176
        %v3287 = vunpack.c.l.b16 %v3177
        %v3288 = vunpack.c.h.b16 %v3177
        %v3289 = vunpack.c.l.b16 %v3178
        %v3290 = vunpack.c.l.b16 %v3179
        %v3291 = vunpack.c.h.b16 %v3179
        %v3292 = vunpack.c.l.b16 %v3180
        %v3293 = vunpack.c.h.b16 %v3180
        %v3294 = vunpack.c.l.b16 %v3181
        %v3295 = vunpack.c.l.b16 %v3182
        %v3296 = vunpack.c.h.b16 %v3182
        %v3297 = vunpack.c.l.b16 %v3183
        %v3298 = vunpack.c.h.b16 %v3183
        %v3299 = vunpack.c.l.b16 %v3184
        %v3300 = vunpack.c.l.b16 %v3185
        %v3301 = vunpack.c.h.b16 %v3185
        %v3302 = vunpack.c.l.b16 %v3186
        %v3303 = vunpack.c.h.b16 %v3186
        %v3304 = vunpack.c.l.b16 %v3187
        %v3305 = vunpack.c.l.b16 %v3188
        %v3306 = vunpack.c.h.b16 %v3188
        %v3307 = vunpack.c.l.b16 %v3189
        %v3308 = vunpack.c.h.b16 %v3189
        %v3309 = vunpack.c.l.b16 %v3190
        %v3310 = vunpack.c.l.b16 %v3191
        %v3311 = vunpack.c.h.b16 %v3191
        %v3312 = vunpack.c.l.b16 %v3192
        %v3313 = vunpack.c.h.b16 %v3192
        %v3314 = vunpack.c.l.b16 %v3193
        %v3315 = vunpack.c.l.b16 %v3194
        %v3316 = vunpack.c.h.b16 %v3194
        %v3317 = vunpack.c.l.b16 %v3195
        %v3318 = vunpack.c.h.b16 %v3195
        %v3319 = vunpack.c.l.b16 %v3196
        %v3320 = vunpack.c.l.b16 %v3197
        %v3321 = vunpack.c.h.b16 %v3197
        %v3322 = vunpack.c.l.b16 %v3198
        %v3323 = vunpack.c.h.b16 %v3198
        %v3324 = vunpack.c.l.b16 %v3199
        %v3325 = vunpack.c.l.b16 %v3200
        %v3326 = vunpack.c.h.b16 %v3200
        %v3327 = vunpack.c.l.b16 %v3201
        %v3328 = vunpack.c.h.b16 %v3201
        %v3329 = vunpack.c.l.b16 %v3202
        %v3330 = vunpack.c.l.b16 %v3203
        %v3331 = vunpack.c.h.b16 %v3203
        %v3332 = vunpack.c.l.b16 %v3204
        %v3333 = vunpack.c.h.b16 %v3204
        %v3334 = vunpack.c.l.b16 %v3205
        %v3335 = vunpack.c.l.b16 %v3206
        %v3336 = vunpack.c.h.b16 %v3206
        %v3337 = vunpack.c.l.b16 %v3207
        %v3338 = vunpack.c.h.b16 %v3207
        %v3339 = vunpack.c.l.b16 %v3208
        %v3340 = vunpack.c.l.b16 %v3209
        %v3341 = vunpack.c.h.b16 %v3209
        %v3342 = vunpack.c.l.b16 %v3210
        %v3343 = vunpack.c.h.b16 %v3210
        %v3344 = vunpack.c.l.b16 %v3211
        %v3345 = vunpack.c.l.b16 %v3212
        %v3346 = vunpack.c.h.b16 %v3212
        %v3347 = vunpack.c.l.b16 %v3213
        %v3348 = vunpack.c.h.b16 %v3213
        %v3349 = vunpack.c.l.b16 %v3214
        %v3350 = vunpack.c.l.b16 %v3215
        %v3351 = vunpack.c.h.b16 %v3215
        %v3352 = vunpack.c.l.b16 %v3216
        %v3353 = vunpack.c.h.b16 %v3216
        %v3354 = vunpack.c.l.b16 %v3217
        %v3355 = vunpack.c.l.b16 %v3218
        %v3356 = vunpack.c.h.b16 %v3218
        %v3357 = vunpack.c.l.b16 %v3219
        %v3358 = vunpack.c.h.b16 %v3219
        %v3359 = vunpack.c.l.b16 %v3220
        %v3360 = vunpack.c.l.b16 %v3221
        %v3361 = vunpack.c.h.b16 %v3221
        %v3362 = vunpack.c.l.b16 %v3222
        %v3363 = vunpack.c.h.b16 %v3222
        %v3364 = vunpack.c.l.b16 %v3223
        %v3365 = vpack.c.b16 %v3290, %v3285
        %v3366 = vpack.c.b16 %v3291, %v3286
        %v3367 = vpack.c.b16 %v3292, %v3287
        %v3368 = vpack.c.b16 %v3293, %v3288
        %v3369 = vpack.c.b16 %v3294, %v3289
        %v3370 = vpack.c.b16 %v3300, %v3295
        %v3371 = vpack.c.b16 %v3301, %v3296
        %v3372 = vpack.c.b16 %v3302, %v3297
        %v3373 = vpack.c.b16 %v3303, %v3298
        %v3374 = vpack.c.b16 %v3304, %v3299
        %v3375 = vpack.c.b16 %v3310, %v3305
        %v3376 = vpack.c.b16 %v3311, %v3306
        %v3377 = vpack.c.b16 %v3312, %v3307
        %v3378 = vpack.c.b16 %v3313, %v3308
        %v3379 = vpack.c.b16 %v3314, %v3309
        %v3380 = vpack.c.b16 %v3320, %v3315
        %v3381 = vpack.c.b16 %v3321, %v3316
        %v3382 = vpack.c.b16 %v3322, %v3317
        %v3383 = vpack.c.b16 %v3323, %v3318
        %v3384 = vpack.c.b16 %v3324, %v3319
        %v3385 = vpack.c.b16 %v3330, %v3325
        %v3386 = vpack.c.b16 %v3331, %v3326
        %v3387 = vpack.c.b16 %v3332, %v3327
        %v3388 = vpack.c.b16 %v3333, %v3328
        %v3389 = vpack.c.b16 %v3334, %v3329
        %v3390 = vpack.c.b16 %v3340, %v3335
        %v3391 = vpack.c.b16 %v3341, %v3336
        %v3392 = vpack.c.b16 %v3342, %v3337
        %v3393 = vpack.c.b16 %v3343, %v3338
        %v3394 = vpack.c.b16 %v3344, %v3339
        %v3395 = vpack.c.b16 %v3350, %v3345
        %v3396 = vpack.c.b16 %v3351, %v3346
        %v3397 = vpack.c.b16 %v3352, %v3347
        %v3398 = vpack.c.b16 %v3353, %v3348
        %v3399 = vpack.c.b16 %v3354, %v3349
        %v3400 = vpack.c.b16 %v3360, %v3355
        %v3401 = vpack.c.b16 %v3361, %v3356
        %v3402 = vpack.c.b16 %v3362, %v3357
        %v3403 = vpack.c.b16 %v3363, %v3358
        %v3404 = vpack.c.b16 %v3364, %v3359
        %3445 = vmatpush.bf16.msra.mxu0 %v3400
        %3446 = vmatpush.bf16.msra.mxu0 %v3395
        %3447 = vmatpush.bf16.msra.mxu0 %v3390
        %3448 = vmatpush.bf16.msra.mxu0 %v3385
        %3449 = vmatpush.bf16.msra.mxu0 %v3380
        %3450 = vmatpush.bf16.msra.mxu0 %v3375
        %3451 = vmatpush.bf16.msra.mxu0 %v3370
        %3452 = vmatpush.bf16.msra.mxu0 %v3365
        %3453 = vmatmul.bf16.gmra.mxu0 %v3174
        %v3454 = vpop.f32.mrf.mxu0
        %v3455 = vadd.f32 %v3227, %v3454
        %v3456 = vpop.f32.mrf.mxu0
        %v3457 = vadd.f32 %v3227, %v3456
        %3458 = vdwg.mxu0
        %3459 = vmatpush.bf16.msra.mxu0 %v3401
        %3460 = vmatpush.bf16.msra.mxu0 %v3396
        %3461 = vmatpush.bf16.msra.mxu0 %v3391
        %3462 = vmatpush.bf16.msra.mxu0 %v3386
        %3463 = vmatpush.bf16.msra.mxu0 %v3381
        %3464 = vmatpush.bf16.msra.mxu0 %v3376
        %3465 = vmatpush.bf16.msra.mxu0 %v3371
        %3466 = vmatpush.bf16.msra.mxu0 %v3366
        %3467 = vmatmul.bf16.gmra.mxu0 %v3174
        %v3468 = vpop.f32.mrf.mxu0
        %v3469 = vadd.f32 %v3228, %v3468
        %v3470 = vpop.f32.mrf.mxu0
        %v3471 = vadd.f32 %v3228, %v3470
        %3472 = vdwg.mxu0
        %3473 = vmatpush.bf16.msra.mxu0 %v3402
        %3474 = vmatpush.bf16.msra.mxu0 %v3397
        %3475 = vmatpush.bf16.msra.mxu0 %v3392
        %3476 = vmatpush.bf16.msra.mxu0 %v3387
        %3477 = vmatpush.bf16.msra.mxu0 %v3382
        %3478 = vmatpush.bf16.msra.mxu0 %v3377
        %3479 = vmatpush.bf16.msra.mxu0 %v3372
        %3480 = vmatpush.bf16.msra.mxu0 %v3367
        %3481 = vmatmul.bf16.gmra.mxu0 %v3174
        %v3482 = vpop.f32.mrf.mxu0
        %v3483 = vadd.f32 %v3229, %v3482
        %v3484 = vpop.f32.mrf.mxu0
        %v3485 = vadd.f32 %v3229, %v3484
        %3486 = vdwg.mxu0
        %3487 = vmatpush.bf16.msra.mxu0 %v3403
        %3488 = vmatpush.bf16.msra.mxu0 %v3398
        %3489 = vmatpush.bf16.msra.mxu0 %v3393
        %3490 = vmatpush.bf16.msra.mxu0 %v3388
        %3491 = vmatpush.bf16.msra.mxu0 %v3383
        %3492 = vmatpush.bf16.msra.mxu0 %v3378
        %3493 = vmatpush.bf16.msra.mxu0 %v3373
        %3494 = vmatpush.bf16.msra.mxu0 %v3368
        %3495 = vmatmul.bf16.gmra.mxu0 %v3174
        %v3496 = vpop.f32.mrf.mxu0
        %v3497 = vadd.f32 %v3230, %v3496
        %v3498 = vpop.f32.mrf.mxu0
        %v3499 = vadd.f32 %v3230, %v3498
        %3500 = vdwg.mxu0
        %3501 = vmatpush.bf16.msra.mxu0 %v3404
        %3502 = vmatpush.bf16.msra.mxu0 %v3399
        %3503 = vmatpush.bf16.msra.mxu0 %v3394
        %3504 = vmatpush.bf16.msra.mxu0 %v3389
        %3505 = vmatpush.bf16.msra.mxu0 %v3384
        %3506 = vmatpush.bf16.msra.mxu0 %v3379
        %3507 = vmatpush.bf16.msra.mxu0 %v3374
        %3508 = vmatpush.bf16.msra.mxu0 %v3369
        %3509 = vmatmul.bf16.gmra.mxu0 %v3174
        %v3510 = vpop.f32.mrf.mxu0
        %v3511 = vadd.f32 %v3231, %v3510
        %v3512 = vpop.f32.mrf.mxu0
        %v3513 = vadd.f32 %v3231, %v3512
        %3514 = vdwg.mxu0
        %v3515 = vpack.c.bf16 %v3018, %v3017
        %v3516 = vpack.c.bf16 %v3020, %v3019
        %v3517 = vpack.c.bf16 %v3022, %v3021
        %v3518 = vpack.c.bf16 %v3024, %v3023
        %v3519 = vpack.c.bf16 %v3026, %v3025
        %v3520 = vpack.c.bf16 %v3028, %v3027
        %v3521 = vpack.c.bf16 %v3030, %v3029
        %v3522 = vpack.c.bf16 %v3032, %v3031
        %v3523 = vpack.c.bf16 %v3034, %v3033
        %v3524 = vpack.c.bf16 %v3036, %v3035
        %v3525 = vpack.c.bf16 %v3038, %v3037
        %v3526 = vpack.c.bf16 %v3040, %v3039
        %v3527 = vpack.c.bf16 %v3042, %v3041
        %v3528 = vpack.c.bf16 %v3044, %v3043
        %v3529 = vpack.c.bf16 %v3046, %v3045
        %v3530 = vpack.c.bf16 %v3048, %v3047
        %s3531 = scalar_lea.vmem [#allocation14], 64
        %v3532 = vld [vmem:[%s3531] sm:$0xf]
        %v3533 = vld [vmem:[%s3531 + $0x4] sm:$0xf]
        %v3534 = vld [vmem:[%s3531 + $0x8] sm:$0xf]
        %v3535 = vld [vmem:[%s3531 + $0xc] sm:$0xf]
        %v3536 = vld [vmem:[%s3531 + $0x10] sm:$0xf]
        %v3537 = vld [vmem:[%s3531 + $0x14] sm:$0xf]
        %v3538 = vld [vmem:[%s3531 + $0x18] sm:$0xf]
        %v3539 = vld [vmem:[%s3531 + $0x1c] sm:$0xf]
        %v3540 = vld [vmem:[%s3531 + $0x20] sm:$0xf]
        %v3541 = vld [vmem:[%s3531 + $0x24] sm:$0xf]
        %v3542 = vld [vmem:[%s3531 + $0x28] sm:$0xf]
        %v3543 = vld [vmem:[%s3531 + $0x2c] sm:$0xf]
        %v3544 = vld [vmem:[%s3531 + $0x30] sm:$0xf]
        %v3545 = vld [vmem:[%s3531 + $0x34] sm:$0xf]
        %v3546 = vld [vmem:[%s3531 + $0x38] sm:$0xf]
        %v3547 = vld [vmem:[%s3531 + $0x3c] sm:$0xf]
        %s3548 = scalar_lea.vmem %s10, 1
        %v3549 = vld [vmem:[%s3548] sm:$0x1]
        %v3551 = vperm.slane %v3549, 0
        %v3569 = vunpack.c.l.b16 %v3532
        %v3570 = vunpack.c.l.b16 %v3533
        %v3571 = vunpack.c.l.b16 %v3534
        %v3572 = vunpack.c.l.b16 %v3535
        %v3573 = vunpack.c.l.b16 %v3536
        %v3574 = vunpack.c.l.b16 %v3537
        %v3575 = vunpack.c.l.b16 %v3538
        %v3576 = vunpack.c.l.b16 %v3539
        %v3577 = vunpack.c.l.b16 %v3540
        %v3578 = vunpack.c.l.b16 %v3541
        %v3579 = vunpack.c.l.b16 %v3542
        %v3580 = vunpack.c.l.b16 %v3543
        %v3581 = vunpack.c.l.b16 %v3544
        %v3582 = vunpack.c.l.b16 %v3545
        %v3583 = vunpack.c.l.b16 %v3546
        %v3584 = vunpack.c.l.b16 %v3547
        %v3585 = vpack.c.b16 %v3570, %v3569
        %v3586 = vpack.c.b16 %v3572, %v3571
        %v3587 = vpack.c.b16 %v3574, %v3573
        %v3588 = vpack.c.b16 %v3576, %v3575
        %v3589 = vpack.c.b16 %v3578, %v3577
        %v3590 = vpack.c.b16 %v3580, %v3579
        %v3591 = vpack.c.b16 %v3582, %v3581
        %v3592 = vpack.c.b16 %v3584, %v3583
        %3601 = vmatpush.bf16.msra.mxu0 %v3592
        %3602 = vmatpush.bf16.msra.mxu0 %v3591
        %3603 = vmatpush.bf16.msra.mxu0 %v3590
        %3604 = vmatpush.bf16.msra.mxu0 %v3589
        %3605 = vmatpush.bf16.msra.mxu0 %v3588
        %3606 = vmatpush.bf16.msra.mxu0 %v3587
        %3607 = vmatpush.bf16.msra.mxu0 %v3586
        %3608 = vmatpush.bf16.msra.mxu0 %v3585
        %3609 = vmatmul.bf16.gmra.mxu0 %v3515
        %v3610 = vpop.f32.mrf.mxu0
        %v3611 = vadd.f32 %v3551, %v3610
        %v3612 = vpop.f32.mrf.mxu0
        %v3613 = vadd.f32 %v3551, %v3612
        %3614 = vmatmul.bf16.gmra.mxu0 %v3516
        %v3615 = vpop.f32.mrf.mxu0
        %v3616 = vadd.f32 %v3551, %v3615
        %v3617 = vpop.f32.mrf.mxu0
        %v3618 = vadd.f32 %v3551, %v3617
        %3619 = vmatmul.bf16.gmra.mxu0 %v3517
        %v3620 = vpop.f32.mrf.mxu0
        %v3621 = vadd.f32 %v3551, %v3620
        %v3622 = vpop.f32.mrf.mxu0
        %v3623 = vadd.f32 %v3551, %v3622
        %3624 = vmatmul.bf16.gmra.mxu0 %v3518
        %v3625 = vpop.f32.mrf.mxu0
        %v3626 = vadd.f32 %v3551, %v3625
        %v3627 = vpop.f32.mrf.mxu0
        %v3628 = vadd.f32 %v3551, %v3627
        %3629 = vmatmul.bf16.gmra.mxu0 %v3519
        %v3630 = vpop.f32.mrf.mxu0
        %v3631 = vadd.f32 %v3551, %v3630
        %v3632 = vpop.f32.mrf.mxu0
        %v3633 = vadd.f32 %v3551, %v3632
        %3634 = vmatmul.bf16.gmra.mxu0 %v3520
        %v3635 = vpop.f32.mrf.mxu0
        %v3636 = vadd.f32 %v3551, %v3635
        %v3637 = vpop.f32.mrf.mxu0
        %v3638 = vadd.f32 %v3551, %v3637
        %3639 = vmatmul.bf16.gmra.mxu0 %v3521
        %v3640 = vpop.f32.mrf.mxu0
        %v3641 = vadd.f32 %v3551, %v3640
        %v3642 = vpop.f32.mrf.mxu0
        %v3643 = vadd.f32 %v3551, %v3642
        %3644 = vmatmul.bf16.gmra.mxu0 %v3522
        %v3645 = vpop.f32.mrf.mxu0
        %v3646 = vadd.f32 %v3551, %v3645
        %v3647 = vpop.f32.mrf.mxu0
        %v3648 = vadd.f32 %v3551, %v3647
        %3649 = vmatmul.bf16.gmra.mxu0 %v3523
        %v3650 = vpop.f32.mrf.mxu0
        %v3651 = vadd.f32 %v3551, %v3650
        %v3652 = vpop.f32.mrf.mxu0
        %v3653 = vadd.f32 %v3551, %v3652
        %3654 = vmatmul.bf16.gmra.mxu0 %v3524
        %v3655 = vpop.f32.mrf.mxu0
        %v3656 = vadd.f32 %v3551, %v3655
        %v3657 = vpop.f32.mrf.mxu0
        %v3658 = vadd.f32 %v3551, %v3657
        %3659 = vmatmul.bf16.gmra.mxu0 %v3525
        %v3660 = vpop.f32.mrf.mxu0
        %v3661 = vadd.f32 %v3551, %v3660
        %v3662 = vpop.f32.mrf.mxu0
        %v3663 = vadd.f32 %v3551, %v3662
        %3664 = vmatmul.bf16.gmra.mxu0 %v3526
        %v3665 = vpop.f32.mrf.mxu0
        %v3666 = vadd.f32 %v3551, %v3665
        %v3667 = vpop.f32.mrf.mxu0
        %v3668 = vadd.f32 %v3551, %v3667
        %3669 = vmatmul.bf16.gmra.mxu0 %v3527
        %v3670 = vpop.f32.mrf.mxu0
        %v3671 = vadd.f32 %v3551, %v3670
        %v3672 = vpop.f32.mrf.mxu0
        %v3673 = vadd.f32 %v3551, %v3672
        %3674 = vmatmul.bf16.gmra.mxu0 %v3528
        %v3675 = vpop.f32.mrf.mxu0
        %v3676 = vadd.f32 %v3551, %v3675
        %v3677 = vpop.f32.mrf.mxu0
        %v3678 = vadd.f32 %v3551, %v3677
        %3679 = vmatmul.bf16.gmra.mxu0 %v3529
        %v3680 = vpop.f32.mrf.mxu0
        %v3681 = vadd.f32 %v3551, %v3680
        %v3682 = vpop.f32.mrf.mxu0
        %v3683 = vadd.f32 %v3551, %v3682
        %3684 = vmatmul.bf16.gmra.mxu0 %v3530
        %v3685 = vpop.f32.mrf.mxu0
        %v3686 = vadd.f32 %v3551, %v3685
        %v3687 = vpop.f32.mrf.mxu0
        %v3688 = vadd.f32 %v3551, %v3687
        %3689 = vdwg.mxu0
        %v3692 = vrot.slane %v3497, 1
        %v3693 = vrot.slane %v3497, 2
        %v3694 = vrot.slane %v3497, 3
        %v3695 = vrot.slane %v3497, 4
        %v3696 = vrot.slane %v3497, 5
        %v3697 = vrot.slane %v3497, 6
        %v3698 = vrot.slane %v3497, 7
        %v3699 = vrot.slane %v3499, 1
        %v3700 = vrot.slane %v3499, 2
        %v3701 = vrot.slane %v3499, 3
        %v3702 = vrot.slane %v3499, 4
        %v3703 = vrot.slane %v3499, 5
        %v3704 = vrot.slane %v3499, 6
        %v3705 = vrot.slane %v3499, 7
        %v3706 = vperm.slane %v3497, 0
        %v3707 = vperm.slane %v3692, 0
        %v3708 = vperm.slane %v3693, 0
        %v3709 = vperm.slane %v3694, 0
        %v3710 = vperm.slane %v3695, 0
        %v3711 = vperm.slane %v3696, 0
        %v3712 = vperm.slane %v3697, 0
        %v3713 = vperm.slane %v3698, 0
        %v3714 = vperm.slane %v3499, 0
        %v3715 = vperm.slane %v3699, 0
        %v3716 = vperm.slane %v3700, 0
        %v3717 = vperm.slane %v3701, 0
        %v3718 = vperm.slane %v3702, 0
        %v3719 = vperm.slane %v3703, 0
        %v3720 = vperm.slane %v3704, 0
        %v3721 = vperm.slane %v3705, 0
        %v3738 = vadd.f32 %v3483, %v3706
        %v3739 = vadd.f32 %v3485, %v3706
        %v3740 = vadd.f32 %v3483, %v3707
        %v3741 = vadd.f32 %v3485, %v3707
        %v3742 = vadd.f32 %v3483, %v3708
        %v3743 = vadd.f32 %v3485, %v3708
        %v3744 = vadd.f32 %v3483, %v3709
        %v3745 = vadd.f32 %v3485, %v3709
        %v3746 = vadd.f32 %v3483, %v3710
        %v3747 = vadd.f32 %v3485, %v3710
        %v3748 = vadd.f32 %v3483, %v3711
        %v3749 = vadd.f32 %v3485, %v3711
        %v3750 = vadd.f32 %v3483, %v3712
        %v3751 = vadd.f32 %v3485, %v3712
        %v3752 = vadd.f32 %v3483, %v3713
        %v3753 = vadd.f32 %v3485, %v3713
        %v3754 = vadd.f32 %v3483, %v3714
        %v3755 = vadd.f32 %v3485, %v3714
        %v3756 = vadd.f32 %v3483, %v3715
        %v3757 = vadd.f32 %v3485, %v3715
        %v3758 = vadd.f32 %v3483, %v3716
        %v3759 = vadd.f32 %v3485, %v3716
        %v3760 = vadd.f32 %v3483, %v3717
        %v3761 = vadd.f32 %v3485, %v3717
        %v3762 = vadd.f32 %v3483, %v3718
        %v3763 = vadd.f32 %v3485, %v3718
        %v3764 = vadd.f32 %v3483, %v3719
        %v3765 = vadd.f32 %v3485, %v3719
        %v3766 = vadd.f32 %v3483, %v3720
        %v3767 = vadd.f32 %v3485, %v3720
        %v3768 = vadd.f32 %v3483, %v3721
        %v3769 = vadd.f32 %v3485, %v3721
        %v3770 = vadd.f32 %v3738, %v3611
        %v3771 = vadd.f32 %v3739, %v3613
        %v3772 = vadd.f32 %v3740, %v3616
        %v3773 = vadd.f32 %v3741, %v3618
        %v3774 = vadd.f32 %v3742, %v3621
        %v3775 = vadd.f32 %v3743, %v3623
        %v3776 = vadd.f32 %v3744, %v3626
        %v3777 = vadd.f32 %v3745, %v3628
        %v3778 = vadd.f32 %v3746, %v3631
        %v3779 = vadd.f32 %v3747, %v3633
        %v3780 = vadd.f32 %v3748, %v3636
        %v3781 = vadd.f32 %v3749, %v3638
        %v3782 = vadd.f32 %v3750, %v3641
        %v3783 = vadd.f32 %v3751, %v3643
        %v3784 = vadd.f32 %v3752, %v3646
        %v3785 = vadd.f32 %v3753, %v3648
        %v3786 = vadd.f32 %v3754, %v3651
        %v3787 = vadd.f32 %v3755, %v3653
        %v3788 = vadd.f32 %v3756, %v3656
        %v3789 = vadd.f32 %v3757, %v3658
        %v3790 = vadd.f32 %v3758, %v3661
        %v3791 = vadd.f32 %v3759, %v3663
        %v3792 = vadd.f32 %v3760, %v3666
        %v3793 = vadd.f32 %v3761, %v3668
        %v3794 = vadd.f32 %v3762, %v3671
        %v3795 = vadd.f32 %v3763, %v3673
        %v3796 = vadd.f32 %v3764, %v3676
        %v3797 = vadd.f32 %v3765, %v3678
        %v3798 = vadd.f32 %v3766, %v3681
        %v3799 = vadd.f32 %v3767, %v3683
        %v3800 = vadd.f32 %v3768, %v3686
        %v3801 = vadd.f32 %v3769, %v3688
        %v3802 = vxor.u32 %v3770, 2147483648
        %v3803 = vxor.u32 %v3771, 2147483648
        %v3804 = vxor.u32 %v3772, 2147483648
        %v3805 = vxor.u32 %v3773, 2147483648
        %v3806 = vxor.u32 %v3774, 2147483648
        %v3807 = vxor.u32 %v3775, 2147483648
        %v3808 = vxor.u32 %v3776, 2147483648
        %v3809 = vxor.u32 %v3777, 2147483648
        %v3810 = vxor.u32 %v3778, 2147483648
        %v3811 = vxor.u32 %v3779, 2147483648
        %v3812 = vxor.u32 %v3780, 2147483648
        %v3813 = vxor.u32 %v3781, 2147483648
        %v3814 = vxor.u32 %v3782, 2147483648
        %v3815 = vxor.u32 %v3783, 2147483648
        %v3816 = vxor.u32 %v3784, 2147483648
        %v3817 = vxor.u32 %v3785, 2147483648
        %v3818 = vxor.u32 %v3786, 2147483648
        %v3819 = vxor.u32 %v3787, 2147483648
        %v3820 = vxor.u32 %v3788, 2147483648
        %v3821 = vxor.u32 %v3789, 2147483648
        %v3822 = vxor.u32 %v3790, 2147483648
        %v3823 = vxor.u32 %v3791, 2147483648
        %v3824 = vxor.u32 %v3792, 2147483648
        %v3825 = vxor.u32 %v3793, 2147483648
        %v3826 = vxor.u32 %v3794, 2147483648
        %v3827 = vxor.u32 %v3795, 2147483648
        %v3828 = vxor.u32 %v3796, 2147483648
        %v3829 = vxor.u32 %v3797, 2147483648
        %v3830 = vxor.u32 %v3798, 2147483648
        %v3831 = vxor.u32 %v3799, 2147483648
        %v3832 = vxor.u32 %v3800, 2147483648
        %v3833 = vxor.u32 %v3801, 2147483648
        %v3834 = vmul.f32 %v3802, 1.442695
        %v3835 = vpow.pop %v3834
        %v3836 = vmul.f32 %v3803, 1.442695
        %v3837 = vpow.pop %v3836
        %v3838 = vmul.f32 %v3804, 1.442695
        %v3839 = vpow.pop %v3838
        %v3840 = vmul.f32 %v3805, 1.442695
        %v3841 = vpow.pop %v3840
        %v3842 = vmul.f32 %v3806, 1.442695
        %v3843 = vpow.pop %v3842
        %v3844 = vmul.f32 %v3807, 1.442695
        %v3845 = vpow.pop %v3844
        %v3846 = vmul.f32 %v3808, 1.442695
        %v3847 = vpow.pop %v3846
        %v3848 = vmul.f32 %v3809, 1.442695
        %v3849 = vpow.pop %v3848
        %v3850 = vmul.f32 %v3810, 1.442695
        %v3851 = vpow.pop %v3850
        %v3852 = vmul.f32 %v3811, 1.442695
        %v3853 = vpow.pop %v3852
        %v3854 = vmul.f32 %v3812, 1.442695
        %v3855 = vpow.pop %v3854
        %v3856 = vmul.f32 %v3813, 1.442695
        %v3857 = vpow.pop %v3856
        %v3858 = vmul.f32 %v3814, 1.442695
        %v3859 = vpow.pop %v3858
        %v3860 = vmul.f32 %v3815, 1.442695
        %v3861 = vpow.pop %v3860
        %v3862 = vmul.f32 %v3816, 1.442695
        %v3863 = vpow.pop %v3862
        %v3864 = vmul.f32 %v3817, 1.442695
        %v3865 = vpow.pop %v3864
        %v3866 = vmul.f32 %v3818, 1.442695
        %v3867 = vpow.pop %v3866
        %v3868 = vmul.f32 %v3819, 1.442695
        %v3869 = vpow.pop %v3868
        %v3870 = vmul.f32 %v3820, 1.442695
        %v3871 = vpow.pop %v3870
        %v3872 = vmul.f32 %v3821, 1.442695
        %v3873 = vpow.pop %v3872
        %v3874 = vmul.f32 %v3822, 1.442695
        %v3875 = vpow.pop %v3874
        %v3876 = vmul.f32 %v3823, 1.442695
        %v3877 = vpow.pop %v3876
        %v3878 = vmul.f32 %v3824, 1.442695
        %v3879 = vpow.pop %v3878
        %v3880 = vmul.f32 %v3825, 1.442695
        %v3881 = vpow.pop %v3880
        %v3882 = vmul.f32 %v3826, 1.442695
        %v3883 = vpow.pop %v3882
        %v3884 = vmul.f32 %v3827, 1.442695
        %v3885 = vpow.pop %v3884
        %v3886 = vmul.f32 %v3828, 1.442695
        %v3887 = vpow.pop %v3886
        %v3888 = vmul.f32 %v3829, 1.442695
        %v3889 = vpow.pop %v3888
        %v3890 = vmul.f32 %v3830, 1.442695
        %v3891 = vpow.pop %v3890
        %v3892 = vmul.f32 %v3831, 1.442695
        %v3893 = vpow.pop %v3892
        %v3894 = vmul.f32 %v3832, 1.442695
        %v3895 = vpow.pop %v3894
        %v3896 = vmul.f32 %v3833, 1.442695
        %v3897 = vpow.pop %v3896
        %v3898 = vadd.f32 %v3835, 1.0
        %v3899 = vadd.f32 %v3837, 1.0
        %v3900 = vadd.f32 %v3839, 1.0
        %v3901 = vadd.f32 %v3841, 1.0
        %v3902 = vadd.f32 %v3843, 1.0
        %v3903 = vadd.f32 %v3845, 1.0
        %v3904 = vadd.f32 %v3847, 1.0
        %v3905 = vadd.f32 %v3849, 1.0
        %v3906 = vadd.f32 %v3851, 1.0
        %v3907 = vadd.f32 %v3853, 1.0
        %v3908 = vadd.f32 %v3855, 1.0
        %v3909 = vadd.f32 %v3857, 1.0
        %v3910 = vadd.f32 %v3859, 1.0
        %v3911 = vadd.f32 %v3861, 1.0
        %v3912 = vadd.f32 %v3863, 1.0
        %v3913 = vadd.f32 %v3865, 1.0
        %v3914 = vadd.f32 %v3867, 1.0
        %v3915 = vadd.f32 %v3869, 1.0
        %v3916 = vadd.f32 %v3871, 1.0
        %v3917 = vadd.f32 %v3873, 1.0
        %v3918 = vadd.f32 %v3875, 1.0
        %v3919 = vadd.f32 %v3877, 1.0
        %v3920 = vadd.f32 %v3879, 1.0
        %v3921 = vadd.f32 %v3881, 1.0
        %v3922 = vadd.f32 %v3883, 1.0
        %v3923 = vadd.f32 %v3885, 1.0
        %v3924 = vadd.f32 %v3887, 1.0
        %v3925 = vadd.f32 %v3889, 1.0
        %v3926 = vadd.f32 %v3891, 1.0
        %v3927 = vadd.f32 %v3893, 1.0
        %v3928 = vadd.f32 %v3895, 1.0
        %v3929 = vadd.f32 %v3897, 1.0
        %v3930 = vrcp.pop %v3898
        %v3931 = vmul.f32 %v3898, %v3930
        %v3932 = vsub.f32 1.0, %v3931
        %v3933 = vmul.f32 %v3930, %v3932
        %v3934 = vadd.f32 %v3930, %v3933
        %vm3935 = vweird.f32 %v3898
        %vm3936 = vweird.f32 %v3930
        %vm3937 = vmor %vm3935, %vm3936
        %v3938 = vsel %vm3937, %v3930, %v3934
        %v3939 = vand.u32 2147483647, %v3898
        %vm3940 = vcmp.eq.f32.partialorder %v3939, 8.507059e+37
        %v3941 = vand.u32 %v3898, 2147483648
        %v3942 = vor.u32 1.1754944e-38, %v3941
        %v3943 = vsel %vm3940, %v3942, %v3938
        %v3944 = vmul.f32 1.0, %v3943
        %v3945 = vrcp.pop %v3899
        %v3946 = vmul.f32 %v3899, %v3945
        %v3947 = vsub.f32 1.0, %v3946
        %v3948 = vmul.f32 %v3945, %v3947
        %v3949 = vadd.f32 %v3945, %v3948
        %vm3950 = vweird.f32 %v3899
        %vm3951 = vweird.f32 %v3945
        %vm3952 = vmor %vm3950, %vm3951
        %v3953 = vsel %vm3952, %v3945, %v3949
        %v3954 = vand.u32 2147483647, %v3899
        %vm3955 = vcmp.eq.f32.partialorder %v3954, 8.507059e+37
        %v3956 = vand.u32 %v3899, 2147483648
        %v3957 = vor.u32 1.1754944e-38, %v3956
        %v3958 = vsel %vm3955, %v3957, %v3953
        %v3959 = vmul.f32 1.0, %v3958
        %v3960 = vrcp.pop %v3900
        %v3961 = vmul.f32 %v3900, %v3960
        %v3962 = vsub.f32 1.0, %v3961
        %v3963 = vmul.f32 %v3960, %v3962
        %v3964 = vadd.f32 %v3960, %v3963
        %vm3965 = vweird.f32 %v3900
        %vm3966 = vweird.f32 %v3960
        %vm3967 = vmor %vm3965, %vm3966
        %v3968 = vsel %vm3967, %v3960, %v3964
        %v3969 = vand.u32 2147483647, %v3900
        %vm3970 = vcmp.eq.f32.partialorder %v3969, 8.507059e+37
        %v3971 = vand.u32 %v3900, 2147483648
        %v3972 = vor.u32 1.1754944e-38, %v3971
        %v3973 = vsel %vm3970, %v3972, %v3968
        %v3974 = vmul.f32 1.0, %v3973
        %v3975 = vrcp.pop %v3901
        %v3976 = vmul.f32 %v3901, %v3975
        %v3977 = vsub.f32 1.0, %v3976
        %v3978 = vmul.f32 %v3975, %v3977
        %v3979 = vadd.f32 %v3975, %v3978
        %vm3980 = vweird.f32 %v3901
        %vm3981 = vweird.f32 %v3975
        %vm3982 = vmor %vm3980, %vm3981
        %v3983 = vsel %vm3982, %v3975, %v3979
        %v3984 = vand.u32 2147483647, %v3901
        %vm3985 = vcmp.eq.f32.partialorder %v3984, 8.507059e+37
        %v3986 = vand.u32 %v3901, 2147483648
        %v3987 = vor.u32 1.1754944e-38, %v3986
        %v3988 = vsel %vm3985, %v3987, %v3983
        %v3989 = vmul.f32 1.0, %v3988
        %v3990 = vrcp.pop %v3902
        %v3991 = vmul.f32 %v3902, %v3990
        %v3992 = vsub.f32 1.0, %v3991
        %v3993 = vmul.f32 %v3990, %v3992
        %v3994 = vadd.f32 %v3990, %v3993
        %vm3995 = vweird.f32 %v3902
        %vm3996 = vweird.f32 %v3990
        %vm3997 = vmor %vm3995, %vm3996
        %v3998 = vsel %vm3997, %v3990, %v3994
        %v3999 = vand.u32 2147483647, %v3902
        %vm4000 = vcmp.eq.f32.partialorder %v3999, 8.507059e+37
        %v4001 = vand.u32 %v3902, 2147483648
        %v4002 = vor.u32 1.1754944e-38, %v4001
        %v4003 = vsel %vm4000, %v4002, %v3998
        %v4004 = vmul.f32 1.0, %v4003
        %v4005 = vrcp.pop %v3903
        %v4006 = vmul.f32 %v3903, %v4005
        %v4007 = vsub.f32 1.0, %v4006
        %v4008 = vmul.f32 %v4005, %v4007
        %v4009 = vadd.f32 %v4005, %v4008
        %vm4010 = vweird.f32 %v3903
        %vm4011 = vweird.f32 %v4005
        %vm4012 = vmor %vm4010, %vm4011
        %v4013 = vsel %vm4012, %v4005, %v4009
        %v4014 = vand.u32 2147483647, %v3903
        %vm4015 = vcmp.eq.f32.partialorder %v4014, 8.507059e+37
        %v4016 = vand.u32 %v3903, 2147483648
        %v4017 = vor.u32 1.1754944e-38, %v4016
        %v4018 = vsel %vm4015, %v4017, %v4013
        %v4019 = vmul.f32 1.0, %v4018
        %v4020 = vrcp.pop %v3904
        %v4021 = vmul.f32 %v3904, %v4020
        %v4022 = vsub.f32 1.0, %v4021
        %v4023 = vmul.f32 %v4020, %v4022
        %v4024 = vadd.f32 %v4020, %v4023
        %vm4025 = vweird.f32 %v3904
        %vm4026 = vweird.f32 %v4020
        %vm4027 = vmor %vm4025, %vm4026
        %v4028 = vsel %vm4027, %v4020, %v4024
        %v4029 = vand.u32 2147483647, %v3904
        %vm4030 = vcmp.eq.f32.partialorder %v4029, 8.507059e+37
        %v4031 = vand.u32 %v3904, 2147483648
        %v4032 = vor.u32 1.1754944e-38, %v4031
        %v4033 = vsel %vm4030, %v4032, %v4028
        %v4034 = vmul.f32 1.0, %v4033
        %v4035 = vrcp.pop %v3905
        %v4036 = vmul.f32 %v3905, %v4035
        %v4037 = vsub.f32 1.0, %v4036
        %v4038 = vmul.f32 %v4035, %v4037
        %v4039 = vadd.f32 %v4035, %v4038
        %vm4040 = vweird.f32 %v3905
        %vm4041 = vweird.f32 %v4035
        %vm4042 = vmor %vm4040, %vm4041
        %v4043 = vsel %vm4042, %v4035, %v4039
        %v4044 = vand.u32 2147483647, %v3905
        %vm4045 = vcmp.eq.f32.partialorder %v4044, 8.507059e+37
        %v4046 = vand.u32 %v3905, 2147483648
        %v4047 = vor.u32 1.1754944e-38, %v4046
        %v4048 = vsel %vm4045, %v4047, %v4043
        %v4049 = vmul.f32 1.0, %v4048
        %v4050 = vrcp.pop %v3906
        %v4051 = vmul.f32 %v3906, %v4050
        %v4052 = vsub.f32 1.0, %v4051
        %v4053 = vmul.f32 %v4050, %v4052
        %v4054 = vadd.f32 %v4050, %v4053
        %vm4055 = vweird.f32 %v3906
        %vm4056 = vweird.f32 %v4050
        %vm4057 = vmor %vm4055, %vm4056
        %v4058 = vsel %vm4057, %v4050, %v4054
        %v4059 = vand.u32 2147483647, %v3906
        %vm4060 = vcmp.eq.f32.partialorder %v4059, 8.507059e+37
        %v4061 = vand.u32 %v3906, 2147483648
        %v4062 = vor.u32 1.1754944e-38, %v4061
        %v4063 = vsel %vm4060, %v4062, %v4058
        %v4064 = vmul.f32 1.0, %v4063
        %v4065 = vrcp.pop %v3907
        %v4066 = vmul.f32 %v3907, %v4065
        %v4067 = vsub.f32 1.0, %v4066
        %v4068 = vmul.f32 %v4065, %v4067
        %v4069 = vadd.f32 %v4065, %v4068
        %vm4070 = vweird.f32 %v3907
        %vm4071 = vweird.f32 %v4065
        %vm4072 = vmor %vm4070, %vm4071
        %v4073 = vsel %vm4072, %v4065, %v4069
        %v4074 = vand.u32 2147483647, %v3907
        %vm4075 = vcmp.eq.f32.partialorder %v4074, 8.507059e+37
        %v4076 = vand.u32 %v3907, 2147483648
        %v4077 = vor.u32 1.1754944e-38, %v4076
        %v4078 = vsel %vm4075, %v4077, %v4073
        %v4079 = vmul.f32 1.0, %v4078
        %v4080 = vrcp.pop %v3908
        %v4081 = vmul.f32 %v3908, %v4080
        %v4082 = vsub.f32 1.0, %v4081
        %v4083 = vmul.f32 %v4080, %v4082
        %v4084 = vadd.f32 %v4080, %v4083
        %vm4085 = vweird.f32 %v3908
        %vm4086 = vweird.f32 %v4080
        %vm4087 = vmor %vm4085, %vm4086
        %v4088 = vsel %vm4087, %v4080, %v4084
        %v4089 = vand.u32 2147483647, %v3908
        %vm4090 = vcmp.eq.f32.partialorder %v4089, 8.507059e+37
        %v4091 = vand.u32 %v3908, 2147483648
        %v4092 = vor.u32 1.1754944e-38, %v4091
        %v4093 = vsel %vm4090, %v4092, %v4088
        %v4094 = vmul.f32 1.0, %v4093
        %v4095 = vrcp.pop %v3909
        %v4096 = vmul.f32 %v3909, %v4095
        %v4097 = vsub.f32 1.0, %v4096
        %v4098 = vmul.f32 %v4095, %v4097
        %v4099 = vadd.f32 %v4095, %v4098
        %vm4100 = vweird.f32 %v3909
        %vm4101 = vweird.f32 %v4095
        %vm4102 = vmor %vm4100, %vm4101
        %v4103 = vsel %vm4102, %v4095, %v4099
        %v4104 = vand.u32 2147483647, %v3909
        %vm4105 = vcmp.eq.f32.partialorder %v4104, 8.507059e+37
        %v4106 = vand.u32 %v3909, 2147483648
        %v4107 = vor.u32 1.1754944e-38, %v4106
        %v4108 = vsel %vm4105, %v4107, %v4103
        %v4109 = vmul.f32 1.0, %v4108
        %v4110 = vrcp.pop %v3910
        %v4111 = vmul.f32 %v3910, %v4110
        %v4112 = vsub.f32 1.0, %v4111
        %v4113 = vmul.f32 %v4110, %v4112
        %v4114 = vadd.f32 %v4110, %v4113
        %vm4115 = vweird.f32 %v3910
        %vm4116 = vweird.f32 %v4110
        %vm4117 = vmor %vm4115, %vm4116
        %v4118 = vsel %vm4117, %v4110, %v4114
        %v4119 = vand.u32 2147483647, %v3910
        %vm4120 = vcmp.eq.f32.partialorder %v4119, 8.507059e+37
        %v4121 = vand.u32 %v3910, 2147483648
        %v4122 = vor.u32 1.1754944e-38, %v4121
        %v4123 = vsel %vm4120, %v4122, %v4118
        %v4124 = vmul.f32 1.0, %v4123
        %v4125 = vrcp.pop %v3911
        %v4126 = vmul.f32 %v3911, %v4125
        %v4127 = vsub.f32 1.0, %v4126
        %v4128 = vmul.f32 %v4125, %v4127
        %v4129 = vadd.f32 %v4125, %v4128
        %vm4130 = vweird.f32 %v3911
        %vm4131 = vweird.f32 %v4125
        %vm4132 = vmor %vm4130, %vm4131
        %v4133 = vsel %vm4132, %v4125, %v4129
        %v4134 = vand.u32 2147483647, %v3911
        %vm4135 = vcmp.eq.f32.partialorder %v4134, 8.507059e+37
        %v4136 = vand.u32 %v3911, 2147483648
        %v4137 = vor.u32 1.1754944e-38, %v4136
        %v4138 = vsel %vm4135, %v4137, %v4133
        %v4139 = vmul.f32 1.0, %v4138
        %v4140 = vrcp.pop %v3912
        %v4141 = vmul.f32 %v3912, %v4140
        %v4142 = vsub.f32 1.0, %v4141
        %v4143 = vmul.f32 %v4140, %v4142
        %v4144 = vadd.f32 %v4140, %v4143
        %vm4145 = vweird.f32 %v3912
        %vm4146 = vweird.f32 %v4140
        %vm4147 = vmor %vm4145, %vm4146
        %v4148 = vsel %vm4147, %v4140, %v4144
        %v4149 = vand.u32 2147483647, %v3912
        %vm4150 = vcmp.eq.f32.partialorder %v4149, 8.507059e+37
        %v4151 = vand.u32 %v3912, 2147483648
        %v4152 = vor.u32 1.1754944e-38, %v4151
        %v4153 = vsel %vm4150, %v4152, %v4148
        %v4154 = vmul.f32 1.0, %v4153
        %v4155 = vrcp.pop %v3913
        %v4156 = vmul.f32 %v3913, %v4155
        %v4157 = vsub.f32 1.0, %v4156
        %v4158 = vmul.f32 %v4155, %v4157
        %v4159 = vadd.f32 %v4155, %v4158
        %vm4160 = vweird.f32 %v3913
        %vm4161 = vweird.f32 %v4155
        %vm4162 = vmor %vm4160, %vm4161
        %v4163 = vsel %vm4162, %v4155, %v4159
        %v4164 = vand.u32 2147483647, %v3913
        %vm4165 = vcmp.eq.f32.partialorder %v4164, 8.507059e+37
        %v4166 = vand.u32 %v3913, 2147483648
        %v4167 = vor.u32 1.1754944e-38, %v4166
        %v4168 = vsel %vm4165, %v4167, %v4163
        %v4169 = vmul.f32 1.0, %v4168
        %v4170 = vrcp.pop %v3914
        %v4171 = vmul.f32 %v3914, %v4170
        %v4172 = vsub.f32 1.0, %v4171
        %v4173 = vmul.f32 %v4170, %v4172
        %v4174 = vadd.f32 %v4170, %v4173
        %vm4175 = vweird.f32 %v3914
        %vm4176 = vweird.f32 %v4170
        %vm4177 = vmor %vm4175, %vm4176
        %v4178 = vsel %vm4177, %v4170, %v4174
        %v4179 = vand.u32 2147483647, %v3914
        %vm4180 = vcmp.eq.f32.partialorder %v4179, 8.507059e+37
        %v4181 = vand.u32 %v3914, 2147483648
        %v4182 = vor.u32 1.1754944e-38, %v4181
        %v4183 = vsel %vm4180, %v4182, %v4178
        %v4184 = vmul.f32 1.0, %v4183
        %v4185 = vrcp.pop %v3915
        %v4186 = vmul.f32 %v3915, %v4185
        %v4187 = vsub.f32 1.0, %v4186
        %v4188 = vmul.f32 %v4185, %v4187
        %v4189 = vadd.f32 %v4185, %v4188
        %vm4190 = vweird.f32 %v3915
        %vm4191 = vweird.f32 %v4185
        %vm4192 = vmor %vm4190, %vm4191
        %v4193 = vsel %vm4192, %v4185, %v4189
        %v4194 = vand.u32 2147483647, %v3915
        %vm4195 = vcmp.eq.f32.partialorder %v4194, 8.507059e+37
        %v4196 = vand.u32 %v3915, 2147483648
        %v4197 = vor.u32 1.1754944e-38, %v4196
        %v4198 = vsel %vm4195, %v4197, %v4193
        %v4199 = vmul.f32 1.0, %v4198
        %v4200 = vrcp.pop %v3916
        %v4201 = vmul.f32 %v3916, %v4200
        %v4202 = vsub.f32 1.0, %v4201
        %v4203 = vmul.f32 %v4200, %v4202
        %v4204 = vadd.f32 %v4200, %v4203
        %vm4205 = vweird.f32 %v3916
        %vm4206 = vweird.f32 %v4200
        %vm4207 = vmor %vm4205, %vm4206
        %v4208 = vsel %vm4207, %v4200, %v4204
        %v4209 = vand.u32 2147483647, %v3916
        %vm4210 = vcmp.eq.f32.partialorder %v4209, 8.507059e+37
        %v4211 = vand.u32 %v3916, 2147483648
        %v4212 = vor.u32 1.1754944e-38, %v4211
        %v4213 = vsel %vm4210, %v4212, %v4208
        %v4214 = vmul.f32 1.0, %v4213
        %v4215 = vrcp.pop %v3917
        %v4216 = vmul.f32 %v3917, %v4215
        %v4217 = vsub.f32 1.0, %v4216
        %v4218 = vmul.f32 %v4215, %v4217
        %v4219 = vadd.f32 %v4215, %v4218
        %vm4220 = vweird.f32 %v3917
        %vm4221 = vweird.f32 %v4215
        %vm4222 = vmor %vm4220, %vm4221
        %v4223 = vsel %vm4222, %v4215, %v4219
        %v4224 = vand.u32 2147483647, %v3917
        %vm4225 = vcmp.eq.f32.partialorder %v4224, 8.507059e+37
        %v4226 = vand.u32 %v3917, 2147483648
        %v4227 = vor.u32 1.1754944e-38, %v4226
        %v4228 = vsel %vm4225, %v4227, %v4223
        %v4229 = vmul.f32 1.0, %v4228
        %v4230 = vrcp.pop %v3918
        %v4231 = vmul.f32 %v3918, %v4230
        %v4232 = vsub.f32 1.0, %v4231
        %v4233 = vmul.f32 %v4230, %v4232
        %v4234 = vadd.f32 %v4230, %v4233
        %vm4235 = vweird.f32 %v3918
        %vm4236 = vweird.f32 %v4230
        %vm4237 = vmor %vm4235, %vm4236
        %v4238 = vsel %vm4237, %v4230, %v4234
        %v4239 = vand.u32 2147483647, %v3918
        %vm4240 = vcmp.eq.f32.partialorder %v4239, 8.507059e+37
        %v4241 = vand.u32 %v3918, 2147483648
        %v4242 = vor.u32 1.1754944e-38, %v4241
        %v4243 = vsel %vm4240, %v4242, %v4238
        %v4244 = vmul.f32 1.0, %v4243
        %v4245 = vrcp.pop %v3919
        %v4246 = vmul.f32 %v3919, %v4245
        %v4247 = vsub.f32 1.0, %v4246
        %v4248 = vmul.f32 %v4245, %v4247
        %v4249 = vadd.f32 %v4245, %v4248
        %vm4250 = vweird.f32 %v3919
        %vm4251 = vweird.f32 %v4245
        %vm4252 = vmor %vm4250, %vm4251
        %v4253 = vsel %vm4252, %v4245, %v4249
        %v4254 = vand.u32 2147483647, %v3919
        %vm4255 = vcmp.eq.f32.partialorder %v4254, 8.507059e+37
        %v4256 = vand.u32 %v3919, 2147483648
        %v4257 = vor.u32 1.1754944e-38, %v4256
        %v4258 = vsel %vm4255, %v4257, %v4253
        %v4259 = vmul.f32 1.0, %v4258
        %v4260 = vrcp.pop %v3920
        %v4261 = vmul.f32 %v3920, %v4260
        %v4262 = vsub.f32 1.0, %v4261
        %v4263 = vmul.f32 %v4260, %v4262
        %v4264 = vadd.f32 %v4260, %v4263
        %vm4265 = vweird.f32 %v3920
        %vm4266 = vweird.f32 %v4260
        %vm4267 = vmor %vm4265, %vm4266
        %v4268 = vsel %vm4267, %v4260, %v4264
        %v4269 = vand.u32 2147483647, %v3920
        %vm4270 = vcmp.eq.f32.partialorder %v4269, 8.507059e+37
        %v4271 = vand.u32 %v3920, 2147483648
        %v4272 = vor.u32 1.1754944e-38, %v4271
        %v4273 = vsel %vm4270, %v4272, %v4268
        %v4274 = vmul.f32 1.0, %v4273
        %v4275 = vrcp.pop %v3921
        %v4276 = vmul.f32 %v3921, %v4275
        %v4277 = vsub.f32 1.0, %v4276
        %v4278 = vmul.f32 %v4275, %v4277
        %v4279 = vadd.f32 %v4275, %v4278
        %vm4280 = vweird.f32 %v3921
        %vm4281 = vweird.f32 %v4275
        %vm4282 = vmor %vm4280, %vm4281
        %v4283 = vsel %vm4282, %v4275, %v4279
        %v4284 = vand.u32 2147483647, %v3921
        %vm4285 = vcmp.eq.f32.partialorder %v4284, 8.507059e+37
        %v4286 = vand.u32 %v3921, 2147483648
        %v4287 = vor.u32 1.1754944e-38, %v4286
        %v4288 = vsel %vm4285, %v4287, %v4283
        %v4289 = vmul.f32 1.0, %v4288
        %v4290 = vrcp.pop %v3922
        %v4291 = vmul.f32 %v3922, %v4290
        %v4292 = vsub.f32 1.0, %v4291
        %v4293 = vmul.f32 %v4290, %v4292
        %v4294 = vadd.f32 %v4290, %v4293
        %vm4295 = vweird.f32 %v3922
        %vm4296 = vweird.f32 %v4290
        %vm4297 = vmor %vm4295, %vm4296
        %v4298 = vsel %vm4297, %v4290, %v4294
        %v4299 = vand.u32 2147483647, %v3922
        %vm4300 = vcmp.eq.f32.partialorder %v4299, 8.507059e+37
        %v4301 = vand.u32 %v3922, 2147483648
        %v4302 = vor.u32 1.1754944e-38, %v4301
        %v4303 = vsel %vm4300, %v4302, %v4298
        %v4304 = vmul.f32 1.0, %v4303
        %v4305 = vrcp.pop %v3923
        %v4306 = vmul.f32 %v3923, %v4305
        %v4307 = vsub.f32 1.0, %v4306
        %v4308 = vmul.f32 %v4305, %v4307
        %v4309 = vadd.f32 %v4305, %v4308
        %vm4310 = vweird.f32 %v3923
        %vm4311 = vweird.f32 %v4305
        %vm4312 = vmor %vm4310, %vm4311
        %v4313 = vsel %vm4312, %v4305, %v4309
        %v4314 = vand.u32 2147483647, %v3923
        %vm4315 = vcmp.eq.f32.partialorder %v4314, 8.507059e+37
        %v4316 = vand.u32 %v3923, 2147483648
        %v4317 = vor.u32 1.1754944e-38, %v4316
        %v4318 = vsel %vm4315, %v4317, %v4313
        %v4319 = vmul.f32 1.0, %v4318
        %v4320 = vrcp.pop %v3924
        %v4321 = vmul.f32 %v3924, %v4320
        %v4322 = vsub.f32 1.0, %v4321
        %v4323 = vmul.f32 %v4320, %v4322
        %v4324 = vadd.f32 %v4320, %v4323
        %vm4325 = vweird.f32 %v3924
        %vm4326 = vweird.f32 %v4320
        %vm4327 = vmor %vm4325, %vm4326
        %v4328 = vsel %vm4327, %v4320, %v4324
        %v4329 = vand.u32 2147483647, %v3924
        %vm4330 = vcmp.eq.f32.partialorder %v4329, 8.507059e+37
        %v4331 = vand.u32 %v3924, 2147483648
        %v4332 = vor.u32 1.1754944e-38, %v4331
        %v4333 = vsel %vm4330, %v4332, %v4328
        %v4334 = vmul.f32 1.0, %v4333
        %v4335 = vrcp.pop %v3925
        %v4336 = vmul.f32 %v3925, %v4335
        %v4337 = vsub.f32 1.0, %v4336
        %v4338 = vmul.f32 %v4335, %v4337
        %v4339 = vadd.f32 %v4335, %v4338
        %vm4340 = vweird.f32 %v3925
        %vm4341 = vweird.f32 %v4335
        %vm4342 = vmor %vm4340, %vm4341
        %v4343 = vsel %vm4342, %v4335, %v4339
        %v4344 = vand.u32 2147483647, %v3925
        %vm4345 = vcmp.eq.f32.partialorder %v4344, 8.507059e+37
        %v4346 = vand.u32 %v3925, 2147483648
        %v4347 = vor.u32 1.1754944e-38, %v4346
        %v4348 = vsel %vm4345, %v4347, %v4343
        %v4349 = vmul.f32 1.0, %v4348
        %v4350 = vrcp.pop %v3926
        %v4351 = vmul.f32 %v3926, %v4350
        %v4352 = vsub.f32 1.0, %v4351
        %v4353 = vmul.f32 %v4350, %v4352
        %v4354 = vadd.f32 %v4350, %v4353
        %vm4355 = vweird.f32 %v3926
        %vm4356 = vweird.f32 %v4350
        %vm4357 = vmor %vm4355, %vm4356
        %v4358 = vsel %vm4357, %v4350, %v4354
        %v4359 = vand.u32 2147483647, %v3926
        %vm4360 = vcmp.eq.f32.partialorder %v4359, 8.507059e+37
        %v4361 = vand.u32 %v3926, 2147483648
        %v4362 = vor.u32 1.1754944e-38, %v4361
        %v4363 = vsel %vm4360, %v4362, %v4358
        %v4364 = vmul.f32 1.0, %v4363
        %v4365 = vrcp.pop %v3927
        %v4366 = vmul.f32 %v3927, %v4365
        %v4367 = vsub.f32 1.0, %v4366
        %v4368 = vmul.f32 %v4365, %v4367
        %v4369 = vadd.f32 %v4365, %v4368
        %vm4370 = vweird.f32 %v3927
        %vm4371 = vweird.f32 %v4365
        %vm4372 = vmor %vm4370, %vm4371
        %v4373 = vsel %vm4372, %v4365, %v4369
        %v4374 = vand.u32 2147483647, %v3927
        %vm4375 = vcmp.eq.f32.partialorder %v4374, 8.507059e+37
        %v4376 = vand.u32 %v3927, 2147483648
        %v4377 = vor.u32 1.1754944e-38, %v4376
        %v4378 = vsel %vm4375, %v4377, %v4373
        %v4379 = vmul.f32 1.0, %v4378
        %v4380 = vrcp.pop %v3928
        %v4381 = vmul.f32 %v3928, %v4380
        %v4382 = vsub.f32 1.0, %v4381
        %v4383 = vmul.f32 %v4380, %v4382
        %v4384 = vadd.f32 %v4380, %v4383
        %vm4385 = vweird.f32 %v3928
        %vm4386 = vweird.f32 %v4380
        %vm4387 = vmor %vm4385, %vm4386
        %v4388 = vsel %vm4387, %v4380, %v4384
        %v4389 = vand.u32 2147483647, %v3928
        %vm4390 = vcmp.eq.f32.partialorder %v4389, 8.507059e+37
        %v4391 = vand.u32 %v3928, 2147483648
        %v4392 = vor.u32 1.1754944e-38, %v4391
        %v4393 = vsel %vm4390, %v4392, %v4388
        %v4394 = vmul.f32 1.0, %v4393
        %v4395 = vrcp.pop %v3929
        %v4396 = vmul.f32 %v3929, %v4395
        %v4397 = vsub.f32 1.0, %v4396
        %v4398 = vmul.f32 %v4395, %v4397
        %v4399 = vadd.f32 %v4395, %v4398
        %vm4400 = vweird.f32 %v3929
        %vm4401 = vweird.f32 %v4395
        %vm4402 = vmor %vm4400, %vm4401
        %v4403 = vsel %vm4402, %v4395, %v4399
        %v4404 = vand.u32 2147483647, %v3929
        %vm4405 = vcmp.eq.f32.partialorder %v4404, 8.507059e+37
        %v4406 = vand.u32 %v3929, 2147483648
        %v4407 = vor.u32 1.1754944e-38, %v4406
        %v4408 = vsel %vm4405, %v4407, %v4403
        %v4409 = vmul.f32 1.0, %v4408
        %v4410 = vmul.f32 %v3944, %v1076
        %v4411 = vmul.f32 %v3959, %v1077
        %v4412 = vmul.f32 %v3974, %v1078
        %v4413 = vmul.f32 %v3989, %v1079
        %v4414 = vmul.f32 %v4004, %v1080
        %v4415 = vmul.f32 %v4019, %v1081
        %v4416 = vmul.f32 %v4034, %v1082
        %v4417 = vmul.f32 %v4049, %v1083
        %v4418 = vmul.f32 %v4064, %v1084
        %v4419 = vmul.f32 %v4079, %v1085
        %v4420 = vmul.f32 %v4094, %v1086
        %v4421 = vmul.f32 %v4109, %v1087
        %v4422 = vmul.f32 %v4124, %v1088
        %v4423 = vmul.f32 %v4139, %v1089
        %v4424 = vmul.f32 %v4154, %v1090
        %v4425 = vmul.f32 %v4169, %v1091
        %v4426 = vmul.f32 %v4184, %v1092
        %v4427 = vmul.f32 %v4199, %v1093
        %v4428 = vmul.f32 %v4214, %v1094
        %v4429 = vmul.f32 %v4229, %v1095
        %v4430 = vmul.f32 %v4244, %v1096
        %v4431 = vmul.f32 %v4259, %v1097
        %v4432 = vmul.f32 %v4274, %v1098
        %v4433 = vmul.f32 %v4289, %v1099
        %v4434 = vmul.f32 %v4304, %v1100
        %v4435 = vmul.f32 %v4319, %v1101
        %v4436 = vmul.f32 %v4334, %v1102
        %v4437 = vmul.f32 %v4349, %v1103
        %v4438 = vmul.f32 %v4364, %v1104
        %v4439 = vmul.f32 %v4379, %v1105
        %v4440 = vmul.f32 %v4394, %v1106
        %v4441 = vmul.f32 %v4409, %v1107
        %v4442 = vmul.f32 %v4410, %v3469
        %v4443 = vmul.f32 %v4411, %v3471
        %v4444 = vmul.f32 %v4412, %v3469
        %v4445 = vmul.f32 %v4413, %v3471
        %v4446 = vmul.f32 %v4414, %v3469
        %v4447 = vmul.f32 %v4415, %v3471
        %v4448 = vmul.f32 %v4416, %v3469
        %v4449 = vmul.f32 %v4417, %v3471
        %v4450 = vmul.f32 %v4418, %v3469
        %v4451 = vmul.f32 %v4419, %v3471
        %v4452 = vmul.f32 %v4420, %v3469
        %v4453 = vmul.f32 %v4421, %v3471
        %v4454 = vmul.f32 %v4422, %v3469
        %v4455 = vmul.f32 %v4423, %v3471
        %v4456 = vmul.f32 %v4424, %v3469
        %v4457 = vmul.f32 %v4425, %v3471
        %v4458 = vmul.f32 %v4426, %v3469
        %v4459 = vmul.f32 %v4427, %v3471
        %v4460 = vmul.f32 %v4428, %v3469
        %v4461 = vmul.f32 %v4429, %v3471
        %v4462 = vmul.f32 %v4430, %v3469
        %v4463 = vmul.f32 %v4431, %v3471
        %v4464 = vmul.f32 %v4432, %v3469
        %v4465 = vmul.f32 %v4433, %v3471
        %v4466 = vmul.f32 %v4434, %v3469
        %v4467 = vmul.f32 %v4435, %v3471
        %v4468 = vmul.f32 %v4436, %v3469
        %v4469 = vmul.f32 %v4437, %v3471
        %v4470 = vmul.f32 %v4438, %v3469
        %v4471 = vmul.f32 %v4439, %v3471
        %v4472 = vmul.f32 %v4440, %v3469
        %v4473 = vmul.f32 %v4441, %v3471
        %v4474 = vadd.f32 %v4442, %v4443
        %v4475 = vrot.slane %v4474, 4
        %v4476 = vadd.f32 %v4474, %v4475
        %v4477 = vrot.slane %v4476, 2
        %v4478 = vadd.f32 %v4476, %v4477
        %v4479 = vrot.slane %v4478, 1
        %v4480 = vadd.f32 %v4478, %v4479
        %v4481 = vadd.f32 %v4444, %v4445
        %v4482 = vrot.slane %v4481, 4
        %v4483 = vadd.f32 %v4481, %v4482
        %v4484 = vrot.slane %v4483, 2
        %v4485 = vadd.f32 %v4483, %v4484
        %v4486 = vrot.slane %v4485, 1
        %v4487 = vadd.f32 %v4485, %v4486
        %v4488 = vadd.f32 %v4446, %v4447
        %v4489 = vrot.slane %v4488, 4
        %v4490 = vadd.f32 %v4488, %v4489
        %v4491 = vrot.slane %v4490, 2
        %v4492 = vadd.f32 %v4490, %v4491
        %v4493 = vrot.slane %v4492, 1
        %v4494 = vadd.f32 %v4492, %v4493
        %v4495 = vadd.f32 %v4448, %v4449
        %v4496 = vrot.slane %v4495, 4
        %v4497 = vadd.f32 %v4495, %v4496
        %v4498 = vrot.slane %v4497, 2
        %v4499 = vadd.f32 %v4497, %v4498
        %v4500 = vrot.slane %v4499, 1
        %v4501 = vadd.f32 %v4499, %v4500
        %v4502 = vadd.f32 %v4450, %v4451
        %v4503 = vrot.slane %v4502, 4
        %v4504 = vadd.f32 %v4502, %v4503
        %v4505 = vrot.slane %v4504, 2
        %v4506 = vadd.f32 %v4504, %v4505
        %v4507 = vrot.slane %v4506, 1
        %v4508 = vadd.f32 %v4506, %v4507
        %v4509 = vadd.f32 %v4452, %v4453
        %v4510 = vrot.slane %v4509, 4
        %v4511 = vadd.f32 %v4509, %v4510
        %v4512 = vrot.slane %v4511, 2
        %v4513 = vadd.f32 %v4511, %v4512
        %v4514 = vrot.slane %v4513, 1
        %v4515 = vadd.f32 %v4513, %v4514
        %v4516 = vadd.f32 %v4454, %v4455
        %v4517 = vrot.slane %v4516, 4
        %v4518 = vadd.f32 %v4516, %v4517
        %v4519 = vrot.slane %v4518, 2
        %v4520 = vadd.f32 %v4518, %v4519
        %v4521 = vrot.slane %v4520, 1
        %v4522 = vadd.f32 %v4520, %v4521
        %v4523 = vadd.f32 %v4456, %v4457
        %v4524 = vrot.slane %v4523, 4
        %v4525 = vadd.f32 %v4523, %v4524
        %v4526 = vrot.slane %v4525, 2
        %v4527 = vadd.f32 %v4525, %v4526
        %v4528 = vrot.slane %v4527, 1
        %v4529 = vadd.f32 %v4527, %v4528
        %v4530 = vadd.f32 %v4458, %v4459
        %v4531 = vrot.slane %v4530, 4
        %v4532 = vadd.f32 %v4530, %v4531
        %v4533 = vrot.slane %v4532, 2
        %v4534 = vadd.f32 %v4532, %v4533
        %v4535 = vrot.slane %v4534, 1
        %v4536 = vadd.f32 %v4534, %v4535
        %v4537 = vadd.f32 %v4460, %v4461
        %v4538 = vrot.slane %v4537, 4
        %v4539 = vadd.f32 %v4537, %v4538
        %v4540 = vrot.slane %v4539, 2
        %v4541 = vadd.f32 %v4539, %v4540
        %v4542 = vrot.slane %v4541, 1
        %v4543 = vadd.f32 %v4541, %v4542
        %v4544 = vadd.f32 %v4462, %v4463
        %v4545 = vrot.slane %v4544, 4
        %v4546 = vadd.f32 %v4544, %v4545
        %v4547 = vrot.slane %v4546, 2
        %v4548 = vadd.f32 %v4546, %v4547
        %v4549 = vrot.slane %v4548, 1
        %v4550 = vadd.f32 %v4548, %v4549
        %v4551 = vadd.f32 %v4464, %v4465
        %v4552 = vrot.slane %v4551, 4
        %v4553 = vadd.f32 %v4551, %v4552
        %v4554 = vrot.slane %v4553, 2
        %v4555 = vadd.f32 %v4553, %v4554
        %v4556 = vrot.slane %v4555, 1
        %v4557 = vadd.f32 %v4555, %v4556
        %v4558 = vadd.f32 %v4466, %v4467
        %v4559 = vrot.slane %v4558, 4
        %v4560 = vadd.f32 %v4558, %v4559
        %v4561 = vrot.slane %v4560, 2
        %v4562 = vadd.f32 %v4560, %v4561
        %v4563 = vrot.slane %v4562, 1
        %v4564 = vadd.f32 %v4562, %v4563
        %v4565 = vadd.f32 %v4468, %v4469
        %v4566 = vrot.slane %v4565, 4
        %v4567 = vadd.f32 %v4565, %v4566
        %v4568 = vrot.slane %v4567, 2
        %v4569 = vadd.f32 %v4567, %v4568
        %v4570 = vrot.slane %v4569, 1
        %v4571 = vadd.f32 %v4569, %v4570
        %v4572 = vadd.f32 %v4470, %v4471
        %v4573 = vrot.slane %v4572, 4
        %v4574 = vadd.f32 %v4572, %v4573
        %v4575 = vrot.slane %v4574, 2
        %v4576 = vadd.f32 %v4574, %v4575
        %v4577 = vrot.slane %v4576, 1
        %v4578 = vadd.f32 %v4576, %v4577
        %v4579 = vadd.f32 %v4472, %v4473
        %v4580 = vrot.slane %v4579, 4
        %v4581 = vadd.f32 %v4579, %v4580
        %v4582 = vrot.slane %v4581, 2
        %v4583 = vadd.f32 %v4581, %v4582
        %v4584 = vrot.slane %v4583, 1
        %v4585 = vadd.f32 %v4583, %v4584
        %v4586 = vadd.f32 %v4410, %v4411
        %v4587 = vrot.slane %v4586, 4
        %v4588 = vadd.f32 %v4586, %v4587
        %v4589 = vrot.slane %v4588, 2
        %v4590 = vadd.f32 %v4588, %v4589
        %v4591 = vrot.slane %v4590, 1
        %v4592 = vadd.f32 %v4590, %v4591
        %v4593 = vadd.f32 %v4412, %v4413
        %v4594 = vrot.slane %v4593, 4
        %v4595 = vadd.f32 %v4593, %v4594
        %v4596 = vrot.slane %v4595, 2
        %v4597 = vadd.f32 %v4595, %v4596
        %v4598 = vrot.slane %v4597, 1
        %v4599 = vadd.f32 %v4597, %v4598
        %v4600 = vadd.f32 %v4414, %v4415
        %v4601 = vrot.slane %v4600, 4
        %v4602 = vadd.f32 %v4600, %v4601
        %v4603 = vrot.slane %v4602, 2
        %v4604 = vadd.f32 %v4602, %v4603
        %v4605 = vrot.slane %v4604, 1
        %v4606 = vadd.f32 %v4604, %v4605
        %v4607 = vadd.f32 %v4416, %v4417
        %v4608 = vrot.slane %v4607, 4
        %v4609 = vadd.f32 %v4607, %v4608
        %v4610 = vrot.slane %v4609, 2
        %v4611 = vadd.f32 %v4609, %v4610
        %v4612 = vrot.slane %v4611, 1
        %v4613 = vadd.f32 %v4611, %v4612
        %v4614 = vadd.f32 %v4418, %v4419
        %v4615 = vrot.slane %v4614, 4
        %v4616 = vadd.f32 %v4614, %v4615
        %v4617 = vrot.slane %v4616, 2
        %v4618 = vadd.f32 %v4616, %v4617
        %v4619 = vrot.slane %v4618, 1
        %v4620 = vadd.f32 %v4618, %v4619
        %v4621 = vadd.f32 %v4420, %v4421
        %v4622 = vrot.slane %v4621, 4
        %v4623 = vadd.f32 %v4621, %v4622
        %v4624 = vrot.slane %v4623, 2
        %v4625 = vadd.f32 %v4623, %v4624
        %v4626 = vrot.slane %v4625, 1
        %v4627 = vadd.f32 %v4625, %v4626
        %v4628 = vadd.f32 %v4422, %v4423
        %v4629 = vrot.slane %v4628, 4
        %v4630 = vadd.f32 %v4628, %v4629
        %v4631 = vrot.slane %v4630, 2
        %v4632 = vadd.f32 %v4630, %v4631
        %v4633 = vrot.slane %v4632, 1
        %v4634 = vadd.f32 %v4632, %v4633
        %v4635 = vadd.f32 %v4424, %v4425
        %v4636 = vrot.slane %v4635, 4
        %v4637 = vadd.f32 %v4635, %v4636
        %v4638 = vrot.slane %v4637, 2
        %v4639 = vadd.f32 %v4637, %v4638
        %v4640 = vrot.slane %v4639, 1
        %v4641 = vadd.f32 %v4639, %v4640
        %v4642 = vadd.f32 %v4426, %v4427
        %v4643 = vrot.slane %v4642, 4
        %v4644 = vadd.f32 %v4642, %v4643
        %v4645 = vrot.slane %v4644, 2
        %v4646 = vadd.f32 %v4644, %v4645
        %v4647 = vrot.slane %v4646, 1
        %v4648 = vadd.f32 %v4646, %v4647
        %v4649 = vadd.f32 %v4428, %v4429
        %v4650 = vrot.slane %v4649, 4
        %v4651 = vadd.f32 %v4649, %v4650
        %v4652 = vrot.slane %v4651, 2
        %v4653 = vadd.f32 %v4651, %v4652
        %v4654 = vrot.slane %v4653, 1
        %v4655 = vadd.f32 %v4653, %v4654
        %v4656 = vadd.f32 %v4430, %v4431
        %v4657 = vrot.slane %v4656, 4
        %v4658 = vadd.f32 %v4656, %v4657
        %v4659 = vrot.slane %v4658, 2
        %v4660 = vadd.f32 %v4658, %v4659
        %v4661 = vrot.slane %v4660, 1
        %v4662 = vadd.f32 %v4660, %v4661
        %v4663 = vadd.f32 %v4432, %v4433
        %v4664 = vrot.slane %v4663, 4
        %v4665 = vadd.f32 %v4663, %v4664
        %v4666 = vrot.slane %v4665, 2
        %v4667 = vadd.f32 %v4665, %v4666
        %v4668 = vrot.slane %v4667, 1
        %v4669 = vadd.f32 %v4667, %v4668
        %v4670 = vadd.f32 %v4434, %v4435
        %v4671 = vrot.slane %v4670, 4
        %v4672 = vadd.f32 %v4670, %v4671
        %v4673 = vrot.slane %v4672, 2
        %v4674 = vadd.f32 %v4672, %v4673
        %v4675 = vrot.slane %v4674, 1
        %v4676 = vadd.f32 %v4674, %v4675
        %v4677 = vadd.f32 %v4436, %v4437
        %v4678 = vrot.slane %v4677, 4
        %v4679 = vadd.f32 %v4677, %v4678
        %v4680 = vrot.slane %v4679, 2
        %v4681 = vadd.f32 %v4679, %v4680
        %v4682 = vrot.slane %v4681, 1
        %v4683 = vadd.f32 %v4681, %v4682
        %v4684 = vadd.f32 %v4438, %v4439
        %v4685 = vrot.slane %v4684, 4
        %v4686 = vadd.f32 %v4684, %v4685
        %v4687 = vrot.slane %v4686, 2
        %v4688 = vadd.f32 %v4686, %v4687
        %v4689 = vrot.slane %v4688, 1
        %v4690 = vadd.f32 %v4688, %v4689
        %v4691 = vadd.f32 %v4440, %v4441
        %v4692 = vrot.slane %v4691, 4
        %v4693 = vadd.f32 %v4691, %v4692
        %v4694 = vrot.slane %v4693, 2
        %v4695 = vadd.f32 %v4693, %v4694
        %v4696 = vrot.slane %v4695, 1
        %v4697 = vadd.f32 %v4695, %v4696
        %v4698 = vadd.f32 %v4592, 1e-06
        %v4699 = vadd.f32 %v4599, 1e-06
        %v4700 = vadd.f32 %v4606, 1e-06
        %v4701 = vadd.f32 %v4613, 1e-06
        %v4702 = vadd.f32 %v4620, 1e-06
        %v4703 = vadd.f32 %v4627, 1e-06
        %v4704 = vadd.f32 %v4634, 1e-06
        %v4705 = vadd.f32 %v4641, 1e-06
        %v4706 = vadd.f32 %v4648, 1e-06
        %v4707 = vadd.f32 %v4655, 1e-06
        %v4708 = vadd.f32 %v4662, 1e-06
        %v4709 = vadd.f32 %v4669, 1e-06
        %v4710 = vadd.f32 %v4676, 1e-06
        %v4711 = vadd.f32 %v4683, 1e-06
        %v4712 = vadd.f32 %v4690, 1e-06
        %v4713 = vadd.f32 %v4697, 1e-06
        %v4714 = vrcp.pop %v4698
        %v4715 = vmul.f32 %v4698, %v4714
        %v4716 = vsub.f32 1.0, %v4715
        %v4717 = vmul.f32 %v4714, %v4716
        %v4718 = vadd.f32 %v4714, %v4717
        %vm4719 = vweird.f32 %v4698
        %vm4720 = vweird.f32 %v4714
        %vm4721 = vmor %vm4719, %vm4720
        %v4722 = vsel %vm4721, %v4714, %v4718
        %v4723 = vand.u32 2147483647, %v4698
        %vm4724 = vcmp.eq.f32.partialorder %v4723, 8.507059e+37
        %v4725 = vand.u32 %v4698, 2147483648
        %v4726 = vor.u32 1.1754944e-38, %v4725
        %v4727 = vsel %vm4724, %v4726, %v4722
        %v4728 = vmul.f32 %v4480, %v4727
        %v4729 = vrcp.pop %v4699
        %v4730 = vmul.f32 %v4699, %v4729
        %v4731 = vsub.f32 1.0, %v4730
        %v4732 = vmul.f32 %v4729, %v4731
        %v4733 = vadd.f32 %v4729, %v4732
        %vm4734 = vweird.f32 %v4699
        %vm4735 = vweird.f32 %v4729
        %vm4736 = vmor %vm4734, %vm4735
        %v4737 = vsel %vm4736, %v4729, %v4733
        %v4738 = vand.u32 2147483647, %v4699
        %vm4739 = vcmp.eq.f32.partialorder %v4738, 8.507059e+37
        %v4740 = vand.u32 %v4699, 2147483648
        %v4741 = vor.u32 1.1754944e-38, %v4740
        %v4742 = vsel %vm4739, %v4741, %v4737
        %v4743 = vmul.f32 %v4487, %v4742
        %v4744 = vrcp.pop %v4700
        %v4745 = vmul.f32 %v4700, %v4744
        %v4746 = vsub.f32 1.0, %v4745
        %v4747 = vmul.f32 %v4744, %v4746
        %v4748 = vadd.f32 %v4744, %v4747
        %vm4749 = vweird.f32 %v4700
        %vm4750 = vweird.f32 %v4744
        %vm4751 = vmor %vm4749, %vm4750
        %v4752 = vsel %vm4751, %v4744, %v4748
        %v4753 = vand.u32 2147483647, %v4700
        %vm4754 = vcmp.eq.f32.partialorder %v4753, 8.507059e+37
        %v4755 = vand.u32 %v4700, 2147483648
        %v4756 = vor.u32 1.1754944e-38, %v4755
        %v4757 = vsel %vm4754, %v4756, %v4752
        %v4758 = vmul.f32 %v4494, %v4757
        %v4759 = vrcp.pop %v4701
        %v4760 = vmul.f32 %v4701, %v4759
        %v4761 = vsub.f32 1.0, %v4760
        %v4762 = vmul.f32 %v4759, %v4761
        %v4763 = vadd.f32 %v4759, %v4762
        %vm4764 = vweird.f32 %v4701
        %vm4765 = vweird.f32 %v4759
        %vm4766 = vmor %vm4764, %vm4765
        %v4767 = vsel %vm4766, %v4759, %v4763
        %v4768 = vand.u32 2147483647, %v4701
        %vm4769 = vcmp.eq.f32.partialorder %v4768, 8.507059e+37
        %v4770 = vand.u32 %v4701, 2147483648
        %v4771 = vor.u32 1.1754944e-38, %v4770
        %v4772 = vsel %vm4769, %v4771, %v4767
        %v4773 = vmul.f32 %v4501, %v4772
        %v4774 = vrcp.pop %v4702
        %v4775 = vmul.f32 %v4702, %v4774
        %v4776 = vsub.f32 1.0, %v4775
        %v4777 = vmul.f32 %v4774, %v4776
        %v4778 = vadd.f32 %v4774, %v4777
        %vm4779 = vweird.f32 %v4702
        %vm4780 = vweird.f32 %v4774
        %vm4781 = vmor %vm4779, %vm4780
        %v4782 = vsel %vm4781, %v4774, %v4778
        %v4783 = vand.u32 2147483647, %v4702
        %vm4784 = vcmp.eq.f32.partialorder %v4783, 8.507059e+37
        %v4785 = vand.u32 %v4702, 2147483648
        %v4786 = vor.u32 1.1754944e-38, %v4785
        %v4787 = vsel %vm4784, %v4786, %v4782
        %v4788 = vmul.f32 %v4508, %v4787
        %v4789 = vrcp.pop %v4703
        %v4790 = vmul.f32 %v4703, %v4789
        %v4791 = vsub.f32 1.0, %v4790
        %v4792 = vmul.f32 %v4789, %v4791
        %v4793 = vadd.f32 %v4789, %v4792
        %vm4794 = vweird.f32 %v4703
        %vm4795 = vweird.f32 %v4789
        %vm4796 = vmor %vm4794, %vm4795
        %v4797 = vsel %vm4796, %v4789, %v4793
        %v4798 = vand.u32 2147483647, %v4703
        %vm4799 = vcmp.eq.f32.partialorder %v4798, 8.507059e+37
        %v4800 = vand.u32 %v4703, 2147483648
        %v4801 = vor.u32 1.1754944e-38, %v4800
        %v4802 = vsel %vm4799, %v4801, %v4797
        %v4803 = vmul.f32 %v4515, %v4802
        %v4804 = vrcp.pop %v4704
        %v4805 = vmul.f32 %v4704, %v4804
        %v4806 = vsub.f32 1.0, %v4805
        %v4807 = vmul.f32 %v4804, %v4806
        %v4808 = vadd.f32 %v4804, %v4807
        %vm4809 = vweird.f32 %v4704
        %vm4810 = vweird.f32 %v4804
        %vm4811 = vmor %vm4809, %vm4810
        %v4812 = vsel %vm4811, %v4804, %v4808
        %v4813 = vand.u32 2147483647, %v4704
        %vm4814 = vcmp.eq.f32.partialorder %v4813, 8.507059e+37
        %v4815 = vand.u32 %v4704, 2147483648
        %v4816 = vor.u32 1.1754944e-38, %v4815
        %v4817 = vsel %vm4814, %v4816, %v4812
        %v4818 = vmul.f32 %v4522, %v4817
        %v4819 = vrcp.pop %v4705
        %v4820 = vmul.f32 %v4705, %v4819
        %v4821 = vsub.f32 1.0, %v4820
        %v4822 = vmul.f32 %v4819, %v4821
        %v4823 = vadd.f32 %v4819, %v4822
        %vm4824 = vweird.f32 %v4705
        %vm4825 = vweird.f32 %v4819
        %vm4826 = vmor %vm4824, %vm4825
        %v4827 = vsel %vm4826, %v4819, %v4823
        %v4828 = vand.u32 2147483647, %v4705
        %vm4829 = vcmp.eq.f32.partialorder %v4828, 8.507059e+37
        %v4830 = vand.u32 %v4705, 2147483648
        %v4831 = vor.u32 1.1754944e-38, %v4830
        %v4832 = vsel %vm4829, %v4831, %v4827
        %v4833 = vmul.f32 %v4529, %v4832
        %v4834 = vrcp.pop %v4706
        %v4835 = vmul.f32 %v4706, %v4834
        %v4836 = vsub.f32 1.0, %v4835
        %v4837 = vmul.f32 %v4834, %v4836
        %v4838 = vadd.f32 %v4834, %v4837
        %vm4839 = vweird.f32 %v4706
        %vm4840 = vweird.f32 %v4834
        %vm4841 = vmor %vm4839, %vm4840
        %v4842 = vsel %vm4841, %v4834, %v4838
        %v4843 = vand.u32 2147483647, %v4706
        %vm4844 = vcmp.eq.f32.partialorder %v4843, 8.507059e+37
        %v4845 = vand.u32 %v4706, 2147483648
        %v4846 = vor.u32 1.1754944e-38, %v4845
        %v4847 = vsel %vm4844, %v4846, %v4842
        %v4848 = vmul.f32 %v4536, %v4847
        %v4849 = vrcp.pop %v4707
        %v4850 = vmul.f32 %v4707, %v4849
        %v4851 = vsub.f32 1.0, %v4850
        %v4852 = vmul.f32 %v4849, %v4851
        %v4853 = vadd.f32 %v4849, %v4852
        %vm4854 = vweird.f32 %v4707
        %vm4855 = vweird.f32 %v4849
        %vm4856 = vmor %vm4854, %vm4855
        %v4857 = vsel %vm4856, %v4849, %v4853
        %v4858 = vand.u32 2147483647, %v4707
        %vm4859 = vcmp.eq.f32.partialorder %v4858, 8.507059e+37
        %v4860 = vand.u32 %v4707, 2147483648
        %v4861 = vor.u32 1.1754944e-38, %v4860
        %v4862 = vsel %vm4859, %v4861, %v4857
        %v4863 = vmul.f32 %v4543, %v4862
        %v4864 = vrcp.pop %v4708
        %v4865 = vmul.f32 %v4708, %v4864
        %v4866 = vsub.f32 1.0, %v4865
        %v4867 = vmul.f32 %v4864, %v4866
        %v4868 = vadd.f32 %v4864, %v4867
        %vm4869 = vweird.f32 %v4708
        %vm4870 = vweird.f32 %v4864
        %vm4871 = vmor %vm4869, %vm4870
        %v4872 = vsel %vm4871, %v4864, %v4868
        %v4873 = vand.u32 2147483647, %v4708
        %vm4874 = vcmp.eq.f32.partialorder %v4873, 8.507059e+37
        %v4875 = vand.u32 %v4708, 2147483648
        %v4876 = vor.u32 1.1754944e-38, %v4875
        %v4877 = vsel %vm4874, %v4876, %v4872
        %v4878 = vmul.f32 %v4550, %v4877
        %v4879 = vrcp.pop %v4709
        %v4880 = vmul.f32 %v4709, %v4879
        %v4881 = vsub.f32 1.0, %v4880
        %v4882 = vmul.f32 %v4879, %v4881
        %v4883 = vadd.f32 %v4879, %v4882
        %vm4884 = vweird.f32 %v4709
        %vm4885 = vweird.f32 %v4879
        %vm4886 = vmor %vm4884, %vm4885
        %v4887 = vsel %vm4886, %v4879, %v4883
        %v4888 = vand.u32 2147483647, %v4709
        %vm4889 = vcmp.eq.f32.partialorder %v4888, 8.507059e+37
        %v4890 = vand.u32 %v4709, 2147483648
        %v4891 = vor.u32 1.1754944e-38, %v4890
        %v4892 = vsel %vm4889, %v4891, %v4887
        %v4893 = vmul.f32 %v4557, %v4892
        %v4894 = vrcp.pop %v4710
        %v4895 = vmul.f32 %v4710, %v4894
        %v4896 = vsub.f32 1.0, %v4895
        %v4897 = vmul.f32 %v4894, %v4896
        %v4898 = vadd.f32 %v4894, %v4897
        %vm4899 = vweird.f32 %v4710
        %vm4900 = vweird.f32 %v4894
        %vm4901 = vmor %vm4899, %vm4900
        %v4902 = vsel %vm4901, %v4894, %v4898
        %v4903 = vand.u32 2147483647, %v4710
        %vm4904 = vcmp.eq.f32.partialorder %v4903, 8.507059e+37
        %v4905 = vand.u32 %v4710, 2147483648
        %v4906 = vor.u32 1.1754944e-38, %v4905
        %v4907 = vsel %vm4904, %v4906, %v4902
        %v4908 = vmul.f32 %v4564, %v4907
        %v4909 = vrcp.pop %v4711
        %v4910 = vmul.f32 %v4711, %v4909
        %v4911 = vsub.f32 1.0, %v4910
        %v4912 = vmul.f32 %v4909, %v4911
        %v4913 = vadd.f32 %v4909, %v4912
        %vm4914 = vweird.f32 %v4711
        %vm4915 = vweird.f32 %v4909
        %vm4916 = vmor %vm4914, %vm4915
        %v4917 = vsel %vm4916, %v4909, %v4913
        %v4918 = vand.u32 2147483647, %v4711
        %vm4919 = vcmp.eq.f32.partialorder %v4918, 8.507059e+37
        %v4920 = vand.u32 %v4711, 2147483648
        %v4921 = vor.u32 1.1754944e-38, %v4920
        %v4922 = vsel %vm4919, %v4921, %v4917
        %v4923 = vmul.f32 %v4571, %v4922
        %v4924 = vrcp.pop %v4712
        %v4925 = vmul.f32 %v4712, %v4924
        %v4926 = vsub.f32 1.0, %v4925
        %v4927 = vmul.f32 %v4924, %v4926
        %v4928 = vadd.f32 %v4924, %v4927
        %vm4929 = vweird.f32 %v4712
        %vm4930 = vweird.f32 %v4924
        %vm4931 = vmor %vm4929, %vm4930
        %v4932 = vsel %vm4931, %v4924, %v4928
        %v4933 = vand.u32 2147483647, %v4712
        %vm4934 = vcmp.eq.f32.partialorder %v4933, 8.507059e+37
        %v4935 = vand.u32 %v4712, 2147483648
        %v4936 = vor.u32 1.1754944e-38, %v4935
        %v4937 = vsel %vm4934, %v4936, %v4932
        %v4938 = vmul.f32 %v4578, %v4937
        %v4939 = vrcp.pop %v4713
        %v4940 = vmul.f32 %v4713, %v4939
        %v4941 = vsub.f32 1.0, %v4940
        %v4942 = vmul.f32 %v4939, %v4941
        %v4943 = vadd.f32 %v4939, %v4942
        %vm4944 = vweird.f32 %v4713
        %vm4945 = vweird.f32 %v4939
        %vm4946 = vmor %vm4944, %vm4945
        %v4947 = vsel %vm4946, %v4939, %v4943
        %v4948 = vand.u32 2147483647, %v4713
        %vm4949 = vcmp.eq.f32.partialorder %v4948, 8.507059e+37
        %v4950 = vand.u32 %v4713, 2147483648
        %v4951 = vor.u32 1.1754944e-38, %v4950
        %v4952 = vsel %vm4949, %v4951, %v4947
        %v4953 = vmul.f32 %v4585, %v4952
        %v4970 = vsel %vm2902, %v4743, %v4728
        %v4971 = vsel %vm2904, %v4758, %v4970
        %v4972 = vsel %vm2906, %v4773, %v4971
        %v4973 = vsel %vm2908, %v4788, %v4972
        %v4974 = vsel %vm2910, %v4803, %v4973
        %v4975 = vsel %vm2912, %v4818, %v4974
        %v4976 = vsel %vm2914, %v4833, %v4975
        %v4977 = vsel %vm2902, %v4863, %v4848
        %v4978 = vsel %vm2904, %v4878, %v4977
        %v4979 = vsel %vm2906, %v4893, %v4978
        %v4980 = vsel %vm2908, %v4908, %v4979
        %v4981 = vsel %vm2910, %v4923, %v4980
        %v4982 = vsel %vm2912, %v4938, %v4981
        %v4983 = vsel %vm2914, %v4953, %v4982
        %v4986 = vadd.f32 %v3455, %v4976
        %v4987 = vadd.f32 %v3457, %v4983
        %s4988 = scalar_lea.vmem %s11, 2
        %v4989 = vld [vmem:[%s4988] sm:$0x1]
        %v4990 = vmul.f32 %v1108, %v4989
        %s4991 = scalar_lea.vmem [#allocation16], 2
        %v4992 = vld [vmem:[%s4991] sm:$0x1]
        %v4993 = vmul.f32 %v1109, %v4992
        %s4994 = scalar_lea.vmem [#allocation16], 3
        %v4995 = vld [vmem:[%s4994] sm:$0x1]
        %v4997 = vperm.slane %v4990, 0
        %v4999 = vmul.f32 %v4986, %v4997
        %v5000 = vmul.f32 %v4987, %v4997
        %s5001 = scalar_lea.vmem %s11, 3
        %v5002 = vld [vmem:[%s5001] sm:$0x1]
        %v5004 = vperm.slane %v5002, 0
        %v5006 = vadd.f32 %v4999, %v5004
        %v5007 = vadd.f32 %v5000, %v5004
        %v5009 = vperm.slane %v4993, 0
        %v5011 = vmul.f32 %v3770, %v5009
        %v5012 = vmul.f32 %v3771, %v5009
        %v5013 = vmul.f32 %v3772, %v5009
        %v5014 = vmul.f32 %v3773, %v5009
        %v5015 = vmul.f32 %v3774, %v5009
        %v5016 = vmul.f32 %v3775, %v5009
        %v5017 = vmul.f32 %v3776, %v5009
        %v5018 = vmul.f32 %v3777, %v5009
        %v5019 = vmul.f32 %v3778, %v5009
        %v5020 = vmul.f32 %v3779, %v5009
        %v5021 = vmul.f32 %v3780, %v5009
        %v5022 = vmul.f32 %v3781, %v5009
        %v5023 = vmul.f32 %v3782, %v5009
        %v5024 = vmul.f32 %v3783, %v5009
        %v5025 = vmul.f32 %v3784, %v5009
        %v5026 = vmul.f32 %v3785, %v5009
        %v5027 = vmul.f32 %v3786, %v5009
        %v5028 = vmul.f32 %v3787, %v5009
        %v5029 = vmul.f32 %v3788, %v5009
        %v5030 = vmul.f32 %v3789, %v5009
        %v5031 = vmul.f32 %v3790, %v5009
        %v5032 = vmul.f32 %v3791, %v5009
        %v5033 = vmul.f32 %v3792, %v5009
        %v5034 = vmul.f32 %v3793, %v5009
        %v5035 = vmul.f32 %v3794, %v5009
        %v5036 = vmul.f32 %v3795, %v5009
        %v5037 = vmul.f32 %v3796, %v5009
        %v5038 = vmul.f32 %v3797, %v5009
        %v5039 = vmul.f32 %v3798, %v5009
        %v5040 = vmul.f32 %v3799, %v5009
        %v5041 = vmul.f32 %v3800, %v5009
        %v5042 = vmul.f32 %v3801, %v5009
        %v5044 = vperm.slane %v4995, 0
        %v5046 = vadd.f32 %v5011, %v5044
        %v5047 = vadd.f32 %v5012, %v5044
        %v5048 = vadd.f32 %v5013, %v5044
        %v5049 = vadd.f32 %v5014, %v5044
        %v5050 = vadd.f32 %v5015, %v5044
        %v5051 = vadd.f32 %v5016, %v5044
        %v5052 = vadd.f32 %v5017, %v5044
        %v5053 = vadd.f32 %v5018, %v5044
        %v5054 = vadd.f32 %v5019, %v5044
        %v5055 = vadd.f32 %v5020, %v5044
        %v5056 = vadd.f32 %v5021, %v5044
        %v5057 = vadd.f32 %v5022, %v5044
        %v5058 = vadd.f32 %v5023, %v5044
        %v5059 = vadd.f32 %v5024, %v5044
        %v5060 = vadd.f32 %v5025, %v5044
        %v5061 = vadd.f32 %v5026, %v5044
        %v5062 = vadd.f32 %v5027, %v5044
        %v5063 = vadd.f32 %v5028, %v5044
        %v5064 = vadd.f32 %v5029, %v5044
        %v5065 = vadd.f32 %v5030, %v5044
        %v5066 = vadd.f32 %v5031, %v5044
        %v5067 = vadd.f32 %v5032, %v5044
        %v5068 = vadd.f32 %v5033, %v5044
        %v5069 = vadd.f32 %v5034, %v5044
        %v5070 = vadd.f32 %v5035, %v5044
        %v5071 = vadd.f32 %v5036, %v5044
        %v5072 = vadd.f32 %v5037, %v5044
        %v5073 = vadd.f32 %v5038, %v5044
        %v5074 = vadd.f32 %v5039, %v5044
        %v5075 = vadd.f32 %v5040, %v5044
        %v5076 = vadd.f32 %v5041, %v5044
        %v5077 = vadd.f32 %v5042, %v5044
        %v5078 = vmax.f32 %v5006, 0.0
        %v5079 = vmax.f32 %v5007, 0.0
        %v5080 = vmax.f32 %v5046, 0.0
        %v5081 = vmax.f32 %v5047, 0.0
        %v5082 = vmax.f32 %v5048, 0.0
        %v5083 = vmax.f32 %v5049, 0.0
        %v5084 = vmax.f32 %v5050, 0.0
        %v5085 = vmax.f32 %v5051, 0.0
        %v5086 = vmax.f32 %v5052, 0.0
        %v5087 = vmax.f32 %v5053, 0.0
        %v5088 = vmax.f32 %v5054, 0.0
        %v5089 = vmax.f32 %v5055, 0.0
        %v5090 = vmax.f32 %v5056, 0.0
        %v5091 = vmax.f32 %v5057, 0.0
        %v5092 = vmax.f32 %v5058, 0.0
        %v5093 = vmax.f32 %v5059, 0.0
        %v5094 = vmax.f32 %v5060, 0.0
        %v5095 = vmax.f32 %v5061, 0.0
        %v5096 = vmax.f32 %v5062, 0.0
        %v5097 = vmax.f32 %v5063, 0.0
        %v5098 = vmax.f32 %v5064, 0.0
        %v5099 = vmax.f32 %v5065, 0.0
        %v5100 = vmax.f32 %v5066, 0.0
        %v5101 = vmax.f32 %v5067, 0.0
        %v5102 = vmax.f32 %v5068, 0.0
        %v5103 = vmax.f32 %v5069, 0.0
        %v5104 = vmax.f32 %v5070, 0.0
        %v5105 = vmax.f32 %v5071, 0.0
        %v5106 = vmax.f32 %v5072, 0.0
        %v5107 = vmax.f32 %v5073, 0.0
        %v5108 = vmax.f32 %v5074, 0.0
        %v5109 = vmax.f32 %v5075, 0.0
        %v5110 = vmax.f32 %v5076, 0.0
        %v5111 = vmax.f32 %v5077, 0.0
        %v5112 = vpack.c.bf16 %v5079, %v5078
        %s5113 = scalar_lea.vmem [#allocation17], 64
        %v5114 = vld [vmem:[%s5113] sm:$0xf]
        %v5115 = vld [vmem:[%s5113 + $0x4] sm:$0xf]
        %v5116 = vld [vmem:[%s5113 + $0x8] sm:$0xf]
        %v5117 = vld [vmem:[%s5113 + $0xc] sm:$0xf]
        %v5118 = vld [vmem:[%s5113 + $0x10] sm:$0xf]
        %v5119 = vld [vmem:[%s5113 + $0x14] sm:$0xf]
        %v5120 = vld [vmem:[%s5113 + $0x18] sm:$0xf]
        %v5121 = vld [vmem:[%s5113 + $0x1c] sm:$0xf]
        %v5122 = vld [vmem:[%s5113 + $0x20] sm:$0xf]
        %v5123 = vld [vmem:[%s5113 + $0x24] sm:$0xf]
        %v5124 = vld [vmem:[%s5113 + $0x28] sm:$0xf]
        %v5125 = vld [vmem:[%s5113 + $0x2c] sm:$0xf]
        %v5126 = vld [vmem:[%s5113 + $0x30] sm:$0xf]
        %v5127 = vld [vmem:[%s5113 + $0x34] sm:$0xf]
        %v5128 = vld [vmem:[%s5113 + $0x38] sm:$0xf]
        %v5129 = vld [vmem:[%s5113 + $0x3c] sm:$0xf]
        %v5146 = vunpack.c.l.b16 %v5114
        %v5147 = vunpack.c.l.b16 %v5115
        %v5148 = vunpack.c.l.b16 %v5116
        %v5149 = vunpack.c.l.b16 %v5117
        %v5150 = vunpack.c.l.b16 %v5118
        %v5151 = vunpack.c.l.b16 %v5119
        %v5152 = vunpack.c.l.b16 %v5120
        %v5153 = vunpack.c.l.b16 %v5121
        %v5154 = vunpack.c.l.b16 %v5122
        %v5155 = vunpack.c.l.b16 %v5123
        %v5156 = vunpack.c.l.b16 %v5124
        %v5157 = vunpack.c.l.b16 %v5125
        %v5158 = vunpack.c.l.b16 %v5126
        %v5159 = vunpack.c.l.b16 %v5127
        %v5160 = vunpack.c.l.b16 %v5128
        %v5161 = vunpack.c.l.b16 %v5129
        %v5162 = vpack.c.b16 %v5147, %v5146
        %v5163 = vpack.c.b16 %v5149, %v5148
        %v5164 = vpack.c.b16 %v5151, %v5150
        %v5165 = vpack.c.b16 %v5153, %v5152
        %v5166 = vpack.c.b16 %v5155, %v5154
        %v5167 = vpack.c.b16 %v5157, %v5156
        %v5168 = vpack.c.b16 %v5159, %v5158
        %v5169 = vpack.c.b16 %v5161, %v5160
        %5178 = vmatpush.bf16.msra.mxu0 %v5169
        %5179 = vmatpush.bf16.msra.mxu0 %v5168
        %5180 = vmatpush.bf16.msra.mxu0 %v5167
        %5181 = vmatpush.bf16.msra.mxu0 %v5166
        %5182 = vmatpush.bf16.msra.mxu0 %v5165
        %5183 = vmatpush.bf16.msra.mxu0 %v5164
        %5184 = vmatpush.bf16.msra.mxu0 %v5163
        %5185 = vmatpush.bf16.msra.mxu0 %v5162
        %5186 = vmatmul.bf16.gmra.mxu0 %v5112
        %v5187 = vpop.f32.mrf.mxu0
        %v5188 = vadd.f32 %v3511, %v5187
        %v5189 = vpop.f32.mrf.mxu0
        %v5190 = vadd.f32 %v3513, %v5189
        %5191 = vdwg.mxu0
        %v5192 = vxor.u32 %v5188, 2147483648
        %v5193 = vxor.u32 %v5190, 2147483648
        %v5194 = vmul.f32 %v5192, 1.442695
        %v5195 = vpow.pop %v5194
        %v5196 = vmul.f32 %v5193, 1.442695
        %v5197 = vpow.pop %v5196
        %v5198 = vadd.f32 %v5195, 1.0
        %v5199 = vadd.f32 %v5197, 1.0
        %v5200 = vrcp.pop %v5198
        %v5201 = vmul.f32 %v5198, %v5200
        %v5202 = vsub.f32 1.0, %v5201
        %v5203 = vmul.f32 %v5200, %v5202
        %v5204 = vadd.f32 %v5200, %v5203
        %vm5205 = vweird.f32 %v5198
        %vm5206 = vweird.f32 %v5200
        %vm5207 = vmor %vm5205, %vm5206
        %v5208 = vsel %vm5207, %v5200, %v5204
        %v5209 = vand.u32 2147483647, %v5198
        %vm5210 = vcmp.eq.f32.partialorder %v5209, 8.507059e+37
        %v5211 = vand.u32 %v5198, 2147483648
        %v5212 = vor.u32 1.1754944e-38, %v5211
        %v5213 = vsel %vm5210, %v5212, %v5208
        %v5214 = vmul.f32 1.0, %v5213
        %v5215 = vrcp.pop %v5199
        %v5216 = vmul.f32 %v5199, %v5215
        %v5217 = vsub.f32 1.0, %v5216
        %v5218 = vmul.f32 %v5215, %v5217
        %v5219 = vadd.f32 %v5215, %v5218
        %vm5220 = vweird.f32 %v5199
        %vm5221 = vweird.f32 %v5215
        %vm5222 = vmor %vm5220, %vm5221
        %v5223 = vsel %vm5222, %v5215, %v5219
        %v5224 = vand.u32 2147483647, %v5199
        %vm5225 = vcmp.eq.f32.partialorder %v5224, 8.507059e+37
        %v5226 = vand.u32 %v5199, 2147483648
        %v5227 = vor.u32 1.1754944e-38, %v5226
        %v5228 = vsel %vm5225, %v5227, %v5223
        %v5229 = vmul.f32 1.0, %v5228
        %v5230 = vmul.f32 %v5214, %v5078
        %v5231 = vmul.f32 %v5229, %v5079
        %v5232 = vsub.f32 1.0, %v5214
        %v5233 = vsub.f32 1.0, %v5229
        %v5234 = vmul.f32 %v5232, %v3172
        %v5235 = vmul.f32 %v5233, %v3173
        %v5236 = vadd.f32 %v5230, %v5234
        %v5237 = vadd.f32 %v5231, %v5235
        %v5238 = vpack.c.bf16 %v5237, %v5236
        %s5239 = scalar_lea.vmem [#allocation11], 640
        %v5240 = vld [vmem:[%s5239] sm:$0xff]
        %v5241 = vld [vmem:[%s5239 + $0x8] sm:$0xff]
        %v5242 = vld [vmem:[%s5239 + $0x10] sm:$0xf]
        %v5243 = vld [vmem:[%s5239 + $0x14] sm:$0xff]
        %v5244 = vld [vmem:[%s5239 + $0x1c] sm:$0xff]
        %v5245 = vld [vmem:[%s5239 + $0x24] sm:$0xf]
        %v5246 = vld [vmem:[%s5239 + $0x28] sm:$0xff]
        %v5247 = vld [vmem:[%s5239 + $0x30] sm:$0xff]
        %v5248 = vld [vmem:[%s5239 + $0x38] sm:$0xf]
        %v5249 = vld [vmem:[%s5239 + $0x3c] sm:$0xff]
        %v5250 = vld [vmem:[%s5239 + $0x44] sm:$0xff]
        %v5251 = vld [vmem:[%s5239 + $0x4c] sm:$0xf]
        %v5252 = vld [vmem:[%s5239 + $0x50] sm:$0xff]
        %v5253 = vld [vmem:[%s5239 + $0x58] sm:$0xff]
        %v5254 = vld [vmem:[%s5239 + $0x60] sm:$0xf]
        %v5255 = vld [vmem:[%s5239 + $0x64] sm:$0xff]
        %v5256 = vld [vmem:[%s5239 + $0x6c] sm:$0xff]
        %v5257 = vld [vmem:[%s5239 + $0x74] sm:$0xf]
        %v5258 = vld [vmem:[%s5239 + $0x78] sm:$0xff]
        %v5259 = vld [vmem:[%s5239 + $0x80] sm:$0xff]
        %v5260 = vld [vmem:[%s5239 + $0x88] sm:$0xf]
        %v5261 = vld [vmem:[%s5239 + $0x8c] sm:$0xff]
        %v5262 = vld [vmem:[%s5239 + $0x94] sm:$0xff]
        %v5263 = vld [vmem:[%s5239 + $0x9c] sm:$0xf]
        %v5264 = vld [vmem:[%s5239 + $0xa0] sm:$0xff]
        %v5265 = vld [vmem:[%s5239 + $0xa8] sm:$0xff]
        %v5266 = vld [vmem:[%s5239 + $0xb0] sm:$0xf]
        %v5267 = vld [vmem:[%s5239 + $0xb4] sm:$0xff]
        %v5268 = vld [vmem:[%s5239 + $0xbc] sm:$0xff]
        %v5269 = vld [vmem:[%s5239 + $0xc4] sm:$0xf]
        %v5270 = vld [vmem:[%s5239 + $0xc8] sm:$0xff]
        %v5271 = vld [vmem:[%s5239 + $0xd0] sm:$0xff]
        %v5272 = vld [vmem:[%s5239 + $0xd8] sm:$0xf]
        %v5273 = vld [vmem:[%s5239 + $0xdc] sm:$0xff]
        %v5274 = vld [vmem:[%s5239 + $0xe4] sm:$0xff]
        %v5275 = vld [vmem:[%s5239 + $0xec] sm:$0xf]
        %v5276 = vld [vmem:[%s5239 + $0xf0] sm:$0xff]
        %v5277 = vld [vmem:[%s5239 + $0xf8] sm:$0xff]
        %v5278 = vld [vmem:[%s5239 + $0x100] sm:$0xf]
        %v5279 = vld [vmem:[%s5239 + $0x104] sm:$0xff]
        %v5280 = vld [vmem:[%s5239 + $0x10c] sm:$0xff]
        %v5281 = vld [vmem:[%s5239 + $0x114] sm:$0xf]
        %v5282 = vld [vmem:[%s5239 + $0x118] sm:$0xff]
        %v5283 = vld [vmem:[%s5239 + $0x120] sm:$0xff]
        %v5284 = vld [vmem:[%s5239 + $0x128] sm:$0xf]
        %v5285 = vld [vmem:[%s5239 + $0x12c] sm:$0xff]
        %v5286 = vld [vmem:[%s5239 + $0x134] sm:$0xff]
        %v5287 = vld [vmem:[%s5239 + $0x13c] sm:$0xf]
        %s5288 = scalar_lea.vmem [#allocation13], 10
        %v5289 = vld [vmem:[%s5288] sm:$0x1f]
        %v5291 = vperm.slane %v5289, 0
        %v5292 = vperm.slane %v5289, 1
        %v5293 = vperm.slane %v5289, 2
        %v5294 = vperm.slane %v5289, 3
        %v5295 = vperm.slane %v5289, 4
        %v5349 = vunpack.c.l.b16 %v5240
        %v5350 = vunpack.c.h.b16 %v5240
        %v5351 = vunpack.c.l.b16 %v5241
        %v5352 = vunpack.c.h.b16 %v5241
        %v5353 = vunpack.c.l.b16 %v5242
        %v5354 = vunpack.c.l.b16 %v5243
        %v5355 = vunpack.c.h.b16 %v5243
        %v5356 = vunpack.c.l.b16 %v5244
        %v5357 = vunpack.c.h.b16 %v5244
        %v5358 = vunpack.c.l.b16 %v5245
        %v5359 = vunpack.c.l.b16 %v5246
        %v5360 = vunpack.c.h.b16 %v5246
        %v5361 = vunpack.c.l.b16 %v5247
        %v5362 = vunpack.c.h.b16 %v5247
        %v5363 = vunpack.c.l.b16 %v5248
        %v5364 = vunpack.c.l.b16 %v5249
        %v5365 = vunpack.c.h.b16 %v5249
        %v5366 = vunpack.c.l.b16 %v5250
        %v5367 = vunpack.c.h.b16 %v5250
        %v5368 = vunpack.c.l.b16 %v5251
        %v5369 = vunpack.c.l.b16 %v5252
        %v5370 = vunpack.c.h.b16 %v5252
        %v5371 = vunpack.c.l.b16 %v5253
        %v5372 = vunpack.c.h.b16 %v5253
        %v5373 = vunpack.c.l.b16 %v5254
        %v5374 = vunpack.c.l.b16 %v5255
        %v5375 = vunpack.c.h.b16 %v5255
        %v5376 = vunpack.c.l.b16 %v5256
        %v5377 = vunpack.c.h.b16 %v5256
        %v5378 = vunpack.c.l.b16 %v5257
        %v5379 = vunpack.c.l.b16 %v5258
        %v5380 = vunpack.c.h.b16 %v5258
        %v5381 = vunpack.c.l.b16 %v5259
        %v5382 = vunpack.c.h.b16 %v5259
        %v5383 = vunpack.c.l.b16 %v5260
        %v5384 = vunpack.c.l.b16 %v5261
        %v5385 = vunpack.c.h.b16 %v5261
        %v5386 = vunpack.c.l.b16 %v5262
        %v5387 = vunpack.c.h.b16 %v5262
        %v5388 = vunpack.c.l.b16 %v5263
        %v5389 = vunpack.c.l.b16 %v5264
        %v5390 = vunpack.c.h.b16 %v5264
        %v5391 = vunpack.c.l.b16 %v5265
        %v5392 = vunpack.c.h.b16 %v5265
        %v5393 = vunpack.c.l.b16 %v5266
        %v5394 = vunpack.c.l.b16 %v5267
        %v5395 = vunpack.c.h.b16 %v5267
        %v5396 = vunpack.c.l.b16 %v5268
        %v5397 = vunpack.c.h.b16 %v5268
        %v5398 = vunpack.c.l.b16 %v5269
        %v5399 = vunpack.c.l.b16 %v5270
        %v5400 = vunpack.c.h.b16 %v5270
        %v5401 = vunpack.c.l.b16 %v5271
        %v5402 = vunpack.c.h.b16 %v5271
        %v5403 = vunpack.c.l.b16 %v5272
        %v5404 = vunpack.c.l.b16 %v5273
        %v5405 = vunpack.c.h.b16 %v5273
        %v5406 = vunpack.c.l.b16 %v5274
        %v5407 = vunpack.c.h.b16 %v5274
        %v5408 = vunpack.c.l.b16 %v5275
        %v5409 = vunpack.c.l.b16 %v5276
        %v5410 = vunpack.c.h.b16 %v5276
        %v5411 = vunpack.c.l.b16 %v5277
        %v5412 = vunpack.c.h.b16 %v5277
        %v5413 = vunpack.c.l.b16 %v5278
        %v5414 = vunpack.c.l.b16 %v5279
        %v5415 = vunpack.c.h.b16 %v5279
        %v5416 = vunpack.c.l.b16 %v5280
        %v5417 = vunpack.c.h.b16 %v5280
        %v5418 = vunpack.c.l.b16 %v5281
        %v5419 = vunpack.c.l.b16 %v5282
        %v5420 = vunpack.c.h.b16 %v5282
        %v5421 = vunpack.c.l.b16 %v5283
        %v5422 = vunpack.c.h.b16 %v5283
        %v5423 = vunpack.c.l.b16 %v5284
        %v5424 = vunpack.c.l.b16 %v5285
        %v5425 = vunpack.c.h.b16 %v5285
        %v5426 = vunpack.c.l.b16 %v5286
        %v5427 = vunpack.c.h.b16 %v5286
        %v5428 = vunpack.c.l.b16 %v5287
        %v5429 = vpack.c.b16 %v5354, %v5349
        %v5430 = vpack.c.b16 %v5355, %v5350
        %v5431 = vpack.c.b16 %v5356, %v5351
        %v5432 = vpack.c.b16 %v5357, %v5352
        %v5433 = vpack.c.b16 %v5358, %v5353
        %v5434 = vpack.c.b16 %v5364, %v5359
        %v5435 = vpack.c.b16 %v5365, %v5360
        %v5436 = vpack.c.b16 %v5366, %v5361
        %v5437 = vpack.c.b16 %v5367, %v5362
        %v5438 = vpack.c.b16 %v5368, %v5363
        %v5439 = vpack.c.b16 %v5374, %v5369
        %v5440 = vpack.c.b16 %v5375, %v5370
        %v5441 = vpack.c.b16 %v5376, %v5371
        %v5442 = vpack.c.b16 %v5377, %v5372
        %v5443 = vpack.c.b16 %v5378, %v5373
        %v5444 = vpack.c.b16 %v5384, %v5379
        %v5445 = vpack.c.b16 %v5385, %v5380
        %v5446 = vpack.c.b16 %v5386, %v5381
        %v5447 = vpack.c.b16 %v5387, %v5382
        %v5448 = vpack.c.b16 %v5388, %v5383
        %v5449 = vpack.c.b16 %v5394, %v5389
        %v5450 = vpack.c.b16 %v5395, %v5390
        %v5451 = vpack.c.b16 %v5396, %v5391
        %v5452 = vpack.c.b16 %v5397, %v5392
        %v5453 = vpack.c.b16 %v5398, %v5393
        %v5454 = vpack.c.b16 %v5404, %v5399
        %v5455 = vpack.c.b16 %v5405, %v5400
        %v5456 = vpack.c.b16 %v5406, %v5401
        %v5457 = vpack.c.b16 %v5407, %v5402
        %v5458 = vpack.c.b16 %v5408, %v5403
        %v5459 = vpack.c.b16 %v5414, %v5409
        %v5460 = vpack.c.b16 %v5415, %v5410
        %v5461 = vpack.c.b16 %v5416, %v5411
        %v5462 = vpack.c.b16 %v5417, %v5412
        %v5463 = vpack.c.b16 %v5418, %v5413
        %v5464 = vpack.c.b16 %v5424, %v5419
        %v5465 = vpack.c.b16 %v5425, %v5420
        %v5466 = vpack.c.b16 %v5426, %v5421
        %v5467 = vpack.c.b16 %v5427, %v5422
        %v5468 = vpack.c.b16 %v5428, %v5423
        %5509 = vmatpush.bf16.msra.mxu0 %v5464
        %5510 = vmatpush.bf16.msra.mxu0 %v5459
        %5511 = vmatpush.bf16.msra.mxu0 %v5454
        %5512 = vmatpush.bf16.msra.mxu0 %v5449
        %5513 = vmatpush.bf16.msra.mxu0 %v5444
        %5514 = vmatpush.bf16.msra.mxu0 %v5439
        %5515 = vmatpush.bf16.msra.mxu0 %v5434
        %5516 = vmatpush.bf16.msra.mxu0 %v5429
        %5517 = vmatmul.bf16.gmra.mxu0 %v5238
        %v5518 = vpop.f32.mrf.mxu0
        %v5519 = vadd.f32 %v5291, %v5518
        %v5520 = vpop.f32.mrf.mxu0
        %v5521 = vadd.f32 %v5291, %v5520
        %5522 = vdwg.mxu0
        %5523 = vmatpush.bf16.msra.mxu0 %v5465
        %5524 = vmatpush.bf16.msra.mxu0 %v5460
        %5525 = vmatpush.bf16.msra.mxu0 %v5455
        %5526 = vmatpush.bf16.msra.mxu0 %v5450
        %5527 = vmatpush.bf16.msra.mxu0 %v5445
        %5528 = vmatpush.bf16.msra.mxu0 %v5440
        %5529 = vmatpush.bf16.msra.mxu0 %v5435
        %5530 = vmatpush.bf16.msra.mxu0 %v5430
        %5531 = vmatmul.bf16.gmra.mxu0 %v5238
        %v5532 = vpop.f32.mrf.mxu0
        %v5533 = vadd.f32 %v5292, %v5532
        %v5534 = vpop.f32.mrf.mxu0
        %v5535 = vadd.f32 %v5292, %v5534
        %5536 = vdwg.mxu0
        %5537 = vmatpush.bf16.msra.mxu0 %v5466
        %5538 = vmatpush.bf16.msra.mxu0 %v5461
        %5539 = vmatpush.bf16.msra.mxu0 %v5456
        %5540 = vmatpush.bf16.msra.mxu0 %v5451
        %5541 = vmatpush.bf16.msra.mxu0 %v5446
        %5542 = vmatpush.bf16.msra.mxu0 %v5441
        %5543 = vmatpush.bf16.msra.mxu0 %v5436
        %5544 = vmatpush.bf16.msra.mxu0 %v5431
        %5545 = vmatmul.bf16.gmra.mxu0 %v5238
        %v5546 = vpop.f32.mrf.mxu0
        %v5547 = vadd.f32 %v5293, %v5546
        %v5548 = vpop.f32.mrf.mxu0
        %v5549 = vadd.f32 %v5293, %v5548
        %5550 = vdwg.mxu0
        %5551 = vmatpush.bf16.msra.mxu0 %v5467
        %5552 = vmatpush.bf16.msra.mxu0 %v5462
        %5553 = vmatpush.bf16.msra.mxu0 %v5457
        %5554 = vmatpush.bf16.msra.mxu0 %v5452
        %5555 = vmatpush.bf16.msra.mxu0 %v5447
        %5556 = vmatpush.bf16.msra.mxu0 %v5442
        %5557 = vmatpush.bf16.msra.mxu0 %v5437
        %5558 = vmatpush.bf16.msra.mxu0 %v5432
        %5559 = vmatmul.bf16.gmra.mxu0 %v5238
        %v5560 = vpop.f32.mrf.mxu0
        %v5561 = vadd.f32 %v5294, %v5560
        %v5562 = vpop.f32.mrf.mxu0
        %v5563 = vadd.f32 %v5294, %v5562
        %5564 = vdwg.mxu0
        %5565 = vmatpush.bf16.msra.mxu0 %v5468
        %5566 = vmatpush.bf16.msra.mxu0 %v5463
        %5567 = vmatpush.bf16.msra.mxu0 %v5458
        %5568 = vmatpush.bf16.msra.mxu0 %v5453
        %5569 = vmatpush.bf16.msra.mxu0 %v5448
        %5570 = vmatpush.bf16.msra.mxu0 %v5443
        %5571 = vmatpush.bf16.msra.mxu0 %v5438
        %5572 = vmatpush.bf16.msra.mxu0 %v5433
        %5573 = vmatmul.bf16.gmra.mxu0 %v5238
        %v5574 = vpop.f32.mrf.mxu0
        %v5575 = vadd.f32 %v5295, %v5574
        %v5576 = vpop.f32.mrf.mxu0
        %v5577 = vadd.f32 %v5295, %v5576
        %5578 = vdwg.mxu0
        %v5579 = vpack.c.bf16 %v5081, %v5080
        %v5580 = vpack.c.bf16 %v5083, %v5082
        %v5581 = vpack.c.bf16 %v5085, %v5084
        %v5582 = vpack.c.bf16 %v5087, %v5086
        %v5583 = vpack.c.bf16 %v5089, %v5088
        %v5584 = vpack.c.bf16 %v5091, %v5090
        %v5585 = vpack.c.bf16 %v5093, %v5092
        %v5586 = vpack.c.bf16 %v5095, %v5094
        %v5587 = vpack.c.bf16 %v5097, %v5096
        %v5588 = vpack.c.bf16 %v5099, %v5098
        %v5589 = vpack.c.bf16 %v5101, %v5100
        %v5590 = vpack.c.bf16 %v5103, %v5102
        %v5591 = vpack.c.bf16 %v5105, %v5104
        %v5592 = vpack.c.bf16 %v5107, %v5106
        %v5593 = vpack.c.bf16 %v5109, %v5108
        %v5594 = vpack.c.bf16 %v5111, %v5110
        %s5595 = scalar_lea.vmem [#allocation14], 128
        %v5596 = vld [vmem:[%s5595] sm:$0xf]
        %v5597 = vld [vmem:[%s5595 + $0x4] sm:$0xf]
        %v5598 = vld [vmem:[%s5595 + $0x8] sm:$0xf]
        %v5599 = vld [vmem:[%s5595 + $0xc] sm:$0xf]
        %v5600 = vld [vmem:[%s5595 + $0x10] sm:$0xf]
        %v5601 = vld [vmem:[%s5595 + $0x14] sm:$0xf]
        %v5602 = vld [vmem:[%s5595 + $0x18] sm:$0xf]
        %v5603 = vld [vmem:[%s5595 + $0x1c] sm:$0xf]
        %v5604 = vld [vmem:[%s5595 + $0x20] sm:$0xf]
        %v5605 = vld [vmem:[%s5595 + $0x24] sm:$0xf]
        %v5606 = vld [vmem:[%s5595 + $0x28] sm:$0xf]
        %v5607 = vld [vmem:[%s5595 + $0x2c] sm:$0xf]
        %v5608 = vld [vmem:[%s5595 + $0x30] sm:$0xf]
        %v5609 = vld [vmem:[%s5595 + $0x34] sm:$0xf]
        %v5610 = vld [vmem:[%s5595 + $0x38] sm:$0xf]
        %v5611 = vld [vmem:[%s5595 + $0x3c] sm:$0xf]
        %s5612 = scalar_lea.vmem %s10, 2
        %v5613 = vld [vmem:[%s5612] sm:$0x1]
        %v5615 = vperm.slane %v5613, 0
        %v5633 = vunpack.c.l.b16 %v5596
        %v5634 = vunpack.c.l.b16 %v5597
        %v5635 = vunpack.c.l.b16 %v5598
        %v5636 = vunpack.c.l.b16 %v5599
        %v5637 = vunpack.c.l.b16 %v5600
        %v5638 = vunpack.c.l.b16 %v5601
        %v5639 = vunpack.c.l.b16 %v5602
        %v5640 = vunpack.c.l.b16 %v5603
        %v5641 = vunpack.c.l.b16 %v5604
        %v5642 = vunpack.c.l.b16 %v5605
        %v5643 = vunpack.c.l.b16 %v5606
        %v5644 = vunpack.c.l.b16 %v5607
        %v5645 = vunpack.c.l.b16 %v5608
        %v5646 = vunpack.c.l.b16 %v5609
        %v5647 = vunpack.c.l.b16 %v5610
        %v5648 = vunpack.c.l.b16 %v5611
        %v5649 = vpack.c.b16 %v5634, %v5633
        %v5650 = vpack.c.b16 %v5636, %v5635
        %v5651 = vpack.c.b16 %v5638, %v5637
        %v5652 = vpack.c.b16 %v5640, %v5639
        %v5653 = vpack.c.b16 %v5642, %v5641
        %v5654 = vpack.c.b16 %v5644, %v5643
        %v5655 = vpack.c.b16 %v5646, %v5645
        %v5656 = vpack.c.b16 %v5648, %v5647
        %5665 = vmatpush.bf16.msra.mxu0 %v5656
        %5666 = vmatpush.bf16.msra.mxu0 %v5655
        %5667 = vmatpush.bf16.msra.mxu0 %v5654
        %5668 = vmatpush.bf16.msra.mxu0 %v5653
        %5669 = vmatpush.bf16.msra.mxu0 %v5652
        %5670 = vmatpush.bf16.msra.mxu0 %v5651
        %5671 = vmatpush.bf16.msra.mxu0 %v5650
        %5672 = vmatpush.bf16.msra.mxu0 %v5649
        %5673 = vmatmul.bf16.gmra.mxu0 %v5579
        %v5674 = vpop.f32.mrf.mxu0
        %v5675 = vadd.f32 %v5615, %v5674
        %v5676 = vpop.f32.mrf.mxu0
        %v5677 = vadd.f32 %v5615, %v5676
        %5678 = vmatmul.bf16.gmra.mxu0 %v5580
        %v5679 = vpop.f32.mrf.mxu0
        %v5680 = vadd.f32 %v5615, %v5679
        %v5681 = vpop.f32.mrf.mxu0
        %v5682 = vadd.f32 %v5615, %v5681
        %5683 = vmatmul.bf16.gmra.mxu0 %v5581
        %v5684 = vpop.f32.mrf.mxu0
        %v5685 = vadd.f32 %v5615, %v5684
        %v5686 = vpop.f32.mrf.mxu0
        %v5687 = vadd.f32 %v5615, %v5686
        %5688 = vmatmul.bf16.gmra.mxu0 %v5582
        %v5689 = vpop.f32.mrf.mxu0
        %v5690 = vadd.f32 %v5615, %v5689
        %v5691 = vpop.f32.mrf.mxu0
        %v5692 = vadd.f32 %v5615, %v5691
        %5693 = vmatmul.bf16.gmra.mxu0 %v5583
        %v5694 = vpop.f32.mrf.mxu0
        %v5695 = vadd.f32 %v5615, %v5694
        %v5696 = vpop.f32.mrf.mxu0
        %v5697 = vadd.f32 %v5615, %v5696
        %5698 = vmatmul.bf16.gmra.mxu0 %v5584
        %v5699 = vpop.f32.mrf.mxu0
        %v5700 = vadd.f32 %v5615, %v5699
        %v5701 = vpop.f32.mrf.mxu0
        %v5702 = vadd.f32 %v5615, %v5701
        %5703 = vmatmul.bf16.gmra.mxu0 %v5585
        %v5704 = vpop.f32.mrf.mxu0
        %v5705 = vadd.f32 %v5615, %v5704
        %v5706 = vpop.f32.mrf.mxu0
        %v5707 = vadd.f32 %v5615, %v5706
        %5708 = vmatmul.bf16.gmra.mxu0 %v5586
        %v5709 = vpop.f32.mrf.mxu0
        %v5710 = vadd.f32 %v5615, %v5709
        %v5711 = vpop.f32.mrf.mxu0
        %v5712 = vadd.f32 %v5615, %v5711
        %5713 = vmatmul.bf16.gmra.mxu0 %v5587
        %v5714 = vpop.f32.mrf.mxu0
        %v5715 = vadd.f32 %v5615, %v5714
        %v5716 = vpop.f32.mrf.mxu0
        %v5717 = vadd.f32 %v5615, %v5716
        %5718 = vmatmul.bf16.gmra.mxu0 %v5588
        %v5719 = vpop.f32.mrf.mxu0
        %v5720 = vadd.f32 %v5615, %v5719
        %v5721 = vpop.f32.mrf.mxu0
        %v5722 = vadd.f32 %v5615, %v5721
        %5723 = vmatmul.bf16.gmra.mxu0 %v5589
        %v5724 = vpop.f32.mrf.mxu0
        %v5725 = vadd.f32 %v5615, %v5724
        %v5726 = vpop.f32.mrf.mxu0
        %v5727 = vadd.f32 %v5615, %v5726
        %5728 = vmatmul.bf16.gmra.mxu0 %v5590
        %v5729 = vpop.f32.mrf.mxu0
        %v5730 = vadd.f32 %v5615, %v5729
        %v5731 = vpop.f32.mrf.mxu0
        %v5732 = vadd.f32 %v5615, %v5731
        %5733 = vmatmul.bf16.gmra.mxu0 %v5591
        %v5734 = vpop.f32.mrf.mxu0
        %v5735 = vadd.f32 %v5615, %v5734
        %v5736 = vpop.f32.mrf.mxu0
        %v5737 = vadd.f32 %v5615, %v5736
        %5738 = vmatmul.bf16.gmra.mxu0 %v5592
        %v5739 = vpop.f32.mrf.mxu0
        %v5740 = vadd.f32 %v5615, %v5739
        %v5741 = vpop.f32.mrf.mxu0
        %v5742 = vadd.f32 %v5615, %v5741
        %5743 = vmatmul.bf16.gmra.mxu0 %v5593
        %v5744 = vpop.f32.mrf.mxu0
        %v5745 = vadd.f32 %v5615, %v5744
        %v5746 = vpop.f32.mrf.mxu0
        %v5747 = vadd.f32 %v5615, %v5746
        %5748 = vmatmul.bf16.gmra.mxu0 %v5594
        %v5749 = vpop.f32.mrf.mxu0
        %v5750 = vadd.f32 %v5615, %v5749
        %v5751 = vpop.f32.mrf.mxu0
        %v5752 = vadd.f32 %v5615, %v5751
        %5753 = vdwg.mxu0
        %v5756 = vrot.slane %v5561, 1
        %v5757 = vrot.slane %v5561, 2
        %v5758 = vrot.slane %v5561, 3
        %v5759 = vrot.slane %v5561, 4
        %v5760 = vrot.slane %v5561, 5
        %v5761 = vrot.slane %v5561, 6
        %v5762 = vrot.slane %v5561, 7
        %v5763 = vrot.slane %v5563, 1
        %v5764 = vrot.slane %v5563, 2
        %v5765 = vrot.slane %v5563, 3
        %v5766 = vrot.slane %v5563, 4
        %v5767 = vrot.slane %v5563, 5
        %v5768 = vrot.slane %v5563, 6
        %v5769 = vrot.slane %v5563, 7
        %v5770 = vperm.slane %v5561, 0
        %v5771 = vperm.slane %v5756, 0
        %v5772 = vperm.slane %v5757, 0
        %v5773 = vperm.slane %v5758, 0
        %v5774 = vperm.slane %v5759, 0
        %v5775 = vperm.slane %v5760, 0
        %v5776 = vperm.slane %v5761, 0
        %v5777 = vperm.slane %v5762, 0
        %v5778 = vperm.slane %v5563, 0
        %v5779 = vperm.slane %v5763, 0
        %v5780 = vperm.slane %v5764, 0
        %v5781 = vperm.slane %v5765, 0
        %v5782 = vperm.slane %v5766, 0
        %v5783 = vperm.slane %v5767, 0
        %v5784 = vperm.slane %v5768, 0
        %v5785 = vperm.slane %v5769, 0
        %v5802 = vadd.f32 %v5547, %v5770
        %v5803 = vadd.f32 %v5549, %v5770
        %v5804 = vadd.f32 %v5547, %v5771
        %v5805 = vadd.f32 %v5549, %v5771
        %v5806 = vadd.f32 %v5547, %v5772
        %v5807 = vadd.f32 %v5549, %v5772
        %v5808 = vadd.f32 %v5547, %v5773
        %v5809 = vadd.f32 %v5549, %v5773
        %v5810 = vadd.f32 %v5547, %v5774
        %v5811 = vadd.f32 %v5549, %v5774
        %v5812 = vadd.f32 %v5547, %v5775
        %v5813 = vadd.f32 %v5549, %v5775
        %v5814 = vadd.f32 %v5547, %v5776
        %v5815 = vadd.f32 %v5549, %v5776
        %v5816 = vadd.f32 %v5547, %v5777
        %v5817 = vadd.f32 %v5549, %v5777
        %v5818 = vadd.f32 %v5547, %v5778
        %v5819 = vadd.f32 %v5549, %v5778
        %v5820 = vadd.f32 %v5547, %v5779
        %v5821 = vadd.f32 %v5549, %v5779
        %v5822 = vadd.f32 %v5547, %v5780
        %v5823 = vadd.f32 %v5549, %v5780
        %v5824 = vadd.f32 %v5547, %v5781
        %v5825 = vadd.f32 %v5549, %v5781
        %v5826 = vadd.f32 %v5547, %v5782
        %v5827 = vadd.f32 %v5549, %v5782
        %v5828 = vadd.f32 %v5547, %v5783
        %v5829 = vadd.f32 %v5549, %v5783
        %v5830 = vadd.f32 %v5547, %v5784
        %v5831 = vadd.f32 %v5549, %v5784
        %v5832 = vadd.f32 %v5547, %v5785
        %v5833 = vadd.f32 %v5549, %v5785
        %v5834 = vadd.f32 %v5802, %v5675
        %v5835 = vadd.f32 %v5803, %v5677
        %v5836 = vadd.f32 %v5804, %v5680
        %v5837 = vadd.f32 %v5805, %v5682
        %v5838 = vadd.f32 %v5806, %v5685
        %v5839 = vadd.f32 %v5807, %v5687
        %v5840 = vadd.f32 %v5808, %v5690
        %v5841 = vadd.f32 %v5809, %v5692
        %v5842 = vadd.f32 %v5810, %v5695
        %v5843 = vadd.f32 %v5811, %v5697
        %v5844 = vadd.f32 %v5812, %v5700
        %v5845 = vadd.f32 %v5813, %v5702
        %v5846 = vadd.f32 %v5814, %v5705
        %v5847 = vadd.f32 %v5815, %v5707
        %v5848 = vadd.f32 %v5816, %v5710
        %v5849 = vadd.f32 %v5817, %v5712
        %v5850 = vadd.f32 %v5818, %v5715
        %v5851 = vadd.f32 %v5819, %v5717
        %v5852 = vadd.f32 %v5820, %v5720
        %v5853 = vadd.f32 %v5821, %v5722
        %v5854 = vadd.f32 %v5822, %v5725
        %v5855 = vadd.f32 %v5823, %v5727
        %v5856 = vadd.f32 %v5824, %v5730
        %v5857 = vadd.f32 %v5825, %v5732
        %v5858 = vadd.f32 %v5826, %v5735
        %v5859 = vadd.f32 %v5827, %v5737
        %v5860 = vadd.f32 %v5828, %v5740
        %v5861 = vadd.f32 %v5829, %v5742
        %v5862 = vadd.f32 %v5830, %v5745
        %v5863 = vadd.f32 %v5831, %v5747
        %v5864 = vadd.f32 %v5832, %v5750
        %v5865 = vadd.f32 %v5833, %v5752
        %v5866 = vxor.u32 %v5834, 2147483648
        %v5867 = vxor.u32 %v5835, 2147483648
        %v5868 = vxor.u32 %v5836, 2147483648
        %v5869 = vxor.u32 %v5837, 2147483648
        %v5870 = vxor.u32 %v5838, 2147483648
        %v5871 = vxor.u32 %v5839, 2147483648
        %v5872 = vxor.u32 %v5840, 2147483648
        %v5873 = vxor.u32 %v5841, 2147483648
        %v5874 = vxor.u32 %v5842, 2147483648
        %v5875 = vxor.u32 %v5843, 2147483648
        %v5876 = vxor.u32 %v5844, 2147483648
        %v5877 = vxor.u32 %v5845, 2147483648
        %v5878 = vxor.u32 %v5846, 2147483648
        %v5879 = vxor.u32 %v5847, 2147483648
        %v5880 = vxor.u32 %v5848, 2147483648
        %v5881 = vxor.u32 %v5849, 2147483648
        %v5882 = vxor.u32 %v5850, 2147483648
        %v5883 = vxor.u32 %v5851, 2147483648
        %v5884 = vxor.u32 %v5852, 2147483648
        %v5885 = vxor.u32 %v5853, 2147483648
        %v5886 = vxor.u32 %v5854, 2147483648
        %v5887 = vxor.u32 %v5855, 2147483648
        %v5888 = vxor.u32 %v5856, 2147483648
        %v5889 = vxor.u32 %v5857, 2147483648
        %v5890 = vxor.u32 %v5858, 2147483648
        %v5891 = vxor.u32 %v5859, 2147483648
        %v5892 = vxor.u32 %v5860, 2147483648
        %v5893 = vxor.u32 %v5861, 2147483648
        %v5894 = vxor.u32 %v5862, 2147483648
        %v5895 = vxor.u32 %v5863, 2147483648
        %v5896 = vxor.u32 %v5864, 2147483648
        %v5897 = vxor.u32 %v5865, 2147483648
        %v5898 = vmul.f32 %v5866, 1.442695
        %v5899 = vpow.pop %v5898
        %v5900 = vmul.f32 %v5867, 1.442695
        %v5901 = vpow.pop %v5900
        %v5902 = vmul.f32 %v5868, 1.442695
        %v5903 = vpow.pop %v5902
        %v5904 = vmul.f32 %v5869, 1.442695
        %v5905 = vpow.pop %v5904
        %v5906 = vmul.f32 %v5870, 1.442695
        %v5907 = vpow.pop %v5906
        %v5908 = vmul.f32 %v5871, 1.442695
        %v5909 = vpow.pop %v5908
        %v5910 = vmul.f32 %v5872, 1.442695
        %v5911 = vpow.pop %v5910
        %v5912 = vmul.f32 %v5873, 1.442695
        %v5913 = vpow.pop %v5912
        %v5914 = vmul.f32 %v5874, 1.442695
        %v5915 = vpow.pop %v5914
        %v5916 = vmul.f32 %v5875, 1.442695
        %v5917 = vpow.pop %v5916
        %v5918 = vmul.f32 %v5876, 1.442695
        %v5919 = vpow.pop %v5918
        %v5920 = vmul.f32 %v5877, 1.442695
        %v5921 = vpow.pop %v5920
        %v5922 = vmul.f32 %v5878, 1.442695
        %v5923 = vpow.pop %v5922
        %v5924 = vmul.f32 %v5879, 1.442695
        %v5925 = vpow.pop %v5924
        %v5926 = vmul.f32 %v5880, 1.442695
        %v5927 = vpow.pop %v5926
        %v5928 = vmul.f32 %v5881, 1.442695
        %v5929 = vpow.pop %v5928
        %v5930 = vmul.f32 %v5882, 1.442695
        %v5931 = vpow.pop %v5930
        %v5932 = vmul.f32 %v5883, 1.442695
        %v5933 = vpow.pop %v5932
        %v5934 = vmul.f32 %v5884, 1.442695
        %v5935 = vpow.pop %v5934
        %v5936 = vmul.f32 %v5885, 1.442695
        %v5937 = vpow.pop %v5936
        %v5938 = vmul.f32 %v5886, 1.442695
        %v5939 = vpow.pop %v5938
        %v5940 = vmul.f32 %v5887, 1.442695
        %v5941 = vpow.pop %v5940
        %v5942 = vmul.f32 %v5888, 1.442695
        %v5943 = vpow.pop %v5942
        %v5944 = vmul.f32 %v5889, 1.442695
        %v5945 = vpow.pop %v5944
        %v5946 = vmul.f32 %v5890, 1.442695
        %v5947 = vpow.pop %v5946
        %v5948 = vmul.f32 %v5891, 1.442695
        %v5949 = vpow.pop %v5948
        %v5950 = vmul.f32 %v5892, 1.442695
        %v5951 = vpow.pop %v5950
        %v5952 = vmul.f32 %v5893, 1.442695
        %v5953 = vpow.pop %v5952
        %v5954 = vmul.f32 %v5894, 1.442695
        %v5955 = vpow.pop %v5954
        %v5956 = vmul.f32 %v5895, 1.442695
        %v5957 = vpow.pop %v5956
        %v5958 = vmul.f32 %v5896, 1.442695
        %v5959 = vpow.pop %v5958
        %v5960 = vmul.f32 %v5897, 1.442695
        %v5961 = vpow.pop %v5960
        %v5962 = vadd.f32 %v5899, 1.0
        %v5963 = vadd.f32 %v5901, 1.0
        %v5964 = vadd.f32 %v5903, 1.0
        %v5965 = vadd.f32 %v5905, 1.0
        %v5966 = vadd.f32 %v5907, 1.0
        %v5967 = vadd.f32 %v5909, 1.0
        %v5968 = vadd.f32 %v5911, 1.0
        %v5969 = vadd.f32 %v5913, 1.0
        %v5970 = vadd.f32 %v5915, 1.0
        %v5971 = vadd.f32 %v5917, 1.0
        %v5972 = vadd.f32 %v5919, 1.0
        %v5973 = vadd.f32 %v5921, 1.0
        %v5974 = vadd.f32 %v5923, 1.0
        %v5975 = vadd.f32 %v5925, 1.0
        %v5976 = vadd.f32 %v5927, 1.0
        %v5977 = vadd.f32 %v5929, 1.0
        %v5978 = vadd.f32 %v5931, 1.0
        %v5979 = vadd.f32 %v5933, 1.0
        %v5980 = vadd.f32 %v5935, 1.0
        %v5981 = vadd.f32 %v5937, 1.0
        %v5982 = vadd.f32 %v5939, 1.0
        %v5983 = vadd.f32 %v5941, 1.0
        %v5984 = vadd.f32 %v5943, 1.0
        %v5985 = vadd.f32 %v5945, 1.0
        %v5986 = vadd.f32 %v5947, 1.0
        %v5987 = vadd.f32 %v5949, 1.0
        %v5988 = vadd.f32 %v5951, 1.0
        %v5989 = vadd.f32 %v5953, 1.0
        %v5990 = vadd.f32 %v5955, 1.0
        %v5991 = vadd.f32 %v5957, 1.0
        %v5992 = vadd.f32 %v5959, 1.0
        %v5993 = vadd.f32 %v5961, 1.0
        %v5994 = vrcp.pop %v5962
        %v5995 = vmul.f32 %v5962, %v5994
        %v5996 = vsub.f32 1.0, %v5995
        %v5997 = vmul.f32 %v5994, %v5996
        %v5998 = vadd.f32 %v5994, %v5997
        %vm5999 = vweird.f32 %v5962
        %vm6000 = vweird.f32 %v5994
        %vm6001 = vmor %vm5999, %vm6000
        %v6002 = vsel %vm6001, %v5994, %v5998
        %v6003 = vand.u32 2147483647, %v5962
        %vm6004 = vcmp.eq.f32.partialorder %v6003, 8.507059e+37
        %v6005 = vand.u32 %v5962, 2147483648
        %v6006 = vor.u32 1.1754944e-38, %v6005
        %v6007 = vsel %vm6004, %v6006, %v6002
        %v6008 = vmul.f32 1.0, %v6007
        %v6009 = vrcp.pop %v5963
        %v6010 = vmul.f32 %v5963, %v6009
        %v6011 = vsub.f32 1.0, %v6010
        %v6012 = vmul.f32 %v6009, %v6011
        %v6013 = vadd.f32 %v6009, %v6012
        %vm6014 = vweird.f32 %v5963
        %vm6015 = vweird.f32 %v6009
        %vm6016 = vmor %vm6014, %vm6015
        %v6017 = vsel %vm6016, %v6009, %v6013
        %v6018 = vand.u32 2147483647, %v5963
        %vm6019 = vcmp.eq.f32.partialorder %v6018, 8.507059e+37
        %v6020 = vand.u32 %v5963, 2147483648
        %v6021 = vor.u32 1.1754944e-38, %v6020
        %v6022 = vsel %vm6019, %v6021, %v6017
        %v6023 = vmul.f32 1.0, %v6022
        %v6024 = vrcp.pop %v5964
        %v6025 = vmul.f32 %v5964, %v6024
        %v6026 = vsub.f32 1.0, %v6025
        %v6027 = vmul.f32 %v6024, %v6026
        %v6028 = vadd.f32 %v6024, %v6027
        %vm6029 = vweird.f32 %v5964
        %vm6030 = vweird.f32 %v6024
        %vm6031 = vmor %vm6029, %vm6030
        %v6032 = vsel %vm6031, %v6024, %v6028
        %v6033 = vand.u32 2147483647, %v5964
        %vm6034 = vcmp.eq.f32.partialorder %v6033, 8.507059e+37
        %v6035 = vand.u32 %v5964, 2147483648
        %v6036 = vor.u32 1.1754944e-38, %v6035
        %v6037 = vsel %vm6034, %v6036, %v6032
        %v6038 = vmul.f32 1.0, %v6037
        %v6039 = vrcp.pop %v5965
        %v6040 = vmul.f32 %v5965, %v6039
        %v6041 = vsub.f32 1.0, %v6040
        %v6042 = vmul.f32 %v6039, %v6041
        %v6043 = vadd.f32 %v6039, %v6042
        %vm6044 = vweird.f32 %v5965
        %vm6045 = vweird.f32 %v6039
        %vm6046 = vmor %vm6044, %vm6045
        %v6047 = vsel %vm6046, %v6039, %v6043
        %v6048 = vand.u32 2147483647, %v5965
        %vm6049 = vcmp.eq.f32.partialorder %v6048, 8.507059e+37
        %v6050 = vand.u32 %v5965, 2147483648
        %v6051 = vor.u32 1.1754944e-38, %v6050
        %v6052 = vsel %vm6049, %v6051, %v6047
        %v6053 = vmul.f32 1.0, %v6052
        %v6054 = vrcp.pop %v5966
        %v6055 = vmul.f32 %v5966, %v6054
        %v6056 = vsub.f32 1.0, %v6055
        %v6057 = vmul.f32 %v6054, %v6056
        %v6058 = vadd.f32 %v6054, %v6057
        %vm6059 = vweird.f32 %v5966
        %vm6060 = vweird.f32 %v6054
        %vm6061 = vmor %vm6059, %vm6060
        %v6062 = vsel %vm6061, %v6054, %v6058
        %v6063 = vand.u32 2147483647, %v5966
        %vm6064 = vcmp.eq.f32.partialorder %v6063, 8.507059e+37
        %v6065 = vand.u32 %v5966, 2147483648
        %v6066 = vor.u32 1.1754944e-38, %v6065
        %v6067 = vsel %vm6064, %v6066, %v6062
        %v6068 = vmul.f32 1.0, %v6067
        %v6069 = vrcp.pop %v5967
        %v6070 = vmul.f32 %v5967, %v6069
        %v6071 = vsub.f32 1.0, %v6070
        %v6072 = vmul.f32 %v6069, %v6071
        %v6073 = vadd.f32 %v6069, %v6072
        %vm6074 = vweird.f32 %v5967
        %vm6075 = vweird.f32 %v6069
        %vm6076 = vmor %vm6074, %vm6075
        %v6077 = vsel %vm6076, %v6069, %v6073
        %v6078 = vand.u32 2147483647, %v5967
        %vm6079 = vcmp.eq.f32.partialorder %v6078, 8.507059e+37
        %v6080 = vand.u32 %v5967, 2147483648
        %v6081 = vor.u32 1.1754944e-38, %v6080
        %v6082 = vsel %vm6079, %v6081, %v6077
        %v6083 = vmul.f32 1.0, %v6082
        %v6084 = vrcp.pop %v5968
        %v6085 = vmul.f32 %v5968, %v6084
        %v6086 = vsub.f32 1.0, %v6085
        %v6087 = vmul.f32 %v6084, %v6086
        %v6088 = vadd.f32 %v6084, %v6087
        %vm6089 = vweird.f32 %v5968
        %vm6090 = vweird.f32 %v6084
        %vm6091 = vmor %vm6089, %vm6090
        %v6092 = vsel %vm6091, %v6084, %v6088
        %v6093 = vand.u32 2147483647, %v5968
        %vm6094 = vcmp.eq.f32.partialorder %v6093, 8.507059e+37
        %v6095 = vand.u32 %v5968, 2147483648
        %v6096 = vor.u32 1.1754944e-38, %v6095
        %v6097 = vsel %vm6094, %v6096, %v6092
        %v6098 = vmul.f32 1.0, %v6097
        %v6099 = vrcp.pop %v5969
        %v6100 = vmul.f32 %v5969, %v6099
        %v6101 = vsub.f32 1.0, %v6100
        %v6102 = vmul.f32 %v6099, %v6101
        %v6103 = vadd.f32 %v6099, %v6102
        %vm6104 = vweird.f32 %v5969
        %vm6105 = vweird.f32 %v6099
        %vm6106 = vmor %vm6104, %vm6105
        %v6107 = vsel %vm6106, %v6099, %v6103
        %v6108 = vand.u32 2147483647, %v5969
        %vm6109 = vcmp.eq.f32.partialorder %v6108, 8.507059e+37
        %v6110 = vand.u32 %v5969, 2147483648
        %v6111 = vor.u32 1.1754944e-38, %v6110
        %v6112 = vsel %vm6109, %v6111, %v6107
        %v6113 = vmul.f32 1.0, %v6112
        %v6114 = vrcp.pop %v5970
        %v6115 = vmul.f32 %v5970, %v6114
        %v6116 = vsub.f32 1.0, %v6115
        %v6117 = vmul.f32 %v6114, %v6116
        %v6118 = vadd.f32 %v6114, %v6117
        %vm6119 = vweird.f32 %v5970
        %vm6120 = vweird.f32 %v6114
        %vm6121 = vmor %vm6119, %vm6120
        %v6122 = vsel %vm6121, %v6114, %v6118
        %v6123 = vand.u32 2147483647, %v5970
        %vm6124 = vcmp.eq.f32.partialorder %v6123, 8.507059e+37
        %v6125 = vand.u32 %v5970, 2147483648
        %v6126 = vor.u32 1.1754944e-38, %v6125
        %v6127 = vsel %vm6124, %v6126, %v6122
        %v6128 = vmul.f32 1.0, %v6127
        %v6129 = vrcp.pop %v5971
        %v6130 = vmul.f32 %v5971, %v6129
        %v6131 = vsub.f32 1.0, %v6130
        %v6132 = vmul.f32 %v6129, %v6131
        %v6133 = vadd.f32 %v6129, %v6132
        %vm6134 = vweird.f32 %v5971
        %vm6135 = vweird.f32 %v6129
        %vm6136 = vmor %vm6134, %vm6135
        %v6137 = vsel %vm6136, %v6129, %v6133
        %v6138 = vand.u32 2147483647, %v5971
        %vm6139 = vcmp.eq.f32.partialorder %v6138, 8.507059e+37
        %v6140 = vand.u32 %v5971, 2147483648
        %v6141 = vor.u32 1.1754944e-38, %v6140
        %v6142 = vsel %vm6139, %v6141, %v6137
        %v6143 = vmul.f32 1.0, %v6142
        %v6144 = vrcp.pop %v5972
        %v6145 = vmul.f32 %v5972, %v6144
        %v6146 = vsub.f32 1.0, %v6145
        %v6147 = vmul.f32 %v6144, %v6146
        %v6148 = vadd.f32 %v6144, %v6147
        %vm6149 = vweird.f32 %v5972
        %vm6150 = vweird.f32 %v6144
        %vm6151 = vmor %vm6149, %vm6150
        %v6152 = vsel %vm6151, %v6144, %v6148
        %v6153 = vand.u32 2147483647, %v5972
        %vm6154 = vcmp.eq.f32.partialorder %v6153, 8.507059e+37
        %v6155 = vand.u32 %v5972, 2147483648
        %v6156 = vor.u32 1.1754944e-38, %v6155
        %v6157 = vsel %vm6154, %v6156, %v6152
        %v6158 = vmul.f32 1.0, %v6157
        %v6159 = vrcp.pop %v5973
        %v6160 = vmul.f32 %v5973, %v6159
        %v6161 = vsub.f32 1.0, %v6160
        %v6162 = vmul.f32 %v6159, %v6161
        %v6163 = vadd.f32 %v6159, %v6162
        %vm6164 = vweird.f32 %v5973
        %vm6165 = vweird.f32 %v6159
        %vm6166 = vmor %vm6164, %vm6165
        %v6167 = vsel %vm6166, %v6159, %v6163
        %v6168 = vand.u32 2147483647, %v5973
        %vm6169 = vcmp.eq.f32.partialorder %v6168, 8.507059e+37
        %v6170 = vand.u32 %v5973, 2147483648
        %v6171 = vor.u32 1.1754944e-38, %v6170
        %v6172 = vsel %vm6169, %v6171, %v6167
        %v6173 = vmul.f32 1.0, %v6172
        %v6174 = vrcp.pop %v5974
        %v6175 = vmul.f32 %v5974, %v6174
        %v6176 = vsub.f32 1.0, %v6175
        %v6177 = vmul.f32 %v6174, %v6176
        %v6178 = vadd.f32 %v6174, %v6177
        %vm6179 = vweird.f32 %v5974
        %vm6180 = vweird.f32 %v6174
        %vm6181 = vmor %vm6179, %vm6180
        %v6182 = vsel %vm6181, %v6174, %v6178
        %v6183 = vand.u32 2147483647, %v5974
        %vm6184 = vcmp.eq.f32.partialorder %v6183, 8.507059e+37
        %v6185 = vand.u32 %v5974, 2147483648
        %v6186 = vor.u32 1.1754944e-38, %v6185
        %v6187 = vsel %vm6184, %v6186, %v6182
        %v6188 = vmul.f32 1.0, %v6187
        %v6189 = vrcp.pop %v5975
        %v6190 = vmul.f32 %v5975, %v6189
        %v6191 = vsub.f32 1.0, %v6190
        %v6192 = vmul.f32 %v6189, %v6191
        %v6193 = vadd.f32 %v6189, %v6192
        %vm6194 = vweird.f32 %v5975
        %vm6195 = vweird.f32 %v6189
        %vm6196 = vmor %vm6194, %vm6195
        %v6197 = vsel %vm6196, %v6189, %v6193
        %v6198 = vand.u32 2147483647, %v5975
        %vm6199 = vcmp.eq.f32.partialorder %v6198, 8.507059e+37
        %v6200 = vand.u32 %v5975, 2147483648
        %v6201 = vor.u32 1.1754944e-38, %v6200
        %v6202 = vsel %vm6199, %v6201, %v6197
        %v6203 = vmul.f32 1.0, %v6202
        %v6204 = vrcp.pop %v5976
        %v6205 = vmul.f32 %v5976, %v6204
        %v6206 = vsub.f32 1.0, %v6205
        %v6207 = vmul.f32 %v6204, %v6206
        %v6208 = vadd.f32 %v6204, %v6207
        %vm6209 = vweird.f32 %v5976
        %vm6210 = vweird.f32 %v6204
        %vm6211 = vmor %vm6209, %vm6210
        %v6212 = vsel %vm6211, %v6204, %v6208
        %v6213 = vand.u32 2147483647, %v5976
        %vm6214 = vcmp.eq.f32.partialorder %v6213, 8.507059e+37
        %v6215 = vand.u32 %v5976, 2147483648
        %v6216 = vor.u32 1.1754944e-38, %v6215
        %v6217 = vsel %vm6214, %v6216, %v6212
        %v6218 = vmul.f32 1.0, %v6217
        %v6219 = vrcp.pop %v5977
        %v6220 = vmul.f32 %v5977, %v6219
        %v6221 = vsub.f32 1.0, %v6220
        %v6222 = vmul.f32 %v6219, %v6221
        %v6223 = vadd.f32 %v6219, %v6222
        %vm6224 = vweird.f32 %v5977
        %vm6225 = vweird.f32 %v6219
        %vm6226 = vmor %vm6224, %vm6225
        %v6227 = vsel %vm6226, %v6219, %v6223
        %v6228 = vand.u32 2147483647, %v5977
        %vm6229 = vcmp.eq.f32.partialorder %v6228, 8.507059e+37
        %v6230 = vand.u32 %v5977, 2147483648
        %v6231 = vor.u32 1.1754944e-38, %v6230
        %v6232 = vsel %vm6229, %v6231, %v6227
        %v6233 = vmul.f32 1.0, %v6232
        %v6234 = vrcp.pop %v5978
        %v6235 = vmul.f32 %v5978, %v6234
        %v6236 = vsub.f32 1.0, %v6235
        %v6237 = vmul.f32 %v6234, %v6236
        %v6238 = vadd.f32 %v6234, %v6237
        %vm6239 = vweird.f32 %v5978
        %vm6240 = vweird.f32 %v6234
        %vm6241 = vmor %vm6239, %vm6240
        %v6242 = vsel %vm6241, %v6234, %v6238
        %v6243 = vand.u32 2147483647, %v5978
        %vm6244 = vcmp.eq.f32.partialorder %v6243, 8.507059e+37
        %v6245 = vand.u32 %v5978, 2147483648
        %v6246 = vor.u32 1.1754944e-38, %v6245
        %v6247 = vsel %vm6244, %v6246, %v6242
        %v6248 = vmul.f32 1.0, %v6247
        %v6249 = vrcp.pop %v5979
        %v6250 = vmul.f32 %v5979, %v6249
        %v6251 = vsub.f32 1.0, %v6250
        %v6252 = vmul.f32 %v6249, %v6251
        %v6253 = vadd.f32 %v6249, %v6252
        %vm6254 = vweird.f32 %v5979
        %vm6255 = vweird.f32 %v6249
        %vm6256 = vmor %vm6254, %vm6255
        %v6257 = vsel %vm6256, %v6249, %v6253
        %v6258 = vand.u32 2147483647, %v5979
        %vm6259 = vcmp.eq.f32.partialorder %v6258, 8.507059e+37
        %v6260 = vand.u32 %v5979, 2147483648
        %v6261 = vor.u32 1.1754944e-38, %v6260
        %v6262 = vsel %vm6259, %v6261, %v6257
        %v6263 = vmul.f32 1.0, %v6262
        %v6264 = vrcp.pop %v5980
        %v6265 = vmul.f32 %v5980, %v6264
        %v6266 = vsub.f32 1.0, %v6265
        %v6267 = vmul.f32 %v6264, %v6266
        %v6268 = vadd.f32 %v6264, %v6267
        %vm6269 = vweird.f32 %v5980
        %vm6270 = vweird.f32 %v6264
        %vm6271 = vmor %vm6269, %vm6270
        %v6272 = vsel %vm6271, %v6264, %v6268
        %v6273 = vand.u32 2147483647, %v5980
        %vm6274 = vcmp.eq.f32.partialorder %v6273, 8.507059e+37
        %v6275 = vand.u32 %v5980, 2147483648
        %v6276 = vor.u32 1.1754944e-38, %v6275
        %v6277 = vsel %vm6274, %v6276, %v6272
        %v6278 = vmul.f32 1.0, %v6277
        %v6279 = vrcp.pop %v5981
        %v6280 = vmul.f32 %v5981, %v6279
        %v6281 = vsub.f32 1.0, %v6280
        %v6282 = vmul.f32 %v6279, %v6281
        %v6283 = vadd.f32 %v6279, %v6282
        %vm6284 = vweird.f32 %v5981
        %vm6285 = vweird.f32 %v6279
        %vm6286 = vmor %vm6284, %vm6285
        %v6287 = vsel %vm6286, %v6279, %v6283
        %v6288 = vand.u32 2147483647, %v5981
        %vm6289 = vcmp.eq.f32.partialorder %v6288, 8.507059e+37
        %v6290 = vand.u32 %v5981, 2147483648
        %v6291 = vor.u32 1.1754944e-38, %v6290
        %v6292 = vsel %vm6289, %v6291, %v6287
        %v6293 = vmul.f32 1.0, %v6292
        %v6294 = vrcp.pop %v5982
        %v6295 = vmul.f32 %v5982, %v6294
        %v6296 = vsub.f32 1.0, %v6295
        %v6297 = vmul.f32 %v6294, %v6296
        %v6298 = vadd.f32 %v6294, %v6297
        %vm6299 = vweird.f32 %v5982
        %vm6300 = vweird.f32 %v6294
        %vm6301 = vmor %vm6299, %vm6300
        %v6302 = vsel %vm6301, %v6294, %v6298
        %v6303 = vand.u32 2147483647, %v5982
        %vm6304 = vcmp.eq.f32.partialorder %v6303, 8.507059e+37
        %v6305 = vand.u32 %v5982, 2147483648
        %v6306 = vor.u32 1.1754944e-38, %v6305
        %v6307 = vsel %vm6304, %v6306, %v6302
        %v6308 = vmul.f32 1.0, %v6307
        %v6309 = vrcp.pop %v5983
        %v6310 = vmul.f32 %v5983, %v6309
        %v6311 = vsub.f32 1.0, %v6310
        %v6312 = vmul.f32 %v6309, %v6311
        %v6313 = vadd.f32 %v6309, %v6312
        %vm6314 = vweird.f32 %v5983
        %vm6315 = vweird.f32 %v6309
        %vm6316 = vmor %vm6314, %vm6315
        %v6317 = vsel %vm6316, %v6309, %v6313
        %v6318 = vand.u32 2147483647, %v5983
        %vm6319 = vcmp.eq.f32.partialorder %v6318, 8.507059e+37
        %v6320 = vand.u32 %v5983, 2147483648
        %v6321 = vor.u32 1.1754944e-38, %v6320
        %v6322 = vsel %vm6319, %v6321, %v6317
        %v6323 = vmul.f32 1.0, %v6322
        %v6324 = vrcp.pop %v5984
        %v6325 = vmul.f32 %v5984, %v6324
        %v6326 = vsub.f32 1.0, %v6325
        %v6327 = vmul.f32 %v6324, %v6326
        %v6328 = vadd.f32 %v6324, %v6327
        %vm6329 = vweird.f32 %v5984
        %vm6330 = vweird.f32 %v6324
        %vm6331 = vmor %vm6329, %vm6330
        %v6332 = vsel %vm6331, %v6324, %v6328
        %v6333 = vand.u32 2147483647, %v5984
        %vm6334 = vcmp.eq.f32.partialorder %v6333, 8.507059e+37
        %v6335 = vand.u32 %v5984, 2147483648
        %v6336 = vor.u32 1.1754944e-38, %v6335
        %v6337 = vsel %vm6334, %v6336, %v6332
        %v6338 = vmul.f32 1.0, %v6337
        %v6339 = vrcp.pop %v5985
        %v6340 = vmul.f32 %v5985, %v6339
        %v6341 = vsub.f32 1.0, %v6340
        %v6342 = vmul.f32 %v6339, %v6341
        %v6343 = vadd.f32 %v6339, %v6342
        %vm6344 = vweird.f32 %v5985
        %vm6345 = vweird.f32 %v6339
        %vm6346 = vmor %vm6344, %vm6345
        %v6347 = vsel %vm6346, %v6339, %v6343
        %v6348 = vand.u32 2147483647, %v5985
        %vm6349 = vcmp.eq.f32.partialorder %v6348, 8.507059e+37
        %v6350 = vand.u32 %v5985, 2147483648
        %v6351 = vor.u32 1.1754944e-38, %v6350
        %v6352 = vsel %vm6349, %v6351, %v6347
        %v6353 = vmul.f32 1.0, %v6352
        %v6354 = vrcp.pop %v5986
        %v6355 = vmul.f32 %v5986, %v6354
        %v6356 = vsub.f32 1.0, %v6355
        %v6357 = vmul.f32 %v6354, %v6356
        %v6358 = vadd.f32 %v6354, %v6357
        %vm6359 = vweird.f32 %v5986
        %vm6360 = vweird.f32 %v6354
        %vm6361 = vmor %vm6359, %vm6360
        %v6362 = vsel %vm6361, %v6354, %v6358
        %v6363 = vand.u32 2147483647, %v5986
        %vm6364 = vcmp.eq.f32.partialorder %v6363, 8.507059e+37
        %v6365 = vand.u32 %v5986, 2147483648
        %v6366 = vor.u32 1.1754944e-38, %v6365
        %v6367 = vsel %vm6364, %v6366, %v6362
        %v6368 = vmul.f32 1.0, %v6367
        %v6369 = vrcp.pop %v5987
        %v6370 = vmul.f32 %v5987, %v6369
        %v6371 = vsub.f32 1.0, %v6370
        %v6372 = vmul.f32 %v6369, %v6371
        %v6373 = vadd.f32 %v6369, %v6372
        %vm6374 = vweird.f32 %v5987
        %vm6375 = vweird.f32 %v6369
        %vm6376 = vmor %vm6374, %vm6375
        %v6377 = vsel %vm6376, %v6369, %v6373
        %v6378 = vand.u32 2147483647, %v5987
        %vm6379 = vcmp.eq.f32.partialorder %v6378, 8.507059e+37
        %v6380 = vand.u32 %v5987, 2147483648
        %v6381 = vor.u32 1.1754944e-38, %v6380
        %v6382 = vsel %vm6379, %v6381, %v6377
        %v6383 = vmul.f32 1.0, %v6382
        %v6384 = vrcp.pop %v5988
        %v6385 = vmul.f32 %v5988, %v6384
        %v6386 = vsub.f32 1.0, %v6385
        %v6387 = vmul.f32 %v6384, %v6386
        %v6388 = vadd.f32 %v6384, %v6387
        %vm6389 = vweird.f32 %v5988
        %vm6390 = vweird.f32 %v6384
        %vm6391 = vmor %vm6389, %vm6390
        %v6392 = vsel %vm6391, %v6384, %v6388
        %v6393 = vand.u32 2147483647, %v5988
        %vm6394 = vcmp.eq.f32.partialorder %v6393, 8.507059e+37
        %v6395 = vand.u32 %v5988, 2147483648
        %v6396 = vor.u32 1.1754944e-38, %v6395
        %v6397 = vsel %vm6394, %v6396, %v6392
        %v6398 = vmul.f32 1.0, %v6397
        %v6399 = vrcp.pop %v5989
        %v6400 = vmul.f32 %v5989, %v6399
        %v6401 = vsub.f32 1.0, %v6400
        %v6402 = vmul.f32 %v6399, %v6401
        %v6403 = vadd.f32 %v6399, %v6402
        %vm6404 = vweird.f32 %v5989
        %vm6405 = vweird.f32 %v6399
        %vm6406 = vmor %vm6404, %vm6405
        %v6407 = vsel %vm6406, %v6399, %v6403
        %v6408 = vand.u32 2147483647, %v5989
        %vm6409 = vcmp.eq.f32.partialorder %v6408, 8.507059e+37
        %v6410 = vand.u32 %v5989, 2147483648
        %v6411 = vor.u32 1.1754944e-38, %v6410
        %v6412 = vsel %vm6409, %v6411, %v6407
        %v6413 = vmul.f32 1.0, %v6412
        %v6414 = vrcp.pop %v5990
        %v6415 = vmul.f32 %v5990, %v6414
        %v6416 = vsub.f32 1.0, %v6415
        %v6417 = vmul.f32 %v6414, %v6416
        %v6418 = vadd.f32 %v6414, %v6417
        %vm6419 = vweird.f32 %v5990
        %vm6420 = vweird.f32 %v6414
        %vm6421 = vmor %vm6419, %vm6420
        %v6422 = vsel %vm6421, %v6414, %v6418
        %v6423 = vand.u32 2147483647, %v5990
        %vm6424 = vcmp.eq.f32.partialorder %v6423, 8.507059e+37
        %v6425 = vand.u32 %v5990, 2147483648
        %v6426 = vor.u32 1.1754944e-38, %v6425
        %v6427 = vsel %vm6424, %v6426, %v6422
        %v6428 = vmul.f32 1.0, %v6427
        %v6429 = vrcp.pop %v5991
        %v6430 = vmul.f32 %v5991, %v6429
        %v6431 = vsub.f32 1.0, %v6430
        %v6432 = vmul.f32 %v6429, %v6431
        %v6433 = vadd.f32 %v6429, %v6432
        %vm6434 = vweird.f32 %v5991
        %vm6435 = vweird.f32 %v6429
        %vm6436 = vmor %vm6434, %vm6435
        %v6437 = vsel %vm6436, %v6429, %v6433
        %v6438 = vand.u32 2147483647, %v5991
        %vm6439 = vcmp.eq.f32.partialorder %v6438, 8.507059e+37
        %v6440 = vand.u32 %v5991, 2147483648
        %v6441 = vor.u32 1.1754944e-38, %v6440
        %v6442 = vsel %vm6439, %v6441, %v6437
        %v6443 = vmul.f32 1.0, %v6442
        %v6444 = vrcp.pop %v5992
        %v6445 = vmul.f32 %v5992, %v6444
        %v6446 = vsub.f32 1.0, %v6445
        %v6447 = vmul.f32 %v6444, %v6446
        %v6448 = vadd.f32 %v6444, %v6447
        %vm6449 = vweird.f32 %v5992
        %vm6450 = vweird.f32 %v6444
        %vm6451 = vmor %vm6449, %vm6450
        %v6452 = vsel %vm6451, %v6444, %v6448
        %v6453 = vand.u32 2147483647, %v5992
        %vm6454 = vcmp.eq.f32.partialorder %v6453, 8.507059e+37
        %v6455 = vand.u32 %v5992, 2147483648
        %v6456 = vor.u32 1.1754944e-38, %v6455
        %v6457 = vsel %vm6454, %v6456, %v6452
        %v6458 = vmul.f32 1.0, %v6457
        %v6459 = vrcp.pop %v5993
        %v6460 = vmul.f32 %v5993, %v6459
        %v6461 = vsub.f32 1.0, %v6460
        %v6462 = vmul.f32 %v6459, %v6461
        %v6463 = vadd.f32 %v6459, %v6462
        %vm6464 = vweird.f32 %v5993
        %vm6465 = vweird.f32 %v6459
        %vm6466 = vmor %vm6464, %vm6465
        %v6467 = vsel %vm6466, %v6459, %v6463
        %v6468 = vand.u32 2147483647, %v5993
        %vm6469 = vcmp.eq.f32.partialorder %v6468, 8.507059e+37
        %v6470 = vand.u32 %v5993, 2147483648
        %v6471 = vor.u32 1.1754944e-38, %v6470
        %v6472 = vsel %vm6469, %v6471, %v6467
        %v6473 = vmul.f32 1.0, %v6472
        %v6474 = vmul.f32 %v6008, %v1076
        %v6475 = vmul.f32 %v6023, %v1077
        %v6476 = vmul.f32 %v6038, %v1078
        %v6477 = vmul.f32 %v6053, %v1079
        %v6478 = vmul.f32 %v6068, %v1080
        %v6479 = vmul.f32 %v6083, %v1081
        %v6480 = vmul.f32 %v6098, %v1082
        %v6481 = vmul.f32 %v6113, %v1083
        %v6482 = vmul.f32 %v6128, %v1084
        %v6483 = vmul.f32 %v6143, %v1085
        %v6484 = vmul.f32 %v6158, %v1086
        %v6485 = vmul.f32 %v6173, %v1087
        %v6486 = vmul.f32 %v6188, %v1088
        %v6487 = vmul.f32 %v6203, %v1089
        %v6488 = vmul.f32 %v6218, %v1090
        %v6489 = vmul.f32 %v6233, %v1091
        %v6490 = vmul.f32 %v6248, %v1092
        %v6491 = vmul.f32 %v6263, %v1093
        %v6492 = vmul.f32 %v6278, %v1094
        %v6493 = vmul.f32 %v6293, %v1095
        %v6494 = vmul.f32 %v6308, %v1096
        %v6495 = vmul.f32 %v6323, %v1097
        %v6496 = vmul.f32 %v6338, %v1098
        %v6497 = vmul.f32 %v6353, %v1099
        %v6498 = vmul.f32 %v6368, %v1100
        %v6499 = vmul.f32 %v6383, %v1101
        %v6500 = vmul.f32 %v6398, %v1102
        %v6501 = vmul.f32 %v6413, %v1103
        %v6502 = vmul.f32 %v6428, %v1104
        %v6503 = vmul.f32 %v6443, %v1105
        %v6504 = vmul.f32 %v6458, %v1106
        %v6505 = vmul.f32 %v6473, %v1107
        %v6506 = vmul.f32 %v6474, %v5533
        %v6507 = vmul.f32 %v6475, %v5535
        %v6508 = vmul.f32 %v6476, %v5533
        %v6509 = vmul.f32 %v6477, %v5535
        %v6510 = vmul.f32 %v6478, %v5533
        %v6511 = vmul.f32 %v6479, %v5535
        %v6512 = vmul.f32 %v6480, %v5533
        %v6513 = vmul.f32 %v6481, %v5535
        %v6514 = vmul.f32 %v6482, %v5533
        %v6515 = vmul.f32 %v6483, %v5535
        %v6516 = vmul.f32 %v6484, %v5533
        %v6517 = vmul.f32 %v6485, %v5535
        %v6518 = vmul.f32 %v6486, %v5533
        %v6519 = vmul.f32 %v6487, %v5535
        %v6520 = vmul.f32 %v6488, %v5533
        %v6521 = vmul.f32 %v6489, %v5535
        %v6522 = vmul.f32 %v6490, %v5533
        %v6523 = vmul.f32 %v6491, %v5535
        %v6524 = vmul.f32 %v6492, %v5533
        %v6525 = vmul.f32 %v6493, %v5535
        %v6526 = vmul.f32 %v6494, %v5533
        %v6527 = vmul.f32 %v6495, %v5535
        %v6528 = vmul.f32 %v6496, %v5533
        %v6529 = vmul.f32 %v6497, %v5535
        %v6530 = vmul.f32 %v6498, %v5533
        %v6531 = vmul.f32 %v6499, %v5535
        %v6532 = vmul.f32 %v6500, %v5533
        %v6533 = vmul.f32 %v6501, %v5535
        %v6534 = vmul.f32 %v6502, %v5533
        %v6535 = vmul.f32 %v6503, %v5535
        %v6536 = vmul.f32 %v6504, %v5533
        %v6537 = vmul.f32 %v6505, %v5535
        %v6538 = vadd.f32 %v6506, %v6507
        %v6539 = vrot.slane %v6538, 4
        %v6540 = vadd.f32 %v6538, %v6539
        %v6541 = vrot.slane %v6540, 2
        %v6542 = vadd.f32 %v6540, %v6541
        %v6543 = vrot.slane %v6542, 1
        %v6544 = vadd.f32 %v6542, %v6543
        %v6545 = vadd.f32 %v6508, %v6509
        %v6546 = vrot.slane %v6545, 4
        %v6547 = vadd.f32 %v6545, %v6546
        %v6548 = vrot.slane %v6547, 2
        %v6549 = vadd.f32 %v6547, %v6548
        %v6550 = vrot.slane %v6549, 1
        %v6551 = vadd.f32 %v6549, %v6550
        %v6552 = vadd.f32 %v6510, %v6511
        %v6553 = vrot.slane %v6552, 4
        %v6554 = vadd.f32 %v6552, %v6553
        %v6555 = vrot.slane %v6554, 2
        %v6556 = vadd.f32 %v6554, %v6555
        %v6557 = vrot.slane %v6556, 1
        %v6558 = vadd.f32 %v6556, %v6557
        %v6559 = vadd.f32 %v6512, %v6513
        %v6560 = vrot.slane %v6559, 4
        %v6561 = vadd.f32 %v6559, %v6560
        %v6562 = vrot.slane %v6561, 2
        %v6563 = vadd.f32 %v6561, %v6562
        %v6564 = vrot.slane %v6563, 1
        %v6565 = vadd.f32 %v6563, %v6564
        %v6566 = vadd.f32 %v6514, %v6515
        %v6567 = vrot.slane %v6566, 4
        %v6568 = vadd.f32 %v6566, %v6567
        %v6569 = vrot.slane %v6568, 2
        %v6570 = vadd.f32 %v6568, %v6569
        %v6571 = vrot.slane %v6570, 1
        %v6572 = vadd.f32 %v6570, %v6571
        %v6573 = vadd.f32 %v6516, %v6517
        %v6574 = vrot.slane %v6573, 4
        %v6575 = vadd.f32 %v6573, %v6574
        %v6576 = vrot.slane %v6575, 2
        %v6577 = vadd.f32 %v6575, %v6576
        %v6578 = vrot.slane %v6577, 1
        %v6579 = vadd.f32 %v6577, %v6578
        %v6580 = vadd.f32 %v6518, %v6519
        %v6581 = vrot.slane %v6580, 4
        %v6582 = vadd.f32 %v6580, %v6581
        %v6583 = vrot.slane %v6582, 2
        %v6584 = vadd.f32 %v6582, %v6583
        %v6585 = vrot.slane %v6584, 1
        %v6586 = vadd.f32 %v6584, %v6585
        %v6587 = vadd.f32 %v6520, %v6521
        %v6588 = vrot.slane %v6587, 4
        %v6589 = vadd.f32 %v6587, %v6588
        %v6590 = vrot.slane %v6589, 2
        %v6591 = vadd.f32 %v6589, %v6590
        %v6592 = vrot.slane %v6591, 1
        %v6593 = vadd.f32 %v6591, %v6592
        %v6594 = vadd.f32 %v6522, %v6523
        %v6595 = vrot.slane %v6594, 4
        %v6596 = vadd.f32 %v6594, %v6595
        %v6597 = vrot.slane %v6596, 2
        %v6598 = vadd.f32 %v6596, %v6597
        %v6599 = vrot.slane %v6598, 1
        %v6600 = vadd.f32 %v6598, %v6599
        %v6601 = vadd.f32 %v6524, %v6525
        %v6602 = vrot.slane %v6601, 4
        %v6603 = vadd.f32 %v6601, %v6602
        %v6604 = vrot.slane %v6603, 2
        %v6605 = vadd.f32 %v6603, %v6604
        %v6606 = vrot.slane %v6605, 1
        %v6607 = vadd.f32 %v6605, %v6606
        %v6608 = vadd.f32 %v6526, %v6527
        %v6609 = vrot.slane %v6608, 4
        %v6610 = vadd.f32 %v6608, %v6609
        %v6611 = vrot.slane %v6610, 2
        %v6612 = vadd.f32 %v6610, %v6611
        %v6613 = vrot.slane %v6612, 1
        %v6614 = vadd.f32 %v6612, %v6613
        %v6615 = vadd.f32 %v6528, %v6529
        %v6616 = vrot.slane %v6615, 4
        %v6617 = vadd.f32 %v6615, %v6616
        %v6618 = vrot.slane %v6617, 2
        %v6619 = vadd.f32 %v6617, %v6618
        %v6620 = vrot.slane %v6619, 1
        %v6621 = vadd.f32 %v6619, %v6620
        %v6622 = vadd.f32 %v6530, %v6531
        %v6623 = vrot.slane %v6622, 4
        %v6624 = vadd.f32 %v6622, %v6623
        %v6625 = vrot.slane %v6624, 2
        %v6626 = vadd.f32 %v6624, %v6625
        %v6627 = vrot.slane %v6626, 1
        %v6628 = vadd.f32 %v6626, %v6627
        %v6629 = vadd.f32 %v6532, %v6533
        %v6630 = vrot.slane %v6629, 4
        %v6631 = vadd.f32 %v6629, %v6630
        %v6632 = vrot.slane %v6631, 2
        %v6633 = vadd.f32 %v6631, %v6632
        %v6634 = vrot.slane %v6633, 1
        %v6635 = vadd.f32 %v6633, %v6634
        %v6636 = vadd.f32 %v6534, %v6535
        %v6637 = vrot.slane %v6636, 4
        %v6638 = vadd.f32 %v6636, %v6637
        %v6639 = vrot.slane %v6638, 2
        %v6640 = vadd.f32 %v6638, %v6639
        %v6641 = vrot.slane %v6640, 1
        %v6642 = vadd.f32 %v6640, %v6641
        %v6643 = vadd.f32 %v6536, %v6537
        %v6644 = vrot.slane %v6643, 4
        %v6645 = vadd.f32 %v6643, %v6644
        %v6646 = vrot.slane %v6645, 2
        %v6647 = vadd.f32 %v6645, %v6646
        %v6648 = vrot.slane %v6647, 1
        %v6649 = vadd.f32 %v6647, %v6648
        %v6650 = vadd.f32 %v6474, %v6475
        %v6651 = vrot.slane %v6650, 4
        %v6652 = vadd.f32 %v6650, %v6651
        %v6653 = vrot.slane %v6652, 2
        %v6654 = vadd.f32 %v6652, %v6653
        %v6655 = vrot.slane %v6654, 1
        %v6656 = vadd.f32 %v6654, %v6655
        %v6657 = vadd.f32 %v6476, %v6477
        %v6658 = vrot.slane %v6657, 4
        %v6659 = vadd.f32 %v6657, %v6658
        %v6660 = vrot.slane %v6659, 2
        %v6661 = vadd.f32 %v6659, %v6660
        %v6662 = vrot.slane %v6661, 1
        %v6663 = vadd.f32 %v6661, %v6662
        %v6664 = vadd.f32 %v6478, %v6479
        %v6665 = vrot.slane %v6664, 4
        %v6666 = vadd.f32 %v6664, %v6665
        %v6667 = vrot.slane %v6666, 2
        %v6668 = vadd.f32 %v6666, %v6667
        %v6669 = vrot.slane %v6668, 1
        %v6670 = vadd.f32 %v6668, %v6669
        %v6671 = vadd.f32 %v6480, %v6481
        %v6672 = vrot.slane %v6671, 4
        %v6673 = vadd.f32 %v6671, %v6672
        %v6674 = vrot.slane %v6673, 2
        %v6675 = vadd.f32 %v6673, %v6674
        %v6676 = vrot.slane %v6675, 1
        %v6677 = vadd.f32 %v6675, %v6676
        %v6678 = vadd.f32 %v6482, %v6483
        %v6679 = vrot.slane %v6678, 4
        %v6680 = vadd.f32 %v6678, %v6679
        %v6681 = vrot.slane %v6680, 2
        %v6682 = vadd.f32 %v6680, %v6681
        %v6683 = vrot.slane %v6682, 1
        %v6684 = vadd.f32 %v6682, %v6683
        %v6685 = vadd.f32 %v6484, %v6485
        %v6686 = vrot.slane %v6685, 4
        %v6687 = vadd.f32 %v6685, %v6686
        %v6688 = vrot.slane %v6687, 2
        %v6689 = vadd.f32 %v6687, %v6688
        %v6690 = vrot.slane %v6689, 1
        %v6691 = vadd.f32 %v6689, %v6690
        %v6692 = vadd.f32 %v6486, %v6487
        %v6693 = vrot.slane %v6692, 4
        %v6694 = vadd.f32 %v6692, %v6693
        %v6695 = vrot.slane %v6694, 2
        %v6696 = vadd.f32 %v6694, %v6695
        %v6697 = vrot.slane %v6696, 1
        %v6698 = vadd.f32 %v6696, %v6697
        %v6699 = vadd.f32 %v6488, %v6489
        %v6700 = vrot.slane %v6699, 4
        %v6701 = vadd.f32 %v6699, %v6700
        %v6702 = vrot.slane %v6701, 2
        %v6703 = vadd.f32 %v6701, %v6702
        %v6704 = vrot.slane %v6703, 1
        %v6705 = vadd.f32 %v6703, %v6704
        %v6706 = vadd.f32 %v6490, %v6491
        %v6707 = vrot.slane %v6706, 4
        %v6708 = vadd.f32 %v6706, %v6707
        %v6709 = vrot.slane %v6708, 2
        %v6710 = vadd.f32 %v6708, %v6709
        %v6711 = vrot.slane %v6710, 1
        %v6712 = vadd.f32 %v6710, %v6711
        %v6713 = vadd.f32 %v6492, %v6493
        %v6714 = vrot.slane %v6713, 4
        %v6715 = vadd.f32 %v6713, %v6714
        %v6716 = vrot.slane %v6715, 2
        %v6717 = vadd.f32 %v6715, %v6716
        %v6718 = vrot.slane %v6717, 1
        %v6719 = vadd.f32 %v6717, %v6718
        %v6720 = vadd.f32 %v6494, %v6495
        %v6721 = vrot.slane %v6720, 4
        %v6722 = vadd.f32 %v6720, %v6721
        %v6723 = vrot.slane %v6722, 2
        %v6724 = vadd.f32 %v6722, %v6723
        %v6725 = vrot.slane %v6724, 1
        %v6726 = vadd.f32 %v6724, %v6725
        %v6727 = vadd.f32 %v6496, %v6497
        %v6728 = vrot.slane %v6727, 4
        %v6729 = vadd.f32 %v6727, %v6728
        %v6730 = vrot.slane %v6729, 2
        %v6731 = vadd.f32 %v6729, %v6730
        %v6732 = vrot.slane %v6731, 1
        %v6733 = vadd.f32 %v6731, %v6732
        %v6734 = vadd.f32 %v6498, %v6499
        %v6735 = vrot.slane %v6734, 4
        %v6736 = vadd.f32 %v6734, %v6735
        %v6737 = vrot.slane %v6736, 2
        %v6738 = vadd.f32 %v6736, %v6737
        %v6739 = vrot.slane %v6738, 1
        %v6740 = vadd.f32 %v6738, %v6739
        %v6741 = vadd.f32 %v6500, %v6501
        %v6742 = vrot.slane %v6741, 4
        %v6743 = vadd.f32 %v6741, %v6742
        %v6744 = vrot.slane %v6743, 2
        %v6745 = vadd.f32 %v6743, %v6744
        %v6746 = vrot.slane %v6745, 1
        %v6747 = vadd.f32 %v6745, %v6746
        %v6748 = vadd.f32 %v6502, %v6503
        %v6749 = vrot.slane %v6748, 4
        %v6750 = vadd.f32 %v6748, %v6749
        %v6751 = vrot.slane %v6750, 2
        %v6752 = vadd.f32 %v6750, %v6751
        %v6753 = vrot.slane %v6752, 1
        %v6754 = vadd.f32 %v6752, %v6753
        %v6755 = vadd.f32 %v6504, %v6505
        %v6756 = vrot.slane %v6755, 4
        %v6757 = vadd.f32 %v6755, %v6756
        %v6758 = vrot.slane %v6757, 2
        %v6759 = vadd.f32 %v6757, %v6758
        %v6760 = vrot.slane %v6759, 1
        %v6761 = vadd.f32 %v6759, %v6760
        %v6762 = vadd.f32 %v6656, 1e-06
        %v6763 = vadd.f32 %v6663, 1e-06
        %v6764 = vadd.f32 %v6670, 1e-06
        %v6765 = vadd.f32 %v6677, 1e-06
        %v6766 = vadd.f32 %v6684, 1e-06
        %v6767 = vadd.f32 %v6691, 1e-06
        %v6768 = vadd.f32 %v6698, 1e-06
        %v6769 = vadd.f32 %v6705, 1e-06
        %v6770 = vadd.f32 %v6712, 1e-06
        %v6771 = vadd.f32 %v6719, 1e-06
        %v6772 = vadd.f32 %v6726, 1e-06
        %v6773 = vadd.f32 %v6733, 1e-06
        %v6774 = vadd.f32 %v6740, 1e-06
        %v6775 = vadd.f32 %v6747, 1e-06
        %v6776 = vadd.f32 %v6754, 1e-06
        %v6777 = vadd.f32 %v6761, 1e-06
        %v6778 = vrcp.pop %v6762
        %v6779 = vmul.f32 %v6762, %v6778
        %v6780 = vsub.f32 1.0, %v6779
        %v6781 = vmul.f32 %v6778, %v6780
        %v6782 = vadd.f32 %v6778, %v6781
        %vm6783 = vweird.f32 %v6762
        %vm6784 = vweird.f32 %v6778
        %vm6785 = vmor %vm6783, %vm6784
        %v6786 = vsel %vm6785, %v6778, %v6782
        %v6787 = vand.u32 2147483647, %v6762
        %vm6788 = vcmp.eq.f32.partialorder %v6787, 8.507059e+37
        %v6789 = vand.u32 %v6762, 2147483648
        %v6790 = vor.u32 1.1754944e-38, %v6789
        %v6791 = vsel %vm6788, %v6790, %v6786
        %v6792 = vmul.f32 %v6544, %v6791
        %v6793 = vrcp.pop %v6763
        %v6794 = vmul.f32 %v6763, %v6793
        %v6795 = vsub.f32 1.0, %v6794
        %v6796 = vmul.f32 %v6793, %v6795
        %v6797 = vadd.f32 %v6793, %v6796
        %vm6798 = vweird.f32 %v6763
        %vm6799 = vweird.f32 %v6793
        %vm6800 = vmor %vm6798, %vm6799
        %v6801 = vsel %vm6800, %v6793, %v6797
        %v6802 = vand.u32 2147483647, %v6763
        %vm6803 = vcmp.eq.f32.partialorder %v6802, 8.507059e+37
        %v6804 = vand.u32 %v6763, 2147483648
        %v6805 = vor.u32 1.1754944e-38, %v6804
        %v6806 = vsel %vm6803, %v6805, %v6801
        %v6807 = vmul.f32 %v6551, %v6806
        %v6808 = vrcp.pop %v6764
        %v6809 = vmul.f32 %v6764, %v6808
        %v6810 = vsub.f32 1.0, %v6809
        %v6811 = vmul.f32 %v6808, %v6810
        %v6812 = vadd.f32 %v6808, %v6811
        %vm6813 = vweird.f32 %v6764
        %vm6814 = vweird.f32 %v6808
        %vm6815 = vmor %vm6813, %vm6814
        %v6816 = vsel %vm6815, %v6808, %v6812
        %v6817 = vand.u32 2147483647, %v6764
        %vm6818 = vcmp.eq.f32.partialorder %v6817, 8.507059e+37
        %v6819 = vand.u32 %v6764, 2147483648
        %v6820 = vor.u32 1.1754944e-38, %v6819
        %v6821 = vsel %vm6818, %v6820, %v6816
        %v6822 = vmul.f32 %v6558, %v6821
        %v6823 = vrcp.pop %v6765
        %v6824 = vmul.f32 %v6765, %v6823
        %v6825 = vsub.f32 1.0, %v6824
        %v6826 = vmul.f32 %v6823, %v6825
        %v6827 = vadd.f32 %v6823, %v6826
        %vm6828 = vweird.f32 %v6765
        %vm6829 = vweird.f32 %v6823
        %vm6830 = vmor %vm6828, %vm6829
        %v6831 = vsel %vm6830, %v6823, %v6827
        %v6832 = vand.u32 2147483647, %v6765
        %vm6833 = vcmp.eq.f32.partialorder %v6832, 8.507059e+37
        %v6834 = vand.u32 %v6765, 2147483648
        %v6835 = vor.u32 1.1754944e-38, %v6834
        %v6836 = vsel %vm6833, %v6835, %v6831
        %v6837 = vmul.f32 %v6565, %v6836
        %v6838 = vrcp.pop %v6766
        %v6839 = vmul.f32 %v6766, %v6838
        %v6840 = vsub.f32 1.0, %v6839
        %v6841 = vmul.f32 %v6838, %v6840
        %v6842 = vadd.f32 %v6838, %v6841
        %vm6843 = vweird.f32 %v6766
        %vm6844 = vweird.f32 %v6838
        %vm6845 = vmor %vm6843, %vm6844
        %v6846 = vsel %vm6845, %v6838, %v6842
        %v6847 = vand.u32 2147483647, %v6766
        %vm6848 = vcmp.eq.f32.partialorder %v6847, 8.507059e+37
        %v6849 = vand.u32 %v6766, 2147483648
        %v6850 = vor.u32 1.1754944e-38, %v6849
        %v6851 = vsel %vm6848, %v6850, %v6846
        %v6852 = vmul.f32 %v6572, %v6851
        %v6853 = vrcp.pop %v6767
        %v6854 = vmul.f32 %v6767, %v6853
        %v6855 = vsub.f32 1.0, %v6854
        %v6856 = vmul.f32 %v6853, %v6855
        %v6857 = vadd.f32 %v6853, %v6856
        %vm6858 = vweird.f32 %v6767
        %vm6859 = vweird.f32 %v6853
        %vm6860 = vmor %vm6858, %vm6859
        %v6861 = vsel %vm6860, %v6853, %v6857
        %v6862 = vand.u32 2147483647, %v6767
        %vm6863 = vcmp.eq.f32.partialorder %v6862, 8.507059e+37
        %v6864 = vand.u32 %v6767, 2147483648
        %v6865 = vor.u32 1.1754944e-38, %v6864
        %v6866 = vsel %vm6863, %v6865, %v6861
        %v6867 = vmul.f32 %v6579, %v6866
        %v6868 = vrcp.pop %v6768
        %v6869 = vmul.f32 %v6768, %v6868
        %v6870 = vsub.f32 1.0, %v6869
        %v6871 = vmul.f32 %v6868, %v6870
        %v6872 = vadd.f32 %v6868, %v6871
        %vm6873 = vweird.f32 %v6768
        %vm6874 = vweird.f32 %v6868
        %vm6875 = vmor %vm6873, %vm6874
        %v6876 = vsel %vm6875, %v6868, %v6872
        %v6877 = vand.u32 2147483647, %v6768
        %vm6878 = vcmp.eq.f32.partialorder %v6877, 8.507059e+37
        %v6879 = vand.u32 %v6768, 2147483648
        %v6880 = vor.u32 1.1754944e-38, %v6879
        %v6881 = vsel %vm6878, %v6880, %v6876
        %v6882 = vmul.f32 %v6586, %v6881
        %v6883 = vrcp.pop %v6769
        %v6884 = vmul.f32 %v6769, %v6883
        %v6885 = vsub.f32 1.0, %v6884
        %v6886 = vmul.f32 %v6883, %v6885
        %v6887 = vadd.f32 %v6883, %v6886
        %vm6888 = vweird.f32 %v6769
        %vm6889 = vweird.f32 %v6883
        %vm6890 = vmor %vm6888, %vm6889
        %v6891 = vsel %vm6890, %v6883, %v6887
        %v6892 = vand.u32 2147483647, %v6769
        %vm6893 = vcmp.eq.f32.partialorder %v6892, 8.507059e+37
        %v6894 = vand.u32 %v6769, 2147483648
        %v6895 = vor.u32 1.1754944e-38, %v6894
        %v6896 = vsel %vm6893, %v6895, %v6891
        %v6897 = vmul.f32 %v6593, %v6896
        %v6898 = vrcp.pop %v6770
        %v6899 = vmul.f32 %v6770, %v6898
        %v6900 = vsub.f32 1.0, %v6899
        %v6901 = vmul.f32 %v6898, %v6900
        %v6902 = vadd.f32 %v6898, %v6901
        %vm6903 = vweird.f32 %v6770
        %vm6904 = vweird.f32 %v6898
        %vm6905 = vmor %vm6903, %vm6904
        %v6906 = vsel %vm6905, %v6898, %v6902
        %v6907 = vand.u32 2147483647, %v6770
        %vm6908 = vcmp.eq.f32.partialorder %v6907, 8.507059e+37
        %v6909 = vand.u32 %v6770, 2147483648
        %v6910 = vor.u32 1.1754944e-38, %v6909
        %v6911 = vsel %vm6908, %v6910, %v6906
        %v6912 = vmul.f32 %v6600, %v6911
        %v6913 = vrcp.pop %v6771
        %v6914 = vmul.f32 %v6771, %v6913
        %v6915 = vsub.f32 1.0, %v6914
        %v6916 = vmul.f32 %v6913, %v6915
        %v6917 = vadd.f32 %v6913, %v6916
        %vm6918 = vweird.f32 %v6771
        %vm6919 = vweird.f32 %v6913
        %vm6920 = vmor %vm6918, %vm6919
        %v6921 = vsel %vm6920, %v6913, %v6917
        %v6922 = vand.u32 2147483647, %v6771
        %vm6923 = vcmp.eq.f32.partialorder %v6922, 8.507059e+37
        %v6924 = vand.u32 %v6771, 2147483648
        %v6925 = vor.u32 1.1754944e-38, %v6924
        %v6926 = vsel %vm6923, %v6925, %v6921
        %v6927 = vmul.f32 %v6607, %v6926
        %v6928 = vrcp.pop %v6772
        %v6929 = vmul.f32 %v6772, %v6928
        %v6930 = vsub.f32 1.0, %v6929
        %v6931 = vmul.f32 %v6928, %v6930
        %v6932 = vadd.f32 %v6928, %v6931
        %vm6933 = vweird.f32 %v6772
        %vm6934 = vweird.f32 %v6928
        %vm6935 = vmor %vm6933, %vm6934
        %v6936 = vsel %vm6935, %v6928, %v6932
        %v6937 = vand.u32 2147483647, %v6772
        %vm6938 = vcmp.eq.f32.partialorder %v6937, 8.507059e+37
        %v6939 = vand.u32 %v6772, 2147483648
        %v6940 = vor.u32 1.1754944e-38, %v6939
        %v6941 = vsel %vm6938, %v6940, %v6936
        %v6942 = vmul.f32 %v6614, %v6941
        %v6943 = vrcp.pop %v6773
        %v6944 = vmul.f32 %v6773, %v6943
        %v6945 = vsub.f32 1.0, %v6944
        %v6946 = vmul.f32 %v6943, %v6945
        %v6947 = vadd.f32 %v6943, %v6946
        %vm6948 = vweird.f32 %v6773
        %vm6949 = vweird.f32 %v6943
        %vm6950 = vmor %vm6948, %vm6949
        %v6951 = vsel %vm6950, %v6943, %v6947
        %v6952 = vand.u32 2147483647, %v6773
        %vm6953 = vcmp.eq.f32.partialorder %v6952, 8.507059e+37
        %v6954 = vand.u32 %v6773, 2147483648
        %v6955 = vor.u32 1.1754944e-38, %v6954
        %v6956 = vsel %vm6953, %v6955, %v6951
        %v6957 = vmul.f32 %v6621, %v6956
        %v6958 = vrcp.pop %v6774
        %v6959 = vmul.f32 %v6774, %v6958
        %v6960 = vsub.f32 1.0, %v6959
        %v6961 = vmul.f32 %v6958, %v6960
        %v6962 = vadd.f32 %v6958, %v6961
        %vm6963 = vweird.f32 %v6774
        %vm6964 = vweird.f32 %v6958
        %vm6965 = vmor %vm6963, %vm6964
        %v6966 = vsel %vm6965, %v6958, %v6962
        %v6967 = vand.u32 2147483647, %v6774
        %vm6968 = vcmp.eq.f32.partialorder %v6967, 8.507059e+37
        %v6969 = vand.u32 %v6774, 2147483648
        %v6970 = vor.u32 1.1754944e-38, %v6969
        %v6971 = vsel %vm6968, %v6970, %v6966
        %v6972 = vmul.f32 %v6628, %v6971
        %v6973 = vrcp.pop %v6775
        %v6974 = vmul.f32 %v6775, %v6973
        %v6975 = vsub.f32 1.0, %v6974
        %v6976 = vmul.f32 %v6973, %v6975
        %v6977 = vadd.f32 %v6973, %v6976
        %vm6978 = vweird.f32 %v6775
        %vm6979 = vweird.f32 %v6973
        %vm6980 = vmor %vm6978, %vm6979
        %v6981 = vsel %vm6980, %v6973, %v6977
        %v6982 = vand.u32 2147483647, %v6775
        %vm6983 = vcmp.eq.f32.partialorder %v6982, 8.507059e+37
        %v6984 = vand.u32 %v6775, 2147483648
        %v6985 = vor.u32 1.1754944e-38, %v6984
        %v6986 = vsel %vm6983, %v6985, %v6981
        %v6987 = vmul.f32 %v6635, %v6986
        %v6988 = vrcp.pop %v6776
        %v6989 = vmul.f32 %v6776, %v6988
        %v6990 = vsub.f32 1.0, %v6989
        %v6991 = vmul.f32 %v6988, %v6990
        %v6992 = vadd.f32 %v6988, %v6991
        %vm6993 = vweird.f32 %v6776
        %vm6994 = vweird.f32 %v6988
        %vm6995 = vmor %vm6993, %vm6994
        %v6996 = vsel %vm6995, %v6988, %v6992
        %v6997 = vand.u32 2147483647, %v6776
        %vm6998 = vcmp.eq.f32.partialorder %v6997, 8.507059e+37
        %v6999 = vand.u32 %v6776, 2147483648
        %v7000 = vor.u32 1.1754944e-38, %v6999
        %v7001 = vsel %vm6998, %v7000, %v6996
        %v7002 = vmul.f32 %v6642, %v7001
        %v7003 = vrcp.pop %v6777
        %v7004 = vmul.f32 %v6777, %v7003
        %v7005 = vsub.f32 1.0, %v7004
        %v7006 = vmul.f32 %v7003, %v7005
        %v7007 = vadd.f32 %v7003, %v7006
        %vm7008 = vweird.f32 %v6777
        %vm7009 = vweird.f32 %v7003
        %vm7010 = vmor %vm7008, %vm7009
        %v7011 = vsel %vm7010, %v7003, %v7007
        %v7012 = vand.u32 2147483647, %v6777
        %vm7013 = vcmp.eq.f32.partialorder %v7012, 8.507059e+37
        %v7014 = vand.u32 %v6777, 2147483648
        %v7015 = vor.u32 1.1754944e-38, %v7014
        %v7016 = vsel %vm7013, %v7015, %v7011
        %v7017 = vmul.f32 %v6649, %v7016
        %v7034 = vsel %vm2902, %v6807, %v6792
        %v7035 = vsel %vm2904, %v6822, %v7034
        %v7036 = vsel %vm2906, %v6837, %v7035
        %v7037 = vsel %vm2908, %v6852, %v7036
        %v7038 = vsel %vm2910, %v6867, %v7037
        %v7039 = vsel %vm2912, %v6882, %v7038
        %v7040 = vsel %vm2914, %v6897, %v7039
        %v7041 = vsel %vm2902, %v6927, %v6912
        %v7042 = vsel %vm2904, %v6942, %v7041
        %v7043 = vsel %vm2906, %v6957, %v7042
        %v7044 = vsel %vm2908, %v6972, %v7043
        %v7045 = vsel %vm2910, %v6987, %v7044
        %v7046 = vsel %vm2912, %v7002, %v7045
        %v7047 = vsel %vm2914, %v7017, %v7046
        %v7050 = vadd.f32 %v5519, %v7040
        %v7051 = vadd.f32 %v5521, %v7047
        %s7052 = scalar_lea.vmem %s11, 4
        %v7053 = vld [vmem:[%s7052] sm:$0x1]
        %v7054 = vmul.f32 %v1108, %v7053
        %v7056 = vperm.slane %v7054, 0
        %v7058 = vmul.f32 %v7050, %v7056
        %v7059 = vmul.f32 %v7051, %v7056
        %s7060 = scalar_lea.vmem %s11, 5
        %v7061 = vld [vmem:[%s7060] sm:$0x1]
        %v7063 = vperm.slane %v7061, 0
        %v7065 = vadd.f32 %v7058, %v7063
        %v7066 = vadd.f32 %v7059, %v7063
        %v7067 = vmax.f32 %v7065, 0.0
        %v7068 = vmax.f32 %v7066, 0.0
        %v7069 = vpack.c.bf16 %v7068, %v7067
        %s7070 = scalar_lea.vmem [#allocation17], 128
        %v7071 = vld [vmem:[%s7070] sm:$0xf]
        %v7072 = vld [vmem:[%s7070 + $0x4] sm:$0xf]
        %v7073 = vld [vmem:[%s7070 + $0x8] sm:$0xf]
        %v7074 = vld [vmem:[%s7070 + $0xc] sm:$0xf]
        %v7075 = vld [vmem:[%s7070 + $0x10] sm:$0xf]
        %v7076 = vld [vmem:[%s7070 + $0x14] sm:$0xf]
        %v7077 = vld [vmem:[%s7070 + $0x18] sm:$0xf]
        %v7078 = vld [vmem:[%s7070 + $0x1c] sm:$0xf]
        %v7079 = vld [vmem:[%s7070 + $0x20] sm:$0xf]
        %v7080 = vld [vmem:[%s7070 + $0x24] sm:$0xf]
        %v7081 = vld [vmem:[%s7070 + $0x28] sm:$0xf]
        %v7082 = vld [vmem:[%s7070 + $0x2c] sm:$0xf]
        %v7083 = vld [vmem:[%s7070 + $0x30] sm:$0xf]
        %v7084 = vld [vmem:[%s7070 + $0x34] sm:$0xf]
        %v7085 = vld [vmem:[%s7070 + $0x38] sm:$0xf]
        %v7086 = vld [vmem:[%s7070 + $0x3c] sm:$0xf]
        %v7103 = vunpack.c.l.b16 %v7071
        %v7104 = vunpack.c.l.b16 %v7072
        %v7105 = vunpack.c.l.b16 %v7073
        %v7106 = vunpack.c.l.b16 %v7074
        %v7107 = vunpack.c.l.b16 %v7075
        %v7108 = vunpack.c.l.b16 %v7076
        %v7109 = vunpack.c.l.b16 %v7077
        %v7110 = vunpack.c.l.b16 %v7078
        %v7111 = vunpack.c.l.b16 %v7079
        %v7112 = vunpack.c.l.b16 %v7080
        %v7113 = vunpack.c.l.b16 %v7081
        %v7114 = vunpack.c.l.b16 %v7082
        %v7115 = vunpack.c.l.b16 %v7083
        %v7116 = vunpack.c.l.b16 %v7084
        %v7117 = vunpack.c.l.b16 %v7085
        %v7118 = vunpack.c.l.b16 %v7086
        %v7119 = vpack.c.b16 %v7104, %v7103
        %v7120 = vpack.c.b16 %v7106, %v7105
        %v7121 = vpack.c.b16 %v7108, %v7107
        %v7122 = vpack.c.b16 %v7110, %v7109
        %v7123 = vpack.c.b16 %v7112, %v7111
        %v7124 = vpack.c.b16 %v7114, %v7113
        %v7125 = vpack.c.b16 %v7116, %v7115
        %v7126 = vpack.c.b16 %v7118, %v7117
        %7135 = vmatpush.bf16.msra.mxu0 %v7126
        %7136 = vmatpush.bf16.msra.mxu0 %v7125
        %7137 = vmatpush.bf16.msra.mxu0 %v7124
        %7138 = vmatpush.bf16.msra.mxu0 %v7123
        %7139 = vmatpush.bf16.msra.mxu0 %v7122
        %7140 = vmatpush.bf16.msra.mxu0 %v7121
        %7141 = vmatpush.bf16.msra.mxu0 %v7120
        %7142 = vmatpush.bf16.msra.mxu0 %v7119
        %7143 = vmatmul.bf16.gmra.mxu0 %v7069
        %v7144 = vpop.f32.mrf.mxu0
        %v7145 = vadd.f32 %v5575, %v7144
        %v7146 = vpop.f32.mrf.mxu0
        %v7147 = vadd.f32 %v5577, %v7146
        %7148 = vdwg.mxu0
        %v7149 = vxor.u32 %v7145, 2147483648
        %v7150 = vxor.u32 %v7147, 2147483648
        %v7151 = vmul.f32 %v7149, 1.442695
        %v7152 = vpow.pop %v7151
        %v7153 = vmul.f32 %v7150, 1.442695
        %v7154 = vpow.pop %v7153
        %v7155 = vadd.f32 %v7152, 1.0
        %v7156 = vadd.f32 %v7154, 1.0
        %v7157 = vrcp.pop %v7155
        %v7158 = vmul.f32 %v7155, %v7157
        %v7159 = vsub.f32 1.0, %v7158
        %v7160 = vmul.f32 %v7157, %v7159
        %v7161 = vadd.f32 %v7157, %v7160
        %vm7162 = vweird.f32 %v7155
        %vm7163 = vweird.f32 %v7157
        %vm7164 = vmor %vm7162, %vm7163
        %v7165 = vsel %vm7164, %v7157, %v7161
        %v7166 = vand.u32 2147483647, %v7155
        %vm7167 = vcmp.eq.f32.partialorder %v7166, 8.507059e+37
        %v7168 = vand.u32 %v7155, 2147483648
        %v7169 = vor.u32 1.1754944e-38, %v7168
        %v7170 = vsel %vm7167, %v7169, %v7165
        %v7171 = vmul.f32 1.0, %v7170
        %v7172 = vrcp.pop %v7156
        %v7173 = vmul.f32 %v7156, %v7172
        %v7174 = vsub.f32 1.0, %v7173
        %v7175 = vmul.f32 %v7172, %v7174
        %v7176 = vadd.f32 %v7172, %v7175
        %vm7177 = vweird.f32 %v7156
        %vm7178 = vweird.f32 %v7172
        %vm7179 = vmor %vm7177, %vm7178
        %v7180 = vsel %vm7179, %v7172, %v7176
        %v7181 = vand.u32 2147483647, %v7156
        %vm7182 = vcmp.eq.f32.partialorder %v7181, 8.507059e+37
        %v7183 = vand.u32 %v7156, 2147483648
        %v7184 = vor.u32 1.1754944e-38, %v7183
        %v7185 = vsel %vm7182, %v7184, %v7180
        %v7186 = vmul.f32 1.0, %v7185
        %v7187 = vmul.f32 %v7171, %v7067
        %v7188 = vmul.f32 %v7186, %v7068
        %v7189 = vsub.f32 1.0, %v7171
        %v7190 = vsub.f32 1.0, %v7186
        %v7191 = vmul.f32 %v7189, %v5236
        %v7192 = vmul.f32 %v7190, %v5237
        %v7193 = vadd.f32 %v7187, %v7191
        %v7194 = vadd.f32 %v7188, %v7192
        %v7195 = vpack.c.bf16 %v7194, %v7193
        %v7196 = vld [vmem:[%s14] sm:$0xf]
        %v7197 = vld [vmem:[%s14 + $0x4] sm:$0xf]
        %v7198 = vld [vmem:[%s14 + $0x8] sm:$0xf]
        %v7199 = vld [vmem:[%s14 + $0xc] sm:$0xf]
        %v7200 = vld [vmem:[%s14 + $0x10] sm:$0xf]
        %v7201 = vld [vmem:[%s14 + $0x14] sm:$0xf]
        %v7202 = vld [vmem:[%s14 + $0x18] sm:$0xf]
        %v7203 = vld [vmem:[%s14 + $0x1c] sm:$0xf]
        %v7204 = vld [vmem:[%s14 + $0x20] sm:$0xf]
        %v7205 = vld [vmem:[%s14 + $0x24] sm:$0xf]
        %v7206 = vld [vmem:[%s14 + $0x28] sm:$0xf]
        %v7207 = vld [vmem:[%s14 + $0x2c] sm:$0xf]
        %v7208 = vld [vmem:[%s14 + $0x30] sm:$0xf]
        %v7209 = vld [vmem:[%s14 + $0x34] sm:$0xf]
        %v7210 = vld [vmem:[%s14 + $0x38] sm:$0xf]
        %v7211 = vld [vmem:[%s14 + $0x3c] sm:$0xf]
        %v7228 = vunpack.c.l.b16 %v7196
        %v7229 = vunpack.c.l.b16 %v7197
        %v7230 = vunpack.c.l.b16 %v7198
        %v7231 = vunpack.c.l.b16 %v7199
        %v7232 = vunpack.c.l.b16 %v7200
        %v7233 = vunpack.c.l.b16 %v7201
        %v7234 = vunpack.c.l.b16 %v7202
        %v7235 = vunpack.c.l.b16 %v7203
        %v7236 = vunpack.c.l.b16 %v7204
        %v7237 = vunpack.c.l.b16 %v7205
        %v7238 = vunpack.c.l.b16 %v7206
        %v7239 = vunpack.c.l.b16 %v7207
        %v7240 = vunpack.c.l.b16 %v7208
        %v7241 = vunpack.c.l.b16 %v7209
        %v7242 = vunpack.c.l.b16 %v7210
        %v7243 = vunpack.c.l.b16 %v7211
        %v7244 = vpack.c.b16 %v7229, %v7228
        %v7245 = vpack.c.b16 %v7231, %v7230
        %v7246 = vpack.c.b16 %v7233, %v7232
        %v7247 = vpack.c.b16 %v7235, %v7234
        %v7248 = vpack.c.b16 %v7237, %v7236
        %v7249 = vpack.c.b16 %v7239, %v7238
        %v7250 = vpack.c.b16 %v7241, %v7240
        %v7251 = vpack.c.b16 %v7243, %v7242
        %7260 = vmatpush.bf16.msra.mxu0 %v7251
        %7261 = vmatpush.bf16.msra.mxu0 %v7250
        %7262 = vmatpush.bf16.msra.mxu0 %v7249
        %7263 = vmatpush.bf16.msra.mxu0 %v7248
        %7264 = vmatpush.bf16.msra.mxu0 %v7247
        %7265 = vmatpush.bf16.msra.mxu0 %v7246
        %7266 = vmatpush.bf16.msra.mxu0 %v7245
        %7267 = vmatpush.bf16.msra.mxu0 %v7244
        %7268 = vmatmul.bf16.gmra.mxu0 %v7195
        %v7269 = vpop.f32.mrf.mxu0
        %v7270 = vadd.f32 0.0, %v7269
        %v7271 = vpop.f32.mrf.mxu0
        %v7272 = vadd.f32 0.0, %v7271
        %7273 = vdwg.mxu0
        %v7274 = vadd.f32 %v7270, %v7272
        %v7275 = vrot.slane %v7274, 4
        %v7276 = vadd.f32 %v7274, %v7275
        %v7277 = vrot.slane %v7276, 2
        %v7278 = vadd.f32 %v7276, %v7277
        %v7279 = vrot.slane %v7278, 1
        %v7280 = vadd.f32 %v7278, %v7279
        %v7281 = vrcp.pop 16.0
        %v7282 = vmul.f32 16.0, %v7281
        %v7283 = vsub.f32 1.0, %v7282
        %v7284 = vmul.f32 %v7281, %v7283
        %v7285 = vadd.f32 %v7281, %v7284
        %vm7286 = vweird.f32 %v7281
        %v7287 = vsel %vm7286, %v7281, %v7285
        %v7288 = vmul.f32 %v7280, %v7287
        %v7289 = vld [vmem:[%s15] sm:$0xff]
        %v7290 = vld [vmem:[%s15 + $0x8] sm:$0xff]
        %v7291 = vld [vmem:[%s15 + $0x10] sm:$0xff]
        %v7292 = vld [vmem:[%s15 + $0x18] sm:$0xff]
        %v7293 = vld [vmem:[%s15 + $0x20] sm:$0xff]
        %v7294 = vld [vmem:[%s15 + $0x28] sm:$0xff]
        %v7295 = vld [vmem:[%s15 + $0x30] sm:$0xff]
        %v7296 = vld [vmem:[%s15 + $0x38] sm:$0xff]
        %v7297 = vld [vmem:[%s15 + $0x40] sm:$0xff]
        %v7298 = vld [vmem:[%s15 + $0x48] sm:$0xff]
        %v7299 = vld [vmem:[%s15 + $0x50] sm:$0xff]
        %v7300 = vld [vmem:[%s15 + $0x58] sm:$0xff]
        %v7301 = vld [vmem:[%s15 + $0x60] sm:$0xff]
        %v7302 = vld [vmem:[%s15 + $0x68] sm:$0xff]
        %v7303 = vld [vmem:[%s15 + $0x70] sm:$0xff]
        %v7304 = vld [vmem:[%s15 + $0x78] sm:$0xff]
        %v7305 = vld [vmem:[%s16] sm:$0x1]
        %7306 = vmatpush.msra.mxu0 %v7304
        %7307 = vmatpush.msra.mxu0 %v7303
        %7308 = vmatpush.msra.mxu0 %v7302
        %7309 = vmatpush.msra.mxu0 %v7301
        %7310 = vmatpush.msra.mxu0 %v7300
        %7311 = vmatpush.msra.mxu0 %v7299
        %7312 = vmatpush.msra.mxu0 %v7298
        %7313 = vmatpush.msra.mxu0 %v7297
        %7314 = vmatpush.msra.mxu0 %v7296
        %7315 = vmatpush.msra.mxu0 %v7295
        %7316 = vmatpush.msra.mxu0 %v7294
        %7317 = vmatpush.msra.mxu0 %v7293
        %7318 = vmatpush.msra.mxu0 %v7292
        %7319 = vmatpush.msra.mxu0 %v7291
        %7320 = vmatpush.msra.mxu0 %v7290
        %7321 = vmatpush.msra.mxu0 %v7289
        %7322 = vmatmul.f32.gmra.mxu0 %v7288
        %v7323 = vpop.f32.mrf.mxu0
        %v7324 = vadd.f32 %v7305, %v7323
        %7325 = vdwg.mxu0
        %vm7326 = vcmask 24576
        %7327 = vst.msk [vmem:[%s790] sm:$0x1] %vm7326, %v7324
        %s7328 = sand.u32 %s433, 1
        %s7329 = scalar_lea.sflag [#allocation4], %s7328
        %s7330 = sand.u32 %s433, 1
        %s7331 = scalar_lea.vmem [#allocation19], %s7330
        // Predicated region
        $region129: #{tpu_custom_call.1} parent=87 // pred_check
          %p7332 = pneg %p443
        $region130: #{tpu_custom_call.1} parent=87 // pred_check_branch
          %7334 = sbr.rel (%p7332) target = $region132
        $region131: #{tpu_custom_call.1} parent=87 // pred_region
          %7336 = vsyncadd %s7329, 0
          %s7337 = scalar_lea.hbm %s17, %s43
          %s7339 = sshll.u32 %s7331, 4
          %s7340 = int_to_ptr.vmem [resolvable:$true] %s7339
          %s7341 = sshll.u32 %s7337, 4
          %s7342 = int_to_ptr.hbm [resolvable:$true] %s7341
          %7344 = dma.vmem_to_hbm [thread:$0]  %s7340, 16, %s7342, %s7329
        $region132: #{tpu_custom_call.1} parent=87 // pred_fallthru
          _
      $region88: #{tpu_custom_call.1} parent=5 // pred_fallthru
        _
      %p7345 = scmp.le.s32.totalorder 2, %s38
      // Predicated region
      $region133: #{tpu_custom_call.1} parent=5 // pred_check
        %p7346 = pneg %p7345
      $region134: #{tpu_custom_call.1} parent=5 // pred_check_branch
        %7348 = sbr.rel (%p7346) target = $region136
      $region135: #{tpu_custom_call.1} parent=5 // pred_region
        %s7349 = ssub.s32 %s38, 2
        // Predicated region
        $region137: #{tpu_custom_call.1} parent=135 // pred_check
          %p7350 = pneg %p449
        $region138: #{tpu_custom_call.1} parent=135 // pred_check_branch
          %7352 = sbr.rel (%p7350) target = $region140
        $region139: #{tpu_custom_call.1} parent=135 // pred_region
          %s7353 = sand.u32 %s434, 1
          %s7354 = scalar_lea.sflag [#allocation4], %s7353
          %s7355 = sand.u32 %s434, 1
          %s7356 = scalar_lea.vmem [#allocation19], %s7355
          %7358 = dma.done %s7354, 16
        $region140: #{tpu_custom_call.1} parent=135 // pred_fallthru
          _
      $region136: #{tpu_custom_call.1} parent=5 // pred_fallthru
        _
    $region6: #{tpu_custom_call.1} parent=1 // loop_footer
      %s42 = sadd.s32 1, %s38
    $region7: #{tpu_custom_call.1} parent=1 // loop_footer_branch
      %37 = sbr.rel target = $region3
    $region8: #{tpu_custom_call.1} parent=1 // loop_exit
      _
    %7359 = vsyncpa [#allocation3], 1
    %s7360 = scalar_lea.sflag [#allocation3], 1
    %7361 = vsyncpa %s7360, 1
    %7362 = vsyncpa [#allocation6], 1
    %s7363 = scalar_lea.sflag [#allocation6], 1
    %7364 = vsyncpa %s7363, 1
    %7365 = vsyncpa [#allocation9], 1
    %s7366 = scalar_lea.sflag [#allocation9], 1
    %7367 = vsyncpa %s7366, 1
    %7368 = vsyncpa [#allocation12], 1
    %7369 = vsyncpa [#allocation15], 1
    %7370 = vsyncpa [#allocation18], 1
    %7371 = vsyncpa [#allocation4], 1
    %s7372 = scalar_lea.sflag [#allocation4], 1
    %7373 = vsyncpa %s7372, 1

</llo_original>
